<compile_context>
chip_gen: v7x
topology: tpu7x:2x2x1
jax: 0.10.0
libtpu: 0.0.40
codegen_flags: <defaults>
</compile_context>

<pallas_src>
import functools
import math

import jax
import jax.numpy as jnp
from jax.experimental import pallas as pl
from jax.experimental.pallas import tpu as pltpu


# ----------------------------------------------------------------------------
# in-kernel math helpers (all guaranteed-lowering elementwise / reduce ops)
# ----------------------------------------------------------------------------
def _layernorm(x, g, b):
    mean = jnp.mean(x, axis=-1, keepdims=True)
    var = jnp.mean((x - mean) ** 2, axis=-1, keepdims=True)
    return (x - mean) * jax.lax.rsqrt(var + 1e-5) * g + b


def _softmax_lastdim(logits):
    m = jnp.max(logits, axis=-1, keepdims=True)
    p = jnp.exp(logits - m)
    return p / jnp.sum(p, axis=-1, keepdims=True)      # exact normalisation


def _erf(z):
    # Abramowitz & Stegun 7.1.26, |abs err| <= 1.5e-7 — matches exact erf to
    # ~f32 precision using only exp/abs/where (all lower on Mosaic TPU).
    a1, a2, a3, a4, a5 = 0.254829592, -0.284496736, 1.421413741, -1.453152027, 1.061405429
    pp = 0.3275911
    za = jnp.abs(z)
    t = 1.0 / (1.0 + pp * za)
    poly = ((((a5 * t + a4) * t + a3) * t + a2) * t + a1) * t
    y = 1.0 - poly * jnp.exp(-za * za)
    return jnp.where(z >= 0.0, y, -y)


def _gelu(x):
    # PyTorch nn.GELU default (exact erf formulation).
    return 0.5 * x * (1.0 + _erf(x * 0.7071067811865476))


# ----------------------------------------------------------------------------
# The mega-kernel: entire EnhancedMathReasoner forward for one batch element.
# grid = (B,), "parallel" (megacore granule on v7x; serial loop on v5e/v6e).
# ----------------------------------------------------------------------------
def _mega_kernel(x_ref,
                 ln1g_ref, ln1b_ref, wqkv_ref, bqkv_ref, wo_ref, bo_ref,
                 ln2g_ref, ln2b_ref, wf1_ref, bf1_ref, wf2_ref, bf2_ref,
                 wg_ref, bg_ref, we1_ref, be1_ref, we2_ref, be2_ref,
                 wr_ref, brt_ref, wpath_ref, bpath_ref,
                 wi_ref, bi_ref,
                 o_ref, probs_ref, *, n_head):
    T, H = x_ref.shape[1], x_ref.shape[2]
    Dh = H // n_head
    scale = 1.0 / math.sqrt(Dh)
    E = we1_ref.shape[0]
    P = wpath_ref.shape[0]

    x = x_ref[0].astype(jnp.float32)                                   # (T, H)

    # ---- transformer branch (pre-LN block): used for symbolic (0) / advanced (1)
    def transformer_branch(br):
        h = _layernorm(x, ln1g_ref[br], ln1b_ref[br])
        # fused QKV: ONE (T,H)@(H,3H) matmul instead of 3*n_head tiny dots
        qkv = jnp.dot(h, wqkv_ref[br], preferred_element_type=jnp.float32) + bqkv_ref[br]
        heads = []
        for hh in range(n_head):                                       # static head loop
            q = qkv[:, hh * Dh:(hh + 1) * Dh]
            k = qkv[:, H + hh * Dh:H + (hh + 1) * Dh]
            v = qkv[:, 2 * H + hh * Dh:2 * H + (hh + 1) * Dh]
            s = jax.lax.dot_general(q, k, (((1,), (1,)), ((), ())),
                                    preferred_element_type=jnp.float32) * scale   # (T, T)
            # TODO(synk): attention_mask application is unspecified in the
            # reference sub-modules; mask is accepted but not applied.
            heads.append(jnp.dot(_softmax_lastdim(s), v,
                                 preferred_element_type=jnp.float32))  # (T, Dh)
        att = jnp.concatenate(heads, axis=-1)                          # (T, H)
        # fused head merge: ONE (T,H)@(H,H) matmul
        r1 = x + jnp.dot(att, wo_ref[br], preferred_element_type=jnp.float32) + bo_ref[br]
        h2 = _layernorm(r1, ln2g_ref[br], ln2b_ref[br])
        f = _gelu(jnp.dot(h2, wf1_ref[br], preferred_element_type=jnp.float32) + bf1_ref[br])
        f = jnp.dot(f, wf2_ref[br], preferred_element_type=jnp.float32) + bf2_ref[br]
        return r1 + f

    symbolic_out = transformer_branch(0)
    advanced_out = transformer_branch(1)

    # ---- MoE branch: gate softmax + in-kernel expert loop, f32 accumulator
    gate = _softmax_lastdim(
        jnp.dot(x, wg_ref[...], preferred_element_type=jnp.float32) + bg_ref[...])   # (T, E)
    moe_out = jnp.zeros((T, H), jnp.float32)
    for e in range(E):                                                  # static expert loop
        he = _gelu(jnp.dot(x, we1_ref[e], preferred_element_type=jnp.float32) + be1_ref[e])
        ye = jnp.dot(he, we2_ref[e], preferred_element_type=jnp.float32) + be2_ref[e]
        moe_out = moe_out + ye * gate[:, e:e + 1]                       # static slice

    # ---- dynamic reasoning router: softmax router + in-kernel path loop
    probs = _softmax_lastdim(
        jnp.dot(x, wr_ref[...], preferred_element_type=jnp.float32) + brt_ref[...])  # (T, P)
    routed_out = jnp.zeros((T, H), jnp.float32)
    for j in range(P):                                                  # static path loop
        yj = _gelu(jnp.dot(x, wpath_ref[j], preferred_element_type=jnp.float32) + bpath_ref[j])
        routed_out = routed_out + yj * probs[:, j:j + 1]

    # ---- combine (0.2/0.2/0.2/0.4) + integration Linear — the ONLY HBM stores
    combined = (0.2 * symbolic_out + 0.2 * moe_out
                + 0.2 * routed_out + 0.4 * advanced_out)
    final = jnp.dot(combined, wi_ref[...], preferred_element_type=jnp.float32) + bi_ref[...]

    o_ref[0] = final.astype(o_ref.dtype)
    probs_ref[0] = probs.astype(probs_ref.dtype)


# ----------------------------------------------------------------------------
# wrapper
# ----------------------------------------------------------------------------
def _full_spec(arr):
    nd = arr.ndim
    return pl.BlockSpec(arr.shape, lambda b, _nd=nd: (0,) * _nd)


def enhanced_math_reasoner(x, params, n_head, reasoning_steps=None, attention_mask=None):
    B, T, H = x.shape
    tb = params["transformer"]
    moe = params["moe"]
    rt = params["router"]
    integ = params["integration"]
    P = rt["wp"].shape[0]

    flat = [
        tb["ln1_g"], tb["ln1_b"], tb["w_qkv"], tb["b_qkv"], tb["w_o"], tb["b_o"],
        tb["ln2_g"], tb["ln2_b"], tb["w_f1"], tb["b_f1"], tb["w_f2"], tb["b_f2"],
        moe["w_gate"], moe["b_gate"], moe["w1"], moe["b1"], moe["w2"], moe["b2"],
        rt["w_r"], rt["b_r"], rt["wp"], rt["bp"],
        integ["w"], integ["b"],
    ]

    in_specs = [pl.BlockSpec((1, T, H), lambda b: (b, 0, 0))] + [_full_spec(a) for a in flat]
    out_specs = [pl.BlockSpec((1, T, H), lambda b: (b, 0, 0)),
                 pl.BlockSpec((1, T, P), lambda b: (b, 0, 0))]

    final, probs = pl.pallas_call(
        functools.partial(_mega_kernel, n_head=n_head),
        out_shape=(jax.ShapeDtypeStruct((B, T, H), x.dtype),
                   jax.ShapeDtypeStruct((B, T, P), jnp.float32)),
        grid=(B,),
        in_specs=in_specs,
        out_specs=out_specs,
        compiler_params=pltpu.CompilerParams(dimension_semantics=("parallel",)),
    )(x, *flat)

    routing_info = {"routing_probs": probs}
    verification_info = {}
    # TODO(synk): FormalVerificationModule internals not provided; only the
    # reasoning_steps=None path (empty verification_info) is implemented.
    return final, {"routing_info": routing_info,
                   "verification_info": verification_info,
                   "advanced_reasoning_applied": True}


# ----------------------------------------------------------------------------
# parameter initialisation (deterministic, synthetic, kernel-ready layouts)
# ----------------------------------------------------------------------------
def _w(key, shape, scale=0.02):
    return jax.random.normal(key, shape, jnp.float32) * scale


def init_params(key, H, n_head, n_experts, n_paths):
    ks = jax.random.split(key, 6)

    # Two transformer blocks stacked on a leading dim: 0 = symbolic, 1 = advanced.
    tk = jax.random.split(ks[0], 8)
    transformer = dict(
        ln1_g=jnp.ones((2, 1, H), jnp.float32), ln1_b=jnp.zeros((2, 1, H), jnp.float32),
        ln2_g=jnp.ones((2, 1, H), jnp.float32), ln2_b=jnp.zeros((2, 1, H), jnp.float32),
        w_qkv=jnp.stack([_w(tk[0], (H, 3 * H)), _w(tk[1], (H, 3 * H))]),
        b_qkv=jnp.zeros((2, 1, 3 * H), jnp.float32),
        w_o=jnp.stack([_w(tk[2], (H, H)), _w(tk[3], (H, H))]),
        b_o=jnp.zeros((2, 1, H), jnp.float32),
        w_f1=jnp.stack([_w(tk[4], (H, 4 * H)), _w(tk[5], (H, 4 * H))]),
        b_f1=jnp.zeros((2, 1, 4 * H), jnp.float32),
        w_f2=jnp.stack([_w(tk[6], (4 * H, H)), _w(tk[7], (4 * H, H))]),
        b_f2=jnp.zeros((2, 1, H), jnp.float32),
    )

    ek = jax.random.split(ks[1], 2 * n_experts)
    moe = dict(
        w_gate=_w(ks[2], (H, n_experts)),
        b_gate=jnp.zeros((1, n_experts), jnp.float32),
        w1=jnp.stack([_w(ek[2 * e], (H, H)) for e in range(n_experts)]),
        b1=jnp.zeros((n_experts, 1, H), jnp.float32),
        w2=jnp.stack([_w(ek[2 * e + 1], (H, H)) for e in range(n_experts)]),
        b2=jnp.zeros((n_experts, 1, H), jnp.float32),
    )

    pk = jax.random.split(ks[3], n_paths)
    router = dict(
        w_r=_w(ks[4], (H, n_paths)),
        b_r=jnp.zeros((1, n_paths), jnp.float32),
        wp=jnp.stack([_w(pk[i], (H, H)) for i in range(n_paths)]),
        bp=jnp.zeros((n_paths, 1, H), jnp.float32),
    )

    integration = dict(w=_w(ks[5], (H, H)), b=jnp.zeros((1, H), jnp.float32))

    return dict(transformer=transformer, moe=moe, router=router, integration=integration)


# ----------------------------------------------------------------------------
if __name__ == "__main__":
    B, T, H = 2, 8, 32          # batch, seq, n_embd
    N_HEAD = 4
    N_EXPERTS = 4
    N_PATHS = 3

    key = jax.random.PRNGKey(0)
    k_x, k_p = jax.random.split(key)
    x = jax.random.normal(k_x, (B, T, H), jnp.float32)
    params = init_params(k_p, H, N_HEAD, N_EXPERTS, N_PATHS)

    out, info = enhanced_math_reasoner(x, params, N_HEAD)
    jax.block_until_ready(out)
    jax.block_until_ready(info["routing_info"]["routing_probs"])

    assert out.shape == (B, T, H) and out.dtype == jnp.float32
    assert info["routing_info"]["routing_probs"].shape == (B, T, N_PATHS)
    assert bool(jnp.all(jnp.isfinite(out)))
    print("KERNEL_OK")
</pallas_src>

<mosaic_0001>
module attributes {stable_mosaic.version = 11 : i64} {
  func.func @_mega_kernel(%arg0: i32, %arg1: memref<1x8x32xf32, #tpu.memory_space<vmem>>, %arg2: memref<2x1x32xf32, #tpu.memory_space<vmem>>, %arg3: memref<2x1x32xf32, #tpu.memory_space<vmem>>, %arg4: memref<2x32x96xf32, #tpu.memory_space<vmem>>, %arg5: memref<2x1x96xf32, #tpu.memory_space<vmem>>, %arg6: memref<2x32x32xf32, #tpu.memory_space<vmem>>, %arg7: memref<2x1x32xf32, #tpu.memory_space<vmem>>, %arg8: memref<2x1x32xf32, #tpu.memory_space<vmem>>, %arg9: memref<2x1x32xf32, #tpu.memory_space<vmem>>, %arg10: memref<2x32x128xf32, #tpu.memory_space<vmem>>, %arg11: memref<2x1x128xf32, #tpu.memory_space<vmem>>, %arg12: memref<2x128x32xf32, #tpu.memory_space<vmem>>, %arg13: memref<2x1x32xf32, #tpu.memory_space<vmem>>, %arg14: memref<32x4xf32, #tpu.memory_space<vmem>>, %arg15: memref<1x4xf32, #tpu.memory_space<vmem>>, %arg16: memref<4x32x32xf32, #tpu.memory_space<vmem>>, %arg17: memref<4x1x32xf32, #tpu.memory_space<vmem>>, %arg18: memref<4x32x32xf32, #tpu.memory_space<vmem>>, %arg19: memref<4x1x32xf32, #tpu.memory_space<vmem>>, %arg20: memref<32x3xf32, #tpu.memory_space<vmem>>, %arg21: memref<1x3xf32, #tpu.memory_space<vmem>>, %arg22: memref<3x32x32xf32, #tpu.memory_space<vmem>>, %arg23: memref<3x1x32xf32, #tpu.memory_space<vmem>>, %arg24: memref<32x32xf32, #tpu.memory_space<vmem>>, %arg25: memref<1x32xf32, #tpu.memory_space<vmem>>, %arg26: memref<1x8x32xf32, #tpu.memory_space<vmem>>, %arg27: memref<1x8x3xf32, #tpu.memory_space<vmem>>) attributes {dimension_semantics = [#tpu.dimension_semantics<parallel>], iteration_bounds = array<i64: 2>, scalar_prefetch = 0 : i64, scratch_operands = 0 : i64, tpu.core_type = #tpu.core_type<tc>, window_params = [{transform_indices = @transform_0, window_bounds = array<i64: 1, 8, 32>}, {pipeline_mode = #tpu.pipeline_mode<synchronous>, transform_indices = @transform_1, window_bounds = array<i64: 2, 1, 32>}, {pipeline_mode = #tpu.pipeline_mode<synchronous>, transform_indices = @transform_2, window_bounds = array<i64: 2, 1, 32>}, {pipeline_mode = #tpu.pipeline_mode<synchronous>, transform_indices = @transform_3, window_bounds = array<i64: 2, 32, 96>}, {pipeline_mode = #tpu.pipeline_mode<synchronous>, transform_indices = @transform_4, window_bounds = array<i64: 2, 1, 96>}, {pipeline_mode = #tpu.pipeline_mode<synchronous>, transform_indices = @transform_5, window_bounds = array<i64: 2, 32, 32>}, {pipeline_mode = #tpu.pipeline_mode<synchronous>, transform_indices = @transform_6, window_bounds = array<i64: 2, 1, 32>}, {pipeline_mode = #tpu.pipeline_mode<synchronous>, transform_indices = @transform_7, window_bounds = array<i64: 2, 1, 32>}, {pipeline_mode = #tpu.pipeline_mode<synchronous>, transform_indices = @transform_8, window_bounds = array<i64: 2, 1, 32>}, {pipeline_mode = #tpu.pipeline_mode<synchronous>, transform_indices = @transform_9, window_bounds = array<i64: 2, 32, 128>}, {pipeline_mode = #tpu.pipeline_mode<synchronous>, transform_indices = @transform_10, window_bounds = array<i64: 2, 1, 128>}, {pipeline_mode = #tpu.pipeline_mode<synchronous>, transform_indices = @transform_11, window_bounds = array<i64: 2, 128, 32>}, {pipeline_mode = #tpu.pipeline_mode<synchronous>, transform_indices = @transform_12, window_bounds = array<i64: 2, 1, 32>}, {pipeline_mode = #tpu.pipeline_mode<synchronous>, transform_indices = @transform_13, window_bounds = array<i64: 32, 4>}, {pipeline_mode = #tpu.pipeline_mode<synchronous>, transform_indices = @transform_14, window_bounds = array<i64: 1, 4>}, {pipeline_mode = #tpu.pipeline_mode<synchronous>, transform_indices = @transform_15, window_bounds = array<i64: 4, 32, 32>}, {pipeline_mode = #tpu.pipeline_mode<synchronous>, transform_indices = @transform_16, window_bounds = array<i64: 4, 1, 32>}, {pipeline_mode = #tpu.pipeline_mode<synchronous>, transform_indices = @transform_17, window_bounds = array<i64: 4, 32, 32>}, {pipeline_mode = #tpu.pipeline_mode<synchronous>, transform_indices = @transform_18, window_bounds = array<i64: 4, 1, 32>}, {pipeline_mode = #tpu.pipeline_mode<synchronous>, transform_indices = @transform_19, window_bounds = array<i64: 32, 3>}, {pipeline_mode = #tpu.pipeline_mode<synchronous>, transform_indices = @transform_20, window_bounds = array<i64: 1, 3>}, {pipeline_mode = #tpu.pipeline_mode<synchronous>, transform_indices = @transform_21, window_bounds = array<i64: 3, 32, 32>}, {pipeline_mode = #tpu.pipeline_mode<synchronous>, transform_indices = @transform_22, window_bounds = array<i64: 3, 1, 32>}, {pipeline_mode = #tpu.pipeline_mode<synchronous>, transform_indices = @transform_23, window_bounds = array<i64: 32, 32>}, {pipeline_mode = #tpu.pipeline_mode<synchronous>, transform_indices = @transform_24, window_bounds = array<i64: 1, 32>}, {transform_indices = @transform_25, window_bounds = array<i64: 1, 8, 32>}, {transform_indices = @transform_26, window_bounds = array<i64: 1, 8, 3>}]} {
    %c0 = arith.constant 0 : index
    %c0_0 = arith.constant 0 : index
    %c0_1 = arith.constant 0 : index
    %0 = vector.load %arg1[%c0, %c0_0, %c0_1] : memref<1x8x32xf32, #tpu.memory_space<vmem>>, vector<1x8x32xf32>
    %1 = vector.shape_cast %0 : vector<1x8x32xf32> to vector<8x32xf32>
    %c0_2 = arith.constant 0 : index
    %c0_3 = arith.constant 0 : index
    %c0_4 = arith.constant 0 : index
    %2 = vector.load %arg2[%c0_2, %c0_3, %c0_4] : memref<2x1x32xf32, #tpu.memory_space<vmem>>, vector<1x1x32xf32>
    %3 = vector.shape_cast %2 : vector<1x1x32xf32> to vector<1x32xf32>
    %c0_5 = arith.constant 0 : index
    %c0_6 = arith.constant 0 : index
    %c0_7 = arith.constant 0 : index
    %4 = vector.load %arg3[%c0_5, %c0_6, %c0_7] : memref<2x1x32xf32, #tpu.memory_space<vmem>>, vector<1x1x32xf32>
    %5 = vector.shape_cast %4 : vector<1x1x32xf32> to vector<1x32xf32>
    %cst = arith.constant dense<0.000000e+00> : vector<8xf32>
    %6 = vector.multi_reduction <add>, %1, %cst [1] : vector<8x32xf32> to vector<8xf32>
    %7 = vector.shape_cast %6 : vector<8xf32> to vector<8x1xf32>
    %cst_8 = arith.constant 3.200000e+01 : f32
    %8 = vector.broadcast %cst_8 : f32 to vector<8x1xf32>
    %9 = arith.divf %7, %8 : vector<8x1xf32>
    %10 = vector.broadcast %9 : vector<8x1xf32> to vector<8x32xf32>
    %11 = arith.subf %1, %10 : vector<8x32xf32>
    %12 = arith.mulf %11, %11 : vector<8x32xf32>
    %cst_9 = arith.constant dense<0.000000e+00> : vector<8xf32>
    %13 = vector.multi_reduction <add>, %12, %cst_9 [1] : vector<8x32xf32> to vector<8xf32>
    %14 = vector.shape_cast %13 : vector<8xf32> to vector<8x1xf32>
    %cst_10 = arith.constant 3.200000e+01 : f32
    %15 = vector.broadcast %cst_10 : f32 to vector<8x1xf32>
    %16 = arith.divf %14, %15 : vector<8x1xf32>
    %17 = vector.broadcast %9 : vector<8x1xf32> to vector<8x32xf32>
    %18 = arith.subf %1, %17 : vector<8x32xf32>
    %cst_11 = arith.constant 9.99999974E-6 : f32
    %19 = vector.broadcast %cst_11 : f32 to vector<8x1xf32>
    %20 = arith.addf %16, %19 : vector<8x1xf32>
    %21 = math.rsqrt %20 : vector<8x1xf32>
    %22 = vector.broadcast %21 : vector<8x1xf32> to vector<8x32xf32>
    %23 = arith.mulf %18, %22 : vector<8x32xf32>
    %24 = vector.broadcast %3 : vector<1x32xf32> to vector<8x32xf32>
    %25 = arith.mulf %23, %24 : vector<8x32xf32>
    %26 = vector.broadcast %5 : vector<1x32xf32> to vector<8x32xf32>
    %27 = arith.addf %25, %26 : vector<8x32xf32>
    %c0_12 = arith.constant 0 : index
    %c0_13 = arith.constant 0 : index
    %c0_14 = arith.constant 0 : index
    %28 = vector.load %arg4[%c0_12, %c0_13, %c0_14] : memref<2x32x96xf32, #tpu.memory_space<vmem>>, vector<1x32x96xf32>
    %29 = vector.shape_cast %28 : vector<1x32x96xf32> to vector<32x96xf32>
    %cst_15 = arith.constant dense<0.000000e+00> : vector<8x96xf32>
    %30 = tpu.matmul %27, %29, %cst_15 {dimension_numbers = #tpu.dot_dimension_numbers<[1], [0], [0], [1], [0, 0, 1, 1], [], []>} : vector<8x32xf32>, vector<32x96xf32>, vector<8x96xf32> -> vector<8x96xf32>
    %c0_16 = arith.constant 0 : index
    %c0_17 = arith.constant 0 : index
    %c0_18 = arith.constant 0 : index
    %31 = vector.load %arg5[%c0_16, %c0_17, %c0_18] : memref<2x1x96xf32, #tpu.memory_space<vmem>>, vector<1x1x96xf32>
    %32 = vector.shape_cast %31 : vector<1x1x96xf32> to vector<1x96xf32>
    %33 = vector.broadcast %32 : vector<1x96xf32> to vector<8x96xf32>
    %34 = arith.addf %30, %33 : vector<8x96xf32>
    %35 = vector.extract_strided_slice %34 {offsets = [0, 0], sizes = [8, 8], strides = [1, 1]} : vector<8x96xf32> to vector<8x8xf32>
    %36 = vector.extract_strided_slice %34 {offsets = [0, 32], sizes = [8, 8], strides = [1, 1]} : vector<8x96xf32> to vector<8x8xf32>
    %37 = vector.extract_strided_slice %34 {offsets = [0, 64], sizes = [8, 8], strides = [1, 1]} : vector<8x96xf32> to vector<8x8xf32>
    %cst_19 = arith.constant dense<0.000000e+00> : vector<8x8xf32>
    %38 = tpu.matmul %35, %36, %cst_19 {dimension_numbers = #tpu.dot_dimension_numbers<[1], [1], [0], [0], [0, 0, 1, 0], [], []>} : vector<8x8xf32>, vector<8x8xf32>, vector<8x8xf32> -> vector<8x8xf32>
    %cst_20 = arith.constant 0.353553385 : f32
    %39 = vector.broadcast %cst_20 : f32 to vector<8x8xf32>
    %40 = arith.mulf %38, %39 : vector<8x8xf32>
    %cst_21 = arith.constant dense<0xFF800000> : vector<8xf32>
    %41 = vector.multi_reduction <maximumf>, %40, %cst_21 [1] : vector<8x8xf32> to vector<8xf32>
    %42 = vector.shape_cast %41 : vector<8xf32> to vector<8x1xf32>
    %43 = vector.broadcast %42 : vector<8x1xf32> to vector<8x8xf32>
    %44 = arith.subf %40, %43 : vector<8x8xf32>
    %45 = math.exp %44 : vector<8x8xf32>
    %cst_22 = arith.constant dense<0.000000e+00> : vector<8xf32>
    %46 = vector.multi_reduction <add>, %45, %cst_22 [1] : vector<8x8xf32> to vector<8xf32>
    %47 = vector.shape_cast %46 : vector<8xf32> to vector<8x1xf32>
    %48 = vector.broadcast %47 : vector<8x1xf32> to vector<8x8xf32>
    %49 = arith.divf %45, %48 : vector<8x8xf32>
    %cst_23 = arith.constant dense<0.000000e+00> : vector<8x8xf32>
    %50 = tpu.matmul %49, %37, %cst_23 {dimension_numbers = #tpu.dot_dimension_numbers<[1], [0], [0], [1], [0, 0, 1, 1], [], []>} : vector<8x8xf32>, vector<8x8xf32>, vector<8x8xf32> -> vector<8x8xf32>
    %51 = vector.extract_strided_slice %34 {offsets = [0, 8], sizes = [8, 8], strides = [1, 1]} : vector<8x96xf32> to vector<8x8xf32>
    %52 = vector.extract_strided_slice %34 {offsets = [0, 40], sizes = [8, 8], strides = [1, 1]} : vector<8x96xf32> to vector<8x8xf32>
    %53 = vector.extract_strided_slice %34 {offsets = [0, 72], sizes = [8, 8], strides = [1, 1]} : vector<8x96xf32> to vector<8x8xf32>
    %cst_24 = arith.constant dense<0.000000e+00> : vector<8x8xf32>
    %54 = tpu.matmul %51, %52, %cst_24 {dimension_numbers = #tpu.dot_dimension_numbers<[1], [1], [0], [0], [0, 0, 1, 0], [], []>} : vector<8x8xf32>, vector<8x8xf32>, vector<8x8xf32> -> vector<8x8xf32>
    %cst_25 = arith.constant 0.353553385 : f32
    %55 = vector.broadcast %cst_25 : f32 to vector<8x8xf32>
    %56 = arith.mulf %54, %55 : vector<8x8xf32>
    %cst_26 = arith.constant dense<0xFF800000> : vector<8xf32>
    %57 = vector.multi_reduction <maximumf>, %56, %cst_26 [1] : vector<8x8xf32> to vector<8xf32>
    %58 = vector.shape_cast %57 : vector<8xf32> to vector<8x1xf32>
    %59 = vector.broadcast %58 : vector<8x1xf32> to vector<8x8xf32>
    %60 = arith.subf %56, %59 : vector<8x8xf32>
    %61 = math.exp %60 : vector<8x8xf32>
    %cst_27 = arith.constant dense<0.000000e+00> : vector<8xf32>
    %62 = vector.multi_reduction <add>, %61, %cst_27 [1] : vector<8x8xf32> to vector<8xf32>
    %63 = vector.shape_cast %62 : vector<8xf32> to vector<8x1xf32>
    %64 = vector.broadcast %63 : vector<8x1xf32> to vector<8x8xf32>
    %65 = arith.divf %61, %64 : vector<8x8xf32>
    %cst_28 = arith.constant dense<0.000000e+00> : vector<8x8xf32>
    %66 = tpu.matmul %65, %53, %cst_28 {dimension_numbers = #tpu.dot_dimension_numbers<[1], [0], [0], [1], [0, 0, 1, 1], [], []>} : vector<8x8xf32>, vector<8x8xf32>, vector<8x8xf32> -> vector<8x8xf32>
    %67 = vector.extract_strided_slice %34 {offsets = [0, 16], sizes = [8, 8], strides = [1, 1]} : vector<8x96xf32> to vector<8x8xf32>
    %68 = vector.extract_strided_slice %34 {offsets = [0, 48], sizes = [8, 8], strides = [1, 1]} : vector<8x96xf32> to vector<8x8xf32>
    %69 = vector.extract_strided_slice %34 {offsets = [0, 80], sizes = [8, 8], strides = [1, 1]} : vector<8x96xf32> to vector<8x8xf32>
    %cst_29 = arith.constant dense<0.000000e+00> : vector<8x8xf32>
    %70 = tpu.matmul %67, %68, %cst_29 {dimension_numbers = #tpu.dot_dimension_numbers<[1], [1], [0], [0], [0, 0, 1, 0], [], []>} : vector<8x8xf32>, vector<8x8xf32>, vector<8x8xf32> -> vector<8x8xf32>
    %cst_30 = arith.constant 0.353553385 : f32
    %71 = vector.broadcast %cst_30 : f32 to vector<8x8xf32>
    %72 = arith.mulf %70, %71 : vector<8x8xf32>
    %cst_31 = arith.constant dense<0xFF800000> : vector<8xf32>
    %73 = vector.multi_reduction <maximumf>, %72, %cst_31 [1] : vector<8x8xf32> to vector<8xf32>
    %74 = vector.shape_cast %73 : vector<8xf32> to vector<8x1xf32>
    %75 = vector.broadcast %74 : vector<8x1xf32> to vector<8x8xf32>
    %76 = arith.subf %72, %75 : vector<8x8xf32>
    %77 = math.exp %76 : vector<8x8xf32>
    %cst_32 = arith.constant dense<0.000000e+00> : vector<8xf32>
    %78 = vector.multi_reduction <add>, %77, %cst_32 [1] : vector<8x8xf32> to vector<8xf32>
    %79 = vector.shape_cast %78 : vector<8xf32> to vector<8x1xf32>
    %80 = vector.broadcast %79 : vector<8x1xf32> to vector<8x8xf32>
    %81 = arith.divf %77, %80 : vector<8x8xf32>
    %cst_33 = arith.constant dense<0.000000e+00> : vector<8x8xf32>
    %82 = tpu.matmul %81, %69, %cst_33 {dimension_numbers = #tpu.dot_dimension_numbers<[1], [0], [0], [1], [0, 0, 1, 1], [], []>} : vector<8x8xf32>, vector<8x8xf32>, vector<8x8xf32> -> vector<8x8xf32>
    %83 = vector.extract_strided_slice %34 {offsets = [0, 24], sizes = [8, 8], strides = [1, 1]} : vector<8x96xf32> to vector<8x8xf32>
    %84 = vector.extract_strided_slice %34 {offsets = [0, 56], sizes = [8, 8], strides = [1, 1]} : vector<8x96xf32> to vector<8x8xf32>
    %85 = vector.extract_strided_slice %34 {offsets = [0, 88], sizes = [8, 8], strides = [1, 1]} : vector<8x96xf32> to vector<8x8xf32>
    %cst_34 = arith.constant dense<0.000000e+00> : vector<8x8xf32>
    %86 = tpu.matmul %83, %84, %cst_34 {dimension_numbers = #tpu.dot_dimension_numbers<[1], [1], [0], [0], [0, 0, 1, 0], [], []>} : vector<8x8xf32>, vector<8x8xf32>, vector<8x8xf32> -> vector<8x8xf32>
    %cst_35 = arith.constant 0.353553385 : f32
    %87 = vector.broadcast %cst_35 : f32 to vector<8x8xf32>
    %88 = arith.mulf %86, %87 : vector<8x8xf32>
    %cst_36 = arith.constant dense<0xFF800000> : vector<8xf32>
    %89 = vector.multi_reduction <maximumf>, %88, %cst_36 [1] : vector<8x8xf32> to vector<8xf32>
    %90 = vector.shape_cast %89 : vector<8xf32> to vector<8x1xf32>
    %91 = vector.broadcast %90 : vector<8x1xf32> to vector<8x8xf32>
    %92 = arith.subf %88, %91 : vector<8x8xf32>
    %93 = math.exp %92 : vector<8x8xf32>
    %cst_37 = arith.constant dense<0.000000e+00> : vector<8xf32>
    %94 = vector.multi_reduction <add>, %93, %cst_37 [1] : vector<8x8xf32> to vector<8xf32>
    %95 = vector.shape_cast %94 : vector<8xf32> to vector<8x1xf32>
    %96 = vector.broadcast %95 : vector<8x1xf32> to vector<8x8xf32>
    %97 = arith.divf %93, %96 : vector<8x8xf32>
    %cst_38 = arith.constant dense<0.000000e+00> : vector<8x8xf32>
    %98 = tpu.matmul %97, %85, %cst_38 {dimension_numbers = #tpu.dot_dimension_numbers<[1], [0], [0], [1], [0, 0, 1, 1], [], []>} : vector<8x8xf32>, vector<8x8xf32>, vector<8x8xf32> -> vector<8x8xf32>
    %99 = tpu.concatenate %50, %66, %82, %98 in 1 : vector<8x8xf32>, vector<8x8xf32>, vector<8x8xf32>, vector<8x8xf32> -> vector<8x32xf32>
    %c0_39 = arith.constant 0 : index
    %c0_40 = arith.constant 0 : index
    %c0_41 = arith.constant 0 : index
    %100 = vector.load %arg6[%c0_39, %c0_40, %c0_41] : memref<2x32x32xf32, #tpu.memory_space<vmem>>, vector<1x32x32xf32>
    %101 = vector.shape_cast %100 : vector<1x32x32xf32> to vector<32x32xf32>
    %cst_42 = arith.constant dense<0.000000e+00> : vector<8x32xf32>
    %102 = tpu.matmul %99, %101, %cst_42 {dimension_numbers = #tpu.dot_dimension_numbers<[1], [0], [0], [1], [0, 0, 1, 1], [], []>} : vector<8x32xf32>, vector<32x32xf32>, vector<8x32xf32> -> vector<8x32xf32>
    %103 = arith.addf %1, %102 : vector<8x32xf32>
    %c0_43 = arith.constant 0 : index
    %c0_44 = arith.constant 0 : index
    %c0_45 = arith.constant 0 : index
    %104 = vector.load %arg7[%c0_43, %c0_44, %c0_45] : memref<2x1x32xf32, #tpu.memory_space<vmem>>, vector<1x1x32xf32>
    %105 = vector.shape_cast %104 : vector<1x1x32xf32> to vector<1x32xf32>
    %106 = vector.broadcast %105 : vector<1x32xf32> to vector<8x32xf32>
    %107 = arith.addf %103, %106 : vector<8x32xf32>
    %c0_46 = arith.constant 0 : index
    %c0_47 = arith.constant 0 : index
    %c0_48 = arith.constant 0 : index
    %108 = vector.load %arg8[%c0_46, %c0_47, %c0_48] : memref<2x1x32xf32, #tpu.memory_space<vmem>>, vector<1x1x32xf32>
    %109 = vector.shape_cast %108 : vector<1x1x32xf32> to vector<1x32xf32>
    %c0_49 = arith.constant 0 : index
    %c0_50 = arith.constant 0 : index
    %c0_51 = arith.constant 0 : index
    %110 = vector.load %arg9[%c0_49, %c0_50, %c0_51] : memref<2x1x32xf32, #tpu.memory_space<vmem>>, vector<1x1x32xf32>
    %111 = vector.shape_cast %110 : vector<1x1x32xf32> to vector<1x32xf32>
    %cst_52 = arith.constant dense<0.000000e+00> : vector<8xf32>
    %112 = vector.multi_reduction <add>, %107, %cst_52 [1] : vector<8x32xf32> to vector<8xf32>
    %113 = vector.shape_cast %112 : vector<8xf32> to vector<8x1xf32>
    %cst_53 = arith.constant 3.200000e+01 : f32
    %114 = vector.broadcast %cst_53 : f32 to vector<8x1xf32>
    %115 = arith.divf %113, %114 : vector<8x1xf32>
    %116 = vector.broadcast %115 : vector<8x1xf32> to vector<8x32xf32>
    %117 = arith.subf %107, %116 : vector<8x32xf32>
    %118 = arith.mulf %117, %117 : vector<8x32xf32>
    %cst_54 = arith.constant dense<0.000000e+00> : vector<8xf32>
    %119 = vector.multi_reduction <add>, %118, %cst_54 [1] : vector<8x32xf32> to vector<8xf32>
    %120 = vector.shape_cast %119 : vector<8xf32> to vector<8x1xf32>
    %cst_55 = arith.constant 3.200000e+01 : f32
    %121 = vector.broadcast %cst_55 : f32 to vector<8x1xf32>
    %122 = arith.divf %120, %121 : vector<8x1xf32>
    %123 = vector.broadcast %115 : vector<8x1xf32> to vector<8x32xf32>
    %124 = arith.subf %107, %123 : vector<8x32xf32>
    %cst_56 = arith.constant 9.99999974E-6 : f32
    %125 = vector.broadcast %cst_56 : f32 to vector<8x1xf32>
    %126 = arith.addf %122, %125 : vector<8x1xf32>
    %127 = math.rsqrt %126 : vector<8x1xf32>
    %128 = vector.broadcast %127 : vector<8x1xf32> to vector<8x32xf32>
    %129 = arith.mulf %124, %128 : vector<8x32xf32>
    %130 = vector.broadcast %109 : vector<1x32xf32> to vector<8x32xf32>
    %131 = arith.mulf %129, %130 : vector<8x32xf32>
    %132 = vector.broadcast %111 : vector<1x32xf32> to vector<8x32xf32>
    %133 = arith.addf %131, %132 : vector<8x32xf32>
    %c0_57 = arith.constant 0 : index
    %c0_58 = arith.constant 0 : index
    %c0_59 = arith.constant 0 : index
    %134 = vector.load %arg10[%c0_57, %c0_58, %c0_59] : memref<2x32x128xf32, #tpu.memory_space<vmem>>, vector<1x32x128xf32>
    %135 = vector.shape_cast %134 : vector<1x32x128xf32> to vector<32x128xf32>
    %cst_60 = arith.constant dense<0.000000e+00> : vector<8x128xf32>
    %136 = tpu.matmul %133, %135, %cst_60 {dimension_numbers = #tpu.dot_dimension_numbers<[1], [0], [0], [1], [0, 0, 1, 1], [], []>} : vector<8x32xf32>, vector<32x128xf32>, vector<8x128xf32> -> vector<8x128xf32>
    %c0_61 = arith.constant 0 : index
    %c0_62 = arith.constant 0 : index
    %c0_63 = arith.constant 0 : index
    %137 = vector.load %arg11[%c0_61, %c0_62, %c0_63] : memref<2x1x128xf32, #tpu.memory_space<vmem>>, vector<1x1x128xf32>
    %138 = vector.shape_cast %137 : vector<1x1x128xf32> to vector<1x128xf32>
    %139 = vector.broadcast %138 : vector<1x128xf32> to vector<8x128xf32>
    %140 = arith.addf %136, %139 : vector<8x128xf32>
    %cst_64 = arith.constant 5.000000e-01 : f32
    %141 = vector.broadcast %cst_64 : f32 to vector<8x128xf32>
    %142 = arith.mulf %141, %140 : vector<8x128xf32>
    %cst_65 = arith.constant 0.707106769 : f32
    %143 = vector.broadcast %cst_65 : f32 to vector<8x128xf32>
    %144 = arith.mulf %140, %143 : vector<8x128xf32>
    %145 = math.absf %144 : vector<8x128xf32>
    %cst_66 = arith.constant 0.327591091 : f32
    %146 = vector.broadcast %cst_66 : f32 to vector<8x128xf32>
    %147 = arith.mulf %146, %145 : vector<8x128xf32>
    %cst_67 = arith.constant 1.000000e+00 : f32
    %148 = vector.broadcast %cst_67 : f32 to vector<8x128xf32>
    %149 = arith.addf %148, %147 : vector<8x128xf32>
    %cst_68 = arith.constant 1.000000e+00 : f32
    %150 = vector.broadcast %cst_68 : f32 to vector<8x128xf32>
    %151 = arith.divf %150, %149 : vector<8x128xf32>
    %cst_69 = arith.constant 1.06140542 : f32
    %152 = vector.broadcast %cst_69 : f32 to vector<8x128xf32>
    %153 = arith.mulf %152, %151 : vector<8x128xf32>
    %cst_70 = arith.constant -1.45315206 : f32
    %154 = vector.broadcast %cst_70 : f32 to vector<8x128xf32>
    %155 = arith.addf %153, %154 : vector<8x128xf32>
    %156 = arith.mulf %155, %151 : vector<8x128xf32>
    %cst_71 = arith.constant 1.42141378 : f32
    %157 = vector.broadcast %cst_71 : f32 to vector<8x128xf32>
    %158 = arith.addf %156, %157 : vector<8x128xf32>
    %159 = arith.mulf %158, %151 : vector<8x128xf32>
    %cst_72 = arith.constant -0.284496725 : f32
    %160 = vector.broadcast %cst_72 : f32 to vector<8x128xf32>
    %161 = arith.addf %159, %160 : vector<8x128xf32>
    %162 = arith.mulf %161, %151 : vector<8x128xf32>
    %cst_73 = arith.constant 0.254829586 : f32
    %163 = vector.broadcast %cst_73 : f32 to vector<8x128xf32>
    %164 = arith.addf %162, %163 : vector<8x128xf32>
    %165 = arith.mulf %164, %151 : vector<8x128xf32>
    %cst_74 = arith.constant 0.000000e+00 : f32
    %166 = vector.broadcast %cst_74 : f32 to vector<8x128xf32>
    %167 = arith.subf %166, %145 : vector<8x128xf32>
    %168 = arith.mulf %167, %145 : vector<8x128xf32>
    %169 = math.exp %168 : vector<8x128xf32>
    %170 = arith.mulf %165, %169 : vector<8x128xf32>
    %cst_75 = arith.constant 1.000000e+00 : f32
    %171 = vector.broadcast %cst_75 : f32 to vector<8x128xf32>
    %172 = arith.subf %171, %170 : vector<8x128xf32>
    %cst_76 = arith.constant 0.000000e+00 : f32
    %173 = vector.broadcast %cst_76 : f32 to vector<8x128xf32>
    %174 = arith.cmpf oge, %144, %173 : vector<8x128xf32>
    %cst_77 = arith.constant 0.000000e+00 : f32
    %175 = vector.broadcast %cst_77 : f32 to vector<8x128xf32>
    %176 = arith.subf %175, %172 : vector<8x128xf32>
    %177 = arith.select %174, %172, %176 : vector<8x128xi1>, vector<8x128xf32>
    %cst_78 = arith.constant 1.000000e+00 : f32
    %178 = vector.broadcast %cst_78 : f32 to vector<8x128xf32>
    %179 = arith.addf %178, %177 : vector<8x128xf32>
    %180 = arith.mulf %142, %179 : vector<8x128xf32>
    %c0_79 = arith.constant 0 : index
    %c0_80 = arith.constant 0 : index
    %c0_81 = arith.constant 0 : index
    %181 = vector.load %arg12[%c0_79, %c0_80, %c0_81] : memref<2x128x32xf32, #tpu.memory_space<vmem>>, vector<1x128x32xf32>
    %182 = vector.shape_cast %181 : vector<1x128x32xf32> to vector<128x32xf32>
    %cst_82 = arith.constant dense<0.000000e+00> : vector<8x32xf32>
    %183 = tpu.matmul %180, %182, %cst_82 {dimension_numbers = #tpu.dot_dimension_numbers<[1], [0], [0], [1], [0, 0, 1, 1], [], []>} : vector<8x128xf32>, vector<128x32xf32>, vector<8x32xf32> -> vector<8x32xf32>
    %c0_83 = arith.constant 0 : index
    %c0_84 = arith.constant 0 : index
    %c0_85 = arith.constant 0 : index
    %184 = vector.load %arg13[%c0_83, %c0_84, %c0_85] : memref<2x1x32xf32, #tpu.memory_space<vmem>>, vector<1x1x32xf32>
    %185 = vector.shape_cast %184 : vector<1x1x32xf32> to vector<1x32xf32>
    %186 = vector.broadcast %185 : vector<1x32xf32> to vector<8x32xf32>
    %187 = arith.addf %183, %186 : vector<8x32xf32>
    %188 = arith.addf %107, %187 : vector<8x32xf32>
    %c1 = arith.constant 1 : index
    %c0_86 = arith.constant 0 : index
    %c0_87 = arith.constant 0 : index
    %189 = vector.load %arg2[%c1, %c0_86, %c0_87] : memref<2x1x32xf32, #tpu.memory_space<vmem>>, vector<1x1x32xf32>
    %190 = vector.shape_cast %189 : vector<1x1x32xf32> to vector<1x32xf32>
    %c1_88 = arith.constant 1 : index
    %c0_89 = arith.constant 0 : index
    %c0_90 = arith.constant 0 : index
    %191 = vector.load %arg3[%c1_88, %c0_89, %c0_90] : memref<2x1x32xf32, #tpu.memory_space<vmem>>, vector<1x1x32xf32>
    %192 = vector.shape_cast %191 : vector<1x1x32xf32> to vector<1x32xf32>
    %cst_91 = arith.constant dense<0.000000e+00> : vector<8xf32>
    %193 = vector.multi_reduction <add>, %1, %cst_91 [1] : vector<8x32xf32> to vector<8xf32>
    %194 = vector.shape_cast %193 : vector<8xf32> to vector<8x1xf32>
    %cst_92 = arith.constant 3.200000e+01 : f32
    %195 = vector.broadcast %cst_92 : f32 to vector<8x1xf32>
    %196 = arith.divf %194, %195 : vector<8x1xf32>
    %197 = vector.broadcast %196 : vector<8x1xf32> to vector<8x32xf32>
    %198 = arith.subf %1, %197 : vector<8x32xf32>
    %199 = arith.mulf %198, %198 : vector<8x32xf32>
    %cst_93 = arith.constant dense<0.000000e+00> : vector<8xf32>
    %200 = vector.multi_reduction <add>, %199, %cst_93 [1] : vector<8x32xf32> to vector<8xf32>
    %201 = vector.shape_cast %200 : vector<8xf32> to vector<8x1xf32>
    %cst_94 = arith.constant 3.200000e+01 : f32
    %202 = vector.broadcast %cst_94 : f32 to vector<8x1xf32>
    %203 = arith.divf %201, %202 : vector<8x1xf32>
    %204 = vector.broadcast %196 : vector<8x1xf32> to vector<8x32xf32>
    %205 = arith.subf %1, %204 : vector<8x32xf32>
    %cst_95 = arith.constant 9.99999974E-6 : f32
    %206 = vector.broadcast %cst_95 : f32 to vector<8x1xf32>
    %207 = arith.addf %203, %206 : vector<8x1xf32>
    %208 = math.rsqrt %207 : vector<8x1xf32>
    %209 = vector.broadcast %208 : vector<8x1xf32> to vector<8x32xf32>
    %210 = arith.mulf %205, %209 : vector<8x32xf32>
    %211 = vector.broadcast %190 : vector<1x32xf32> to vector<8x32xf32>
    %212 = arith.mulf %210, %211 : vector<8x32xf32>
    %213 = vector.broadcast %192 : vector<1x32xf32> to vector<8x32xf32>
    %214 = arith.addf %212, %213 : vector<8x32xf32>
    %c1_96 = arith.constant 1 : index
    %c0_97 = arith.constant 0 : index
    %c0_98 = arith.constant 0 : index
    %215 = vector.load %arg4[%c1_96, %c0_97, %c0_98] : memref<2x32x96xf32, #tpu.memory_space<vmem>>, vector<1x32x96xf32>
    %216 = vector.shape_cast %215 : vector<1x32x96xf32> to vector<32x96xf32>
    %cst_99 = arith.constant dense<0.000000e+00> : vector<8x96xf32>
    %217 = tpu.matmul %214, %216, %cst_99 {dimension_numbers = #tpu.dot_dimension_numbers<[1], [0], [0], [1], [0, 0, 1, 1], [], []>} : vector<8x32xf32>, vector<32x96xf32>, vector<8x96xf32> -> vector<8x96xf32>
    %c1_100 = arith.constant 1 : index
    %c0_101 = arith.constant 0 : index
    %c0_102 = arith.constant 0 : index
    %218 = vector.load %arg5[%c1_100, %c0_101, %c0_102] : memref<2x1x96xf32, #tpu.memory_space<vmem>>, vector<1x1x96xf32>
    %219 = vector.shape_cast %218 : vector<1x1x96xf32> to vector<1x96xf32>
    %220 = vector.broadcast %219 : vector<1x96xf32> to vector<8x96xf32>
    %221 = arith.addf %217, %220 : vector<8x96xf32>
    %222 = vector.extract_strided_slice %221 {offsets = [0, 0], sizes = [8, 8], strides = [1, 1]} : vector<8x96xf32> to vector<8x8xf32>
    %223 = vector.extract_strided_slice %221 {offsets = [0, 32], sizes = [8, 8], strides = [1, 1]} : vector<8x96xf32> to vector<8x8xf32>
    %224 = vector.extract_strided_slice %221 {offsets = [0, 64], sizes = [8, 8], strides = [1, 1]} : vector<8x96xf32> to vector<8x8xf32>
    %cst_103 = arith.constant dense<0.000000e+00> : vector<8x8xf32>
    %225 = tpu.matmul %222, %223, %cst_103 {dimension_numbers = #tpu.dot_dimension_numbers<[1], [1], [0], [0], [0, 0, 1, 0], [], []>} : vector<8x8xf32>, vector<8x8xf32>, vector<8x8xf32> -> vector<8x8xf32>
    %cst_104 = arith.constant 0.353553385 : f32
    %226 = vector.broadcast %cst_104 : f32 to vector<8x8xf32>
    %227 = arith.mulf %225, %226 : vector<8x8xf32>
    %cst_105 = arith.constant dense<0xFF800000> : vector<8xf32>
    %228 = vector.multi_reduction <maximumf>, %227, %cst_105 [1] : vector<8x8xf32> to vector<8xf32>
    %229 = vector.shape_cast %228 : vector<8xf32> to vector<8x1xf32>
    %230 = vector.broadcast %229 : vector<8x1xf32> to vector<8x8xf32>
    %231 = arith.subf %227, %230 : vector<8x8xf32>
    %232 = math.exp %231 : vector<8x8xf32>
    %cst_106 = arith.constant dense<0.000000e+00> : vector<8xf32>
    %233 = vector.multi_reduction <add>, %232, %cst_106 [1] : vector<8x8xf32> to vector<8xf32>
    %234 = vector.shape_cast %233 : vector<8xf32> to vector<8x1xf32>
    %235 = vector.broadcast %234 : vector<8x1xf32> to vector<8x8xf32>
    %236 = arith.divf %232, %235 : vector<8x8xf32>
    %cst_107 = arith.constant dense<0.000000e+00> : vector<8x8xf32>
    %237 = tpu.matmul %236, %224, %cst_107 {dimension_numbers = #tpu.dot_dimension_numbers<[1], [0], [0], [1], [0, 0, 1, 1], [], []>} : vector<8x8xf32>, vector<8x8xf32>, vector<8x8xf32> -> vector<8x8xf32>
    %238 = vector.extract_strided_slice %221 {offsets = [0, 8], sizes = [8, 8], strides = [1, 1]} : vector<8x96xf32> to vector<8x8xf32>
    %239 = vector.extract_strided_slice %221 {offsets = [0, 40], sizes = [8, 8], strides = [1, 1]} : vector<8x96xf32> to vector<8x8xf32>
    %240 = vector.extract_strided_slice %221 {offsets = [0, 72], sizes = [8, 8], strides = [1, 1]} : vector<8x96xf32> to vector<8x8xf32>
    %cst_108 = arith.constant dense<0.000000e+00> : vector<8x8xf32>
    %241 = tpu.matmul %238, %239, %cst_108 {dimension_numbers = #tpu.dot_dimension_numbers<[1], [1], [0], [0], [0, 0, 1, 0], [], []>} : vector<8x8xf32>, vector<8x8xf32>, vector<8x8xf32> -> vector<8x8xf32>
    %cst_109 = arith.constant 0.353553385 : f32
    %242 = vector.broadcast %cst_109 : f32 to vector<8x8xf32>
    %243 = arith.mulf %241, %242 : vector<8x8xf32>
    %cst_110 = arith.constant dense<0xFF800000> : vector<8xf32>
    %244 = vector.multi_reduction <maximumf>, %243, %cst_110 [1] : vector<8x8xf32> to vector<8xf32>
    %245 = vector.shape_cast %244 : vector<8xf32> to vector<8x1xf32>
    %246 = vector.broadcast %245 : vector<8x1xf32> to vector<8x8xf32>
    %247 = arith.subf %243, %246 : vector<8x8xf32>
    %248 = math.exp %247 : vector<8x8xf32>
    %cst_111 = arith.constant dense<0.000000e+00> : vector<8xf32>
    %249 = vector.multi_reduction <add>, %248, %cst_111 [1] : vector<8x8xf32> to vector<8xf32>
    %250 = vector.shape_cast %249 : vector<8xf32> to vector<8x1xf32>
    %251 = vector.broadcast %250 : vector<8x1xf32> to vector<8x8xf32>
    %252 = arith.divf %248, %251 : vector<8x8xf32>
    %cst_112 = arith.constant dense<0.000000e+00> : vector<8x8xf32>
    %253 = tpu.matmul %252, %240, %cst_112 {dimension_numbers = #tpu.dot_dimension_numbers<[1], [0], [0], [1], [0, 0, 1, 1], [], []>} : vector<8x8xf32>, vector<8x8xf32>, vector<8x8xf32> -> vector<8x8xf32>
    %254 = vector.extract_strided_slice %221 {offsets = [0, 16], sizes = [8, 8], strides = [1, 1]} : vector<8x96xf32> to vector<8x8xf32>
    %255 = vector.extract_strided_slice %221 {offsets = [0, 48], sizes = [8, 8], strides = [1, 1]} : vector<8x96xf32> to vector<8x8xf32>
    %256 = vector.extract_strided_slice %221 {offsets = [0, 80], sizes = [8, 8], strides = [1, 1]} : vector<8x96xf32> to vector<8x8xf32>
    %cst_113 = arith.constant dense<0.000000e+00> : vector<8x8xf32>
    %257 = tpu.matmul %254, %255, %cst_113 {dimension_numbers = #tpu.dot_dimension_numbers<[1], [1], [0], [0], [0, 0, 1, 0], [], []>} : vector<8x8xf32>, vector<8x8xf32>, vector<8x8xf32> -> vector<8x8xf32>
    %cst_114 = arith.constant 0.353553385 : f32
    %258 = vector.broadcast %cst_114 : f32 to vector<8x8xf32>
    %259 = arith.mulf %257, %258 : vector<8x8xf32>
    %cst_115 = arith.constant dense<0xFF800000> : vector<8xf32>
    %260 = vector.multi_reduction <maximumf>, %259, %cst_115 [1] : vector<8x8xf32> to vector<8xf32>
    %261 = vector.shape_cast %260 : vector<8xf32> to vector<8x1xf32>
    %262 = vector.broadcast %261 : vector<8x1xf32> to vector<8x8xf32>
    %263 = arith.subf %259, %262 : vector<8x8xf32>
    %264 = math.exp %263 : vector<8x8xf32>
    %cst_116 = arith.constant dense<0.000000e+00> : vector<8xf32>
    %265 = vector.multi_reduction <add>, %264, %cst_116 [1] : vector<8x8xf32> to vector<8xf32>
    %266 = vector.shape_cast %265 : vector<8xf32> to vector<8x1xf32>
    %267 = vector.broadcast %266 : vector<8x1xf32> to vector<8x8xf32>
    %268 = arith.divf %264, %267 : vector<8x8xf32>
    %cst_117 = arith.constant dense<0.000000e+00> : vector<8x8xf32>
    %269 = tpu.matmul %268, %256, %cst_117 {dimension_numbers = #tpu.dot_dimension_numbers<[1], [0], [0], [1], [0, 0, 1, 1], [], []>} : vector<8x8xf32>, vector<8x8xf32>, vector<8x8xf32> -> vector<8x8xf32>
    %270 = vector.extract_strided_slice %221 {offsets = [0, 24], sizes = [8, 8], strides = [1, 1]} : vector<8x96xf32> to vector<8x8xf32>
    %271 = vector.extract_strided_slice %221 {offsets = [0, 56], sizes = [8, 8], strides = [1, 1]} : vector<8x96xf32> to vector<8x8xf32>
    %272 = vector.extract_strided_slice %221 {offsets = [0, 88], sizes = [8, 8], strides = [1, 1]} : vector<8x96xf32> to vector<8x8xf32>
    %cst_118 = arith.constant dense<0.000000e+00> : vector<8x8xf32>
    %273 = tpu.matmul %270, %271, %cst_118 {dimension_numbers = #tpu.dot_dimension_numbers<[1], [1], [0], [0], [0, 0, 1, 0], [], []>} : vector<8x8xf32>, vector<8x8xf32>, vector<8x8xf32> -> vector<8x8xf32>
    %cst_119 = arith.constant 0.353553385 : f32
    %274 = vector.broadcast %cst_119 : f32 to vector<8x8xf32>
    %275 = arith.mulf %273, %274 : vector<8x8xf32>
    %cst_120 = arith.constant dense<0xFF800000> : vector<8xf32>
    %276 = vector.multi_reduction <maximumf>, %275, %cst_120 [1] : vector<8x8xf32> to vector<8xf32>
    %277 = vector.shape_cast %276 : vector<8xf32> to vector<8x1xf32>
    %278 = vector.broadcast %277 : vector<8x1xf32> to vector<8x8xf32>
    %279 = arith.subf %275, %278 : vector<8x8xf32>
    %280 = math.exp %279 : vector<8x8xf32>
    %cst_121 = arith.constant dense<0.000000e+00> : vector<8xf32>
    %281 = vector.multi_reduction <add>, %280, %cst_121 [1] : vector<8x8xf32> to vector<8xf32>
    %282 = vector.shape_cast %281 : vector<8xf32> to vector<8x1xf32>
    %283 = vector.broadcast %282 : vector<8x1xf32> to vector<8x8xf32>
    %284 = arith.divf %280, %283 : vector<8x8xf32>
    %cst_122 = arith.constant dense<0.000000e+00> : vector<8x8xf32>
    %285 = tpu.matmul %284, %272, %cst_122 {dimension_numbers = #tpu.dot_dimension_numbers<[1], [0], [0], [1], [0, 0, 1, 1], [], []>} : vector<8x8xf32>, vector<8x8xf32>, vector<8x8xf32> -> vector<8x8xf32>
    %286 = tpu.concatenate %237, %253, %269, %285 in 1 : vector<8x8xf32>, vector<8x8xf32>, vector<8x8xf32>, vector<8x8xf32> -> vector<8x32xf32>
    %c1_123 = arith.constant 1 : index
    %c0_124 = arith.constant 0 : index
    %c0_125 = arith.constant 0 : index
    %287 = vector.load %arg6[%c1_123, %c0_124, %c0_125] : memref<2x32x32xf32, #tpu.memory_space<vmem>>, vector<1x32x32xf32>
    %288 = vector.shape_cast %287 : vector<1x32x32xf32> to vector<32x32xf32>
    %cst_126 = arith.constant dense<0.000000e+00> : vector<8x32xf32>
    %289 = tpu.matmul %286, %288, %cst_126 {dimension_numbers = #tpu.dot_dimension_numbers<[1], [0], [0], [1], [0, 0, 1, 1], [], []>} : vector<8x32xf32>, vector<32x32xf32>, vector<8x32xf32> -> vector<8x32xf32>
    %290 = arith.addf %1, %289 : vector<8x32xf32>
    %c1_127 = arith.constant 1 : index
    %c0_128 = arith.constant 0 : index
    %c0_129 = arith.constant 0 : index
    %291 = vector.load %arg7[%c1_127, %c0_128, %c0_129] : memref<2x1x32xf32, #tpu.memory_space<vmem>>, vector<1x1x32xf32>
    %292 = vector.shape_cast %291 : vector<1x1x32xf32> to vector<1x32xf32>
    %293 = vector.broadcast %292 : vector<1x32xf32> to vector<8x32xf32>
    %294 = arith.addf %290, %293 : vector<8x32xf32>
    %c1_130 = arith.constant 1 : index
    %c0_131 = arith.constant 0 : index
    %c0_132 = arith.constant 0 : index
    %295 = vector.load %arg8[%c1_130, %c0_131, %c0_132] : memref<2x1x32xf32, #tpu.memory_space<vmem>>, vector<1x1x32xf32>
    %296 = vector.shape_cast %295 : vector<1x1x32xf32> to vector<1x32xf32>
    %c1_133 = arith.constant 1 : index
    %c0_134 = arith.constant 0 : index
    %c0_135 = arith.constant 0 : index
    %297 = vector.load %arg9[%c1_133, %c0_134, %c0_135] : memref<2x1x32xf32, #tpu.memory_space<vmem>>, vector<1x1x32xf32>
    %298 = vector.shape_cast %297 : vector<1x1x32xf32> to vector<1x32xf32>
    %cst_136 = arith.constant dense<0.000000e+00> : vector<8xf32>
    %299 = vector.multi_reduction <add>, %294, %cst_136 [1] : vector<8x32xf32> to vector<8xf32>
    %300 = vector.shape_cast %299 : vector<8xf32> to vector<8x1xf32>
    %cst_137 = arith.constant 3.200000e+01 : f32
    %301 = vector.broadcast %cst_137 : f32 to vector<8x1xf32>
    %302 = arith.divf %300, %301 : vector<8x1xf32>
    %303 = vector.broadcast %302 : vector<8x1xf32> to vector<8x32xf32>
    %304 = arith.subf %294, %303 : vector<8x32xf32>
    %305 = arith.mulf %304, %304 : vector<8x32xf32>
    %cst_138 = arith.constant dense<0.000000e+00> : vector<8xf32>
    %306 = vector.multi_reduction <add>, %305, %cst_138 [1] : vector<8x32xf32> to vector<8xf32>
    %307 = vector.shape_cast %306 : vector<8xf32> to vector<8x1xf32>
    %cst_139 = arith.constant 3.200000e+01 : f32
    %308 = vector.broadcast %cst_139 : f32 to vector<8x1xf32>
    %309 = arith.divf %307, %308 : vector<8x1xf32>
    %310 = vector.broadcast %302 : vector<8x1xf32> to vector<8x32xf32>
    %311 = arith.subf %294, %310 : vector<8x32xf32>
    %cst_140 = arith.constant 9.99999974E-6 : f32
    %312 = vector.broadcast %cst_140 : f32 to vector<8x1xf32>
    %313 = arith.addf %309, %312 : vector<8x1xf32>
    %314 = math.rsqrt %313 : vector<8x1xf32>
    %315 = vector.broadcast %314 : vector<8x1xf32> to vector<8x32xf32>
    %316 = arith.mulf %311, %315 : vector<8x32xf32>
    %317 = vector.broadcast %296 : vector<1x32xf32> to vector<8x32xf32>
    %318 = arith.mulf %316, %317 : vector<8x32xf32>
    %319 = vector.broadcast %298 : vector<1x32xf32> to vector<8x32xf32>
    %320 = arith.addf %318, %319 : vector<8x32xf32>
    %c1_141 = arith.constant 1 : index
    %c0_142 = arith.constant 0 : index
    %c0_143 = arith.constant 0 : index
    %321 = vector.load %arg10[%c1_141, %c0_142, %c0_143] : memref<2x32x128xf32, #tpu.memory_space<vmem>>, vector<1x32x128xf32>
    %322 = vector.shape_cast %321 : vector<1x32x128xf32> to vector<32x128xf32>
    %cst_144 = arith.constant dense<0.000000e+00> : vector<8x128xf32>
    %323 = tpu.matmul %320, %322, %cst_144 {dimension_numbers = #tpu.dot_dimension_numbers<[1], [0], [0], [1], [0, 0, 1, 1], [], []>} : vector<8x32xf32>, vector<32x128xf32>, vector<8x128xf32> -> vector<8x128xf32>
    %c1_145 = arith.constant 1 : index
    %c0_146 = arith.constant 0 : index
    %c0_147 = arith.constant 0 : index
    %324 = vector.load %arg11[%c1_145, %c0_146, %c0_147] : memref<2x1x128xf32, #tpu.memory_space<vmem>>, vector<1x1x128xf32>
    %325 = vector.shape_cast %324 : vector<1x1x128xf32> to vector<1x128xf32>
    %326 = vector.broadcast %325 : vector<1x128xf32> to vector<8x128xf32>
    %327 = arith.addf %323, %326 : vector<8x128xf32>
    %cst_148 = arith.constant 5.000000e-01 : f32
    %328 = vector.broadcast %cst_148 : f32 to vector<8x128xf32>
    %329 = arith.mulf %328, %327 : vector<8x128xf32>
    %cst_149 = arith.constant 0.707106769 : f32
    %330 = vector.broadcast %cst_149 : f32 to vector<8x128xf32>
    %331 = arith.mulf %327, %330 : vector<8x128xf32>
    %332 = math.absf %331 : vector<8x128xf32>
    %cst_150 = arith.constant 0.327591091 : f32
    %333 = vector.broadcast %cst_150 : f32 to vector<8x128xf32>
    %334 = arith.mulf %333, %332 : vector<8x128xf32>
    %cst_151 = arith.constant 1.000000e+00 : f32
    %335 = vector.broadcast %cst_151 : f32 to vector<8x128xf32>
    %336 = arith.addf %335, %334 : vector<8x128xf32>
    %cst_152 = arith.constant 1.000000e+00 : f32
    %337 = vector.broadcast %cst_152 : f32 to vector<8x128xf32>
    %338 = arith.divf %337, %336 : vector<8x128xf32>
    %cst_153 = arith.constant 1.06140542 : f32
    %339 = vector.broadcast %cst_153 : f32 to vector<8x128xf32>
    %340 = arith.mulf %339, %338 : vector<8x128xf32>
    %cst_154 = arith.constant -1.45315206 : f32
    %341 = vector.broadcast %cst_154 : f32 to vector<8x128xf32>
    %342 = arith.addf %340, %341 : vector<8x128xf32>
    %343 = arith.mulf %342, %338 : vector<8x128xf32>
    %cst_155 = arith.constant 1.42141378 : f32
    %344 = vector.broadcast %cst_155 : f32 to vector<8x128xf32>
    %345 = arith.addf %343, %344 : vector<8x128xf32>
    %346 = arith.mulf %345, %338 : vector<8x128xf32>
    %cst_156 = arith.constant -0.284496725 : f32
    %347 = vector.broadcast %cst_156 : f32 to vector<8x128xf32>
    %348 = arith.addf %346, %347 : vector<8x128xf32>
    %349 = arith.mulf %348, %338 : vector<8x128xf32>
    %cst_157 = arith.constant 0.254829586 : f32
    %350 = vector.broadcast %cst_157 : f32 to vector<8x128xf32>
    %351 = arith.addf %349, %350 : vector<8x128xf32>
    %352 = arith.mulf %351, %338 : vector<8x128xf32>
    %cst_158 = arith.constant 0.000000e+00 : f32
    %353 = vector.broadcast %cst_158 : f32 to vector<8x128xf32>
    %354 = arith.subf %353, %332 : vector<8x128xf32>
    %355 = arith.mulf %354, %332 : vector<8x128xf32>
    %356 = math.exp %355 : vector<8x128xf32>
    %357 = arith.mulf %352, %356 : vector<8x128xf32>
    %cst_159 = arith.constant 1.000000e+00 : f32
    %358 = vector.broadcast %cst_159 : f32 to vector<8x128xf32>
    %359 = arith.subf %358, %357 : vector<8x128xf32>
    %cst_160 = arith.constant 0.000000e+00 : f32
    %360 = vector.broadcast %cst_160 : f32 to vector<8x128xf32>
    %361 = arith.cmpf oge, %331, %360 : vector<8x128xf32>
    %cst_161 = arith.constant 0.000000e+00 : f32
    %362 = vector.broadcast %cst_161 : f32 to vector<8x128xf32>
    %363 = arith.subf %362, %359 : vector<8x128xf32>
    %364 = arith.select %361, %359, %363 : vector<8x128xi1>, vector<8x128xf32>
    %cst_162 = arith.constant 1.000000e+00 : f32
    %365 = vector.broadcast %cst_162 : f32 to vector<8x128xf32>
    %366 = arith.addf %365, %364 : vector<8x128xf32>
    %367 = arith.mulf %329, %366 : vector<8x128xf32>
    %c1_163 = arith.constant 1 : index
    %c0_164 = arith.constant 0 : index
    %c0_165 = arith.constant 0 : index
    %368 = vector.load %arg12[%c1_163, %c0_164, %c0_165] : memref<2x128x32xf32, #tpu.memory_space<vmem>>, vector<1x128x32xf32>
    %369 = vector.shape_cast %368 : vector<1x128x32xf32> to vector<128x32xf32>
    %cst_166 = arith.constant dense<0.000000e+00> : vector<8x32xf32>
    %370 = tpu.matmul %367, %369, %cst_166 {dimension_numbers = #tpu.dot_dimension_numbers<[1], [0], [0], [1], [0, 0, 1, 1], [], []>} : vector<8x128xf32>, vector<128x32xf32>, vector<8x32xf32> -> vector<8x32xf32>
    %c1_167 = arith.constant 1 : index
    %c0_168 = arith.constant 0 : index
    %c0_169 = arith.constant 0 : index
    %371 = vector.load %arg13[%c1_167, %c0_168, %c0_169] : memref<2x1x32xf32, #tpu.memory_space<vmem>>, vector<1x1x32xf32>
    %372 = vector.shape_cast %371 : vector<1x1x32xf32> to vector<1x32xf32>
    %373 = vector.broadcast %372 : vector<1x32xf32> to vector<8x32xf32>
    %374 = arith.addf %370, %373 : vector<8x32xf32>
    %375 = arith.addf %294, %374 : vector<8x32xf32>
    %c0_170 = arith.constant 0 : index
    %c0_171 = arith.constant 0 : index
    %376 = vector.load %arg14[%c0_170, %c0_171] : memref<32x4xf32, #tpu.memory_space<vmem>>, vector<32x4xf32>
    %cst_172 = arith.constant dense<0.000000e+00> : vector<8x4xf32>
    %377 = tpu.matmul %1, %376, %cst_172 {dimension_numbers = #tpu.dot_dimension_numbers<[1], [0], [0], [1], [0, 0, 1, 1], [], []>} : vector<8x32xf32>, vector<32x4xf32>, vector<8x4xf32> -> vector<8x4xf32>
    %c0_173 = arith.constant 0 : index
    %c0_174 = arith.constant 0 : index
    %378 = vector.load %arg15[%c0_173, %c0_174] : memref<1x4xf32, #tpu.memory_space<vmem>>, vector<1x4xf32>
    %379 = vector.broadcast %378 : vector<1x4xf32> to vector<8x4xf32>
    %380 = arith.addf %377, %379 : vector<8x4xf32>
    %cst_175 = arith.constant dense<0xFF800000> : vector<8xf32>
    %381 = vector.multi_reduction <maximumf>, %380, %cst_175 [1] : vector<8x4xf32> to vector<8xf32>
    %382 = vector.shape_cast %381 : vector<8xf32> to vector<8x1xf32>
    %383 = vector.broadcast %382 : vector<8x1xf32> to vector<8x4xf32>
    %384 = arith.subf %380, %383 : vector<8x4xf32>
    %385 = math.exp %384 : vector<8x4xf32>
    %cst_176 = arith.constant dense<0.000000e+00> : vector<8xf32>
    %386 = vector.multi_reduction <add>, %385, %cst_176 [1] : vector<8x4xf32> to vector<8xf32>
    %387 = vector.shape_cast %386 : vector<8xf32> to vector<8x1xf32>
    %388 = vector.broadcast %387 : vector<8x1xf32> to vector<8x4xf32>
    %389 = arith.divf %385, %388 : vector<8x4xf32>
    %cst_177 = arith.constant 0.000000e+00 : f32
    %390 = vector.broadcast %cst_177 : f32 to vector<8x32xf32>
    %c0_178 = arith.constant 0 : index
    %c0_179 = arith.constant 0 : index
    %c0_180 = arith.constant 0 : index
    %391 = vector.load %arg16[%c0_178, %c0_179, %c0_180] : memref<4x32x32xf32, #tpu.memory_space<vmem>>, vector<1x32x32xf32>
    %392 = vector.shape_cast %391 : vector<1x32x32xf32> to vector<32x32xf32>
    %cst_181 = arith.constant dense<0.000000e+00> : vector<8x32xf32>
    %393 = tpu.matmul %1, %392, %cst_181 {dimension_numbers = #tpu.dot_dimension_numbers<[1], [0], [0], [1], [0, 0, 1, 1], [], []>} : vector<8x32xf32>, vector<32x32xf32>, vector<8x32xf32> -> vector<8x32xf32>
    %c0_182 = arith.constant 0 : index
    %c0_183 = arith.constant 0 : index
    %c0_184 = arith.constant 0 : index
    %394 = vector.load %arg17[%c0_182, %c0_183, %c0_184] : memref<4x1x32xf32, #tpu.memory_space<vmem>>, vector<1x1x32xf32>
    %395 = vector.shape_cast %394 : vector<1x1x32xf32> to vector<1x32xf32>
    %396 = vector.broadcast %395 : vector<1x32xf32> to vector<8x32xf32>
    %397 = arith.addf %393, %396 : vector<8x32xf32>
    %cst_185 = arith.constant 5.000000e-01 : f32
    %398 = vector.broadcast %cst_185 : f32 to vector<8x32xf32>
    %399 = arith.mulf %398, %397 : vector<8x32xf32>
    %cst_186 = arith.constant 0.707106769 : f32
    %400 = vector.broadcast %cst_186 : f32 to vector<8x32xf32>
    %401 = arith.mulf %397, %400 : vector<8x32xf32>
    %402 = math.absf %401 : vector<8x32xf32>
    %cst_187 = arith.constant 0.327591091 : f32
    %403 = vector.broadcast %cst_187 : f32 to vector<8x32xf32>
    %404 = arith.mulf %403, %402 : vector<8x32xf32>
    %cst_188 = arith.constant 1.000000e+00 : f32
    %405 = vector.broadcast %cst_188 : f32 to vector<8x32xf32>
    %406 = arith.addf %405, %404 : vector<8x32xf32>
    %cst_189 = arith.constant 1.000000e+00 : f32
    %407 = vector.broadcast %cst_189 : f32 to vector<8x32xf32>
    %408 = arith.divf %407, %406 : vector<8x32xf32>
    %cst_190 = arith.constant 1.06140542 : f32
    %409 = vector.broadcast %cst_190 : f32 to vector<8x32xf32>
    %410 = arith.mulf %409, %408 : vector<8x32xf32>
    %cst_191 = arith.constant -1.45315206 : f32
    %411 = vector.broadcast %cst_191 : f32 to vector<8x32xf32>
    %412 = arith.addf %410, %411 : vector<8x32xf32>
    %413 = arith.mulf %412, %408 : vector<8x32xf32>
    %cst_192 = arith.constant 1.42141378 : f32
    %414 = vector.broadcast %cst_192 : f32 to vector<8x32xf32>
    %415 = arith.addf %413, %414 : vector<8x32xf32>
    %416 = arith.mulf %415, %408 : vector<8x32xf32>
    %cst_193 = arith.constant -0.284496725 : f32
    %417 = vector.broadcast %cst_193 : f32 to vector<8x32xf32>
    %418 = arith.addf %416, %417 : vector<8x32xf32>
    %419 = arith.mulf %418, %408 : vector<8x32xf32>
    %cst_194 = arith.constant 0.254829586 : f32
    %420 = vector.broadcast %cst_194 : f32 to vector<8x32xf32>
    %421 = arith.addf %419, %420 : vector<8x32xf32>
    %422 = arith.mulf %421, %408 : vector<8x32xf32>
    %cst_195 = arith.constant 0.000000e+00 : f32
    %423 = vector.broadcast %cst_195 : f32 to vector<8x32xf32>
    %424 = arith.subf %423, %402 : vector<8x32xf32>
    %425 = arith.mulf %424, %402 : vector<8x32xf32>
    %426 = math.exp %425 : vector<8x32xf32>
    %427 = arith.mulf %422, %426 : vector<8x32xf32>
    %cst_196 = arith.constant 1.000000e+00 : f32
    %428 = vector.broadcast %cst_196 : f32 to vector<8x32xf32>
    %429 = arith.subf %428, %427 : vector<8x32xf32>
    %cst_197 = arith.constant 0.000000e+00 : f32
    %430 = vector.broadcast %cst_197 : f32 to vector<8x32xf32>
    %431 = arith.cmpf oge, %401, %430 : vector<8x32xf32>
    %cst_198 = arith.constant 0.000000e+00 : f32
    %432 = vector.broadcast %cst_198 : f32 to vector<8x32xf32>
    %433 = arith.subf %432, %429 : vector<8x32xf32>
    %434 = arith.select %431, %429, %433 : vector<8x32xi1>, vector<8x32xf32>
    %cst_199 = arith.constant 1.000000e+00 : f32
    %435 = vector.broadcast %cst_199 : f32 to vector<8x32xf32>
    %436 = arith.addf %435, %434 : vector<8x32xf32>
    %437 = arith.mulf %399, %436 : vector<8x32xf32>
    %c0_200 = arith.constant 0 : index
    %c0_201 = arith.constant 0 : index
    %c0_202 = arith.constant 0 : index
    %438 = vector.load %arg18[%c0_200, %c0_201, %c0_202] : memref<4x32x32xf32, #tpu.memory_space<vmem>>, vector<1x32x32xf32>
    %439 = vector.shape_cast %438 : vector<1x32x32xf32> to vector<32x32xf32>
    %cst_203 = arith.constant dense<0.000000e+00> : vector<8x32xf32>
    %440 = tpu.matmul %437, %439, %cst_203 {dimension_numbers = #tpu.dot_dimension_numbers<[1], [0], [0], [1], [0, 0, 1, 1], [], []>} : vector<8x32xf32>, vector<32x32xf32>, vector<8x32xf32> -> vector<8x32xf32>
    %c0_204 = arith.constant 0 : index
    %c0_205 = arith.constant 0 : index
    %c0_206 = arith.constant 0 : index
    %441 = vector.load %arg19[%c0_204, %c0_205, %c0_206] : memref<4x1x32xf32, #tpu.memory_space<vmem>>, vector<1x1x32xf32>
    %442 = vector.shape_cast %441 : vector<1x1x32xf32> to vector<1x32xf32>
    %443 = vector.broadcast %442 : vector<1x32xf32> to vector<8x32xf32>
    %444 = arith.addf %440, %443 : vector<8x32xf32>
    %445 = vector.extract_strided_slice %389 {offsets = [0, 0], sizes = [8, 1], strides = [1, 1]} : vector<8x4xf32> to vector<8x1xf32>
    %446 = vector.broadcast %445 : vector<8x1xf32> to vector<8x32xf32>
    %447 = arith.mulf %444, %446 : vector<8x32xf32>
    %448 = arith.addf %390, %447 : vector<8x32xf32>
    %c1_207 = arith.constant 1 : index
    %c0_208 = arith.constant 0 : index
    %c0_209 = arith.constant 0 : index
    %449 = vector.load %arg16[%c1_207, %c0_208, %c0_209] : memref<4x32x32xf32, #tpu.memory_space<vmem>>, vector<1x32x32xf32>
    %450 = vector.shape_cast %449 : vector<1x32x32xf32> to vector<32x32xf32>
    %cst_210 = arith.constant dense<0.000000e+00> : vector<8x32xf32>
    %451 = tpu.matmul %1, %450, %cst_210 {dimension_numbers = #tpu.dot_dimension_numbers<[1], [0], [0], [1], [0, 0, 1, 1], [], []>} : vector<8x32xf32>, vector<32x32xf32>, vector<8x32xf32> -> vector<8x32xf32>
    %c1_211 = arith.constant 1 : index
    %c0_212 = arith.constant 0 : index
    %c0_213 = arith.constant 0 : index
    %452 = vector.load %arg17[%c1_211, %c0_212, %c0_213] : memref<4x1x32xf32, #tpu.memory_space<vmem>>, vector<1x1x32xf32>
    %453 = vector.shape_cast %452 : vector<1x1x32xf32> to vector<1x32xf32>
    %454 = vector.broadcast %453 : vector<1x32xf32> to vector<8x32xf32>
    %455 = arith.addf %451, %454 : vector<8x32xf32>
    %cst_214 = arith.constant 5.000000e-01 : f32
    %456 = vector.broadcast %cst_214 : f32 to vector<8x32xf32>
    %457 = arith.mulf %456, %455 : vector<8x32xf32>
    %cst_215 = arith.constant 0.707106769 : f32
    %458 = vector.broadcast %cst_215 : f32 to vector<8x32xf32>
    %459 = arith.mulf %455, %458 : vector<8x32xf32>
    %460 = math.absf %459 : vector<8x32xf32>
    %cst_216 = arith.constant 0.327591091 : f32
    %461 = vector.broadcast %cst_216 : f32 to vector<8x32xf32>
    %462 = arith.mulf %461, %460 : vector<8x32xf32>
    %cst_217 = arith.constant 1.000000e+00 : f32
    %463 = vector.broadcast %cst_217 : f32 to vector<8x32xf32>
    %464 = arith.addf %463, %462 : vector<8x32xf32>
    %cst_218 = arith.constant 1.000000e+00 : f32
    %465 = vector.broadcast %cst_218 : f32 to vector<8x32xf32>
    %466 = arith.divf %465, %464 : vector<8x32xf32>
    %cst_219 = arith.constant 1.06140542 : f32
    %467 = vector.broadcast %cst_219 : f32 to vector<8x32xf32>
    %468 = arith.mulf %467, %466 : vector<8x32xf32>
    %cst_220 = arith.constant -1.45315206 : f32
    %469 = vector.broadcast %cst_220 : f32 to vector<8x32xf32>
    %470 = arith.addf %468, %469 : vector<8x32xf32>
    %471 = arith.mulf %470, %466 : vector<8x32xf32>
    %cst_221 = arith.constant 1.42141378 : f32
    %472 = vector.broadcast %cst_221 : f32 to vector<8x32xf32>
    %473 = arith.addf %471, %472 : vector<8x32xf32>
    %474 = arith.mulf %473, %466 : vector<8x32xf32>
    %cst_222 = arith.constant -0.284496725 : f32
    %475 = vector.broadcast %cst_222 : f32 to vector<8x32xf32>
    %476 = arith.addf %474, %475 : vector<8x32xf32>
    %477 = arith.mulf %476, %466 : vector<8x32xf32>
    %cst_223 = arith.constant 0.254829586 : f32
    %478 = vector.broadcast %cst_223 : f32 to vector<8x32xf32>
    %479 = arith.addf %477, %478 : vector<8x32xf32>
    %480 = arith.mulf %479, %466 : vector<8x32xf32>
    %cst_224 = arith.constant 0.000000e+00 : f32
    %481 = vector.broadcast %cst_224 : f32 to vector<8x32xf32>
    %482 = arith.subf %481, %460 : vector<8x32xf32>
    %483 = arith.mulf %482, %460 : vector<8x32xf32>
    %484 = math.exp %483 : vector<8x32xf32>
    %485 = arith.mulf %480, %484 : vector<8x32xf32>
    %cst_225 = arith.constant 1.000000e+00 : f32
    %486 = vector.broadcast %cst_225 : f32 to vector<8x32xf32>
    %487 = arith.subf %486, %485 : vector<8x32xf32>
    %cst_226 = arith.constant 0.000000e+00 : f32
    %488 = vector.broadcast %cst_226 : f32 to vector<8x32xf32>
    %489 = arith.cmpf oge, %459, %488 : vector<8x32xf32>
    %cst_227 = arith.constant 0.000000e+00 : f32
    %490 = vector.broadcast %cst_227 : f32 to vector<8x32xf32>
    %491 = arith.subf %490, %487 : vector<8x32xf32>
    %492 = arith.select %489, %487, %491 : vector<8x32xi1>, vector<8x32xf32>
    %cst_228 = arith.constant 1.000000e+00 : f32
    %493 = vector.broadcast %cst_228 : f32 to vector<8x32xf32>
    %494 = arith.addf %493, %492 : vector<8x32xf32>
    %495 = arith.mulf %457, %494 : vector<8x32xf32>
    %c1_229 = arith.constant 1 : index
    %c0_230 = arith.constant 0 : index
    %c0_231 = arith.constant 0 : index
    %496 = vector.load %arg18[%c1_229, %c0_230, %c0_231] : memref<4x32x32xf32, #tpu.memory_space<vmem>>, vector<1x32x32xf32>
    %497 = vector.shape_cast %496 : vector<1x32x32xf32> to vector<32x32xf32>
    %cst_232 = arith.constant dense<0.000000e+00> : vector<8x32xf32>
    %498 = tpu.matmul %495, %497, %cst_232 {dimension_numbers = #tpu.dot_dimension_numbers<[1], [0], [0], [1], [0, 0, 1, 1], [], []>} : vector<8x32xf32>, vector<32x32xf32>, vector<8x32xf32> -> vector<8x32xf32>
    %c1_233 = arith.constant 1 : index
    %c0_234 = arith.constant 0 : index
    %c0_235 = arith.constant 0 : index
    %499 = vector.load %arg19[%c1_233, %c0_234, %c0_235] : memref<4x1x32xf32, #tpu.memory_space<vmem>>, vector<1x1x32xf32>
    %500 = vector.shape_cast %499 : vector<1x1x32xf32> to vector<1x32xf32>
    %501 = vector.broadcast %500 : vector<1x32xf32> to vector<8x32xf32>
    %502 = arith.addf %498, %501 : vector<8x32xf32>
    %503 = vector.extract_strided_slice %389 {offsets = [0, 1], sizes = [8, 1], strides = [1, 1]} : vector<8x4xf32> to vector<8x1xf32>
    %504 = vector.broadcast %503 : vector<8x1xf32> to vector<8x32xf32>
    %505 = arith.mulf %502, %504 : vector<8x32xf32>
    %506 = arith.addf %448, %505 : vector<8x32xf32>
    %c2 = arith.constant 2 : index
    %c0_236 = arith.constant 0 : index
    %c0_237 = arith.constant 0 : index
    %507 = vector.load %arg16[%c2, %c0_236, %c0_237] : memref<4x32x32xf32, #tpu.memory_space<vmem>>, vector<1x32x32xf32>
    %508 = vector.shape_cast %507 : vector<1x32x32xf32> to vector<32x32xf32>
    %cst_238 = arith.constant dense<0.000000e+00> : vector<8x32xf32>
    %509 = tpu.matmul %1, %508, %cst_238 {dimension_numbers = #tpu.dot_dimension_numbers<[1], [0], [0], [1], [0, 0, 1, 1], [], []>} : vector<8x32xf32>, vector<32x32xf32>, vector<8x32xf32> -> vector<8x32xf32>
    %c2_239 = arith.constant 2 : index
    %c0_240 = arith.constant 0 : index
    %c0_241 = arith.constant 0 : index
    %510 = vector.load %arg17[%c2_239, %c0_240, %c0_241] : memref<4x1x32xf32, #tpu.memory_space<vmem>>, vector<1x1x32xf32>
    %511 = vector.shape_cast %510 : vector<1x1x32xf32> to vector<1x32xf32>
    %512 = vector.broadcast %511 : vector<1x32xf32> to vector<8x32xf32>
    %513 = arith.addf %509, %512 : vector<8x32xf32>
    %cst_242 = arith.constant 5.000000e-01 : f32
    %514 = vector.broadcast %cst_242 : f32 to vector<8x32xf32>
    %515 = arith.mulf %514, %513 : vector<8x32xf32>
    %cst_243 = arith.constant 0.707106769 : f32
    %516 = vector.broadcast %cst_243 : f32 to vector<8x32xf32>
    %517 = arith.mulf %513, %516 : vector<8x32xf32>
    %518 = math.absf %517 : vector<8x32xf32>
    %cst_244 = arith.constant 0.327591091 : f32
    %519 = vector.broadcast %cst_244 : f32 to vector<8x32xf32>
    %520 = arith.mulf %519, %518 : vector<8x32xf32>
    %cst_245 = arith.constant 1.000000e+00 : f32
    %521 = vector.broadcast %cst_245 : f32 to vector<8x32xf32>
    %522 = arith.addf %521, %520 : vector<8x32xf32>
    %cst_246 = arith.constant 1.000000e+00 : f32
    %523 = vector.broadcast %cst_246 : f32 to vector<8x32xf32>
    %524 = arith.divf %523, %522 : vector<8x32xf32>
    %cst_247 = arith.constant 1.06140542 : f32
    %525 = vector.broadcast %cst_247 : f32 to vector<8x32xf32>
    %526 = arith.mulf %525, %524 : vector<8x32xf32>
    %cst_248 = arith.constant -1.45315206 : f32
    %527 = vector.broadcast %cst_248 : f32 to vector<8x32xf32>
    %528 = arith.addf %526, %527 : vector<8x32xf32>
    %529 = arith.mulf %528, %524 : vector<8x32xf32>
    %cst_249 = arith.constant 1.42141378 : f32
    %530 = vector.broadcast %cst_249 : f32 to vector<8x32xf32>
    %531 = arith.addf %529, %530 : vector<8x32xf32>
    %532 = arith.mulf %531, %524 : vector<8x32xf32>
    %cst_250 = arith.constant -0.284496725 : f32
    %533 = vector.broadcast %cst_250 : f32 to vector<8x32xf32>
    %534 = arith.addf %532, %533 : vector<8x32xf32>
    %535 = arith.mulf %534, %524 : vector<8x32xf32>
    %cst_251 = arith.constant 0.254829586 : f32
    %536 = vector.broadcast %cst_251 : f32 to vector<8x32xf32>
    %537 = arith.addf %535, %536 : vector<8x32xf32>
    %538 = arith.mulf %537, %524 : vector<8x32xf32>
    %cst_252 = arith.constant 0.000000e+00 : f32
    %539 = vector.broadcast %cst_252 : f32 to vector<8x32xf32>
    %540 = arith.subf %539, %518 : vector<8x32xf32>
    %541 = arith.mulf %540, %518 : vector<8x32xf32>
    %542 = math.exp %541 : vector<8x32xf32>
    %543 = arith.mulf %538, %542 : vector<8x32xf32>
    %cst_253 = arith.constant 1.000000e+00 : f32
    %544 = vector.broadcast %cst_253 : f32 to vector<8x32xf32>
    %545 = arith.subf %544, %543 : vector<8x32xf32>
    %cst_254 = arith.constant 0.000000e+00 : f32
    %546 = vector.broadcast %cst_254 : f32 to vector<8x32xf32>
    %547 = arith.cmpf oge, %517, %546 : vector<8x32xf32>
    %cst_255 = arith.constant 0.000000e+00 : f32
    %548 = vector.broadcast %cst_255 : f32 to vector<8x32xf32>
    %549 = arith.subf %548, %545 : vector<8x32xf32>
    %550 = arith.select %547, %545, %549 : vector<8x32xi1>, vector<8x32xf32>
    %cst_256 = arith.constant 1.000000e+00 : f32
    %551 = vector.broadcast %cst_256 : f32 to vector<8x32xf32>
    %552 = arith.addf %551, %550 : vector<8x32xf32>
    %553 = arith.mulf %515, %552 : vector<8x32xf32>
    %c2_257 = arith.constant 2 : index
    %c0_258 = arith.constant 0 : index
    %c0_259 = arith.constant 0 : index
    %554 = vector.load %arg18[%c2_257, %c0_258, %c0_259] : memref<4x32x32xf32, #tpu.memory_space<vmem>>, vector<1x32x32xf32>
    %555 = vector.shape_cast %554 : vector<1x32x32xf32> to vector<32x32xf32>
    %cst_260 = arith.constant dense<0.000000e+00> : vector<8x32xf32>
    %556 = tpu.matmul %553, %555, %cst_260 {dimension_numbers = #tpu.dot_dimension_numbers<[1], [0], [0], [1], [0, 0, 1, 1], [], []>} : vector<8x32xf32>, vector<32x32xf32>, vector<8x32xf32> -> vector<8x32xf32>
    %c2_261 = arith.constant 2 : index
    %c0_262 = arith.constant 0 : index
    %c0_263 = arith.constant 0 : index
    %557 = vector.load %arg19[%c2_261, %c0_262, %c0_263] : memref<4x1x32xf32, #tpu.memory_space<vmem>>, vector<1x1x32xf32>
    %558 = vector.shape_cast %557 : vector<1x1x32xf32> to vector<1x32xf32>
    %559 = vector.broadcast %558 : vector<1x32xf32> to vector<8x32xf32>
    %560 = arith.addf %556, %559 : vector<8x32xf32>
    %561 = vector.extract_strided_slice %389 {offsets = [0, 2], sizes = [8, 1], strides = [1, 1]} : vector<8x4xf32> to vector<8x1xf32>
    %562 = vector.broadcast %561 : vector<8x1xf32> to vector<8x32xf32>
    %563 = arith.mulf %560, %562 : vector<8x32xf32>
    %564 = arith.addf %506, %563 : vector<8x32xf32>
    %c3 = arith.constant 3 : index
    %c0_264 = arith.constant 0 : index
    %c0_265 = arith.constant 0 : index
    %565 = vector.load %arg16[%c3, %c0_264, %c0_265] : memref<4x32x32xf32, #tpu.memory_space<vmem>>, vector<1x32x32xf32>
    %566 = vector.shape_cast %565 : vector<1x32x32xf32> to vector<32x32xf32>
    %cst_266 = arith.constant dense<0.000000e+00> : vector<8x32xf32>
    %567 = tpu.matmul %1, %566, %cst_266 {dimension_numbers = #tpu.dot_dimension_numbers<[1], [0], [0], [1], [0, 0, 1, 1], [], []>} : vector<8x32xf32>, vector<32x32xf32>, vector<8x32xf32> -> vector<8x32xf32>
    %c3_267 = arith.constant 3 : index
    %c0_268 = arith.constant 0 : index
    %c0_269 = arith.constant 0 : index
    %568 = vector.load %arg17[%c3_267, %c0_268, %c0_269] : memref<4x1x32xf32, #tpu.memory_space<vmem>>, vector<1x1x32xf32>
    %569 = vector.shape_cast %568 : vector<1x1x32xf32> to vector<1x32xf32>
    %570 = vector.broadcast %569 : vector<1x32xf32> to vector<8x32xf32>
    %571 = arith.addf %567, %570 : vector<8x32xf32>
    %cst_270 = arith.constant 5.000000e-01 : f32
    %572 = vector.broadcast %cst_270 : f32 to vector<8x32xf32>
    %573 = arith.mulf %572, %571 : vector<8x32xf32>
    %cst_271 = arith.constant 0.707106769 : f32
    %574 = vector.broadcast %cst_271 : f32 to vector<8x32xf32>
    %575 = arith.mulf %571, %574 : vector<8x32xf32>
    %576 = math.absf %575 : vector<8x32xf32>
    %cst_272 = arith.constant 0.327591091 : f32
    %577 = vector.broadcast %cst_272 : f32 to vector<8x32xf32>
    %578 = arith.mulf %577, %576 : vector<8x32xf32>
    %cst_273 = arith.constant 1.000000e+00 : f32
    %579 = vector.broadcast %cst_273 : f32 to vector<8x32xf32>
    %580 = arith.addf %579, %578 : vector<8x32xf32>
    %cst_274 = arith.constant 1.000000e+00 : f32
    %581 = vector.broadcast %cst_274 : f32 to vector<8x32xf32>
    %582 = arith.divf %581, %580 : vector<8x32xf32>
    %cst_275 = arith.constant 1.06140542 : f32
    %583 = vector.broadcast %cst_275 : f32 to vector<8x32xf32>
    %584 = arith.mulf %583, %582 : vector<8x32xf32>
    %cst_276 = arith.constant -1.45315206 : f32
    %585 = vector.broadcast %cst_276 : f32 to vector<8x32xf32>
    %586 = arith.addf %584, %585 : vector<8x32xf32>
    %587 = arith.mulf %586, %582 : vector<8x32xf32>
    %cst_277 = arith.constant 1.42141378 : f32
    %588 = vector.broadcast %cst_277 : f32 to vector<8x32xf32>
    %589 = arith.addf %587, %588 : vector<8x32xf32>
    %590 = arith.mulf %589, %582 : vector<8x32xf32>
    %cst_278 = arith.constant -0.284496725 : f32
    %591 = vector.broadcast %cst_278 : f32 to vector<8x32xf32>
    %592 = arith.addf %590, %591 : vector<8x32xf32>
    %593 = arith.mulf %592, %582 : vector<8x32xf32>
    %cst_279 = arith.constant 0.254829586 : f32
    %594 = vector.broadcast %cst_279 : f32 to vector<8x32xf32>
    %595 = arith.addf %593, %594 : vector<8x32xf32>
    %596 = arith.mulf %595, %582 : vector<8x32xf32>
    %cst_280 = arith.constant 0.000000e+00 : f32
    %597 = vector.broadcast %cst_280 : f32 to vector<8x32xf32>
    %598 = arith.subf %597, %576 : vector<8x32xf32>
    %599 = arith.mulf %598, %576 : vector<8x32xf32>
    %600 = math.exp %599 : vector<8x32xf32>
    %601 = arith.mulf %596, %600 : vector<8x32xf32>
    %cst_281 = arith.constant 1.000000e+00 : f32
    %602 = vector.broadcast %cst_281 : f32 to vector<8x32xf32>
    %603 = arith.subf %602, %601 : vector<8x32xf32>
    %cst_282 = arith.constant 0.000000e+00 : f32
    %604 = vector.broadcast %cst_282 : f32 to vector<8x32xf32>
    %605 = arith.cmpf oge, %575, %604 : vector<8x32xf32>
    %cst_283 = arith.constant 0.000000e+00 : f32
    %606 = vector.broadcast %cst_283 : f32 to vector<8x32xf32>
    %607 = arith.subf %606, %603 : vector<8x32xf32>
    %608 = arith.select %605, %603, %607 : vector<8x32xi1>, vector<8x32xf32>
    %cst_284 = arith.constant 1.000000e+00 : f32
    %609 = vector.broadcast %cst_284 : f32 to vector<8x32xf32>
    %610 = arith.addf %609, %608 : vector<8x32xf32>
    %611 = arith.mulf %573, %610 : vector<8x32xf32>
    %c3_285 = arith.constant 3 : index
    %c0_286 = arith.constant 0 : index
    %c0_287 = arith.constant 0 : index
    %612 = vector.load %arg18[%c3_285, %c0_286, %c0_287] : memref<4x32x32xf32, #tpu.memory_space<vmem>>, vector<1x32x32xf32>
    %613 = vector.shape_cast %612 : vector<1x32x32xf32> to vector<32x32xf32>
    %cst_288 = arith.constant dense<0.000000e+00> : vector<8x32xf32>
    %614 = tpu.matmul %611, %613, %cst_288 {dimension_numbers = #tpu.dot_dimension_numbers<[1], [0], [0], [1], [0, 0, 1, 1], [], []>} : vector<8x32xf32>, vector<32x32xf32>, vector<8x32xf32> -> vector<8x32xf32>
    %c3_289 = arith.constant 3 : index
    %c0_290 = arith.constant 0 : index
    %c0_291 = arith.constant 0 : index
    %615 = vector.load %arg19[%c3_289, %c0_290, %c0_291] : memref<4x1x32xf32, #tpu.memory_space<vmem>>, vector<1x1x32xf32>
    %616 = vector.shape_cast %615 : vector<1x1x32xf32> to vector<1x32xf32>
    %617 = vector.broadcast %616 : vector<1x32xf32> to vector<8x32xf32>
    %618 = arith.addf %614, %617 : vector<8x32xf32>
    %619 = vector.extract_strided_slice %389 {offsets = [0, 3], sizes = [8, 1], strides = [1, 1]} : vector<8x4xf32> to vector<8x1xf32>
    %620 = vector.broadcast %619 : vector<8x1xf32> to vector<8x32xf32>
    %621 = arith.mulf %618, %620 : vector<8x32xf32>
    %622 = arith.addf %564, %621 : vector<8x32xf32>
    %c0_292 = arith.constant 0 : index
    %c0_293 = arith.constant 0 : index
    %623 = vector.load %arg20[%c0_292, %c0_293] : memref<32x3xf32, #tpu.memory_space<vmem>>, vector<32x3xf32>
    %cst_294 = arith.constant dense<0.000000e+00> : vector<8x3xf32>
    %624 = tpu.matmul %1, %623, %cst_294 {dimension_numbers = #tpu.dot_dimension_numbers<[1], [0], [0], [1], [0, 0, 1, 1], [], []>} : vector<8x32xf32>, vector<32x3xf32>, vector<8x3xf32> -> vector<8x3xf32>
    %c0_295 = arith.constant 0 : index
    %c0_296 = arith.constant 0 : index
    %625 = vector.load %arg21[%c0_295, %c0_296] : memref<1x3xf32, #tpu.memory_space<vmem>>, vector<1x3xf32>
    %626 = vector.broadcast %625 : vector<1x3xf32> to vector<8x3xf32>
    %627 = arith.addf %624, %626 : vector<8x3xf32>
    %cst_297 = arith.constant dense<0xFF800000> : vector<8xf32>
    %628 = vector.multi_reduction <maximumf>, %627, %cst_297 [1] : vector<8x3xf32> to vector<8xf32>
    %629 = vector.shape_cast %628 : vector<8xf32> to vector<8x1xf32>
    %630 = vector.broadcast %629 : vector<8x1xf32> to vector<8x3xf32>
    %631 = arith.subf %627, %630 : vector<8x3xf32>
    %632 = math.exp %631 : vector<8x3xf32>
    %cst_298 = arith.constant dense<0.000000e+00> : vector<8xf32>
    %633 = vector.multi_reduction <add>, %632, %cst_298 [1] : vector<8x3xf32> to vector<8xf32>
    %634 = vector.shape_cast %633 : vector<8xf32> to vector<8x1xf32>
    %635 = vector.broadcast %634 : vector<8x1xf32> to vector<8x3xf32>
    %636 = arith.divf %632, %635 : vector<8x3xf32>
    %cst_299 = arith.constant 0.000000e+00 : f32
    %637 = vector.broadcast %cst_299 : f32 to vector<8x32xf32>
    %c0_300 = arith.constant 0 : index
    %c0_301 = arith.constant 0 : index
    %c0_302 = arith.constant 0 : index
    %638 = vector.load %arg22[%c0_300, %c0_301, %c0_302] : memref<3x32x32xf32, #tpu.memory_space<vmem>>, vector<1x32x32xf32>
    %639 = vector.shape_cast %638 : vector<1x32x32xf32> to vector<32x32xf32>
    %cst_303 = arith.constant dense<0.000000e+00> : vector<8x32xf32>
    %640 = tpu.matmul %1, %639, %cst_303 {dimension_numbers = #tpu.dot_dimension_numbers<[1], [0], [0], [1], [0, 0, 1, 1], [], []>} : vector<8x32xf32>, vector<32x32xf32>, vector<8x32xf32> -> vector<8x32xf32>
    %c0_304 = arith.constant 0 : index
    %c0_305 = arith.constant 0 : index
    %c0_306 = arith.constant 0 : index
    %641 = vector.load %arg23[%c0_304, %c0_305, %c0_306] : memref<3x1x32xf32, #tpu.memory_space<vmem>>, vector<1x1x32xf32>
    %642 = vector.shape_cast %641 : vector<1x1x32xf32> to vector<1x32xf32>
    %643 = vector.broadcast %642 : vector<1x32xf32> to vector<8x32xf32>
    %644 = arith.addf %640, %643 : vector<8x32xf32>
    %cst_307 = arith.constant 5.000000e-01 : f32
    %645 = vector.broadcast %cst_307 : f32 to vector<8x32xf32>
    %646 = arith.mulf %645, %644 : vector<8x32xf32>
    %cst_308 = arith.constant 0.707106769 : f32
    %647 = vector.broadcast %cst_308 : f32 to vector<8x32xf32>
    %648 = arith.mulf %644, %647 : vector<8x32xf32>
    %649 = math.absf %648 : vector<8x32xf32>
    %cst_309 = arith.constant 0.327591091 : f32
    %650 = vector.broadcast %cst_309 : f32 to vector<8x32xf32>
    %651 = arith.mulf %650, %649 : vector<8x32xf32>
    %cst_310 = arith.constant 1.000000e+00 : f32
    %652 = vector.broadcast %cst_310 : f32 to vector<8x32xf32>
    %653 = arith.addf %652, %651 : vector<8x32xf32>
    %cst_311 = arith.constant 1.000000e+00 : f32
    %654 = vector.broadcast %cst_311 : f32 to vector<8x32xf32>
    %655 = arith.divf %654, %653 : vector<8x32xf32>
    %cst_312 = arith.constant 1.06140542 : f32
    %656 = vector.broadcast %cst_312 : f32 to vector<8x32xf32>
    %657 = arith.mulf %656, %655 : vector<8x32xf32>
    %cst_313 = arith.constant -1.45315206 : f32
    %658 = vector.broadcast %cst_313 : f32 to vector<8x32xf32>
    %659 = arith.addf %657, %658 : vector<8x32xf32>
    %660 = arith.mulf %659, %655 : vector<8x32xf32>
    %cst_314 = arith.constant 1.42141378 : f32
    %661 = vector.broadcast %cst_314 : f32 to vector<8x32xf32>
    %662 = arith.addf %660, %661 : vector<8x32xf32>
    %663 = arith.mulf %662, %655 : vector<8x32xf32>
    %cst_315 = arith.constant -0.284496725 : f32
    %664 = vector.broadcast %cst_315 : f32 to vector<8x32xf32>
    %665 = arith.addf %663, %664 : vector<8x32xf32>
    %666 = arith.mulf %665, %655 : vector<8x32xf32>
    %cst_316 = arith.constant 0.254829586 : f32
    %667 = vector.broadcast %cst_316 : f32 to vector<8x32xf32>
    %668 = arith.addf %666, %667 : vector<8x32xf32>
    %669 = arith.mulf %668, %655 : vector<8x32xf32>
    %cst_317 = arith.constant 0.000000e+00 : f32
    %670 = vector.broadcast %cst_317 : f32 to vector<8x32xf32>
    %671 = arith.subf %670, %649 : vector<8x32xf32>
    %672 = arith.mulf %671, %649 : vector<8x32xf32>
    %673 = math.exp %672 : vector<8x32xf32>
    %674 = arith.mulf %669, %673 : vector<8x32xf32>
    %cst_318 = arith.constant 1.000000e+00 : f32
    %675 = vector.broadcast %cst_318 : f32 to vector<8x32xf32>
    %676 = arith.subf %675, %674 : vector<8x32xf32>
    %cst_319 = arith.constant 0.000000e+00 : f32
    %677 = vector.broadcast %cst_319 : f32 to vector<8x32xf32>
    %678 = arith.cmpf oge, %648, %677 : vector<8x32xf32>
    %cst_320 = arith.constant 0.000000e+00 : f32
    %679 = vector.broadcast %cst_320 : f32 to vector<8x32xf32>
    %680 = arith.subf %679, %676 : vector<8x32xf32>
    %681 = arith.select %678, %676, %680 : vector<8x32xi1>, vector<8x32xf32>
    %cst_321 = arith.constant 1.000000e+00 : f32
    %682 = vector.broadcast %cst_321 : f32 to vector<8x32xf32>
    %683 = arith.addf %682, %681 : vector<8x32xf32>
    %684 = arith.mulf %646, %683 : vector<8x32xf32>
    %685 = vector.extract_strided_slice %636 {offsets = [0, 0], sizes = [8, 1], strides = [1, 1]} : vector<8x3xf32> to vector<8x1xf32>
    %686 = vector.broadcast %685 : vector<8x1xf32> to vector<8x32xf32>
    %687 = arith.mulf %684, %686 : vector<8x32xf32>
    %688 = arith.addf %637, %687 : vector<8x32xf32>
    %c1_322 = arith.constant 1 : index
    %c0_323 = arith.constant 0 : index
    %c0_324 = arith.constant 0 : index
    %689 = vector.load %arg22[%c1_322, %c0_323, %c0_324] : memref<3x32x32xf32, #tpu.memory_space<vmem>>, vector<1x32x32xf32>
    %690 = vector.shape_cast %689 : vector<1x32x32xf32> to vector<32x32xf32>
    %cst_325 = arith.constant dense<0.000000e+00> : vector<8x32xf32>
    %691 = tpu.matmul %1, %690, %cst_325 {dimension_numbers = #tpu.dot_dimension_numbers<[1], [0], [0], [1], [0, 0, 1, 1], [], []>} : vector<8x32xf32>, vector<32x32xf32>, vector<8x32xf32> -> vector<8x32xf32>
    %c1_326 = arith.constant 1 : index
    %c0_327 = arith.constant 0 : index
    %c0_328 = arith.constant 0 : index
    %692 = vector.load %arg23[%c1_326, %c0_327, %c0_328] : memref<3x1x32xf32, #tpu.memory_space<vmem>>, vector<1x1x32xf32>
    %693 = vector.shape_cast %692 : vector<1x1x32xf32> to vector<1x32xf32>
    %694 = vector.broadcast %693 : vector<1x32xf32> to vector<8x32xf32>
    %695 = arith.addf %691, %694 : vector<8x32xf32>
    %cst_329 = arith.constant 5.000000e-01 : f32
    %696 = vector.broadcast %cst_329 : f32 to vector<8x32xf32>
    %697 = arith.mulf %696, %695 : vector<8x32xf32>
    %cst_330 = arith.constant 0.707106769 : f32
    %698 = vector.broadcast %cst_330 : f32 to vector<8x32xf32>
    %699 = arith.mulf %695, %698 : vector<8x32xf32>
    %700 = math.absf %699 : vector<8x32xf32>
    %cst_331 = arith.constant 0.327591091 : f32
    %701 = vector.broadcast %cst_331 : f32 to vector<8x32xf32>
    %702 = arith.mulf %701, %700 : vector<8x32xf32>
    %cst_332 = arith.constant 1.000000e+00 : f32
    %703 = vector.broadcast %cst_332 : f32 to vector<8x32xf32>
    %704 = arith.addf %703, %702 : vector<8x32xf32>
    %cst_333 = arith.constant 1.000000e+00 : f32
    %705 = vector.broadcast %cst_333 : f32 to vector<8x32xf32>
    %706 = arith.divf %705, %704 : vector<8x32xf32>
    %cst_334 = arith.constant 1.06140542 : f32
    %707 = vector.broadcast %cst_334 : f32 to vector<8x32xf32>
    %708 = arith.mulf %707, %706 : vector<8x32xf32>
    %cst_335 = arith.constant -1.45315206 : f32
    %709 = vector.broadcast %cst_335 : f32 to vector<8x32xf32>
    %710 = arith.addf %708, %709 : vector<8x32xf32>
    %711 = arith.mulf %710, %706 : vector<8x32xf32>
    %cst_336 = arith.constant 1.42141378 : f32
    %712 = vector.broadcast %cst_336 : f32 to vector<8x32xf32>
    %713 = arith.addf %711, %712 : vector<8x32xf32>
    %714 = arith.mulf %713, %706 : vector<8x32xf32>
    %cst_337 = arith.constant -0.284496725 : f32
    %715 = vector.broadcast %cst_337 : f32 to vector<8x32xf32>
    %716 = arith.addf %714, %715 : vector<8x32xf32>
    %717 = arith.mulf %716, %706 : vector<8x32xf32>
    %cst_338 = arith.constant 0.254829586 : f32
    %718 = vector.broadcast %cst_338 : f32 to vector<8x32xf32>
    %719 = arith.addf %717, %718 : vector<8x32xf32>
    %720 = arith.mulf %719, %706 : vector<8x32xf32>
    %cst_339 = arith.constant 0.000000e+00 : f32
    %721 = vector.broadcast %cst_339 : f32 to vector<8x32xf32>
    %722 = arith.subf %721, %700 : vector<8x32xf32>
    %723 = arith.mulf %722, %700 : vector<8x32xf32>
    %724 = math.exp %723 : vector<8x32xf32>
    %725 = arith.mulf %720, %724 : vector<8x32xf32>
    %cst_340 = arith.constant 1.000000e+00 : f32
    %726 = vector.broadcast %cst_340 : f32 to vector<8x32xf32>
    %727 = arith.subf %726, %725 : vector<8x32xf32>
    %cst_341 = arith.constant 0.000000e+00 : f32
    %728 = vector.broadcast %cst_341 : f32 to vector<8x32xf32>
    %729 = arith.cmpf oge, %699, %728 : vector<8x32xf32>
    %cst_342 = arith.constant 0.000000e+00 : f32
    %730 = vector.broadcast %cst_342 : f32 to vector<8x32xf32>
    %731 = arith.subf %730, %727 : vector<8x32xf32>
    %732 = arith.select %729, %727, %731 : vector<8x32xi1>, vector<8x32xf32>
    %cst_343 = arith.constant 1.000000e+00 : f32
    %733 = vector.broadcast %cst_343 : f32 to vector<8x32xf32>
    %734 = arith.addf %733, %732 : vector<8x32xf32>
    %735 = arith.mulf %697, %734 : vector<8x32xf32>
    %736 = vector.extract_strided_slice %636 {offsets = [0, 1], sizes = [8, 1], strides = [1, 1]} : vector<8x3xf32> to vector<8x1xf32>
    %737 = vector.broadcast %736 : vector<8x1xf32> to vector<8x32xf32>
    %738 = arith.mulf %735, %737 : vector<8x32xf32>
    %739 = arith.addf %688, %738 : vector<8x32xf32>
    %c2_344 = arith.constant 2 : index
    %c0_345 = arith.constant 0 : index
    %c0_346 = arith.constant 0 : index
    %740 = vector.load %arg22[%c2_344, %c0_345, %c0_346] : memref<3x32x32xf32, #tpu.memory_space<vmem>>, vector<1x32x32xf32>
    %741 = vector.shape_cast %740 : vector<1x32x32xf32> to vector<32x32xf32>
    %cst_347 = arith.constant dense<0.000000e+00> : vector<8x32xf32>
    %742 = tpu.matmul %1, %741, %cst_347 {dimension_numbers = #tpu.dot_dimension_numbers<[1], [0], [0], [1], [0, 0, 1, 1], [], []>} : vector<8x32xf32>, vector<32x32xf32>, vector<8x32xf32> -> vector<8x32xf32>
    %c2_348 = arith.constant 2 : index
    %c0_349 = arith.constant 0 : index
    %c0_350 = arith.constant 0 : index
    %743 = vector.load %arg23[%c2_348, %c0_349, %c0_350] : memref<3x1x32xf32, #tpu.memory_space<vmem>>, vector<1x1x32xf32>
    %744 = vector.shape_cast %743 : vector<1x1x32xf32> to vector<1x32xf32>
    %745 = vector.broadcast %744 : vector<1x32xf32> to vector<8x32xf32>
    %746 = arith.addf %742, %745 : vector<8x32xf32>
    %cst_351 = arith.constant 5.000000e-01 : f32
    %747 = vector.broadcast %cst_351 : f32 to vector<8x32xf32>
    %748 = arith.mulf %747, %746 : vector<8x32xf32>
    %cst_352 = arith.constant 0.707106769 : f32
    %749 = vector.broadcast %cst_352 : f32 to vector<8x32xf32>
    %750 = arith.mulf %746, %749 : vector<8x32xf32>
    %751 = math.absf %750 : vector<8x32xf32>
    %cst_353 = arith.constant 0.327591091 : f32
    %752 = vector.broadcast %cst_353 : f32 to vector<8x32xf32>
    %753 = arith.mulf %752, %751 : vector<8x32xf32>
    %cst_354 = arith.constant 1.000000e+00 : f32
    %754 = vector.broadcast %cst_354 : f32 to vector<8x32xf32>
    %755 = arith.addf %754, %753 : vector<8x32xf32>
    %cst_355 = arith.constant 1.000000e+00 : f32
    %756 = vector.broadcast %cst_355 : f32 to vector<8x32xf32>
    %757 = arith.divf %756, %755 : vector<8x32xf32>
    %cst_356 = arith.constant 1.06140542 : f32
    %758 = vector.broadcast %cst_356 : f32 to vector<8x32xf32>
    %759 = arith.mulf %758, %757 : vector<8x32xf32>
    %cst_357 = arith.constant -1.45315206 : f32
    %760 = vector.broadcast %cst_357 : f32 to vector<8x32xf32>
    %761 = arith.addf %759, %760 : vector<8x32xf32>
    %762 = arith.mulf %761, %757 : vector<8x32xf32>
    %cst_358 = arith.constant 1.42141378 : f32
    %763 = vector.broadcast %cst_358 : f32 to vector<8x32xf32>
    %764 = arith.addf %762, %763 : vector<8x32xf32>
    %765 = arith.mulf %764, %757 : vector<8x32xf32>
    %cst_359 = arith.constant -0.284496725 : f32
    %766 = vector.broadcast %cst_359 : f32 to vector<8x32xf32>
    %767 = arith.addf %765, %766 : vector<8x32xf32>
    %768 = arith.mulf %767, %757 : vector<8x32xf32>
    %cst_360 = arith.constant 0.254829586 : f32
    %769 = vector.broadcast %cst_360 : f32 to vector<8x32xf32>
    %770 = arith.addf %768, %769 : vector<8x32xf32>
    %771 = arith.mulf %770, %757 : vector<8x32xf32>
    %cst_361 = arith.constant 0.000000e+00 : f32
    %772 = vector.broadcast %cst_361 : f32 to vector<8x32xf32>
    %773 = arith.subf %772, %751 : vector<8x32xf32>
    %774 = arith.mulf %773, %751 : vector<8x32xf32>
    %775 = math.exp %774 : vector<8x32xf32>
    %776 = arith.mulf %771, %775 : vector<8x32xf32>
    %cst_362 = arith.constant 1.000000e+00 : f32
    %777 = vector.broadcast %cst_362 : f32 to vector<8x32xf32>
    %778 = arith.subf %777, %776 : vector<8x32xf32>
    %cst_363 = arith.constant 0.000000e+00 : f32
    %779 = vector.broadcast %cst_363 : f32 to vector<8x32xf32>
    %780 = arith.cmpf oge, %750, %779 : vector<8x32xf32>
    %cst_364 = arith.constant 0.000000e+00 : f32
    %781 = vector.broadcast %cst_364 : f32 to vector<8x32xf32>
    %782 = arith.subf %781, %778 : vector<8x32xf32>
    %783 = arith.select %780, %778, %782 : vector<8x32xi1>, vector<8x32xf32>
    %cst_365 = arith.constant 1.000000e+00 : f32
    %784 = vector.broadcast %cst_365 : f32 to vector<8x32xf32>
    %785 = arith.addf %784, %783 : vector<8x32xf32>
    %786 = arith.mulf %748, %785 : vector<8x32xf32>
    %787 = vector.extract_strided_slice %636 {offsets = [0, 2], sizes = [8, 1], strides = [1, 1]} : vector<8x3xf32> to vector<8x1xf32>
    %788 = vector.broadcast %787 : vector<8x1xf32> to vector<8x32xf32>
    %789 = arith.mulf %786, %788 : vector<8x32xf32>
    %790 = arith.addf %739, %789 : vector<8x32xf32>
    %cst_366 = arith.constant 2.000000e-01 : f32
    %791 = vector.broadcast %cst_366 : f32 to vector<8x32xf32>
    %792 = arith.mulf %791, %188 : vector<8x32xf32>
    %cst_367 = arith.constant 2.000000e-01 : f32
    %793 = vector.broadcast %cst_367 : f32 to vector<8x32xf32>
    %794 = arith.mulf %793, %622 : vector<8x32xf32>
    %795 = arith.addf %792, %794 : vector<8x32xf32>
    %cst_368 = arith.constant 2.000000e-01 : f32
    %796 = vector.broadcast %cst_368 : f32 to vector<8x32xf32>
    %797 = arith.mulf %796, %790 : vector<8x32xf32>
    %798 = arith.addf %795, %797 : vector<8x32xf32>
    %cst_369 = arith.constant 4.000000e-01 : f32
    %799 = vector.broadcast %cst_369 : f32 to vector<8x32xf32>
    %800 = arith.mulf %799, %375 : vector<8x32xf32>
    %801 = arith.addf %798, %800 : vector<8x32xf32>
    %c0_370 = arith.constant 0 : index
    %c0_371 = arith.constant 0 : index
    %802 = vector.load %arg24[%c0_370, %c0_371] : memref<32x32xf32, #tpu.memory_space<vmem>>, vector<32x32xf32>
    %cst_372 = arith.constant dense<0.000000e+00> : vector<8x32xf32>
    %803 = tpu.matmul %801, %802, %cst_372 {dimension_numbers = #tpu.dot_dimension_numbers<[1], [0], [0], [1], [0, 0, 1, 1], [], []>} : vector<8x32xf32>, vector<32x32xf32>, vector<8x32xf32> -> vector<8x32xf32>
    %c0_373 = arith.constant 0 : index
    %c0_374 = arith.constant 0 : index
    %804 = vector.load %arg25[%c0_373, %c0_374] : memref<1x32xf32, #tpu.memory_space<vmem>>, vector<1x32xf32>
    %805 = vector.broadcast %804 : vector<1x32xf32> to vector<8x32xf32>
    %806 = arith.addf %803, %805 : vector<8x32xf32>
    %c0_375 = arith.constant 0 : index
    %c0_376 = arith.constant 0 : index
    %c0_377 = arith.constant 0 : index
    %807 = vector.load %arg26[%c0_375, %c0_376, %c0_377] : memref<1x8x32xf32, #tpu.memory_space<vmem>>, vector<1x8x32xf32>
    %808 = vector.shape_cast %807 : vector<1x8x32xf32> to vector<8x32xf32>
    %809 = vector.shape_cast %806 : vector<8x32xf32> to vector<1x8x32xf32>
    tpu.vector_store %arg26[%c0_375, %c0_376, %c0_377], %809 {strides = array<i32>} : memref<1x8x32xf32, #tpu.memory_space<vmem>>, vector<1x8x32xf32>,
    %c0_378 = arith.constant 0 : index
    %c0_379 = arith.constant 0 : index
    %c0_380 = arith.constant 0 : index
    %810 = vector.load %arg27[%c0_378, %c0_379, %c0_380] : memref<1x8x3xf32, #tpu.memory_space<vmem>>, vector<1x8x3xf32>
    %811 = vector.shape_cast %810 : vector<1x8x3xf32> to vector<8x3xf32>
    %812 = vector.shape_cast %636 : vector<8x3xf32> to vector<1x8x3xf32>
    tpu.vector_store %arg27[%c0_378, %c0_379, %c0_380], %812 {strides = array<i32>} : memref<1x8x3xf32, #tpu.memory_space<vmem>>, vector<1x8x3xf32>,
    return
  }
  func.func @transform_0(%arg0: i32) -> (i32, i32, i32) {
    %c0_i32 = arith.constant 0 : i32
    %c0_i32_0 = arith.constant 0 : i32
    %c0_i32_1 = arith.constant 0 : i32
    return %arg0, %c0_i32, %c0_i32_0 : i32, i32, i32
  }
  func.func @transform_1(%arg0: i32) -> (i32, i32, i32) {
    %c0_i32 = arith.constant 0 : i32
    %c0_i32_0 = arith.constant 0 : i32
    %c0_i32_1 = arith.constant 0 : i32
    %c0_i32_2 = arith.constant 0 : i32
    return %c0_i32, %c0_i32_0, %c0_i32_1 : i32, i32, i32
  }
  func.func @transform_2(%arg0: i32) -> (i32, i32, i32) {
    %c0_i32 = arith.constant 0 : i32
    %c0_i32_0 = arith.constant 0 : i32
    %c0_i32_1 = arith.constant 0 : i32
    %c0_i32_2 = arith.constant 0 : i32
    return %c0_i32, %c0_i32_0, %c0_i32_1 : i32, i32, i32
  }
  func.func @transform_3(%arg0: i32) -> (i32, i32, i32) {
    %c0_i32 = arith.constant 0 : i32
    %c0_i32_0 = arith.constant 0 : i32
    %c0_i32_1 = arith.constant 0 : i32
    %c0_i32_2 = arith.constant 0 : i32
    return %c0_i32, %c0_i32_0, %c0_i32_1 : i32, i32, i32
  }
  func.func @transform_4(%arg0: i32) -> (i32, i32, i32) {
    %c0_i32 = arith.constant 0 : i32
    %c0_i32_0 = arith.constant 0 : i32
    %c0_i32_1 = arith.constant 0 : i32
    %c0_i32_2 = arith.constant 0 : i32
    return %c0_i32, %c0_i32_0, %c0_i32_1 : i32, i32, i32
  }
  func.func @transform_5(%arg0: i32) -> (i32, i32, i32) {
    %c0_i32 = arith.constant 0 : i32
    %c0_i32_0 = arith.constant 0 : i32
    %c0_i32_1 = arith.constant 0 : i32
    %c0_i32_2 = arith.constant 0 : i32
    return %c0_i32, %c0_i32_0, %c0_i32_1 : i32, i32, i32
  }
  func.func @transform_6(%arg0: i32) -> (i32, i32, i32) {
    %c0_i32 = arith.constant 0 : i32
    %c0_i32_0 = arith.constant 0 : i32
    %c0_i32_1 = arith.constant 0 : i32
    %c0_i32_2 = arith.constant 0 : i32
    return %c0_i32, %c0_i32_0, %c0_i32_1 : i32, i32, i32
  }
  func.func @transform_7(%arg0: i32) -> (i32, i32, i32) {
    %c0_i32 = arith.constant 0 : i32
    %c0_i32_0 = arith.constant 0 : i32
    %c0_i32_1 = arith.constant 0 : i32
    %c0_i32_2 = arith.constant 0 : i32
    return %c0_i32, %c0_i32_0, %c0_i32_1 : i32, i32, i32
  }
  func.func @transform_8(%arg0: i32) -> (i32, i32, i32) {
    %c0_i32 = arith.constant 0 : i32
    %c0_i32_0 = arith.constant 0 : i32
    %c0_i32_1 = arith.constant 0 : i32
    %c0_i32_2 = arith.constant 0 : i32
    return %c0_i32, %c0_i32_0, %c0_i32_1 : i32, i32, i32
  }
  func.func @transform_9(%arg0: i32) -> (i32, i32, i32) {
    %c0_i32 = arith.constant 0 : i32
    %c0_i32_0 = arith.constant 0 : i32
    %c0_i32_1 = arith.constant 0 : i32
    %c0_i32_2 = arith.constant 0 : i32
    return %c0_i32, %c0_i32_0, %c0_i32_1 : i32, i32, i32
  }
  func.func @transform_10(%arg0: i32) -> (i32, i32, i32) {
    %c0_i32 = arith.constant 0 : i32
    %c0_i32_0 = arith.constant 0 : i32
    %c0_i32_1 = arith.constant 0 : i32
    %c0_i32_2 = arith.constant 0 : i32
    return %c0_i32, %c0_i32_0, %c0_i32_1 : i32, i32, i32
  }
  func.func @transform_11(%arg0: i32) -> (i32, i32, i32) {
    %c0_i32 = arith.constant 0 : i32
    %c0_i32_0 = arith.constant 0 : i32
    %c0_i32_1 = arith.constant 0 : i32
    %c0_i32_2 = arith.constant 0 : i32
    return %c0_i32, %c0_i32_0, %c0_i32_1 : i32, i32, i32
  }
  func.func @transform_12(%arg0: i32) -> (i32, i32, i32) {
    %c0_i32 = arith.constant 0 : i32
    %c0_i32_0 = arith.constant 0 : i32
    %c0_i32_1 = arith.constant 0 : i32
    %c0_i32_2 = arith.constant 0 : i32
    return %c0_i32, %c0_i32_0, %c0_i32_1 : i32, i32, i32
  }
  func.func @transform_13(%arg0: i32) -> (i32, i32) {
    %c0_i32 = arith.constant 0 : i32
    %c0_i32_0 = arith.constant 0 : i32
    %c0_i32_1 = arith.constant 0 : i32
    return %c0_i32, %c0_i32_0 : i32, i32
  }
  func.func @transform_14(%arg0: i32) -> (i32, i32) {
    %c0_i32 = arith.constant 0 : i32
    %c0_i32_0 = arith.constant 0 : i32
    %c0_i32_1 = arith.constant 0 : i32
    return %c0_i32, %c0_i32_0 : i32, i32
  }
  func.func @transform_15(%arg0: i32) -> (i32, i32, i32) {
    %c0_i32 = arith.constant 0 : i32
    %c0_i32_0 = arith.constant 0 : i32
    %c0_i32_1 = arith.constant 0 : i32
    %c0_i32_2 = arith.constant 0 : i32
    return %c0_i32, %c0_i32_0, %c0_i32_1 : i32, i32, i32
  }
  func.func @transform_16(%arg0: i32) -> (i32, i32, i32) {
    %c0_i32 = arith.constant 0 : i32
    %c0_i32_0 = arith.constant 0 : i32
    %c0_i32_1 = arith.constant 0 : i32
    %c0_i32_2 = arith.constant 0 : i32
    return %c0_i32, %c0_i32_0, %c0_i32_1 : i32, i32, i32
  }
  func.func @transform_17(%arg0: i32) -> (i32, i32, i32) {
    %c0_i32 = arith.constant 0 : i32
    %c0_i32_0 = arith.constant 0 : i32
    %c0_i32_1 = arith.constant 0 : i32
    %c0_i32_2 = arith.constant 0 : i32
    return %c0_i32, %c0_i32_0, %c0_i32_1 : i32, i32, i32
  }
  func.func @transform_18(%arg0: i32) -> (i32, i32, i32) {
    %c0_i32 = arith.constant 0 : i32
    %c0_i32_0 = arith.constant 0 : i32
    %c0_i32_1 = arith.constant 0 : i32
    %c0_i32_2 = arith.constant 0 : i32
    return %c0_i32, %c0_i32_0, %c0_i32_1 : i32, i32, i32
  }
  func.func @transform_19(%arg0: i32) -> (i32, i32) {
    %c0_i32 = arith.constant 0 : i32
    %c0_i32_0 = arith.constant 0 : i32
    %c0_i32_1 = arith.constant 0 : i32
    return %c0_i32, %c0_i32_0 : i32, i32
  }
  func.func @transform_20(%arg0: i32) -> (i32, i32) {
    %c0_i32 = arith.constant 0 : i32
    %c0_i32_0 = arith.constant 0 : i32
    %c0_i32_1 = arith.constant 0 : i32
    return %c0_i32, %c0_i32_0 : i32, i32
  }
  func.func @transform_21(%arg0: i32) -> (i32, i32, i32) {
    %c0_i32 = arith.constant 0 : i32
    %c0_i32_0 = arith.constant 0 : i32
    %c0_i32_1 = arith.constant 0 : i32
    %c0_i32_2 = arith.constant 0 : i32
    return %c0_i32, %c0_i32_0, %c0_i32_1 : i32, i32, i32
  }
  func.func @transform_22(%arg0: i32) -> (i32, i32, i32) {
    %c0_i32 = arith.constant 0 : i32
    %c0_i32_0 = arith.constant 0 : i32
    %c0_i32_1 = arith.constant 0 : i32
    %c0_i32_2 = arith.constant 0 : i32
    return %c0_i32, %c0_i32_0, %c0_i32_1 : i32, i32, i32
  }
  func.func @transform_23(%arg0: i32) -> (i32, i32) {
    %c0_i32 = arith.constant 0 : i32
    %c0_i32_0 = arith.constant 0 : i32
    %c0_i32_1 = arith.constant 0 : i32
    return %c0_i32, %c0_i32_0 : i32, i32
  }
  func.func @transform_24(%arg0: i32) -> (i32, i32) {
    %c0_i32 = arith.constant 0 : i32
    %c0_i32_0 = arith.constant 0 : i32
    %c0_i32_1 = arith.constant 0 : i32
    return %c0_i32, %c0_i32_0 : i32, i32
  }
  func.func @transform_25(%arg0: i32) -> (i32, i32, i32) {
    %c0_i32 = arith.constant 0 : i32
    %c0_i32_0 = arith.constant 0 : i32
    %c0_i32_1 = arith.constant 0 : i32
    return %arg0, %c0_i32, %c0_i32_0 : i32, i32, i32
  }
  func.func @transform_26(%arg0: i32) -> (i32, i32, i32) {
    %c0_i32 = arith.constant 0 : i32
    %c0_i32_0 = arith.constant 0 : i32
    %c0_i32_1 = arith.constant 0 : i32
    return %arg0, %c0_i32, %c0_i32_0 : i32, i32, i32
  }
}

</mosaic_0001>

<llo_original>
// kernel: tpu_custom_call.1
$region0: #{tpu_custom_call.1}
  #allocation0 [shape = 'u32[]', space=smem, size = 0x4, offset = 0x4, fixed_abs, tag = 'smem constant byte address 0x4 - core index']
  #allocation1 [shape = 'u32[144,128]{1,0:T(1,128)}', space=vmem, size = 0x12000, scoped, tag = 'internal scratch']
  %s0 = inlined_call_operand.hbm [shape: f32[2,8,32], index: 0, kind: input, shape index: {}]
  %s1 = inlined_call_operand.hbm [shape: f32[2,1,32], index: 1, kind: input, shape index: {}]
  %s2 = inlined_call_operand.hbm [shape: f32[2,1,32], index: 2, kind: input, shape index: {}]
  %s3 = inlined_call_operand.hbm [shape: f32[2,32,96], index: 3, kind: input, shape index: {}]
  %s4 = inlined_call_operand.hbm [shape: f32[2,1,96], index: 4, kind: input, shape index: {}]
  %s5 = inlined_call_operand.hbm [shape: f32[2,32,32], index: 5, kind: input, shape index: {}]
  %s6 = inlined_call_operand.hbm [shape: f32[2,1,32], index: 6, kind: input, shape index: {}]
  %s7 = inlined_call_operand.hbm [shape: f32[2,1,32], index: 7, kind: input, shape index: {}]
  %s8 = inlined_call_operand.hbm [shape: f32[2,1,32], index: 8, kind: input, shape index: {}]
  %s9 = inlined_call_operand.hbm [shape: f32[2,32,128], index: 9, kind: input, shape index: {}]
  %s10 = inlined_call_operand.hbm [shape: f32[2,1,128], index: 10, kind: input, shape index: {}]
  %s11 = inlined_call_operand.vmem [shape: f32[2,128,32], index: 11, kind: input, shape index: {}]
  %s12 = inlined_call_operand.hbm [shape: f32[2,1,32], index: 12, kind: input, shape index: {}]
  %s13 = inlined_call_operand.vmem [shape: f32[32,4], index: 13, kind: input, shape index: {}]
  %s14 = inlined_call_operand.hbm [shape: f32[1,4], index: 14, kind: input, shape index: {}]
  %s15 = inlined_call_operand.vmem [shape: f32[4,32,32], index: 15, kind: input, shape index: {}]
  %s16 = inlined_call_operand.vmem [shape: f32[4,1,32], index: 16, kind: input, shape index: {}]
  %s17 = inlined_call_operand.vmem [shape: f32[4,32,32], index: 17, kind: input, shape index: {}]
  %s18 = inlined_call_operand.vmem [shape: f32[4,1,32], index: 18, kind: input, shape index: {}]
  %s19 = inlined_call_operand.vmem [shape: f32[32,3], index: 19, kind: input, shape index: {}]
  %s20 = inlined_call_operand.vmem [shape: f32[1,3], index: 20, kind: input, shape index: {}]
  %s21 = inlined_call_operand.vmem [shape: f32[3,32,32], index: 21, kind: input, shape index: {}]
  %s22 = inlined_call_operand.vmem [shape: f32[3,1,32], index: 22, kind: input, shape index: {}]
  %s23 = inlined_call_operand.vmem [shape: f32[32,32], index: 23, kind: input, shape index: {}]
  %s24 = inlined_call_operand.vmem [shape: f32[1,32], index: 24, kind: input, shape index: {}]
  %s25 = inlined_call_operand.hbm [shape: f32[2,8,32], index: 25, kind: output, shape index: {0}]
  %s26 = inlined_call_operand.vmem [shape: f32[2,8,3], index: 26, kind: output, shape index: {1}]
  %27 = xla_tuple %s25, %s26
  %s28 = sld [smem:[#allocation0]]
  $region193: #{tpu_custom_call.1} parent=0
    _
  %s30 = ssub.s32 1, %s28
  %s31 = scalar_select 0, %s30, %s28
  $region1: #{tpu_custom_call.1} parent=0
    #allocation2 [shape = 'u8[8192]{0}', space=vmem, size = 0x2000, scoped, tag = 'input window, operand 0']
    #allocation3 [shape = 's32[2]{0}', space=sflag, size = 0x8, scoped, tag = 'scoped memory for tpu_custom_call.1']
    #allocation4 [shape = 's32[2]{0}', space=sflag, size = 0x8, scoped, tag = 'scoped memory for tpu_custom_call.1']
    #allocation5 [shape = 'u8[1024]{0}', space=vmem, size = 0x400, scoped, tag = 'input window, operand 1, single buffered']
    #allocation6 [shape = 's32[1]{0}', space=sflag, size = 0x4, scoped, tag = 'scoped memory for tpu_custom_call.1']
    #allocation7 [shape = 'u8[1024]{0}', space=vmem, size = 0x400, scoped, tag = 'input window, operand 2, single buffered']
    #allocation8 [shape = 'u8[32768]{0}', space=vmem, size = 0x8000, scoped, tag = 'input window, operand 3, single buffered']
    #allocation9 [shape = 's32[1]{0}', space=sflag, size = 0x4, scoped, tag = 'scoped memory for tpu_custom_call.1']
    #allocation10 [shape = 'u8[1024]{0}', space=vmem, size = 0x400, scoped, tag = 'input window, operand 4, single buffered']
    #allocation11 [shape = 'u8[32768]{0}', space=vmem, size = 0x8000, scoped, tag = 'input window, operand 5, single buffered']
    #allocation12 [shape = 's32[1]{0}', space=sflag, size = 0x4, scoped, tag = 'scoped memory for tpu_custom_call.1']
    #allocation13 [shape = 'u8[1024]{0}', space=vmem, size = 0x400, scoped, tag = 'input window, operand 6, single buffered']
    #allocation14 [shape = 'u8[1024]{0}', space=vmem, size = 0x400, scoped, tag = 'input window, operand 7, single buffered']
    #allocation15 [shape = 's32[1]{0}', space=sflag, size = 0x4, scoped, tag = 'scoped memory for tpu_custom_call.1']
    #allocation16 [shape = 'u8[1024]{0}', space=vmem, size = 0x400, scoped, tag = 'input window, operand 8, single buffered']
    #allocation17 [shape = 'u8[32768]{0}', space=vmem, size = 0x8000, scoped, tag = 'input window, operand 9, single buffered']
    #allocation18 [shape = 's32[1]{0}', space=sflag, size = 0x4, scoped, tag = 'scoped memory for tpu_custom_call.1']
    #allocation19 [shape = 'u8[1024]{0}', space=vmem, size = 0x400, scoped, tag = 'input window, operand 10, single buffered']
    #allocation20 [shape = 'u8[1024]{0}', space=vmem, size = 0x400, scoped, tag = 'input window, operand 12, single buffered']
    #allocation21 [shape = 's32[1]{0}', space=sflag, size = 0x4, scoped, tag = 'scoped memory for tpu_custom_call.1']
    #allocation22 [shape = 'u8[512]{0}', space=vmem, size = 0x400, scoped, tag = 'input window, operand 14, single buffered']
    #allocation23 [shape = 'u8[8192]{0}', space=vmem, size = 0x2000, scoped, tag = 'output window, operand 0']
    %32 = vsyncpa [#allocation3], 0
    %s33 = scalar_lea.sflag [#allocation3], 1
    %34 = vsyncpa %s33, 0
    %35 = vsyncpa [#allocation6], 0
    %36 = vsyncpa [#allocation9], 0
    %37 = vsyncpa [#allocation12], 0
    %38 = vsyncpa [#allocation15], 0
    %39 = vsyncpa [#allocation18], 0
    %40 = vsyncpa [#allocation21], 0
    %41 = vsyncpa [#allocation4], 0
    %s42 = scalar_lea.sflag [#allocation4], 1
    %43 = vsyncpa %s42, 0
    loop: start=0, step=1, limit=4
    $region2: #{tpu_custom_call.1} parent=1 // loop_pre_header
      _
    $region3: #{tpu_custom_call.1} parent=1 // loop_header
      %s45 = sphi 0, %s49
      %p46 = scmp.ge.s32.totalorder %s45, 4
      %s55 = sphi 0, %s57
      %s58 = sphi 0, %s55
      %s59 = sphi 0, %s58
      %s75 = sphi 0, %s59
      %s79 = sphi 0, %s79
      %s81 = sphi 0, %s79
      %s82 = sphi 0, %s81
      %s96 = sphi 0, %s82
      %s100 = sphi 0, %s100
      %s102 = sphi 0, %s100
      %s103 = sphi 0, %s102
      %s117 = sphi 0, %s103
      %s121 = sphi 0, %s121
      %s123 = sphi 0, %s121
      %s124 = sphi 0, %s123
      %s138 = sphi 0, %s124
      %s142 = sphi 0, %s142
      %s144 = sphi 0, %s142
      %s145 = sphi 0, %s144
      %s159 = sphi 0, %s145
      %s163 = sphi 0, %s163
      %s165 = sphi 0, %s163
      %s166 = sphi 0, %s165
      %s180 = sphi 0, %s166
      %s184 = sphi 0, %s184
      %s186 = sphi 0, %s184
      %s187 = sphi 0, %s186
      %s201 = sphi 0, %s187
      %s205 = sphi 0, %s205
      %s207 = sphi 0, %s205
      %s208 = sphi 0, %s207
      %s222 = sphi 0, %s208
      %s226 = sphi 0, %s226
      %s228 = sphi 0, %s226
      %s229 = sphi 0, %s228
      %s243 = sphi 0, %s229
      %s247 = sphi 0, %s247
      %s249 = sphi 0, %s247
      %s250 = sphi 0, %s249
      %s264 = sphi 0, %s250
      %s268 = sphi 0, %s268
      %s270 = sphi 0, %s268
      %s271 = sphi 0, %s270
      %s285 = sphi 0, %s271
      %s289 = sphi 0, %s289
      %s291 = sphi 0, %s289
      %s292 = sphi 0, %s291
      %s306 = sphi 0, %s292
      %s310 = sphi 0, %s310
      %s312 = sphi 0, %s310
      %s313 = sphi 0, %s312
      %s327 = sphi 0, %s313
      %s331 = sphi 0, %s331
      %s333 = sphi 0, %s331
      %s334 = sphi 0, %s333
      %s348 = sphi 0, %s334
      %s352 = sphi 0, %s352
      %s354 = sphi 0, %s352
      %s355 = sphi 0, %s354
      %s369 = sphi 0, %s355
      %s373 = sphi 0, %s373
      %s375 = sphi 0, %s373
      %s376 = sphi 0, %s375
      %s390 = sphi 0, %s376
      %s394 = sphi 0, %s394
      %s396 = sphi 0, %s394
      %s397 = sphi 0, %s396
      %s411 = sphi 0, %s397
      %s415 = sphi 0, %s415
      %s417 = sphi 0, %s415
      %s418 = sphi 0, %s417
      %s432 = sphi 0, %s418
      %s436 = sphi 0, %s436
      %s438 = sphi 0, %s436
      %s439 = sphi 0, %s438
      %s453 = sphi 0, %s439
      %s457 = sphi 0, %s457
      %s459 = sphi 0, %s457
      %s460 = sphi 0, %s459
      %s474 = sphi 0, %s460
      %s478 = sphi 0, %s478
      %s480 = sphi 0, %s478
      %s481 = sphi 0, %s480
      %s495 = sphi 0, %s481
      %s499 = sphi 0, %s499
      %s501 = sphi 0, %s499
      %s502 = sphi 0, %s501
      %s516 = sphi 0, %s502
      %s520 = sphi 0, %s520
      %s522 = sphi 0, %s520
      %s523 = sphi 0, %s522
      %s537 = sphi 0, %s523
      %s541 = sphi 0, %s541
      %s543 = sphi 0, %s541
      %s544 = sphi 0, %s543
      %s558 = sphi 0, %s544
      %s562 = sphi 0, %s562
      %s564 = sphi 0, %s562
      %s565 = sphi 0, %s564
      %s579 = sphi 0, %s565
      %s585 = sphi 0, %s587
      %s588 = sphi 0, %s585
      %s589 = sphi 0, %s588
      %s605 = sphi 0, %s589
      %s611 = sphi 0, %s613
      %s614 = sphi 0, %s611
      %s615 = sphi 0, %s614
      %s631 = sphi 0, %s615
    $region4: #{tpu_custom_call.1} parent=1 // loop_header_branch
      %48 = sbr.rel (%p46) target = $region8
    $region5: #{tpu_custom_call.1} parent=1 // loop_body
      %s50 = ssub.s32 %s45, 1
      %s51 = ssub.s32 %s45, 2
      %s52 = sadd.s32 %s45, 1
      %s53 = ssub.s32 %s45, %s52
      %p54 = scmp.eq.s32.totalorder %s53, 0
      %s56 = sadd.s32 %s55, 1
      %s57 = scalar_select %p54, %s55, %s56
      %p60 = pneg %p54
      %p61 = scmp.eq.s32.totalorder %s45, 1
      %p62 = por %p60, %p61
      %p63 = scmp.ne.s32.totalorder %s55, %s58
      %p64 = scmp.eq.s32.totalorder %s45, 0
      %p65 = por %p63, %p64
      %p66 = scmp.ne.s32.totalorder %s55, %s58
      %p67 = scmp.eq.s32.totalorder %s50, 1
      %p68 = por %p66, %p67
      %p69 = scmp.ne.s32.totalorder %s58, %s59
      %p70 = scmp.eq.s32.totalorder %s50, 0
      %p71 = por %p69, %p70
      %p72 = scmp.ne.s32.totalorder %s58, %s59
      %p73 = scmp.eq.s32.totalorder %s51, 1
      %p74 = por %p72, %p73
      %p76 = scmp.ne.s32.totalorder %s59, %s75
      %p77 = scmp.eq.s32.totalorder %s51, 0
      %p78 = por %p76, %p77
      %s80 = sadd.s32 %s79, 1
      %p83 = scmp.eq.s32.totalorder %s45, 1
      %p84 = scmp.ne.s32.totalorder %s79, %s81
      %p85 = scmp.eq.s32.totalorder %s45, 0
      %p86 = por %p84, %p85
      %p87 = scmp.ne.s32.totalorder %s79, %s81
      %p88 = scmp.eq.s32.totalorder %s50, 1
      %p89 = por %p87, %p88
      %p90 = scmp.ne.s32.totalorder %s81, %s82
      %p91 = scmp.eq.s32.totalorder %s50, 0
      %p92 = por %p90, %p91
      %p93 = scmp.ne.s32.totalorder %s81, %s82
      %p94 = scmp.eq.s32.totalorder %s51, 1
      %p95 = por %p93, %p94
      %p97 = scmp.ne.s32.totalorder %s82, %s96
      %p98 = scmp.eq.s32.totalorder %s51, 0
      %p99 = por %p97, %p98
      %s101 = sadd.s32 %s100, 1
      %p104 = scmp.eq.s32.totalorder %s45, 1
      %p105 = scmp.ne.s32.totalorder %s100, %s102
      %p106 = scmp.eq.s32.totalorder %s45, 0
      %p107 = por %p105, %p106
      %p108 = scmp.ne.s32.totalorder %s100, %s102
      %p109 = scmp.eq.s32.totalorder %s50, 1
      %p110 = por %p108, %p109
      %p111 = scmp.ne.s32.totalorder %s102, %s103
      %p112 = scmp.eq.s32.totalorder %s50, 0
      %p113 = por %p111, %p112
      %p114 = scmp.ne.s32.totalorder %s102, %s103
      %p115 = scmp.eq.s32.totalorder %s51, 1
      %p116 = por %p114, %p115
      %p118 = scmp.ne.s32.totalorder %s103, %s117
      %p119 = scmp.eq.s32.totalorder %s51, 0
      %p120 = por %p118, %p119
      %s122 = sadd.s32 %s121, 1
      %p125 = scmp.eq.s32.totalorder %s45, 1
      %p126 = scmp.ne.s32.totalorder %s121, %s123
      %p127 = scmp.eq.s32.totalorder %s45, 0
      %p128 = por %p126, %p127
      %p129 = scmp.ne.s32.totalorder %s121, %s123
      %p130 = scmp.eq.s32.totalorder %s50, 1
      %p131 = por %p129, %p130
      %p132 = scmp.ne.s32.totalorder %s123, %s124
      %p133 = scmp.eq.s32.totalorder %s50, 0
      %p134 = por %p132, %p133
      %p135 = scmp.ne.s32.totalorder %s123, %s124
      %p136 = scmp.eq.s32.totalorder %s51, 1
      %p137 = por %p135, %p136
      %p139 = scmp.ne.s32.totalorder %s124, %s138
      %p140 = scmp.eq.s32.totalorder %s51, 0
      %p141 = por %p139, %p140
      %s143 = sadd.s32 %s142, 1
      %p146 = scmp.eq.s32.totalorder %s45, 1
      %p147 = scmp.ne.s32.totalorder %s142, %s144
      %p148 = scmp.eq.s32.totalorder %s45, 0
      %p149 = por %p147, %p148
      %p150 = scmp.ne.s32.totalorder %s142, %s144
      %p151 = scmp.eq.s32.totalorder %s50, 1
      %p152 = por %p150, %p151
      %p153 = scmp.ne.s32.totalorder %s144, %s145
      %p154 = scmp.eq.s32.totalorder %s50, 0
      %p155 = por %p153, %p154
      %p156 = scmp.ne.s32.totalorder %s144, %s145
      %p157 = scmp.eq.s32.totalorder %s51, 1
      %p158 = por %p156, %p157
      %p160 = scmp.ne.s32.totalorder %s145, %s159
      %p161 = scmp.eq.s32.totalorder %s51, 0
      %p162 = por %p160, %p161
      %s164 = sadd.s32 %s163, 1
      %p167 = scmp.eq.s32.totalorder %s45, 1
      %p168 = scmp.ne.s32.totalorder %s163, %s165
      %p169 = scmp.eq.s32.totalorder %s45, 0
      %p170 = por %p168, %p169
      %p171 = scmp.ne.s32.totalorder %s163, %s165
      %p172 = scmp.eq.s32.totalorder %s50, 1
      %p173 = por %p171, %p172
      %p174 = scmp.ne.s32.totalorder %s165, %s166
      %p175 = scmp.eq.s32.totalorder %s50, 0
      %p176 = por %p174, %p175
      %p177 = scmp.ne.s32.totalorder %s165, %s166
      %p178 = scmp.eq.s32.totalorder %s51, 1
      %p179 = por %p177, %p178
      %p181 = scmp.ne.s32.totalorder %s166, %s180
      %p182 = scmp.eq.s32.totalorder %s51, 0
      %p183 = por %p181, %p182
      %s185 = sadd.s32 %s184, 1
      %p188 = scmp.eq.s32.totalorder %s45, 1
      %p189 = scmp.ne.s32.totalorder %s184, %s186
      %p190 = scmp.eq.s32.totalorder %s45, 0
      %p191 = por %p189, %p190
      %p192 = scmp.ne.s32.totalorder %s184, %s186
      %p193 = scmp.eq.s32.totalorder %s50, 1
      %p194 = por %p192, %p193
      %p195 = scmp.ne.s32.totalorder %s186, %s187
      %p196 = scmp.eq.s32.totalorder %s50, 0
      %p197 = por %p195, %p196
      %p198 = scmp.ne.s32.totalorder %s186, %s187
      %p199 = scmp.eq.s32.totalorder %s51, 1
      %p200 = por %p198, %p199
      %p202 = scmp.ne.s32.totalorder %s187, %s201
      %p203 = scmp.eq.s32.totalorder %s51, 0
      %p204 = por %p202, %p203
      %s206 = sadd.s32 %s205, 1
      %p209 = scmp.eq.s32.totalorder %s45, 1
      %p210 = scmp.ne.s32.totalorder %s205, %s207
      %p211 = scmp.eq.s32.totalorder %s45, 0
      %p212 = por %p210, %p211
      %p213 = scmp.ne.s32.totalorder %s205, %s207
      %p214 = scmp.eq.s32.totalorder %s50, 1
      %p215 = por %p213, %p214
      %p216 = scmp.ne.s32.totalorder %s207, %s208
      %p217 = scmp.eq.s32.totalorder %s50, 0
      %p218 = por %p216, %p217
      %p219 = scmp.ne.s32.totalorder %s207, %s208
      %p220 = scmp.eq.s32.totalorder %s51, 1
      %p221 = por %p219, %p220
      %p223 = scmp.ne.s32.totalorder %s208, %s222
      %p224 = scmp.eq.s32.totalorder %s51, 0
      %p225 = por %p223, %p224
      %s227 = sadd.s32 %s226, 1
      %p230 = scmp.eq.s32.totalorder %s45, 1
      %p231 = scmp.ne.s32.totalorder %s226, %s228
      %p232 = scmp.eq.s32.totalorder %s45, 0
      %p233 = por %p231, %p232
      %p234 = scmp.ne.s32.totalorder %s226, %s228
      %p235 = scmp.eq.s32.totalorder %s50, 1
      %p236 = por %p234, %p235
      %p237 = scmp.ne.s32.totalorder %s228, %s229
      %p238 = scmp.eq.s32.totalorder %s50, 0
      %p239 = por %p237, %p238
      %p240 = scmp.ne.s32.totalorder %s228, %s229
      %p241 = scmp.eq.s32.totalorder %s51, 1
      %p242 = por %p240, %p241
      %p244 = scmp.ne.s32.totalorder %s229, %s243
      %p245 = scmp.eq.s32.totalorder %s51, 0
      %p246 = por %p244, %p245
      %s248 = sadd.s32 %s247, 1
      %p251 = scmp.eq.s32.totalorder %s45, 1
      %p252 = scmp.ne.s32.totalorder %s247, %s249
      %p253 = scmp.eq.s32.totalorder %s45, 0
      %p254 = por %p252, %p253
      %p255 = scmp.ne.s32.totalorder %s247, %s249
      %p256 = scmp.eq.s32.totalorder %s50, 1
      %p257 = por %p255, %p256
      %p258 = scmp.ne.s32.totalorder %s249, %s250
      %p259 = scmp.eq.s32.totalorder %s50, 0
      %p260 = por %p258, %p259
      %p261 = scmp.ne.s32.totalorder %s249, %s250
      %p262 = scmp.eq.s32.totalorder %s51, 1
      %p263 = por %p261, %p262
      %p265 = scmp.ne.s32.totalorder %s250, %s264
      %p266 = scmp.eq.s32.totalorder %s51, 0
      %p267 = por %p265, %p266
      %s269 = sadd.s32 %s268, 1
      %p272 = scmp.eq.s32.totalorder %s45, 1
      %p273 = scmp.ne.s32.totalorder %s268, %s270
      %p274 = scmp.eq.s32.totalorder %s45, 0
      %p275 = por %p273, %p274
      %p276 = scmp.ne.s32.totalorder %s268, %s270
      %p277 = scmp.eq.s32.totalorder %s50, 1
      %p278 = por %p276, %p277
      %p279 = scmp.ne.s32.totalorder %s270, %s271
      %p280 = scmp.eq.s32.totalorder %s50, 0
      %p281 = por %p279, %p280
      %p282 = scmp.ne.s32.totalorder %s270, %s271
      %p283 = scmp.eq.s32.totalorder %s51, 1
      %p284 = por %p282, %p283
      %p286 = scmp.ne.s32.totalorder %s271, %s285
      %p287 = scmp.eq.s32.totalorder %s51, 0
      %p288 = por %p286, %p287
      %s290 = sadd.s32 %s289, 1
      %p293 = scmp.eq.s32.totalorder %s45, 1
      %p294 = scmp.ne.s32.totalorder %s289, %s291
      %p295 = scmp.eq.s32.totalorder %s45, 0
      %p296 = por %p294, %p295
      %p297 = scmp.ne.s32.totalorder %s289, %s291
      %p298 = scmp.eq.s32.totalorder %s50, 1
      %p299 = por %p297, %p298
      %p300 = scmp.ne.s32.totalorder %s291, %s292
      %p301 = scmp.eq.s32.totalorder %s50, 0
      %p302 = por %p300, %p301
      %p303 = scmp.ne.s32.totalorder %s291, %s292
      %p304 = scmp.eq.s32.totalorder %s51, 1
      %p305 = por %p303, %p304
      %p307 = scmp.ne.s32.totalorder %s292, %s306
      %p308 = scmp.eq.s32.totalorder %s51, 0
      %p309 = por %p307, %p308
      %s311 = sadd.s32 %s310, 1
      %p314 = scmp.eq.s32.totalorder %s45, 1
      %p315 = scmp.ne.s32.totalorder %s310, %s312
      %p316 = scmp.eq.s32.totalorder %s45, 0
      %p317 = por %p315, %p316
      %p318 = scmp.ne.s32.totalorder %s310, %s312
      %p319 = scmp.eq.s32.totalorder %s50, 1
      %p320 = por %p318, %p319
      %p321 = scmp.ne.s32.totalorder %s312, %s313
      %p322 = scmp.eq.s32.totalorder %s50, 0
      %p323 = por %p321, %p322
      %p324 = scmp.ne.s32.totalorder %s312, %s313
      %p325 = scmp.eq.s32.totalorder %s51, 1
      %p326 = por %p324, %p325
      %p328 = scmp.ne.s32.totalorder %s313, %s327
      %p329 = scmp.eq.s32.totalorder %s51, 0
      %p330 = por %p328, %p329
      %s332 = sadd.s32 %s331, 1
      %p335 = scmp.eq.s32.totalorder %s45, 1
      %p336 = scmp.ne.s32.totalorder %s331, %s333
      %p337 = scmp.eq.s32.totalorder %s45, 0
      %p338 = por %p336, %p337
      %p339 = scmp.ne.s32.totalorder %s331, %s333
      %p340 = scmp.eq.s32.totalorder %s50, 1
      %p341 = por %p339, %p340
      %p342 = scmp.ne.s32.totalorder %s333, %s334
      %p343 = scmp.eq.s32.totalorder %s50, 0
      %p344 = por %p342, %p343
      %p345 = scmp.ne.s32.totalorder %s333, %s334
      %p346 = scmp.eq.s32.totalorder %s51, 1
      %p347 = por %p345, %p346
      %p349 = scmp.ne.s32.totalorder %s334, %s348
      %p350 = scmp.eq.s32.totalorder %s51, 0
      %p351 = por %p349, %p350
      %s353 = sadd.s32 %s352, 1
      %p356 = scmp.eq.s32.totalorder %s45, 1
      %p357 = scmp.ne.s32.totalorder %s352, %s354
      %p358 = scmp.eq.s32.totalorder %s45, 0
      %p359 = por %p357, %p358
      %p360 = scmp.ne.s32.totalorder %s352, %s354
      %p361 = scmp.eq.s32.totalorder %s50, 1
      %p362 = por %p360, %p361
      %p363 = scmp.ne.s32.totalorder %s354, %s355
      %p364 = scmp.eq.s32.totalorder %s50, 0
      %p365 = por %p363, %p364
      %p366 = scmp.ne.s32.totalorder %s354, %s355
      %p367 = scmp.eq.s32.totalorder %s51, 1
      %p368 = por %p366, %p367
      %p370 = scmp.ne.s32.totalorder %s355, %s369
      %p371 = scmp.eq.s32.totalorder %s51, 0
      %p372 = por %p370, %p371
      %s374 = sadd.s32 %s373, 1
      %p377 = scmp.eq.s32.totalorder %s45, 1
      %p378 = scmp.ne.s32.totalorder %s373, %s375
      %p379 = scmp.eq.s32.totalorder %s45, 0
      %p380 = por %p378, %p379
      %p381 = scmp.ne.s32.totalorder %s373, %s375
      %p382 = scmp.eq.s32.totalorder %s50, 1
      %p383 = por %p381, %p382
      %p384 = scmp.ne.s32.totalorder %s375, %s376
      %p385 = scmp.eq.s32.totalorder %s50, 0
      %p386 = por %p384, %p385
      %p387 = scmp.ne.s32.totalorder %s375, %s376
      %p388 = scmp.eq.s32.totalorder %s51, 1
      %p389 = por %p387, %p388
      %p391 = scmp.ne.s32.totalorder %s376, %s390
      %p392 = scmp.eq.s32.totalorder %s51, 0
      %p393 = por %p391, %p392
      %s395 = sadd.s32 %s394, 1
      %p398 = scmp.eq.s32.totalorder %s45, 1
      %p399 = scmp.ne.s32.totalorder %s394, %s396
      %p400 = scmp.eq.s32.totalorder %s45, 0
      %p401 = por %p399, %p400
      %p402 = scmp.ne.s32.totalorder %s394, %s396
      %p403 = scmp.eq.s32.totalorder %s50, 1
      %p404 = por %p402, %p403
      %p405 = scmp.ne.s32.totalorder %s396, %s397
      %p406 = scmp.eq.s32.totalorder %s50, 0
      %p407 = por %p405, %p406
      %p408 = scmp.ne.s32.totalorder %s396, %s397
      %p409 = scmp.eq.s32.totalorder %s51, 1
      %p410 = por %p408, %p409
      %p412 = scmp.ne.s32.totalorder %s397, %s411
      %p413 = scmp.eq.s32.totalorder %s51, 0
      %p414 = por %p412, %p413
      %s416 = sadd.s32 %s415, 1
      %p419 = scmp.eq.s32.totalorder %s45, 1
      %p420 = scmp.ne.s32.totalorder %s415, %s417
      %p421 = scmp.eq.s32.totalorder %s45, 0
      %p422 = por %p420, %p421
      %p423 = scmp.ne.s32.totalorder %s415, %s417
      %p424 = scmp.eq.s32.totalorder %s50, 1
      %p425 = por %p423, %p424
      %p426 = scmp.ne.s32.totalorder %s417, %s418
      %p427 = scmp.eq.s32.totalorder %s50, 0
      %p428 = por %p426, %p427
      %p429 = scmp.ne.s32.totalorder %s417, %s418
      %p430 = scmp.eq.s32.totalorder %s51, 1
      %p431 = por %p429, %p430
      %p433 = scmp.ne.s32.totalorder %s418, %s432
      %p434 = scmp.eq.s32.totalorder %s51, 0
      %p435 = por %p433, %p434
      %s437 = sadd.s32 %s436, 1
      %p440 = scmp.eq.s32.totalorder %s45, 1
      %p441 = scmp.ne.s32.totalorder %s436, %s438
      %p442 = scmp.eq.s32.totalorder %s45, 0
      %p443 = por %p441, %p442
      %p444 = scmp.ne.s32.totalorder %s436, %s438
      %p445 = scmp.eq.s32.totalorder %s50, 1
      %p446 = por %p444, %p445
      %p447 = scmp.ne.s32.totalorder %s438, %s439
      %p448 = scmp.eq.s32.totalorder %s50, 0
      %p449 = por %p447, %p448
      %p450 = scmp.ne.s32.totalorder %s438, %s439
      %p451 = scmp.eq.s32.totalorder %s51, 1
      %p452 = por %p450, %p451
      %p454 = scmp.ne.s32.totalorder %s439, %s453
      %p455 = scmp.eq.s32.totalorder %s51, 0
      %p456 = por %p454, %p455
      %s458 = sadd.s32 %s457, 1
      %p461 = scmp.eq.s32.totalorder %s45, 1
      %p462 = scmp.ne.s32.totalorder %s457, %s459
      %p463 = scmp.eq.s32.totalorder %s45, 0
      %p464 = por %p462, %p463
      %p465 = scmp.ne.s32.totalorder %s457, %s459
      %p466 = scmp.eq.s32.totalorder %s50, 1
      %p467 = por %p465, %p466
      %p468 = scmp.ne.s32.totalorder %s459, %s460
      %p469 = scmp.eq.s32.totalorder %s50, 0
      %p470 = por %p468, %p469
      %p471 = scmp.ne.s32.totalorder %s459, %s460
      %p472 = scmp.eq.s32.totalorder %s51, 1
      %p473 = por %p471, %p472
      %p475 = scmp.ne.s32.totalorder %s460, %s474
      %p476 = scmp.eq.s32.totalorder %s51, 0
      %p477 = por %p475, %p476
      %s479 = sadd.s32 %s478, 1
      %p482 = scmp.eq.s32.totalorder %s45, 1
      %p483 = scmp.ne.s32.totalorder %s478, %s480
      %p484 = scmp.eq.s32.totalorder %s45, 0
      %p485 = por %p483, %p484
      %p486 = scmp.ne.s32.totalorder %s478, %s480
      %p487 = scmp.eq.s32.totalorder %s50, 1
      %p488 = por %p486, %p487
      %p489 = scmp.ne.s32.totalorder %s480, %s481
      %p490 = scmp.eq.s32.totalorder %s50, 0
      %p491 = por %p489, %p490
      %p492 = scmp.ne.s32.totalorder %s480, %s481
      %p493 = scmp.eq.s32.totalorder %s51, 1
      %p494 = por %p492, %p493
      %p496 = scmp.ne.s32.totalorder %s481, %s495
      %p497 = scmp.eq.s32.totalorder %s51, 0
      %p498 = por %p496, %p497
      %s500 = sadd.s32 %s499, 1
      %p503 = scmp.eq.s32.totalorder %s45, 1
      %p504 = scmp.ne.s32.totalorder %s499, %s501
      %p505 = scmp.eq.s32.totalorder %s45, 0
      %p506 = por %p504, %p505
      %p507 = scmp.ne.s32.totalorder %s499, %s501
      %p508 = scmp.eq.s32.totalorder %s50, 1
      %p509 = por %p507, %p508
      %p510 = scmp.ne.s32.totalorder %s501, %s502
      %p511 = scmp.eq.s32.totalorder %s50, 0
      %p512 = por %p510, %p511
      %p513 = scmp.ne.s32.totalorder %s501, %s502
      %p514 = scmp.eq.s32.totalorder %s51, 1
      %p515 = por %p513, %p514
      %p517 = scmp.ne.s32.totalorder %s502, %s516
      %p518 = scmp.eq.s32.totalorder %s51, 0
      %p519 = por %p517, %p518
      %s521 = sadd.s32 %s520, 1
      %p524 = scmp.eq.s32.totalorder %s45, 1
      %p525 = scmp.ne.s32.totalorder %s520, %s522
      %p526 = scmp.eq.s32.totalorder %s45, 0
      %p527 = por %p525, %p526
      %p528 = scmp.ne.s32.totalorder %s520, %s522
      %p529 = scmp.eq.s32.totalorder %s50, 1
      %p530 = por %p528, %p529
      %p531 = scmp.ne.s32.totalorder %s522, %s523
      %p532 = scmp.eq.s32.totalorder %s50, 0
      %p533 = por %p531, %p532
      %p534 = scmp.ne.s32.totalorder %s522, %s523
      %p535 = scmp.eq.s32.totalorder %s51, 1
      %p536 = por %p534, %p535
      %p538 = scmp.ne.s32.totalorder %s523, %s537
      %p539 = scmp.eq.s32.totalorder %s51, 0
      %p540 = por %p538, %p539
      %s542 = sadd.s32 %s541, 1
      %p545 = scmp.eq.s32.totalorder %s45, 1
      %p546 = scmp.ne.s32.totalorder %s541, %s543
      %p547 = scmp.eq.s32.totalorder %s45, 0
      %p548 = por %p546, %p547
      %p549 = scmp.ne.s32.totalorder %s541, %s543
      %p550 = scmp.eq.s32.totalorder %s50, 1
      %p551 = por %p549, %p550
      %p552 = scmp.ne.s32.totalorder %s543, %s544
      %p553 = scmp.eq.s32.totalorder %s50, 0
      %p554 = por %p552, %p553
      %p555 = scmp.ne.s32.totalorder %s543, %s544
      %p556 = scmp.eq.s32.totalorder %s51, 1
      %p557 = por %p555, %p556
      %p559 = scmp.ne.s32.totalorder %s544, %s558
      %p560 = scmp.eq.s32.totalorder %s51, 0
      %p561 = por %p559, %p560
      %s563 = sadd.s32 %s562, 1
      %p566 = scmp.eq.s32.totalorder %s45, 1
      %p567 = scmp.ne.s32.totalorder %s562, %s564
      %p568 = scmp.eq.s32.totalorder %s45, 0
      %p569 = por %p567, %p568
      %p570 = scmp.ne.s32.totalorder %s562, %s564
      %p571 = scmp.eq.s32.totalorder %s50, 1
      %p572 = por %p570, %p571
      %p573 = scmp.ne.s32.totalorder %s564, %s565
      %p574 = scmp.eq.s32.totalorder %s50, 0
      %p575 = por %p573, %p574
      %p576 = scmp.ne.s32.totalorder %s564, %s565
      %p577 = scmp.eq.s32.totalorder %s51, 1
      %p578 = por %p576, %p577
      %p580 = scmp.ne.s32.totalorder %s565, %s579
      %p581 = scmp.eq.s32.totalorder %s51, 0
      %p582 = por %p580, %p581
      %s583 = ssub.s32 %s45, %s52
      %p584 = scmp.eq.s32.totalorder %s583, 0
      %s586 = sadd.s32 %s585, 1
      %s587 = scalar_select %p584, %s585, %s586
      %p590 = pneg %p584
      %p591 = scmp.eq.s32.totalorder %s45, 1
      %p592 = por %p590, %p591
      %p593 = scmp.ne.s32.totalorder %s585, %s588
      %p594 = scmp.eq.s32.totalorder %s45, 0
      %p595 = por %p593, %p594
      %p596 = scmp.ne.s32.totalorder %s585, %s588
      %p597 = scmp.eq.s32.totalorder %s50, 1
      %p598 = por %p596, %p597
      %p599 = scmp.ne.s32.totalorder %s588, %s589
      %p600 = scmp.eq.s32.totalorder %s50, 0
      %p601 = por %p599, %p600
      %p602 = scmp.ne.s32.totalorder %s588, %s589
      %p603 = scmp.eq.s32.totalorder %s51, 1
      %p604 = por %p602, %p603
      %p606 = scmp.ne.s32.totalorder %s589, %s605
      %p607 = scmp.eq.s32.totalorder %s51, 0
      %p608 = por %p606, %p607
      %s609 = ssub.s32 %s45, %s52
      %p610 = scmp.eq.s32.totalorder %s609, 0
      %s612 = sadd.s32 %s611, 1
      %s613 = scalar_select %p610, %s611, %s612
      %p616 = pneg %p610
      %p617 = scmp.eq.s32.totalorder %s45, 1
      %p618 = por %p616, %p617
      %p619 = scmp.ne.s32.totalorder %s611, %s614
      %p620 = scmp.eq.s32.totalorder %s45, 0
      %p621 = por %p619, %p620
      %p622 = scmp.ne.s32.totalorder %s611, %s614
      %p623 = scmp.eq.s32.totalorder %s50, 1
      %p624 = por %p622, %p623
      %p625 = scmp.ne.s32.totalorder %s614, %s615
      %p626 = scmp.eq.s32.totalorder %s50, 0
      %p627 = por %p625, %p626
      %p628 = scmp.ne.s32.totalorder %s614, %s615
      %p629 = scmp.eq.s32.totalorder %s51, 1
      %p630 = por %p628, %p629
      %p632 = scmp.ne.s32.totalorder %s615, %s631
      %p633 = scmp.eq.s32.totalorder %s51, 0
      %p634 = por %p632, %p633
      %p635 = scmp.le.s32.totalorder 1, %s45
      %p636 = scmp.lt.s32.totalorder %s45, 3
      %p637 = pnand %p635, %p636
      %p638 = pneg %p637
      // Predicated region
      $region9: #{tpu_custom_call.1} parent=5 // pred_check
        _
      $region10: #{tpu_custom_call.1} parent=5 // pred_check_branch
        %640 = sbr.rel (%p637) target = $region12
      $region11: #{tpu_custom_call.1} parent=5 // pred_region
        %s641 = ssub.s32 %s45, 1
        // Predicated region
        $region13: #{tpu_custom_call.1} parent=11 // pred_check
          %p642 = pneg %p92
        $region14: #{tpu_custom_call.1} parent=11 // pred_check_branch
          %644 = sbr.rel (%p642) target = $region16
        $region15: #{tpu_custom_call.1} parent=11 // pred_region
          %s646 = ssub.s32 32, 32
          %647 = vsyncadd [#allocation6], %s646
          %s648 = sshll.u32 [#allocation5], 4
          %s649 = int_to_ptr.vmem [resolvable:$true] %s648
          %654 = dma.hbm_to_vmem [thread:$0]  %s1, 32, %s649, [#allocation6], 16, 16, 1
        $region16: #{tpu_custom_call.1} parent=11 // pred_fallthru
          _
        // Predicated region
        $region17: #{tpu_custom_call.1} parent=11 // pred_check
          %p655 = pneg %p113
        $region18: #{tpu_custom_call.1} parent=11 // pred_check_branch
          %657 = sbr.rel (%p655) target = $region20
        $region19: #{tpu_custom_call.1} parent=11 // pred_region
          %s659 = ssub.s32 32, 32
          %660 = vsyncadd [#allocation6], %s659
          %s661 = sshll.u32 [#allocation7], 4
          %s662 = int_to_ptr.vmem [resolvable:$true] %s661
          %667 = dma.hbm_to_vmem [thread:$0]  %s2, 32, %s662, [#allocation6], 16, 16, 1
        $region20: #{tpu_custom_call.1} parent=11 // pred_fallthru
          _
        // Predicated region
        $region21: #{tpu_custom_call.1} parent=11 // pred_check
          %p668 = pneg %p134
        $region22: #{tpu_custom_call.1} parent=11 // pred_check_branch
          %670 = sbr.rel (%p668) target = $region24
        $region23: #{tpu_custom_call.1} parent=11 // pred_region
          %s672 = ssub.s32 1024, 1024
          %673 = vsyncadd [#allocation9], %s672
          %s674 = sshll.u32 [#allocation8], 4
          %s675 = int_to_ptr.vmem [resolvable:$true] %s674
          %680 = dma.hbm_to_vmem [thread:$0]  %s3, 1024, %s675, [#allocation9], 128, 128, 8
        $region24: #{tpu_custom_call.1} parent=11 // pred_fallthru
          _
        // Predicated region
        $region25: #{tpu_custom_call.1} parent=11 // pred_check
          %p681 = pneg %p155
        $region26: #{tpu_custom_call.1} parent=11 // pred_check_branch
          %683 = sbr.rel (%p681) target = $region28
        $region27: #{tpu_custom_call.1} parent=11 // pred_region
          %s685 = ssub.s32 32, 32
          %686 = vsyncadd [#allocation9], %s685
          %s687 = sshll.u32 [#allocation10], 4
          %s688 = int_to_ptr.vmem [resolvable:$true] %s687
          %693 = dma.hbm_to_vmem [thread:$0]  %s4, 32, %s688, [#allocation9], 16, 16, 1
        $region28: #{tpu_custom_call.1} parent=11 // pred_fallthru
          _
        // Predicated region
        $region29: #{tpu_custom_call.1} parent=11 // pred_check
          %p694 = pneg %p176
        $region30: #{tpu_custom_call.1} parent=11 // pred_check_branch
          %696 = sbr.rel (%p694) target = $region32
        $region31: #{tpu_custom_call.1} parent=11 // pred_region
          %s698 = ssub.s32 1024, 1024
          %699 = vsyncadd [#allocation12], %s698
          %s700 = sshll.u32 [#allocation11], 4
          %s701 = int_to_ptr.vmem [resolvable:$true] %s700
          %706 = dma.hbm_to_vmem [thread:$0]  %s5, 1024, %s701, [#allocation12], 128, 128, 8
        $region32: #{tpu_custom_call.1} parent=11 // pred_fallthru
          _
        // Predicated region
        $region33: #{tpu_custom_call.1} parent=11 // pred_check
          %p707 = pneg %p197
        $region34: #{tpu_custom_call.1} parent=11 // pred_check_branch
          %709 = sbr.rel (%p707) target = $region36
        $region35: #{tpu_custom_call.1} parent=11 // pred_region
          %s711 = ssub.s32 32, 32
          %712 = vsyncadd [#allocation12], %s711
          %s713 = sshll.u32 [#allocation13], 4
          %s714 = int_to_ptr.vmem [resolvable:$true] %s713
          %719 = dma.hbm_to_vmem [thread:$0]  %s6, 32, %s714, [#allocation12], 16, 16, 1
        $region36: #{tpu_custom_call.1} parent=11 // pred_fallthru
          _
        // Predicated region
        $region37: #{tpu_custom_call.1} parent=11 // pred_check
          %p720 = pneg %p218
        $region38: #{tpu_custom_call.1} parent=11 // pred_check_branch
          %722 = sbr.rel (%p720) target = $region40
        $region39: #{tpu_custom_call.1} parent=11 // pred_region
          %s724 = ssub.s32 32, 32
          %725 = vsyncadd [#allocation15], %s724
          %s726 = sshll.u32 [#allocation14], 4
          %s727 = int_to_ptr.vmem [resolvable:$true] %s726
          %732 = dma.hbm_to_vmem [thread:$0]  %s7, 32, %s727, [#allocation15], 16, 16, 1
        $region40: #{tpu_custom_call.1} parent=11 // pred_fallthru
          _
        // Predicated region
        $region41: #{tpu_custom_call.1} parent=11 // pred_check
          %p733 = pneg %p239
        $region42: #{tpu_custom_call.1} parent=11 // pred_check_branch
          %735 = sbr.rel (%p733) target = $region44
        $region43: #{tpu_custom_call.1} parent=11 // pred_region
          %s737 = ssub.s32 32, 32
          %738 = vsyncadd [#allocation15], %s737
          %s739 = sshll.u32 [#allocation16], 4
          %s740 = int_to_ptr.vmem [resolvable:$true] %s739
          %745 = dma.hbm_to_vmem [thread:$0]  %s8, 32, %s740, [#allocation15], 16, 16, 1
        $region44: #{tpu_custom_call.1} parent=11 // pred_fallthru
          _
        // Predicated region
        $region45: #{tpu_custom_call.1} parent=11 // pred_check
          %p746 = pneg %p260
        $region46: #{tpu_custom_call.1} parent=11 // pred_check_branch
          %748 = sbr.rel (%p746) target = $region48
        $region47: #{tpu_custom_call.1} parent=11 // pred_region
          %s750 = ssub.s32 1024, 1024
          %751 = vsyncadd [#allocation18], %s750
          %s752 = sshll.u32 [#allocation17], 4
          %s753 = int_to_ptr.vmem [resolvable:$true] %s752
          %758 = dma.hbm_to_vmem [thread:$0]  %s9, 1024, %s753, [#allocation18], 128, 128, 8
        $region48: #{tpu_custom_call.1} parent=11 // pred_fallthru
          _
        // Predicated region
        $region49: #{tpu_custom_call.1} parent=11 // pred_check
          %p759 = pneg %p281
        $region50: #{tpu_custom_call.1} parent=11 // pred_check_branch
          %761 = sbr.rel (%p759) target = $region52
        $region51: #{tpu_custom_call.1} parent=11 // pred_region
          %s763 = ssub.s32 32, 32
          %764 = vsyncadd [#allocation18], %s763
          %s765 = sshll.u32 [#allocation19], 4
          %s766 = int_to_ptr.vmem [resolvable:$true] %s765
          %771 = dma.hbm_to_vmem [thread:$0]  %s10, 32, %s766, [#allocation18], 16, 16, 1
        $region52: #{tpu_custom_call.1} parent=11 // pred_fallthru
          _
        // Predicated region
        $region53: #{tpu_custom_call.1} parent=11 // pred_check
          %p772 = pneg %p302
        $region54: #{tpu_custom_call.1} parent=11 // pred_check_branch
          %774 = sbr.rel (%p772) target = $region56
        $region55: #{tpu_custom_call.1} parent=11 // pred_region
          _
        $region56: #{tpu_custom_call.1} parent=11 // pred_fallthru
          _
        // Predicated region
        $region57: #{tpu_custom_call.1} parent=11 // pred_check
          %p775 = pneg %p323
        $region58: #{tpu_custom_call.1} parent=11 // pred_check_branch
          %777 = sbr.rel (%p775) target = $region60
        $region59: #{tpu_custom_call.1} parent=11 // pred_region
          %s779 = ssub.s32 32, 32
          %780 = vsyncadd [#allocation21], %s779
          %s781 = sshll.u32 [#allocation20], 4
          %s782 = int_to_ptr.vmem [resolvable:$true] %s781
          %787 = dma.hbm_to_vmem [thread:$0]  %s12, 32, %s782, [#allocation21], 16, 16, 1
        $region60: #{tpu_custom_call.1} parent=11 // pred_fallthru
          _
        // Predicated region
        $region61: #{tpu_custom_call.1} parent=11 // pred_check
          %p788 = pneg %p344
        $region62: #{tpu_custom_call.1} parent=11 // pred_check_branch
          %790 = sbr.rel (%p788) target = $region64
        $region63: #{tpu_custom_call.1} parent=11 // pred_region
          _
        $region64: #{tpu_custom_call.1} parent=11 // pred_fallthru
          _
        // Predicated region
        $region65: #{tpu_custom_call.1} parent=11 // pred_check
          %p791 = pneg %p365
        $region66: #{tpu_custom_call.1} parent=11 // pred_check_branch
          %793 = sbr.rel (%p791) target = $region68
        $region67: #{tpu_custom_call.1} parent=11 // pred_region
          %s795 = ssub.s32 16, 16
          %796 = vsyncadd [#allocation21], %s795
          %s798 = sshll.u32 [#allocation22], 4
          %s799 = int_to_ptr.vmem [resolvable:$true] %s798
          %801 = dma.hbm_to_vmem [thread:$0]  %s14, 16, %s799, [#allocation21]
        $region68: #{tpu_custom_call.1} parent=11 // pred_fallthru
          _
        // Predicated region
        $region69: #{tpu_custom_call.1} parent=11 // pred_check
          %p802 = pneg %p386
        $region70: #{tpu_custom_call.1} parent=11 // pred_check_branch
          %804 = sbr.rel (%p802) target = $region72
        $region71: #{tpu_custom_call.1} parent=11 // pred_region
          _
        $region72: #{tpu_custom_call.1} parent=11 // pred_fallthru
          _
        // Predicated region
        $region73: #{tpu_custom_call.1} parent=11 // pred_check
          %p805 = pneg %p407
        $region74: #{tpu_custom_call.1} parent=11 // pred_check_branch
          %807 = sbr.rel (%p805) target = $region76
        $region75: #{tpu_custom_call.1} parent=11 // pred_region
          _
        $region76: #{tpu_custom_call.1} parent=11 // pred_fallthru
          _
        // Predicated region
        $region77: #{tpu_custom_call.1} parent=11 // pred_check
          %p808 = pneg %p428
        $region78: #{tpu_custom_call.1} parent=11 // pred_check_branch
          %810 = sbr.rel (%p808) target = $region80
        $region79: #{tpu_custom_call.1} parent=11 // pred_region
          _
        $region80: #{tpu_custom_call.1} parent=11 // pred_fallthru
          _
        // Predicated region
        $region81: #{tpu_custom_call.1} parent=11 // pred_check
          %p811 = pneg %p449
        $region82: #{tpu_custom_call.1} parent=11 // pred_check_branch
          %813 = sbr.rel (%p811) target = $region84
        $region83: #{tpu_custom_call.1} parent=11 // pred_region
          _
        $region84: #{tpu_custom_call.1} parent=11 // pred_fallthru
          _
        // Predicated region
        $region85: #{tpu_custom_call.1} parent=11 // pred_check
          %p814 = pneg %p470
        $region86: #{tpu_custom_call.1} parent=11 // pred_check_branch
          %816 = sbr.rel (%p814) target = $region88
        $region87: #{tpu_custom_call.1} parent=11 // pred_region
          _
        $region88: #{tpu_custom_call.1} parent=11 // pred_fallthru
          _
        // Predicated region
        $region89: #{tpu_custom_call.1} parent=11 // pred_check
          %p817 = pneg %p491
        $region90: #{tpu_custom_call.1} parent=11 // pred_check_branch
          %819 = sbr.rel (%p817) target = $region92
        $region91: #{tpu_custom_call.1} parent=11 // pred_region
          _
        $region92: #{tpu_custom_call.1} parent=11 // pred_fallthru
          _
        // Predicated region
        $region93: #{tpu_custom_call.1} parent=11 // pred_check
          %p820 = pneg %p512
        $region94: #{tpu_custom_call.1} parent=11 // pred_check_branch
          %822 = sbr.rel (%p820) target = $region96
        $region95: #{tpu_custom_call.1} parent=11 // pred_region
          _
        $region96: #{tpu_custom_call.1} parent=11 // pred_fallthru
          _
        // Predicated region
        $region97: #{tpu_custom_call.1} parent=11 // pred_check
          %p823 = pneg %p533
        $region98: #{tpu_custom_call.1} parent=11 // pred_check_branch
          %825 = sbr.rel (%p823) target = $region100
        $region99: #{tpu_custom_call.1} parent=11 // pred_region
          _
        $region100: #{tpu_custom_call.1} parent=11 // pred_fallthru
          _
        // Predicated region
        $region101: #{tpu_custom_call.1} parent=11 // pred_check
          %p826 = pneg %p554
        $region102: #{tpu_custom_call.1} parent=11 // pred_check_branch
          %828 = sbr.rel (%p826) target = $region104
        $region103: #{tpu_custom_call.1} parent=11 // pred_region
          _
        $region104: #{tpu_custom_call.1} parent=11 // pred_fallthru
          _
        // Predicated region
        $region105: #{tpu_custom_call.1} parent=11 // pred_check
          %p829 = pneg %p575
        $region106: #{tpu_custom_call.1} parent=11 // pred_check_branch
          %831 = sbr.rel (%p829) target = $region108
        $region107: #{tpu_custom_call.1} parent=11 // pred_region
          _
        $region108: #{tpu_custom_call.1} parent=11 // pred_fallthru
          _
      $region12: #{tpu_custom_call.1} parent=5 // pred_fallthru
        _
      %p832 = scmp.lt.s32.totalorder %s45, 2
      // Predicated region
      $region109: #{tpu_custom_call.1} parent=5 // pred_check
        %p833 = pneg %p832
      $region110: #{tpu_custom_call.1} parent=5 // pred_check_branch
        %835 = sbr.rel (%p833) target = $region112
      $region111: #{tpu_custom_call.1} parent=5 // pred_region
        // Predicated region
        $region113: #{tpu_custom_call.1} parent=111 // pred_check
          %p836 = pneg %p65
        $region114: #{tpu_custom_call.1} parent=111 // pred_check_branch
          %838 = sbr.rel (%p836) target = $region116
        $region115: #{tpu_custom_call.1} parent=111 // pred_region
          %s839 = sand.u32 %s55, 1
          %s840 = scalar_lea.sflag [#allocation3], %s839
          %s841 = sand.u32 %s55, 1
          %s842 = smul.addr %s841, 8
          %s843 = scalar_lea.vmem [#allocation2], %s842
          %s845 = ssub.s32 128, 128
          %846 = vsyncadd %s840, %s845
          %s847 = smul.addr %s45, 128
          %s848 = scalar_lea.hbm %s0, %s847
          %s850 = sshll.u32 %s843, 4
          %s851 = int_to_ptr.vmem [resolvable:$true] %s850
          %853 = dma.hbm_to_vmem [thread:$0]  %s848, 128, %s851, %s840
        $region116: #{tpu_custom_call.1} parent=111 // pred_fallthru
          _
      $region112: #{tpu_custom_call.1} parent=5 // pred_fallthru
        _
      %p854 = scmp.le.s32.totalorder 1, %s45
      %p855 = scmp.lt.s32.totalorder %s45, 3
      %p856 = pnand %p854, %p855
      %p857 = pneg %p856
      // Predicated region
      $region117: #{tpu_custom_call.1} parent=5 // pred_check
        _
      $region118: #{tpu_custom_call.1} parent=5 // pred_check_branch
        %859 = sbr.rel (%p856) target = $region120
      $region119: #{tpu_custom_call.1} parent=5 // pred_region
        %s860 = ssub.s32 %s45, 1
        %s861 = sand.u32 %s58, 1
        %s862 = scalar_lea.sflag [#allocation3], %s861
        %s863 = sand.u32 %s58, 1
        %s864 = smul.addr %s863, 8
        %s865 = scalar_lea.vmem [#allocation2], %s864
        // Predicated region
        $region121: #{tpu_custom_call.1} parent=119 // pred_check
          %p866 = pneg %p71
        $region122: #{tpu_custom_call.1} parent=119 // pred_check_branch
          %868 = sbr.rel (%p866) target = $region124
        $region123: #{tpu_custom_call.1} parent=119 // pred_region
          %869 = dma.done %s862, 128
        $region124: #{tpu_custom_call.1} parent=119 // pred_fallthru
          _
        // Predicated region
        $region125: #{tpu_custom_call.1} parent=119 // pred_check
          %p870 = pneg %p92
        $region126: #{tpu_custom_call.1} parent=119 // pred_check_branch
          %872 = sbr.rel (%p870) target = $region128
        $region127: #{tpu_custom_call.1} parent=119 // pred_region
          %873 = dma.done [#allocation6], 32
        $region128: #{tpu_custom_call.1} parent=119 // pred_fallthru
          _
        // Predicated region
        $region129: #{tpu_custom_call.1} parent=119 // pred_check
          %p874 = pneg %p113
        $region130: #{tpu_custom_call.1} parent=119 // pred_check_branch
          %876 = sbr.rel (%p874) target = $region132
        $region131: #{tpu_custom_call.1} parent=119 // pred_region
          %877 = dma.done [#allocation6], 32
        $region132: #{tpu_custom_call.1} parent=119 // pred_fallthru
          _
        // Predicated region
        $region133: #{tpu_custom_call.1} parent=119 // pred_check
          %p878 = pneg %p134
        $region134: #{tpu_custom_call.1} parent=119 // pred_check_branch
          %880 = sbr.rel (%p878) target = $region136
        $region135: #{tpu_custom_call.1} parent=119 // pred_region
          %881 = dma.done [#allocation9], 1024
        $region136: #{tpu_custom_call.1} parent=119 // pred_fallthru
          _
        // Predicated region
        $region137: #{tpu_custom_call.1} parent=119 // pred_check
          %p882 = pneg %p155
        $region138: #{tpu_custom_call.1} parent=119 // pred_check_branch
          %884 = sbr.rel (%p882) target = $region140
        $region139: #{tpu_custom_call.1} parent=119 // pred_region
          %885 = dma.done [#allocation9], 32
        $region140: #{tpu_custom_call.1} parent=119 // pred_fallthru
          _
        // Predicated region
        $region141: #{tpu_custom_call.1} parent=119 // pred_check
          %p886 = pneg %p176
        $region142: #{tpu_custom_call.1} parent=119 // pred_check_branch
          %888 = sbr.rel (%p886) target = $region144
        $region143: #{tpu_custom_call.1} parent=119 // pred_region
          %889 = dma.done [#allocation12], 1024
        $region144: #{tpu_custom_call.1} parent=119 // pred_fallthru
          _
        // Predicated region
        $region145: #{tpu_custom_call.1} parent=119 // pred_check
          %p890 = pneg %p197
        $region146: #{tpu_custom_call.1} parent=119 // pred_check_branch
          %892 = sbr.rel (%p890) target = $region148
        $region147: #{tpu_custom_call.1} parent=119 // pred_region
          %893 = dma.done [#allocation12], 32
        $region148: #{tpu_custom_call.1} parent=119 // pred_fallthru
          _
        // Predicated region
        $region149: #{tpu_custom_call.1} parent=119 // pred_check
          %p894 = pneg %p218
        $region150: #{tpu_custom_call.1} parent=119 // pred_check_branch
          %896 = sbr.rel (%p894) target = $region152
        $region151: #{tpu_custom_call.1} parent=119 // pred_region
          %897 = dma.done [#allocation15], 32
        $region152: #{tpu_custom_call.1} parent=119 // pred_fallthru
          _
        // Predicated region
        $region153: #{tpu_custom_call.1} parent=119 // pred_check
          %p898 = pneg %p239
        $region154: #{tpu_custom_call.1} parent=119 // pred_check_branch
          %900 = sbr.rel (%p898) target = $region156
        $region155: #{tpu_custom_call.1} parent=119 // pred_region
          %901 = dma.done [#allocation15], 32
        $region156: #{tpu_custom_call.1} parent=119 // pred_fallthru
          _
        // Predicated region
        $region157: #{tpu_custom_call.1} parent=119 // pred_check
          %p902 = pneg %p260
        $region158: #{tpu_custom_call.1} parent=119 // pred_check_branch
          %904 = sbr.rel (%p902) target = $region160
        $region159: #{tpu_custom_call.1} parent=119 // pred_region
          %905 = dma.done [#allocation18], 1024
        $region160: #{tpu_custom_call.1} parent=119 // pred_fallthru
          _
        // Predicated region
        $region161: #{tpu_custom_call.1} parent=119 // pred_check
          %p906 = pneg %p281
        $region162: #{tpu_custom_call.1} parent=119 // pred_check_branch
          %908 = sbr.rel (%p906) target = $region164
        $region163: #{tpu_custom_call.1} parent=119 // pred_region
          %909 = dma.done [#allocation18], 32
        $region164: #{tpu_custom_call.1} parent=119 // pred_fallthru
          _
        // Predicated region
        $region165: #{tpu_custom_call.1} parent=119 // pred_check
          %p910 = pneg %p323
        $region166: #{tpu_custom_call.1} parent=119 // pred_check_branch
          %912 = sbr.rel (%p910) target = $region168
        $region167: #{tpu_custom_call.1} parent=119 // pred_region
          %913 = dma.done [#allocation21], 32
        $region168: #{tpu_custom_call.1} parent=119 // pred_fallthru
          _
        // Predicated region
        $region169: #{tpu_custom_call.1} parent=119 // pred_check
          %p914 = pneg %p365
        $region170: #{tpu_custom_call.1} parent=119 // pred_check_branch
          %916 = sbr.rel (%p914) target = $region172
        $region171: #{tpu_custom_call.1} parent=119 // pred_region
          %917 = dma.done [#allocation21], 16
        $region172: #{tpu_custom_call.1} parent=119 // pred_fallthru
          _
        %s918 = sand.u32 %s58, 1
        %s919 = scalar_lea.sflag [#allocation3], %s918
        %s920 = sand.u32 %s58, 1
        %s921 = smul.addr %s920, 8
        %s922 = scalar_lea.vmem [#allocation2], %s921
        %p923 = pneg %p71
        %p924 = pneg %p68
        %p925 = pneg %p92
        %p926 = pneg %p89
        %p927 = pneg %p113
        %p928 = pneg %p110
        %p929 = pneg %p134
        %p930 = pneg %p131
        %p931 = pneg %p155
        %p932 = pneg %p152
        %p933 = pneg %p176
        %p934 = pneg %p173
        %p935 = pneg %p197
        %p936 = pneg %p194
        %p937 = pneg %p218
        %p938 = pneg %p215
        %p939 = pneg %p239
        %p940 = pneg %p236
        %p941 = pneg %p260
        %p942 = pneg %p257
        %p943 = pneg %p281
        %p944 = pneg %p278
        %p945 = pneg %p302
        %p946 = pneg %p299
        %p947 = pneg %p323
        %p948 = pneg %p320
        %p949 = pneg %p344
        %p950 = pneg %p341
        %p951 = pneg %p365
        %p952 = pneg %p362
        %p953 = pneg %p386
        %p954 = pneg %p383
        %p955 = pneg %p407
        %p956 = pneg %p404
        %p957 = pneg %p428
        %p958 = pneg %p425
        %p959 = pneg %p449
        %p960 = pneg %p446
        %p961 = pneg %p470
        %p962 = pneg %p467
        %p963 = pneg %p491
        %p964 = pneg %p488
        %p965 = pneg %p512
        %p966 = pneg %p509
        %p967 = pneg %p533
        %p968 = pneg %p530
        %p969 = pneg %p554
        %p970 = pneg %p551
        %p971 = pneg %p575
        %p972 = pneg %p572
        %p973 = pneg %p601
        %p974 = pneg %p598
        %s975 = sand.u32 %s588, 1
        %s976 = scalar_lea.sflag [#allocation4], %s975
        %s977 = sand.u32 %s588, 1
        %s978 = smul.addr %s977, 8
        %s979 = scalar_lea.vmem [#allocation23], %s978
        %p980 = pneg %p627
        %p981 = pneg %p624
        %p982 = scmp.lt.s32.totalorder %s50, 1
        %s983 = scalar_select %p982, %s50, 1
        %s984 = smul.addr %s983, 8
        %s985 = scalar_lea.vmem %s26, %s984
        %p986 = scmp.lt.s32.totalorder %s50, 1
        %s987 = scalar_select %p986, %s50, 1
        %s988 = smul.addr %s987, 8
        %s989 = scalar_lea.vmem %s26, %s988
        %v990 = vld [vmem:[%s865] sm:$0xff]
        %v991 = vld [vmem:[#allocation5] sm:$0x1]
        %v992 = vld [vmem:[#allocation7] sm:$0x1]
        %vm993 = vcmask 261120
        %v994 = vsel %vm993, %v990, 0.0
        %995 = vadd.xlane.f32.xlu0 %v994
        %v996 = vpop.xlane.xlu0 %995
        %v997 = vrcp.pop 32.0
        %v998 = vmul.f32 %v996, %v997
        %v999 = vsub.f32 %v990, %v998
        %v1000 = vmul.f32 %v999, %v999
        %v1001 = vsel %vm993, %v1000, 0.0
        %1002 = vadd.xlane.f32.xlu0 %v1001
        %v1003 = vpop.xlane.xlu0 %1002
        %v1004 = vmul.f32 %v1003, %v997
        %v1005 = vadd.f32 %v1004, 1e-05
        %v1006 = vrsqrt.pop %v1005
        %v1007 = vmul.f32 %v999, %v1006
        %v1009 = vlaneseq
        %v1010 = vshrl.u32 %v1009, 7
        %v1011 = vsub.s32 0, %v1010
        %v1012 = vrot.slane %v991, %v1011
        %v1014 = vmul.f32 %v1007, %v1012
        %v1016 = vlaneseq
        %v1017 = vshrl.u32 %v1016, 7
        %v1018 = vsub.s32 0, %v1017
        %v1019 = vrot.slane %v992, %v1018
        %v1021 = vadd.f32 %v1014, %v1019
        %v1022 = vld [vmem:[#allocation8] sm:$0xff]
        %v1023 = vld [vmem:[#allocation8 + $0x8] sm:$0xff]
        %v1024 = vld [vmem:[#allocation8 + $0x10] sm:$0xff]
        %v1025 = vld [vmem:[#allocation8 + $0x18] sm:$0xff]
        %v1026 = vld [vmem:[#allocation10] sm:$0x1]
        %v1028 = vlaneseq
        %v1029 = vshrl.u32 %v1028, 7
        %v1030 = vsub.s32 0, %v1029
        %v1031 = vrot.slane %v1026, %v1030
        %v1034 = vsel %vm993, %v1021, 0
        %1036 = vmatprep.subr.mxu0 0.0
        %1037 = vmatpush1.msra.mxu0 %v1022
        %1038 = vmatprep.subr.mxu0 0.0
        %1039 = vmatpush1.msra.mxu0 %v1023
        %1040 = vmatprep.subr.mxu0 0.0
        %1041 = vmatpush1.msra.mxu0 %v1024
        %1042 = vmatprep.subr.mxu0 0.0
        %1043 = vmatpush1.msra.mxu0 %v1025
        %1044 = vmatprep.subr.mxu0 0.0
        %1045 = vmatpush1.msra.mxu0 0.0
        %1046 = vmatprep.subr.mxu0 0.0
        %1047 = vmatpush1.msra.mxu0 0.0
        %1048 = vmatprep.subr.mxu0 0.0
        %1049 = vmatpush1.msra.mxu0 0.0
        %1050 = vmatprep.subr.mxu0 0.0
        %1051 = vmatpush1.msra.mxu0 0.0
        %1052 = vmatprep.subr.mxu0 0.0
        %1053 = vmatpush1.msra.mxu0 0.0
        %1054 = vmatprep.subr.mxu0 0.0
        %1055 = vmatpush1.msra.mxu0 0.0
        %1056 = vmatprep.subr.mxu0 0.0
        %1057 = vmatpush1.msra.mxu0 0.0
        %1058 = vmatprep.subr.mxu0 0.0
        %1059 = vmatpush1.msra.mxu0 0.0
        %1060 = vmatprep.subr.mxu0 0.0
        %1061 = vmatpush1.msra.mxu0 0.0
        %1062 = vmatprep.subr.mxu0 0.0
        %1063 = vmatpush1.msra.mxu0 0.0
        %1064 = vmatprep.subr.mxu0 0.0
        %1065 = vmatpush1.msra.mxu0 0.0
        %1066 = vmatprep.subr.mxu0 0.0
        %1067 = vmatpush1.msra.mxu0 0.0
        %1068 = vmatprep.subr.mxu0 0.0
        %1069 = vmatpush1.msra.mxu0 0.0
        %1070 = vmatprep.subr.mxu0 0.0
        %1071 = vmatpush1.msra.mxu0 0.0
        %1072 = vmatprep.subr.mxu0 0.0
        %1073 = vmatpush1.msra.mxu0 0.0
        %1074 = vmatprep.subr.mxu0 0.0
        %1075 = vmatpush1.msra.mxu0 0.0
        %1076 = vmatprep.subr.mxu0 0.0
        %1077 = vmatpush1.msra.mxu0 0.0
        %1078 = vmatprep.subr.mxu0 0.0
        %1079 = vmatpush1.msra.mxu0 0.0
        %1080 = vmatprep.subr.mxu0 0.0
        %1081 = vmatpush1.msra.mxu0 0.0
        %1082 = vmatprep.subr.mxu0 0.0
        %1083 = vmatpush1.msra.mxu0 0.0
        %1084 = vmatprep.subr.mxu0 0.0
        %1085 = vmatpush1.msra.mxu0 0.0
        %1086 = vmatprep.subr.mxu0 0.0
        %1087 = vmatpush1.msra.mxu0 0.0
        %1088 = vmatprep.subr.mxu0 0.0
        %1089 = vmatpush1.msra.mxu0 0.0
        %1090 = vmatprep.subr.mxu0 0.0
        %1091 = vmatpush1.msra.mxu0 0.0
        %1092 = vmatprep.subr.mxu0 0.0
        %1093 = vmatpush1.msra.mxu0 0.0
        %1094 = vmatprep.subr.mxu0 0.0
        %1095 = vmatpush1.msra.mxu0 0.0
        %1096 = vmatprep.subr.mxu0 0.0
        %1097 = vmatpush1.msra.mxu0 0.0
        %1098 = vmatprep.subr.mxu0 0.0
        %1099 = vmatpush1.msra.mxu0 0.0
        %1100 = vmatprep.mubr.f32.mxu0 0.0
        %1101 = vmatmul.mubr.f32.gmra.mrb[0].mxu0 %v1034
        %v1102 = vpop.f32.mrb[0].mxu0
        %v1103 = vadd.f32 %v1031, %v1102
        %v1104 = vpop.f32.mrb[0].mxu0
        %1105 = vdwg.mxu0
        %1107 = vrot.lane.b32.xlu0 %v1103, 96
        %v1108 = vpop.permute.xlu0 %1107
        %vm1109 = vcmask 64512
        %v1110 = vsel %vm1109, %v1103, 0
        %v1112 = vsel %vm1109, %v1108, 0
        %1114 = vmatprep.subr.mxu0 0.0
        %1115 = vmatpush1.xpose.msra.mxu0 %v1112
        %1116 = vmatprep.subr.mxu0 0.0
        %1117 = vmatpush1.xpose.msra.mxu0 0.0
        %1118 = vmatprep.subr.mxu0 0.0
        %1119 = vmatpush1.xpose.msra.mxu0 0.0
        %1120 = vmatprep.subr.mxu0 0.0
        %1121 = vmatpush1.xpose.msra.mxu0 0.0
        %1122 = vmatprep.subr.mxu0 0.0
        %1123 = vmatpush1.xpose.msra.mxu0 0.0
        %1124 = vmatprep.subr.mxu0 0.0
        %1125 = vmatpush1.xpose.msra.mxu0 0.0
        %1126 = vmatprep.subr.mxu0 0.0
        %1127 = vmatpush1.xpose.msra.mxu0 0.0
        %1128 = vmatprep.subr.mxu0 0.0
        %1129 = vmatpush1.xpose.msra.mxu0 0.0
        %1130 = vmatprep.subr.mxu0 0.0
        %1131 = vmatpush1.xpose.msra.mxu0 0.0
        %1132 = vmatprep.subr.mxu0 0.0
        %1133 = vmatpush1.xpose.msra.mxu0 0.0
        %1134 = vmatprep.subr.mxu0 0.0
        %1135 = vmatpush1.xpose.msra.mxu0 0.0
        %1136 = vmatprep.subr.mxu0 0.0
        %1137 = vmatpush1.xpose.msra.mxu0 0.0
        %1138 = vmatprep.subr.mxu0 0.0
        %1139 = vmatpush1.xpose.msra.mxu0 0.0
        %1140 = vmatprep.subr.mxu0 0.0
        %1141 = vmatpush1.xpose.msra.mxu0 0.0
        %1142 = vmatprep.subr.mxu0 0.0
        %1143 = vmatpush1.xpose.msra.mxu0 0.0
        %1144 = vmatprep.subr.mxu0 0.0
        %1145 = vmatpush1.xpose.msra.mxu0 0.0
        %1146 = vmatprep.subr.mxu0 0.0
        %1147 = vmatpush1.xpose.msra.mxu0 0.0
        %1148 = vmatprep.subr.mxu0 0.0
        %1149 = vmatpush1.xpose.msra.mxu0 0.0
        %1150 = vmatprep.subr.mxu0 0.0
        %1151 = vmatpush1.xpose.msra.mxu0 0.0
        %1152 = vmatprep.subr.mxu0 0.0
        %1153 = vmatpush1.xpose.msra.mxu0 0.0
        %1154 = vmatprep.subr.mxu0 0.0
        %1155 = vmatpush1.xpose.msra.mxu0 0.0
        %1156 = vmatprep.subr.mxu0 0.0
        %1157 = vmatpush1.xpose.msra.mxu0 0.0
        %1158 = vmatprep.subr.mxu0 0.0
        %1159 = vmatpush1.xpose.msra.mxu0 0.0
        %1160 = vmatprep.subr.mxu0 0.0
        %1161 = vmatpush1.xpose.msra.mxu0 0.0
        %1162 = vmatprep.subr.mxu0 0.0
        %1163 = vmatpush1.xpose.msra.mxu0 0.0
        %1164 = vmatprep.subr.mxu0 0.0
        %1165 = vmatpush1.xpose.msra.mxu0 0.0
        %1166 = vmatprep.subr.mxu0 0.0
        %1167 = vmatpush1.xpose.msra.mxu0 0.0
        %1168 = vmatprep.subr.mxu0 0.0
        %1169 = vmatpush1.xpose.msra.mxu0 0.0
        %1170 = vmatprep.subr.mxu0 0.0
        %1171 = vmatpush1.xpose.msra.mxu0 0.0
        %1172 = vmatprep.subr.mxu0 0.0
        %1173 = vmatpush1.xpose.msra.mxu0 0.0
        %1174 = vmatprep.subr.mxu0 0.0
        %1175 = vmatpush1.xpose.msra.mxu0 0.0
        %1176 = vmatprep.subr.mxu0 0.0
        %1177 = vmatpush1.xpose.msra.mxu0 0.0
        %1178 = vmatprep.mubr.f32.mxu0 0.0
        %1179 = vmatmul.mubr.f32.gmra.mrb[0].mxu0 %v1110
        %v1180 = vpop.f32.mrb[0].mxu0
        %v1181 = vadd.f32 0.0, %v1180
        %v1182 = vpop.f32.mrb[0].mxu0
        %1183 = vdwg.mxu0
        %v1184 = vmul.f32 %v1181, 0.35355338
        %v1185 = vsel %vm1109, %v1184, -inf
        %1186 = vmax.xlane.f32.xlu0 %v1185
        %v1187 = vpop.xlane.xlu0 %1186
        %v1188 = vsub.f32 %v1184, %v1187
        %v1189 = vmul.f32 %v1188, 1.442695
        %v1190 = vpow.pop %v1189
        %v1191 = vsel %vm1109, %v1190, 0.0
        %1192 = vadd.xlane.f32.xlu0 %v1191
        %v1193 = vpop.xlane.xlu0 %1192
        %v1194 = vrcp.pop %v1193
        %v1195 = vmul.f32 %v1190, %v1194
        %1196 = vrot.lane.b32.xlu0 %v1103, 64
        %v1197 = vpop.permute.xlu0 %1196
        %v1200 = vsel %vm1109, %v1195, 0
        %1202 = vmatprep.subr.mxu0 0.0
        %1203 = vmatpush1.msra.mxu0 %v1197
        %1204 = vmatprep.subr.mxu0 0.0
        %1205 = vmatpush1.msra.mxu0 0.0
        %1206 = vmatprep.subr.mxu0 0.0
        %1207 = vmatpush1.msra.mxu0 0.0
        %1208 = vmatprep.subr.mxu0 0.0
        %1209 = vmatpush1.msra.mxu0 0.0
        %1210 = vmatprep.subr.mxu0 0.0
        %1211 = vmatpush1.msra.mxu0 0.0
        %1212 = vmatprep.subr.mxu0 0.0
        %1213 = vmatpush1.msra.mxu0 0.0
        %1214 = vmatprep.subr.mxu0 0.0
        %1215 = vmatpush1.msra.mxu0 0.0
        %1216 = vmatprep.subr.mxu0 0.0
        %1217 = vmatpush1.msra.mxu0 0.0
        %1218 = vmatprep.subr.mxu0 0.0
        %1219 = vmatpush1.msra.mxu0 0.0
        %1220 = vmatprep.subr.mxu0 0.0
        %1221 = vmatpush1.msra.mxu0 0.0
        %1222 = vmatprep.subr.mxu0 0.0
        %1223 = vmatpush1.msra.mxu0 0.0
        %1224 = vmatprep.subr.mxu0 0.0
        %1225 = vmatpush1.msra.mxu0 0.0
        %1226 = vmatprep.subr.mxu0 0.0
        %1227 = vmatpush1.msra.mxu0 0.0
        %1228 = vmatprep.subr.mxu0 0.0
        %1229 = vmatpush1.msra.mxu0 0.0
        %1230 = vmatprep.subr.mxu0 0.0
        %1231 = vmatpush1.msra.mxu0 0.0
        %1232 = vmatprep.subr.mxu0 0.0
        %1233 = vmatpush1.msra.mxu0 0.0
        %1234 = vmatprep.subr.mxu0 0.0
        %1235 = vmatpush1.msra.mxu0 0.0
        %1236 = vmatprep.subr.mxu0 0.0
        %1237 = vmatpush1.msra.mxu0 0.0
        %1238 = vmatprep.subr.mxu0 0.0
        %1239 = vmatpush1.msra.mxu0 0.0
        %1240 = vmatprep.subr.mxu0 0.0
        %1241 = vmatpush1.msra.mxu0 0.0
        %1242 = vmatprep.subr.mxu0 0.0
        %1243 = vmatpush1.msra.mxu0 0.0
        %1244 = vmatprep.subr.mxu0 0.0
        %1245 = vmatpush1.msra.mxu0 0.0
        %1246 = vmatprep.subr.mxu0 0.0
        %1247 = vmatpush1.msra.mxu0 0.0
        %1248 = vmatprep.subr.mxu0 0.0
        %1249 = vmatpush1.msra.mxu0 0.0
        %1250 = vmatprep.subr.mxu0 0.0
        %1251 = vmatpush1.msra.mxu0 0.0
        %1252 = vmatprep.subr.mxu0 0.0
        %1253 = vmatpush1.msra.mxu0 0.0
        %1254 = vmatprep.subr.mxu0 0.0
        %1255 = vmatpush1.msra.mxu0 0.0
        %1256 = vmatprep.subr.mxu0 0.0
        %1257 = vmatpush1.msra.mxu0 0.0
        %1258 = vmatprep.subr.mxu0 0.0
        %1259 = vmatpush1.msra.mxu0 0.0
        %1260 = vmatprep.subr.mxu0 0.0
        %1261 = vmatpush1.msra.mxu0 0.0
        %1262 = vmatprep.subr.mxu0 0.0
        %1263 = vmatpush1.msra.mxu0 0.0
        %1264 = vmatprep.subr.mxu0 0.0
        %1265 = vmatpush1.msra.mxu0 0.0
        %1266 = vmatprep.mubr.f32.mxu0 0.0
        %1267 = vmatmul.mubr.f32.gmra.mrb[0].mxu0 %v1200
        %v1268 = vpop.f32.mrb[0].mxu0
        %v1269 = vadd.f32 0.0, %v1268
        %v1270 = vpop.f32.mrb[0].mxu0
        %1271 = vdwg.mxu0
        %1272 = vrot.lane.b32.xlu0 %v1103, 120
        %v1273 = vpop.permute.xlu0 %1272
        %1274 = vrot.lane.b32.xlu0 %v1103, 88
        %v1275 = vpop.permute.xlu0 %1274
        %v1276 = vsel %vm1109, %v1273, 0
        %v1278 = vsel %vm1109, %v1275, 0
        %1280 = vmatprep.subr.mxu0 0.0
        %1281 = vmatpush1.xpose.msra.mxu0 %v1278
        %1282 = vmatprep.subr.mxu0 0.0
        %1283 = vmatpush1.xpose.msra.mxu0 0.0
        %1284 = vmatprep.subr.mxu0 0.0
        %1285 = vmatpush1.xpose.msra.mxu0 0.0
        %1286 = vmatprep.subr.mxu0 0.0
        %1287 = vmatpush1.xpose.msra.mxu0 0.0
        %1288 = vmatprep.subr.mxu0 0.0
        %1289 = vmatpush1.xpose.msra.mxu0 0.0
        %1290 = vmatprep.subr.mxu0 0.0
        %1291 = vmatpush1.xpose.msra.mxu0 0.0
        %1292 = vmatprep.subr.mxu0 0.0
        %1293 = vmatpush1.xpose.msra.mxu0 0.0
        %1294 = vmatprep.subr.mxu0 0.0
        %1295 = vmatpush1.xpose.msra.mxu0 0.0
        %1296 = vmatprep.subr.mxu0 0.0
        %1297 = vmatpush1.xpose.msra.mxu0 0.0
        %1298 = vmatprep.subr.mxu0 0.0
        %1299 = vmatpush1.xpose.msra.mxu0 0.0
        %1300 = vmatprep.subr.mxu0 0.0
        %1301 = vmatpush1.xpose.msra.mxu0 0.0
        %1302 = vmatprep.subr.mxu0 0.0
        %1303 = vmatpush1.xpose.msra.mxu0 0.0
        %1304 = vmatprep.subr.mxu0 0.0
        %1305 = vmatpush1.xpose.msra.mxu0 0.0
        %1306 = vmatprep.subr.mxu0 0.0
        %1307 = vmatpush1.xpose.msra.mxu0 0.0
        %1308 = vmatprep.subr.mxu0 0.0
        %1309 = vmatpush1.xpose.msra.mxu0 0.0
        %1310 = vmatprep.subr.mxu0 0.0
        %1311 = vmatpush1.xpose.msra.mxu0 0.0
        %1312 = vmatprep.subr.mxu0 0.0
        %1313 = vmatpush1.xpose.msra.mxu0 0.0
        %1314 = vmatprep.subr.mxu0 0.0
        %1315 = vmatpush1.xpose.msra.mxu0 0.0
        %1316 = vmatprep.subr.mxu0 0.0
        %1317 = vmatpush1.xpose.msra.mxu0 0.0
        %1318 = vmatprep.subr.mxu0 0.0
        %1319 = vmatpush1.xpose.msra.mxu0 0.0
        %1320 = vmatprep.subr.mxu0 0.0
        %1321 = vmatpush1.xpose.msra.mxu0 0.0
        %1322 = vmatprep.subr.mxu0 0.0
        %1323 = vmatpush1.xpose.msra.mxu0 0.0
        %1324 = vmatprep.subr.mxu0 0.0
        %1325 = vmatpush1.xpose.msra.mxu0 0.0
        %1326 = vmatprep.subr.mxu0 0.0
        %1327 = vmatpush1.xpose.msra.mxu0 0.0
        %1328 = vmatprep.subr.mxu0 0.0
        %1329 = vmatpush1.xpose.msra.mxu0 0.0
        %1330 = vmatprep.subr.mxu0 0.0
        %1331 = vmatpush1.xpose.msra.mxu0 0.0
        %1332 = vmatprep.subr.mxu0 0.0
        %1333 = vmatpush1.xpose.msra.mxu0 0.0
        %1334 = vmatprep.subr.mxu0 0.0
        %1335 = vmatpush1.xpose.msra.mxu0 0.0
        %1336 = vmatprep.subr.mxu0 0.0
        %1337 = vmatpush1.xpose.msra.mxu0 0.0
        %1338 = vmatprep.subr.mxu0 0.0
        %1339 = vmatpush1.xpose.msra.mxu0 0.0
        %1340 = vmatprep.subr.mxu0 0.0
        %1341 = vmatpush1.xpose.msra.mxu0 0.0
        %1342 = vmatprep.subr.mxu0 0.0
        %1343 = vmatpush1.xpose.msra.mxu0 0.0
        %1344 = vmatprep.mubr.f32.mxu0 0.0
        %1345 = vmatmul.mubr.f32.gmra.mrb[0].mxu0 %v1276
        %v1346 = vpop.f32.mrb[0].mxu0
        %v1347 = vadd.f32 0.0, %v1346
        %v1348 = vpop.f32.mrb[0].mxu0
        %1349 = vdwg.mxu0
        %v1350 = vmul.f32 %v1347, 0.35355338
        %v1351 = vsel %vm1109, %v1350, -inf
        %1352 = vmax.xlane.f32.xlu0 %v1351
        %v1353 = vpop.xlane.xlu0 %1352
        %v1354 = vsub.f32 %v1350, %v1353
        %v1355 = vmul.f32 %v1354, 1.442695
        %v1356 = vpow.pop %v1355
        %v1357 = vsel %vm1109, %v1356, 0.0
        %1358 = vadd.xlane.f32.xlu0 %v1357
        %v1359 = vpop.xlane.xlu0 %1358
        %v1360 = vrcp.pop %v1359
        %v1361 = vmul.f32 %v1356, %v1360
        %1362 = vrot.lane.b32.xlu0 %v1103, 56
        %v1363 = vpop.permute.xlu0 %1362
        %v1366 = vsel %vm1109, %v1361, 0
        %1368 = vmatprep.subr.mxu0 0.0
        %1369 = vmatpush1.msra.mxu0 %v1363
        %1370 = vmatprep.subr.mxu0 0.0
        %1371 = vmatpush1.msra.mxu0 0.0
        %1372 = vmatprep.subr.mxu0 0.0
        %1373 = vmatpush1.msra.mxu0 0.0
        %1374 = vmatprep.subr.mxu0 0.0
        %1375 = vmatpush1.msra.mxu0 0.0
        %1376 = vmatprep.subr.mxu0 0.0
        %1377 = vmatpush1.msra.mxu0 0.0
        %1378 = vmatprep.subr.mxu0 0.0
        %1379 = vmatpush1.msra.mxu0 0.0
        %1380 = vmatprep.subr.mxu0 0.0
        %1381 = vmatpush1.msra.mxu0 0.0
        %1382 = vmatprep.subr.mxu0 0.0
        %1383 = vmatpush1.msra.mxu0 0.0
        %1384 = vmatprep.subr.mxu0 0.0
        %1385 = vmatpush1.msra.mxu0 0.0
        %1386 = vmatprep.subr.mxu0 0.0
        %1387 = vmatpush1.msra.mxu0 0.0
        %1388 = vmatprep.subr.mxu0 0.0
        %1389 = vmatpush1.msra.mxu0 0.0
        %1390 = vmatprep.subr.mxu0 0.0
        %1391 = vmatpush1.msra.mxu0 0.0
        %1392 = vmatprep.subr.mxu0 0.0
        %1393 = vmatpush1.msra.mxu0 0.0
        %1394 = vmatprep.subr.mxu0 0.0
        %1395 = vmatpush1.msra.mxu0 0.0
        %1396 = vmatprep.subr.mxu0 0.0
        %1397 = vmatpush1.msra.mxu0 0.0
        %1398 = vmatprep.subr.mxu0 0.0
        %1399 = vmatpush1.msra.mxu0 0.0
        %1400 = vmatprep.subr.mxu0 0.0
        %1401 = vmatpush1.msra.mxu0 0.0
        %1402 = vmatprep.subr.mxu0 0.0
        %1403 = vmatpush1.msra.mxu0 0.0
        %1404 = vmatprep.subr.mxu0 0.0
        %1405 = vmatpush1.msra.mxu0 0.0
        %1406 = vmatprep.subr.mxu0 0.0
        %1407 = vmatpush1.msra.mxu0 0.0
        %1408 = vmatprep.subr.mxu0 0.0
        %1409 = vmatpush1.msra.mxu0 0.0
        %1410 = vmatprep.subr.mxu0 0.0
        %1411 = vmatpush1.msra.mxu0 0.0
        %1412 = vmatprep.subr.mxu0 0.0
        %1413 = vmatpush1.msra.mxu0 0.0
        %1414 = vmatprep.subr.mxu0 0.0
        %1415 = vmatpush1.msra.mxu0 0.0
        %1416 = vmatprep.subr.mxu0 0.0
        %1417 = vmatpush1.msra.mxu0 0.0
        %1418 = vmatprep.subr.mxu0 0.0
        %1419 = vmatpush1.msra.mxu0 0.0
        %1420 = vmatprep.subr.mxu0 0.0
        %1421 = vmatpush1.msra.mxu0 0.0
        %1422 = vmatprep.subr.mxu0 0.0
        %1423 = vmatpush1.msra.mxu0 0.0
        %1424 = vmatprep.subr.mxu0 0.0
        %1425 = vmatpush1.msra.mxu0 0.0
        %1426 = vmatprep.subr.mxu0 0.0
        %1427 = vmatpush1.msra.mxu0 0.0
        %1428 = vmatprep.subr.mxu0 0.0
        %1429 = vmatpush1.msra.mxu0 0.0
        %1430 = vmatprep.subr.mxu0 0.0
        %1431 = vmatpush1.msra.mxu0 0.0
        %1432 = vmatprep.mubr.f32.mxu0 0.0
        %1433 = vmatmul.mubr.f32.gmra.mrb[0].mxu0 %v1366
        %v1434 = vpop.f32.mrb[0].mxu0
        %v1435 = vadd.f32 0.0, %v1434
        %v1436 = vpop.f32.mrb[0].mxu0
        %1437 = vdwg.mxu0
        %1438 = vrot.lane.b32.xlu0 %v1103, 112
        %v1439 = vpop.permute.xlu0 %1438
        %1440 = vrot.lane.b32.xlu0 %v1103, 80
        %v1441 = vpop.permute.xlu0 %1440
        %v1442 = vsel %vm1109, %v1439, 0
        %v1444 = vsel %vm1109, %v1441, 0
        %1446 = vmatprep.subr.mxu0 0.0
        %1447 = vmatpush1.xpose.msra.mxu0 %v1444
        %1448 = vmatprep.subr.mxu0 0.0
        %1449 = vmatpush1.xpose.msra.mxu0 0.0
        %1450 = vmatprep.subr.mxu0 0.0
        %1451 = vmatpush1.xpose.msra.mxu0 0.0
        %1452 = vmatprep.subr.mxu0 0.0
        %1453 = vmatpush1.xpose.msra.mxu0 0.0
        %1454 = vmatprep.subr.mxu0 0.0
        %1455 = vmatpush1.xpose.msra.mxu0 0.0
        %1456 = vmatprep.subr.mxu0 0.0
        %1457 = vmatpush1.xpose.msra.mxu0 0.0
        %1458 = vmatprep.subr.mxu0 0.0
        %1459 = vmatpush1.xpose.msra.mxu0 0.0
        %1460 = vmatprep.subr.mxu0 0.0
        %1461 = vmatpush1.xpose.msra.mxu0 0.0
        %1462 = vmatprep.subr.mxu0 0.0
        %1463 = vmatpush1.xpose.msra.mxu0 0.0
        %1464 = vmatprep.subr.mxu0 0.0
        %1465 = vmatpush1.xpose.msra.mxu0 0.0
        %1466 = vmatprep.subr.mxu0 0.0
        %1467 = vmatpush1.xpose.msra.mxu0 0.0
        %1468 = vmatprep.subr.mxu0 0.0
        %1469 = vmatpush1.xpose.msra.mxu0 0.0
        %1470 = vmatprep.subr.mxu0 0.0
        %1471 = vmatpush1.xpose.msra.mxu0 0.0
        %1472 = vmatprep.subr.mxu0 0.0
        %1473 = vmatpush1.xpose.msra.mxu0 0.0
        %1474 = vmatprep.subr.mxu0 0.0
        %1475 = vmatpush1.xpose.msra.mxu0 0.0
        %1476 = vmatprep.subr.mxu0 0.0
        %1477 = vmatpush1.xpose.msra.mxu0 0.0
        %1478 = vmatprep.subr.mxu0 0.0
        %1479 = vmatpush1.xpose.msra.mxu0 0.0
        %1480 = vmatprep.subr.mxu0 0.0
        %1481 = vmatpush1.xpose.msra.mxu0 0.0
        %1482 = vmatprep.subr.mxu0 0.0
        %1483 = vmatpush1.xpose.msra.mxu0 0.0
        %1484 = vmatprep.subr.mxu0 0.0
        %1485 = vmatpush1.xpose.msra.mxu0 0.0
        %1486 = vmatprep.subr.mxu0 0.0
        %1487 = vmatpush1.xpose.msra.mxu0 0.0
        %1488 = vmatprep.subr.mxu0 0.0
        %1489 = vmatpush1.xpose.msra.mxu0 0.0
        %1490 = vmatprep.subr.mxu0 0.0
        %1491 = vmatpush1.xpose.msra.mxu0 0.0
        %1492 = vmatprep.subr.mxu0 0.0
        %1493 = vmatpush1.xpose.msra.mxu0 0.0
        %1494 = vmatprep.subr.mxu0 0.0
        %1495 = vmatpush1.xpose.msra.mxu0 0.0
        %1496 = vmatprep.subr.mxu0 0.0
        %1497 = vmatpush1.xpose.msra.mxu0 0.0
        %1498 = vmatprep.subr.mxu0 0.0
        %1499 = vmatpush1.xpose.msra.mxu0 0.0
        %1500 = vmatprep.subr.mxu0 0.0
        %1501 = vmatpush1.xpose.msra.mxu0 0.0
        %1502 = vmatprep.subr.mxu0 0.0
        %1503 = vmatpush1.xpose.msra.mxu0 0.0
        %1504 = vmatprep.subr.mxu0 0.0
        %1505 = vmatpush1.xpose.msra.mxu0 0.0
        %1506 = vmatprep.subr.mxu0 0.0
        %1507 = vmatpush1.xpose.msra.mxu0 0.0
        %1508 = vmatprep.subr.mxu0 0.0
        %1509 = vmatpush1.xpose.msra.mxu0 0.0
        %1510 = vmatprep.mubr.f32.mxu0 0.0
        %1511 = vmatmul.mubr.f32.gmra.mrb[0].mxu0 %v1442
        %v1512 = vpop.f32.mrb[0].mxu0
        %v1513 = vadd.f32 0.0, %v1512
        %v1514 = vpop.f32.mrb[0].mxu0
        %1515 = vdwg.mxu0
        %v1516 = vmul.f32 %v1513, 0.35355338
        %v1517 = vsel %vm1109, %v1516, -inf
        %1518 = vmax.xlane.f32.xlu0 %v1517
        %v1519 = vpop.xlane.xlu0 %1518
        %v1520 = vsub.f32 %v1516, %v1519
        %v1521 = vmul.f32 %v1520, 1.442695
        %v1522 = vpow.pop %v1521
        %v1523 = vsel %vm1109, %v1522, 0.0
        %1524 = vadd.xlane.f32.xlu0 %v1523
        %v1525 = vpop.xlane.xlu0 %1524
        %v1526 = vrcp.pop %v1525
        %v1527 = vmul.f32 %v1522, %v1526
        %1528 = vrot.lane.b32.xlu0 %v1103, 48
        %v1529 = vpop.permute.xlu0 %1528
        %v1532 = vsel %vm1109, %v1527, 0
        %1534 = vmatprep.subr.mxu0 0.0
        %1535 = vmatpush1.msra.mxu0 %v1529
        %1536 = vmatprep.subr.mxu0 0.0
        %1537 = vmatpush1.msra.mxu0 0.0
        %1538 = vmatprep.subr.mxu0 0.0
        %1539 = vmatpush1.msra.mxu0 0.0
        %1540 = vmatprep.subr.mxu0 0.0
        %1541 = vmatpush1.msra.mxu0 0.0
        %1542 = vmatprep.subr.mxu0 0.0
        %1543 = vmatpush1.msra.mxu0 0.0
        %1544 = vmatprep.subr.mxu0 0.0
        %1545 = vmatpush1.msra.mxu0 0.0
        %1546 = vmatprep.subr.mxu0 0.0
        %1547 = vmatpush1.msra.mxu0 0.0
        %1548 = vmatprep.subr.mxu0 0.0
        %1549 = vmatpush1.msra.mxu0 0.0
        %1550 = vmatprep.subr.mxu0 0.0
        %1551 = vmatpush1.msra.mxu0 0.0
        %1552 = vmatprep.subr.mxu0 0.0
        %1553 = vmatpush1.msra.mxu0 0.0
        %1554 = vmatprep.subr.mxu0 0.0
        %1555 = vmatpush1.msra.mxu0 0.0
        %1556 = vmatprep.subr.mxu0 0.0
        %1557 = vmatpush1.msra.mxu0 0.0
        %1558 = vmatprep.subr.mxu0 0.0
        %1559 = vmatpush1.msra.mxu0 0.0
        %1560 = vmatprep.subr.mxu0 0.0
        %1561 = vmatpush1.msra.mxu0 0.0
        %1562 = vmatprep.subr.mxu0 0.0
        %1563 = vmatpush1.msra.mxu0 0.0
        %1564 = vmatprep.subr.mxu0 0.0
        %1565 = vmatpush1.msra.mxu0 0.0
        %1566 = vmatprep.subr.mxu0 0.0
        %1567 = vmatpush1.msra.mxu0 0.0
        %1568 = vmatprep.subr.mxu0 0.0
        %1569 = vmatpush1.msra.mxu0 0.0
        %1570 = vmatprep.subr.mxu0 0.0
        %1571 = vmatpush1.msra.mxu0 0.0
        %1572 = vmatprep.subr.mxu0 0.0
        %1573 = vmatpush1.msra.mxu0 0.0
        %1574 = vmatprep.subr.mxu0 0.0
        %1575 = vmatpush1.msra.mxu0 0.0
        %1576 = vmatprep.subr.mxu0 0.0
        %1577 = vmatpush1.msra.mxu0 0.0
        %1578 = vmatprep.subr.mxu0 0.0
        %1579 = vmatpush1.msra.mxu0 0.0
        %1580 = vmatprep.subr.mxu0 0.0
        %1581 = vmatpush1.msra.mxu0 0.0
        %1582 = vmatprep.subr.mxu0 0.0
        %1583 = vmatpush1.msra.mxu0 0.0
        %1584 = vmatprep.subr.mxu0 0.0
        %1585 = vmatpush1.msra.mxu0 0.0
        %1586 = vmatprep.subr.mxu0 0.0
        %1587 = vmatpush1.msra.mxu0 0.0
        %1588 = vmatprep.subr.mxu0 0.0
        %1589 = vmatpush1.msra.mxu0 0.0
        %1590 = vmatprep.subr.mxu0 0.0
        %1591 = vmatpush1.msra.mxu0 0.0
        %1592 = vmatprep.subr.mxu0 0.0
        %1593 = vmatpush1.msra.mxu0 0.0
        %1594 = vmatprep.subr.mxu0 0.0
        %1595 = vmatpush1.msra.mxu0 0.0
        %1596 = vmatprep.subr.mxu0 0.0
        %1597 = vmatpush1.msra.mxu0 0.0
        %1598 = vmatprep.mubr.f32.mxu0 0.0
        %1599 = vmatmul.mubr.f32.gmra.mrb[0].mxu0 %v1532
        %v1600 = vpop.f32.mrb[0].mxu0
        %v1601 = vadd.f32 0.0, %v1600
        %v1602 = vpop.f32.mrb[0].mxu0
        %1603 = vdwg.mxu0
        %1604 = vrot.lane.b32.xlu0 %v1103, 104
        %v1605 = vpop.permute.xlu0 %1604
        %1606 = vrot.lane.b32.xlu0 %v1103, 72
        %v1607 = vpop.permute.xlu0 %1606
        %v1608 = vsel %vm1109, %v1605, 0
        %v1610 = vsel %vm1109, %v1607, 0
        %1612 = vmatprep.subr.mxu0 0.0
        %1613 = vmatpush1.xpose.msra.mxu0 %v1610
        %1614 = vmatprep.subr.mxu0 0.0
        %1615 = vmatpush1.xpose.msra.mxu0 0.0
        %1616 = vmatprep.subr.mxu0 0.0
        %1617 = vmatpush1.xpose.msra.mxu0 0.0
        %1618 = vmatprep.subr.mxu0 0.0
        %1619 = vmatpush1.xpose.msra.mxu0 0.0
        %1620 = vmatprep.subr.mxu0 0.0
        %1621 = vmatpush1.xpose.msra.mxu0 0.0
        %1622 = vmatprep.subr.mxu0 0.0
        %1623 = vmatpush1.xpose.msra.mxu0 0.0
        %1624 = vmatprep.subr.mxu0 0.0
        %1625 = vmatpush1.xpose.msra.mxu0 0.0
        %1626 = vmatprep.subr.mxu0 0.0
        %1627 = vmatpush1.xpose.msra.mxu0 0.0
        %1628 = vmatprep.subr.mxu0 0.0
        %1629 = vmatpush1.xpose.msra.mxu0 0.0
        %1630 = vmatprep.subr.mxu0 0.0
        %1631 = vmatpush1.xpose.msra.mxu0 0.0
        %1632 = vmatprep.subr.mxu0 0.0
        %1633 = vmatpush1.xpose.msra.mxu0 0.0
        %1634 = vmatprep.subr.mxu0 0.0
        %1635 = vmatpush1.xpose.msra.mxu0 0.0
        %1636 = vmatprep.subr.mxu0 0.0
        %1637 = vmatpush1.xpose.msra.mxu0 0.0
        %1638 = vmatprep.subr.mxu0 0.0
        %1639 = vmatpush1.xpose.msra.mxu0 0.0
        %1640 = vmatprep.subr.mxu0 0.0
        %1641 = vmatpush1.xpose.msra.mxu0 0.0
        %1642 = vmatprep.subr.mxu0 0.0
        %1643 = vmatpush1.xpose.msra.mxu0 0.0
        %1644 = vmatprep.subr.mxu0 0.0
        %1645 = vmatpush1.xpose.msra.mxu0 0.0
        %1646 = vmatprep.subr.mxu0 0.0
        %1647 = vmatpush1.xpose.msra.mxu0 0.0
        %1648 = vmatprep.subr.mxu0 0.0
        %1649 = vmatpush1.xpose.msra.mxu0 0.0
        %1650 = vmatprep.subr.mxu0 0.0
        %1651 = vmatpush1.xpose.msra.mxu0 0.0
        %1652 = vmatprep.subr.mxu0 0.0
        %1653 = vmatpush1.xpose.msra.mxu0 0.0
        %1654 = vmatprep.subr.mxu0 0.0
        %1655 = vmatpush1.xpose.msra.mxu0 0.0
        %1656 = vmatprep.subr.mxu0 0.0
        %1657 = vmatpush1.xpose.msra.mxu0 0.0
        %1658 = vmatprep.subr.mxu0 0.0
        %1659 = vmatpush1.xpose.msra.mxu0 0.0
        %1660 = vmatprep.subr.mxu0 0.0
        %1661 = vmatpush1.xpose.msra.mxu0 0.0
        %1662 = vmatprep.subr.mxu0 0.0
        %1663 = vmatpush1.xpose.msra.mxu0 0.0
        %1664 = vmatprep.subr.mxu0 0.0
        %1665 = vmatpush1.xpose.msra.mxu0 0.0
        %1666 = vmatprep.subr.mxu0 0.0
        %1667 = vmatpush1.xpose.msra.mxu0 0.0
        %1668 = vmatprep.subr.mxu0 0.0
        %1669 = vmatpush1.xpose.msra.mxu0 0.0
        %1670 = vmatprep.subr.mxu0 0.0
        %1671 = vmatpush1.xpose.msra.mxu0 0.0
        %1672 = vmatprep.subr.mxu0 0.0
        %1673 = vmatpush1.xpose.msra.mxu0 0.0
        %1674 = vmatprep.subr.mxu0 0.0
        %1675 = vmatpush1.xpose.msra.mxu0 0.0
        %1676 = vmatprep.mubr.f32.mxu0 0.0
        %1677 = vmatmul.mubr.f32.gmra.mrb[0].mxu0 %v1608
        %v1678 = vpop.f32.mrb[0].mxu0
        %v1679 = vadd.f32 0.0, %v1678
        %v1680 = vpop.f32.mrb[0].mxu0
        %1681 = vdwg.mxu0
        %v1682 = vmul.f32 %v1679, 0.35355338
        %v1683 = vsel %vm1109, %v1682, -inf
        %1684 = vmax.xlane.f32.xlu0 %v1683
        %v1685 = vpop.xlane.xlu0 %1684
        %v1686 = vsub.f32 %v1682, %v1685
        %v1687 = vmul.f32 %v1686, 1.442695
        %v1688 = vpow.pop %v1687
        %v1689 = vsel %vm1109, %v1688, 0.0
        %1690 = vadd.xlane.f32.xlu0 %v1689
        %v1691 = vpop.xlane.xlu0 %1690
        %v1692 = vrcp.pop %v1691
        %v1693 = vmul.f32 %v1688, %v1692
        %1694 = vrot.lane.b32.xlu0 %v1103, 40
        %v1695 = vpop.permute.xlu0 %1694
        %v1698 = vsel %vm1109, %v1693, 0
        %1700 = vmatprep.subr.mxu0 0.0
        %1701 = vmatpush1.msra.mxu0 %v1695
        %1702 = vmatprep.subr.mxu0 0.0
        %1703 = vmatpush1.msra.mxu0 0.0
        %1704 = vmatprep.subr.mxu0 0.0
        %1705 = vmatpush1.msra.mxu0 0.0
        %1706 = vmatprep.subr.mxu0 0.0
        %1707 = vmatpush1.msra.mxu0 0.0
        %1708 = vmatprep.subr.mxu0 0.0
        %1709 = vmatpush1.msra.mxu0 0.0
        %1710 = vmatprep.subr.mxu0 0.0
        %1711 = vmatpush1.msra.mxu0 0.0
        %1712 = vmatprep.subr.mxu0 0.0
        %1713 = vmatpush1.msra.mxu0 0.0
        %1714 = vmatprep.subr.mxu0 0.0
        %1715 = vmatpush1.msra.mxu0 0.0
        %1716 = vmatprep.subr.mxu0 0.0
        %1717 = vmatpush1.msra.mxu0 0.0
        %1718 = vmatprep.subr.mxu0 0.0
        %1719 = vmatpush1.msra.mxu0 0.0
        %1720 = vmatprep.subr.mxu0 0.0
        %1721 = vmatpush1.msra.mxu0 0.0
        %1722 = vmatprep.subr.mxu0 0.0
        %1723 = vmatpush1.msra.mxu0 0.0
        %1724 = vmatprep.subr.mxu0 0.0
        %1725 = vmatpush1.msra.mxu0 0.0
        %1726 = vmatprep.subr.mxu0 0.0
        %1727 = vmatpush1.msra.mxu0 0.0
        %1728 = vmatprep.subr.mxu0 0.0
        %1729 = vmatpush1.msra.mxu0 0.0
        %1730 = vmatprep.subr.mxu0 0.0
        %1731 = vmatpush1.msra.mxu0 0.0
        %1732 = vmatprep.subr.mxu0 0.0
        %1733 = vmatpush1.msra.mxu0 0.0
        %1734 = vmatprep.subr.mxu0 0.0
        %1735 = vmatpush1.msra.mxu0 0.0
        %1736 = vmatprep.subr.mxu0 0.0
        %1737 = vmatpush1.msra.mxu0 0.0
        %1738 = vmatprep.subr.mxu0 0.0
        %1739 = vmatpush1.msra.mxu0 0.0
        %1740 = vmatprep.subr.mxu0 0.0
        %1741 = vmatpush1.msra.mxu0 0.0
        %1742 = vmatprep.subr.mxu0 0.0
        %1743 = vmatpush1.msra.mxu0 0.0
        %1744 = vmatprep.subr.mxu0 0.0
        %1745 = vmatpush1.msra.mxu0 0.0
        %1746 = vmatprep.subr.mxu0 0.0
        %1747 = vmatpush1.msra.mxu0 0.0
        %1748 = vmatprep.subr.mxu0 0.0
        %1749 = vmatpush1.msra.mxu0 0.0
        %1750 = vmatprep.subr.mxu0 0.0
        %1751 = vmatpush1.msra.mxu0 0.0
        %1752 = vmatprep.subr.mxu0 0.0
        %1753 = vmatpush1.msra.mxu0 0.0
        %1754 = vmatprep.subr.mxu0 0.0
        %1755 = vmatpush1.msra.mxu0 0.0
        %1756 = vmatprep.subr.mxu0 0.0
        %1757 = vmatpush1.msra.mxu0 0.0
        %1758 = vmatprep.subr.mxu0 0.0
        %1759 = vmatpush1.msra.mxu0 0.0
        %1760 = vmatprep.subr.mxu0 0.0
        %1761 = vmatpush1.msra.mxu0 0.0
        %1762 = vmatprep.subr.mxu0 0.0
        %1763 = vmatpush1.msra.mxu0 0.0
        %1764 = vmatprep.mubr.f32.mxu0 0.0
        %1765 = vmatmul.mubr.f32.gmra.mrb[0].mxu0 %v1698
        %v1766 = vpop.f32.mrb[0].mxu0
        %v1767 = vadd.f32 0.0, %v1766
        %v1768 = vpop.f32.mrb[0].mxu0
        %1769 = vdwg.mxu0
        %1771 = vrot.lane.b32.xlu0 %v1435, 8
        %v1772 = vpop.permute.xlu0 %1771
        %1775 = vrot.lane.b32.xlu0 %v1601, 16
        %v1776 = vpop.permute.xlu0 %1775
        %1779 = vrot.lane.b32.xlu0 %v1767, 24
        %v1780 = vpop.permute.xlu0 %1779
        %v1782 = vsel %vm1109, %v1269, %v1772
        %vm1783 = vcmask 130048
        %v1784 = vsel %vm1783, %v1782, %v1776
        %vm1785 = vcmask 195584
        %v1786 = vsel %vm1785, %v1784, %v1780
        %v1787 = vld [vmem:[#allocation11] sm:$0xff]
        %v1788 = vld [vmem:[#allocation11 + $0x8] sm:$0xff]
        %v1789 = vld [vmem:[#allocation11 + $0x10] sm:$0xff]
        %v1790 = vld [vmem:[#allocation11 + $0x18] sm:$0xff]
        %v1792 = vsel %vm993, %v1786, 0
        %1794 = vmatprep.subr.mxu0 0.0
        %1795 = vmatpush1.msra.mxu0 %v1787
        %1796 = vmatprep.subr.mxu0 0.0
        %1797 = vmatpush1.msra.mxu0 %v1788
        %1798 = vmatprep.subr.mxu0 0.0
        %1799 = vmatpush1.msra.mxu0 %v1789
        %1800 = vmatprep.subr.mxu0 0.0
        %1801 = vmatpush1.msra.mxu0 %v1790
        %1802 = vmatprep.subr.mxu0 0.0
        %1803 = vmatpush1.msra.mxu0 0.0
        %1804 = vmatprep.subr.mxu0 0.0
        %1805 = vmatpush1.msra.mxu0 0.0
        %1806 = vmatprep.subr.mxu0 0.0
        %1807 = vmatpush1.msra.mxu0 0.0
        %1808 = vmatprep.subr.mxu0 0.0
        %1809 = vmatpush1.msra.mxu0 0.0
        %1810 = vmatprep.subr.mxu0 0.0
        %1811 = vmatpush1.msra.mxu0 0.0
        %1812 = vmatprep.subr.mxu0 0.0
        %1813 = vmatpush1.msra.mxu0 0.0
        %1814 = vmatprep.subr.mxu0 0.0
        %1815 = vmatpush1.msra.mxu0 0.0
        %1816 = vmatprep.subr.mxu0 0.0
        %1817 = vmatpush1.msra.mxu0 0.0
        %1818 = vmatprep.subr.mxu0 0.0
        %1819 = vmatpush1.msra.mxu0 0.0
        %1820 = vmatprep.subr.mxu0 0.0
        %1821 = vmatpush1.msra.mxu0 0.0
        %1822 = vmatprep.subr.mxu0 0.0
        %1823 = vmatpush1.msra.mxu0 0.0
        %1824 = vmatprep.subr.mxu0 0.0
        %1825 = vmatpush1.msra.mxu0 0.0
        %1826 = vmatprep.subr.mxu0 0.0
        %1827 = vmatpush1.msra.mxu0 0.0
        %1828 = vmatprep.subr.mxu0 0.0
        %1829 = vmatpush1.msra.mxu0 0.0
        %1830 = vmatprep.subr.mxu0 0.0
        %1831 = vmatpush1.msra.mxu0 0.0
        %1832 = vmatprep.subr.mxu0 0.0
        %1833 = vmatpush1.msra.mxu0 0.0
        %1834 = vmatprep.subr.mxu0 0.0
        %1835 = vmatpush1.msra.mxu0 0.0
        %1836 = vmatprep.subr.mxu0 0.0
        %1837 = vmatpush1.msra.mxu0 0.0
        %1838 = vmatprep.subr.mxu0 0.0
        %1839 = vmatpush1.msra.mxu0 0.0
        %1840 = vmatprep.subr.mxu0 0.0
        %1841 = vmatpush1.msra.mxu0 0.0
        %1842 = vmatprep.subr.mxu0 0.0
        %1843 = vmatpush1.msra.mxu0 0.0
        %1844 = vmatprep.subr.mxu0 0.0
        %1845 = vmatpush1.msra.mxu0 0.0
        %1846 = vmatprep.subr.mxu0 0.0
        %1847 = vmatpush1.msra.mxu0 0.0
        %1848 = vmatprep.subr.mxu0 0.0
        %1849 = vmatpush1.msra.mxu0 0.0
        %1850 = vmatprep.subr.mxu0 0.0
        %1851 = vmatpush1.msra.mxu0 0.0
        %1852 = vmatprep.subr.mxu0 0.0
        %1853 = vmatpush1.msra.mxu0 0.0
        %1854 = vmatprep.subr.mxu0 0.0
        %1855 = vmatpush1.msra.mxu0 0.0
        %1856 = vmatprep.subr.mxu0 0.0
        %1857 = vmatpush1.msra.mxu0 0.0
        %1858 = vmatprep.mubr.f32.mxu0 0.0
        %1859 = vmatmul.mubr.f32.gmra.mrb[0].mxu0 %v1792
        %v1860 = vpop.f32.mrb[0].mxu0
        %v1861 = vadd.f32 0.0, %v1860
        %v1862 = vpop.f32.mrb[0].mxu0
        %1863 = vdwg.mxu0
        %v1864 = vadd.f32 %v990, %v1861
        %v1865 = vld [vmem:[#allocation13] sm:$0x1]
        %v1867 = vlaneseq
        %v1868 = vshrl.u32 %v1867, 7
        %v1869 = vsub.s32 0, %v1868
        %v1870 = vrot.slane %v1865, %v1869
        %v1872 = vadd.f32 %v1864, %v1870
        %v1873 = vld [vmem:[#allocation14] sm:$0x1]
        %v1874 = vld [vmem:[#allocation16] sm:$0x1]
        %v1875 = vsel %vm993, %v1872, 0.0
        %1876 = vadd.xlane.f32.xlu0 %v1875
        %v1877 = vpop.xlane.xlu0 %1876
        %v1878 = vmul.f32 %v1877, %v997
        %v1879 = vsub.f32 %v1872, %v1878
        %v1880 = vmul.f32 %v1879, %v1879
        %v1881 = vsel %vm993, %v1880, 0.0
        %1882 = vadd.xlane.f32.xlu0 %v1881
        %v1883 = vpop.xlane.xlu0 %1882
        %v1884 = vmul.f32 %v1883, %v997
        %v1885 = vadd.f32 %v1884, 1e-05
        %v1886 = vrsqrt.pop %v1885
        %v1887 = vmul.f32 %v1879, %v1886
        %v1889 = vlaneseq
        %v1890 = vshrl.u32 %v1889, 7
        %v1891 = vsub.s32 0, %v1890
        %v1892 = vrot.slane %v1873, %v1891
        %v1894 = vmul.f32 %v1887, %v1892
        %v1896 = vlaneseq
        %v1897 = vshrl.u32 %v1896, 7
        %v1898 = vsub.s32 0, %v1897
        %v1899 = vrot.slane %v1874, %v1898
        %v1901 = vadd.f32 %v1894, %v1899
        %v1902 = vld [vmem:[#allocation17] sm:$0xff]
        %v1903 = vld [vmem:[#allocation17 + $0x8] sm:$0xff]
        %v1904 = vld [vmem:[#allocation17 + $0x10] sm:$0xff]
        %v1905 = vld [vmem:[#allocation17 + $0x18] sm:$0xff]
        %v1906 = vld [vmem:[#allocation19] sm:$0x1]
        %v1908 = vlaneseq
        %v1909 = vshrl.u32 %v1908, 7
        %v1910 = vsub.s32 0, %v1909
        %v1911 = vrot.slane %v1906, %v1910
        %v1914 = vsel %vm993, %v1901, 0
        %1916 = vmatprep.subr.mxu0 0.0
        %1917 = vmatpush1.msra.mxu0 %v1902
        %1918 = vmatprep.subr.mxu0 0.0
        %1919 = vmatpush1.msra.mxu0 %v1903
        %1920 = vmatprep.subr.mxu0 0.0
        %1921 = vmatpush1.msra.mxu0 %v1904
        %1922 = vmatprep.subr.mxu0 0.0
        %1923 = vmatpush1.msra.mxu0 %v1905
        %1924 = vmatprep.subr.mxu0 0.0
        %1925 = vmatpush1.msra.mxu0 0.0
        %1926 = vmatprep.subr.mxu0 0.0
        %1927 = vmatpush1.msra.mxu0 0.0
        %1928 = vmatprep.subr.mxu0 0.0
        %1929 = vmatpush1.msra.mxu0 0.0
        %1930 = vmatprep.subr.mxu0 0.0
        %1931 = vmatpush1.msra.mxu0 0.0
        %1932 = vmatprep.subr.mxu0 0.0
        %1933 = vmatpush1.msra.mxu0 0.0
        %1934 = vmatprep.subr.mxu0 0.0
        %1935 = vmatpush1.msra.mxu0 0.0
        %1936 = vmatprep.subr.mxu0 0.0
        %1937 = vmatpush1.msra.mxu0 0.0
        %1938 = vmatprep.subr.mxu0 0.0
        %1939 = vmatpush1.msra.mxu0 0.0
        %1940 = vmatprep.subr.mxu0 0.0
        %1941 = vmatpush1.msra.mxu0 0.0
        %1942 = vmatprep.subr.mxu0 0.0
        %1943 = vmatpush1.msra.mxu0 0.0
        %1944 = vmatprep.subr.mxu0 0.0
        %1945 = vmatpush1.msra.mxu0 0.0
        %1946 = vmatprep.subr.mxu0 0.0
        %1947 = vmatpush1.msra.mxu0 0.0
        %1948 = vmatprep.subr.mxu0 0.0
        %1949 = vmatpush1.msra.mxu0 0.0
        %1950 = vmatprep.subr.mxu0 0.0
        %1951 = vmatpush1.msra.mxu0 0.0
        %1952 = vmatprep.subr.mxu0 0.0
        %1953 = vmatpush1.msra.mxu0 0.0
        %1954 = vmatprep.subr.mxu0 0.0
        %1955 = vmatpush1.msra.mxu0 0.0
        %1956 = vmatprep.subr.mxu0 0.0
        %1957 = vmatpush1.msra.mxu0 0.0
        %1958 = vmatprep.subr.mxu0 0.0
        %1959 = vmatpush1.msra.mxu0 0.0
        %1960 = vmatprep.subr.mxu0 0.0
        %1961 = vmatpush1.msra.mxu0 0.0
        %1962 = vmatprep.subr.mxu0 0.0
        %1963 = vmatpush1.msra.mxu0 0.0
        %1964 = vmatprep.subr.mxu0 0.0
        %1965 = vmatpush1.msra.mxu0 0.0
        %1966 = vmatprep.subr.mxu0 0.0
        %1967 = vmatpush1.msra.mxu0 0.0
        %1968 = vmatprep.subr.mxu0 0.0
        %1969 = vmatpush1.msra.mxu0 0.0
        %1970 = vmatprep.subr.mxu0 0.0
        %1971 = vmatpush1.msra.mxu0 0.0
        %1972 = vmatprep.subr.mxu0 0.0
        %1973 = vmatpush1.msra.mxu0 0.0
        %1974 = vmatprep.subr.mxu0 0.0
        %1975 = vmatpush1.msra.mxu0 0.0
        %1976 = vmatprep.subr.mxu0 0.0
        %1977 = vmatpush1.msra.mxu0 0.0
        %1978 = vmatprep.subr.mxu0 0.0
        %1979 = vmatpush1.msra.mxu0 0.0
        %1980 = vmatprep.mubr.f32.mxu0 0.0
        %1981 = vmatmul.mubr.f32.gmra.mrb[0].mxu0 %v1914
        %v1982 = vpop.f32.mrb[0].mxu0
        %v1983 = vadd.f32 %v1911, %v1982
        %v1984 = vpop.f32.mrb[0].mxu0
        %1985 = vdwg.mxu0
        %v1986 = vmul.f32 %v1983, 0.5
        %v1987 = vmul.f32 %v1983, 0.70710677
        %v1988 = vand.u32 2147483647, %v1987
        %v1989 = vmul.f32 %v1988, 0.3275911
        %v1990 = vadd.f32 %v1989, 1.0
        %v1991 = vrcp.pop %v1990
        %v1992 = vmul.f32 1.0, %v1991
        %v1993 = vmul.f32 %v1992, 1.0614054
        %v1994 = vadd.f32 %v1993, -1.4531521
        %v1995 = vmul.f32 %v1994, %v1992
        %v1996 = vadd.f32 %v1995, 1.4214138
        %v1997 = vmul.f32 %v1996, %v1992
        %v1998 = vadd.f32 %v1997, -0.28449672
        %v1999 = vmul.f32 %v1998, %v1992
        %v2000 = vadd.f32 %v1999, 0.2548296
        %v2001 = vmul.f32 %v2000, %v1992
        %v2002 = vsub.f32 0.0, %v1988
        %v2003 = vmul.f32 %v2002, %v1988
        %v2004 = vmul.f32 %v2003, 1.442695
        %v2005 = vpow.pop %v2004
        %v2006 = vmul.f32 %v2001, %v2005
        %v2007 = vsub.f32 1.0, %v2006
        %vm2008 = vcmp.ge.f32.partialorder %v1987, 0.0
        %v2009 = vsub.f32 0.0, %v2007
        %v2010 = vsel %vm2008, %v2007, %v2009
        %v2011 = vadd.f32 %v2010, 1.0
        %v2012 = vmul.f32 %v1986, %v2011
        %v2013 = vld [vmem:[%s11] sm:$0xff]
        %v2014 = vld [vmem:[%s11 + $0x8] sm:$0xff]
        %v2015 = vld [vmem:[%s11 + $0x10] sm:$0xff]
        %v2016 = vld [vmem:[%s11 + $0x18] sm:$0xff]
        %v2017 = vld [vmem:[%s11 + $0x20] sm:$0xff]
        %v2018 = vld [vmem:[%s11 + $0x28] sm:$0xff]
        %v2019 = vld [vmem:[%s11 + $0x30] sm:$0xff]
        %v2020 = vld [vmem:[%s11 + $0x38] sm:$0xff]
        %v2021 = vld [vmem:[%s11 + $0x40] sm:$0xff]
        %v2022 = vld [vmem:[%s11 + $0x48] sm:$0xff]
        %v2023 = vld [vmem:[%s11 + $0x50] sm:$0xff]
        %v2024 = vld [vmem:[%s11 + $0x58] sm:$0xff]
        %v2025 = vld [vmem:[%s11 + $0x60] sm:$0xff]
        %v2026 = vld [vmem:[%s11 + $0x68] sm:$0xff]
        %v2027 = vld [vmem:[%s11 + $0x70] sm:$0xff]
        %v2028 = vld [vmem:[%s11 + $0x78] sm:$0xff]
        %v2029 = vld [vmem:[#allocation20] sm:$0x1]
        %v2031 = vlaneseq
        %v2032 = vshrl.u32 %v2031, 7
        %v2033 = vsub.s32 0, %v2032
        %v2034 = vrot.slane %v2029, %v2033
        %2036 = vmatprep.subr.mxu0 0.0
        %2037 = vmatpush1.msra.mxu0 %v2013
        %2038 = vmatprep.subr.mxu0 0.0
        %2039 = vmatpush1.msra.mxu0 %v2014
        %2040 = vmatprep.subr.mxu0 0.0
        %2041 = vmatpush1.msra.mxu0 %v2015
        %2042 = vmatprep.subr.mxu0 0.0
        %2043 = vmatpush1.msra.mxu0 %v2016
        %2044 = vmatprep.subr.mxu0 0.0
        %2045 = vmatpush1.msra.mxu0 %v2017
        %2046 = vmatprep.subr.mxu0 0.0
        %2047 = vmatpush1.msra.mxu0 %v2018
        %2048 = vmatprep.subr.mxu0 0.0
        %2049 = vmatpush1.msra.mxu0 %v2019
        %2050 = vmatprep.subr.mxu0 0.0
        %2051 = vmatpush1.msra.mxu0 %v2020
        %2052 = vmatprep.subr.mxu0 0.0
        %2053 = vmatpush1.msra.mxu0 %v2021
        %2054 = vmatprep.subr.mxu0 0.0
        %2055 = vmatpush1.msra.mxu0 %v2022
        %2056 = vmatprep.subr.mxu0 0.0
        %2057 = vmatpush1.msra.mxu0 %v2023
        %2058 = vmatprep.subr.mxu0 0.0
        %2059 = vmatpush1.msra.mxu0 %v2024
        %2060 = vmatprep.subr.mxu0 0.0
        %2061 = vmatpush1.msra.mxu0 %v2025
        %2062 = vmatprep.subr.mxu0 0.0
        %2063 = vmatpush1.msra.mxu0 %v2026
        %2064 = vmatprep.subr.mxu0 0.0
        %2065 = vmatpush1.msra.mxu0 %v2027
        %2066 = vmatprep.subr.mxu0 0.0
        %2067 = vmatpush1.msra.mxu0 %v2028
        %2068 = vmatprep.subr.mxu0 0.0
        %2069 = vmatpush1.msra.mxu0 0.0
        %2070 = vmatprep.subr.mxu0 0.0
        %2071 = vmatpush1.msra.mxu0 0.0
        %2072 = vmatprep.subr.mxu0 0.0
        %2073 = vmatpush1.msra.mxu0 0.0
        %2074 = vmatprep.subr.mxu0 0.0
        %2075 = vmatpush1.msra.mxu0 0.0
        %2076 = vmatprep.subr.mxu0 0.0
        %2077 = vmatpush1.msra.mxu0 0.0
        %2078 = vmatprep.subr.mxu0 0.0
        %2079 = vmatpush1.msra.mxu0 0.0
        %2080 = vmatprep.subr.mxu0 0.0
        %2081 = vmatpush1.msra.mxu0 0.0
        %2082 = vmatprep.subr.mxu0 0.0
        %2083 = vmatpush1.msra.mxu0 0.0
        %2084 = vmatprep.subr.mxu0 0.0
        %2085 = vmatpush1.msra.mxu0 0.0
        %2086 = vmatprep.subr.mxu0 0.0
        %2087 = vmatpush1.msra.mxu0 0.0
        %2088 = vmatprep.subr.mxu0 0.0
        %2089 = vmatpush1.msra.mxu0 0.0
        %2090 = vmatprep.subr.mxu0 0.0
        %2091 = vmatpush1.msra.mxu0 0.0
        %2092 = vmatprep.subr.mxu0 0.0
        %2093 = vmatpush1.msra.mxu0 0.0
        %2094 = vmatprep.subr.mxu0 0.0
        %2095 = vmatpush1.msra.mxu0 0.0
        %2096 = vmatprep.subr.mxu0 0.0
        %2097 = vmatpush1.msra.mxu0 0.0
        %2098 = vmatprep.subr.mxu0 0.0
        %2099 = vmatpush1.msra.mxu0 0.0
        %2100 = vmatprep.mubr.f32.mxu0 0.0
        %2101 = vmatmul.mubr.f32.gmra.mrb[0].mxu0 %v2012
        %v2102 = vpop.f32.mrb[0].mxu0
        %v2103 = vadd.f32 %v2034, %v2102
        %v2104 = vpop.f32.mrb[0].mxu0
        %2105 = vdwg.mxu0
        %v2106 = vadd.f32 %v1872, %v2103
        %s2107 = scalar_lea.vmem [#allocation5], 1
        %v2108 = vld [vmem:[%s2107] sm:$0x1]
        %s2109 = scalar_lea.vmem [#allocation7], 1
        %v2110 = vld [vmem:[%s2109] sm:$0x1]
        %v2112 = vlaneseq
        %v2113 = vshrl.u32 %v2112, 7
        %v2114 = vsub.s32 0, %v2113
        %v2115 = vrot.slane %v2108, %v2114
        %v2117 = vmul.f32 %v1007, %v2115
        %v2119 = vlaneseq
        %v2120 = vshrl.u32 %v2119, 7
        %v2121 = vsub.s32 0, %v2120
        %v2122 = vrot.slane %v2110, %v2121
        %v2124 = vadd.f32 %v2117, %v2122
        %s2125 = scalar_lea.vmem [#allocation8], 32
        %v2126 = vld [vmem:[%s2125] sm:$0xff]
        %v2127 = vld [vmem:[%s2125 + $0x8] sm:$0xff]
        %v2128 = vld [vmem:[%s2125 + $0x10] sm:$0xff]
        %v2129 = vld [vmem:[%s2125 + $0x18] sm:$0xff]
        %s2130 = scalar_lea.vmem [#allocation10], 1
        %v2131 = vld [vmem:[%s2130] sm:$0x1]
        %v2133 = vlaneseq
        %v2134 = vshrl.u32 %v2133, 7
        %v2135 = vsub.s32 0, %v2134
        %v2136 = vrot.slane %v2131, %v2135
        %v2139 = vsel %vm993, %v2124, 0
        %2141 = vmatprep.subr.mxu0 0.0
        %2142 = vmatpush1.msra.mxu0 %v2126
        %2143 = vmatprep.subr.mxu0 0.0
        %2144 = vmatpush1.msra.mxu0 %v2127
        %2145 = vmatprep.subr.mxu0 0.0
        %2146 = vmatpush1.msra.mxu0 %v2128
        %2147 = vmatprep.subr.mxu0 0.0
        %2148 = vmatpush1.msra.mxu0 %v2129
        %2149 = vmatprep.subr.mxu0 0.0
        %2150 = vmatpush1.msra.mxu0 0.0
        %2151 = vmatprep.subr.mxu0 0.0
        %2152 = vmatpush1.msra.mxu0 0.0
        %2153 = vmatprep.subr.mxu0 0.0
        %2154 = vmatpush1.msra.mxu0 0.0
        %2155 = vmatprep.subr.mxu0 0.0
        %2156 = vmatpush1.msra.mxu0 0.0
        %2157 = vmatprep.subr.mxu0 0.0
        %2158 = vmatpush1.msra.mxu0 0.0
        %2159 = vmatprep.subr.mxu0 0.0
        %2160 = vmatpush1.msra.mxu0 0.0
        %2161 = vmatprep.subr.mxu0 0.0
        %2162 = vmatpush1.msra.mxu0 0.0
        %2163 = vmatprep.subr.mxu0 0.0
        %2164 = vmatpush1.msra.mxu0 0.0
        %2165 = vmatprep.subr.mxu0 0.0
        %2166 = vmatpush1.msra.mxu0 0.0
        %2167 = vmatprep.subr.mxu0 0.0
        %2168 = vmatpush1.msra.mxu0 0.0
        %2169 = vmatprep.subr.mxu0 0.0
        %2170 = vmatpush1.msra.mxu0 0.0
        %2171 = vmatprep.subr.mxu0 0.0
        %2172 = vmatpush1.msra.mxu0 0.0
        %2173 = vmatprep.subr.mxu0 0.0
        %2174 = vmatpush1.msra.mxu0 0.0
        %2175 = vmatprep.subr.mxu0 0.0
        %2176 = vmatpush1.msra.mxu0 0.0
        %2177 = vmatprep.subr.mxu0 0.0
        %2178 = vmatpush1.msra.mxu0 0.0
        %2179 = vmatprep.subr.mxu0 0.0
        %2180 = vmatpush1.msra.mxu0 0.0
        %2181 = vmatprep.subr.mxu0 0.0
        %2182 = vmatpush1.msra.mxu0 0.0
        %2183 = vmatprep.subr.mxu0 0.0
        %2184 = vmatpush1.msra.mxu0 0.0
        %2185 = vmatprep.subr.mxu0 0.0
        %2186 = vmatpush1.msra.mxu0 0.0
        %2187 = vmatprep.subr.mxu0 0.0
        %2188 = vmatpush1.msra.mxu0 0.0
        %2189 = vmatprep.subr.mxu0 0.0
        %2190 = vmatpush1.msra.mxu0 0.0
        %2191 = vmatprep.subr.mxu0 0.0
        %2192 = vmatpush1.msra.mxu0 0.0
        %2193 = vmatprep.subr.mxu0 0.0
        %2194 = vmatpush1.msra.mxu0 0.0
        %2195 = vmatprep.subr.mxu0 0.0
        %2196 = vmatpush1.msra.mxu0 0.0
        %2197 = vmatprep.subr.mxu0 0.0
        %2198 = vmatpush1.msra.mxu0 0.0
        %2199 = vmatprep.subr.mxu0 0.0
        %2200 = vmatpush1.msra.mxu0 0.0
        %2201 = vmatprep.subr.mxu0 0.0
        %2202 = vmatpush1.msra.mxu0 0.0
        %2203 = vmatprep.subr.mxu0 0.0
        %2204 = vmatpush1.msra.mxu0 0.0
        %2205 = vmatprep.mubr.f32.mxu0 0.0
        %2206 = vmatmul.mubr.f32.gmra.mrb[0].mxu0 %v2139
        %v2207 = vpop.f32.mrb[0].mxu0
        %v2208 = vadd.f32 %v2136, %v2207
        %v2209 = vpop.f32.mrb[0].mxu0
        %2210 = vdwg.mxu0
        %2212 = vrot.lane.b32.xlu0 %v2208, 96
        %v2213 = vpop.permute.xlu0 %2212
        %v2214 = vsel %vm1109, %v2208, 0
        %v2216 = vsel %vm1109, %v2213, 0
        %2218 = vmatprep.subr.mxu0 0.0
        %2219 = vmatpush1.xpose.msra.mxu0 %v2216
        %2220 = vmatprep.subr.mxu0 0.0
        %2221 = vmatpush1.xpose.msra.mxu0 0.0
        %2222 = vmatprep.subr.mxu0 0.0
        %2223 = vmatpush1.xpose.msra.mxu0 0.0
        %2224 = vmatprep.subr.mxu0 0.0
        %2225 = vmatpush1.xpose.msra.mxu0 0.0
        %2226 = vmatprep.subr.mxu0 0.0
        %2227 = vmatpush1.xpose.msra.mxu0 0.0
        %2228 = vmatprep.subr.mxu0 0.0
        %2229 = vmatpush1.xpose.msra.mxu0 0.0
        %2230 = vmatprep.subr.mxu0 0.0
        %2231 = vmatpush1.xpose.msra.mxu0 0.0
        %2232 = vmatprep.subr.mxu0 0.0
        %2233 = vmatpush1.xpose.msra.mxu0 0.0
        %2234 = vmatprep.subr.mxu0 0.0
        %2235 = vmatpush1.xpose.msra.mxu0 0.0
        %2236 = vmatprep.subr.mxu0 0.0
        %2237 = vmatpush1.xpose.msra.mxu0 0.0
        %2238 = vmatprep.subr.mxu0 0.0
        %2239 = vmatpush1.xpose.msra.mxu0 0.0
        %2240 = vmatprep.subr.mxu0 0.0
        %2241 = vmatpush1.xpose.msra.mxu0 0.0
        %2242 = vmatprep.subr.mxu0 0.0
        %2243 = vmatpush1.xpose.msra.mxu0 0.0
        %2244 = vmatprep.subr.mxu0 0.0
        %2245 = vmatpush1.xpose.msra.mxu0 0.0
        %2246 = vmatprep.subr.mxu0 0.0
        %2247 = vmatpush1.xpose.msra.mxu0 0.0
        %2248 = vmatprep.subr.mxu0 0.0
        %2249 = vmatpush1.xpose.msra.mxu0 0.0
        %2250 = vmatprep.subr.mxu0 0.0
        %2251 = vmatpush1.xpose.msra.mxu0 0.0
        %2252 = vmatprep.subr.mxu0 0.0
        %2253 = vmatpush1.xpose.msra.mxu0 0.0
        %2254 = vmatprep.subr.mxu0 0.0
        %2255 = vmatpush1.xpose.msra.mxu0 0.0
        %2256 = vmatprep.subr.mxu0 0.0
        %2257 = vmatpush1.xpose.msra.mxu0 0.0
        %2258 = vmatprep.subr.mxu0 0.0
        %2259 = vmatpush1.xpose.msra.mxu0 0.0
        %2260 = vmatprep.subr.mxu0 0.0
        %2261 = vmatpush1.xpose.msra.mxu0 0.0
        %2262 = vmatprep.subr.mxu0 0.0
        %2263 = vmatpush1.xpose.msra.mxu0 0.0
        %2264 = vmatprep.subr.mxu0 0.0
        %2265 = vmatpush1.xpose.msra.mxu0 0.0
        %2266 = vmatprep.subr.mxu0 0.0
        %2267 = vmatpush1.xpose.msra.mxu0 0.0
        %2268 = vmatprep.subr.mxu0 0.0
        %2269 = vmatpush1.xpose.msra.mxu0 0.0
        %2270 = vmatprep.subr.mxu0 0.0
        %2271 = vmatpush1.xpose.msra.mxu0 0.0
        %2272 = vmatprep.subr.mxu0 0.0
        %2273 = vmatpush1.xpose.msra.mxu0 0.0
        %2274 = vmatprep.subr.mxu0 0.0
        %2275 = vmatpush1.xpose.msra.mxu0 0.0
        %2276 = vmatprep.subr.mxu0 0.0
        %2277 = vmatpush1.xpose.msra.mxu0 0.0
        %2278 = vmatprep.subr.mxu0 0.0
        %2279 = vmatpush1.xpose.msra.mxu0 0.0
        %2280 = vmatprep.subr.mxu0 0.0
        %2281 = vmatpush1.xpose.msra.mxu0 0.0
        %2282 = vmatprep.mubr.f32.mxu0 0.0
        %2283 = vmatmul.mubr.f32.gmra.mrb[0].mxu0 %v2214
        %v2284 = vpop.f32.mrb[0].mxu0
        %v2285 = vadd.f32 0.0, %v2284
        %v2286 = vpop.f32.mrb[0].mxu0
        %2287 = vdwg.mxu0
        %v2288 = vmul.f32 %v2285, 0.35355338
        %v2289 = vsel %vm1109, %v2288, -inf
        %2290 = vmax.xlane.f32.xlu0 %v2289
        %v2291 = vpop.xlane.xlu0 %2290
        %v2292 = vsub.f32 %v2288, %v2291
        %v2293 = vmul.f32 %v2292, 1.442695
        %v2294 = vpow.pop %v2293
        %v2295 = vsel %vm1109, %v2294, 0.0
        %2296 = vadd.xlane.f32.xlu0 %v2295
        %v2297 = vpop.xlane.xlu0 %2296
        %v2298 = vrcp.pop %v2297
        %v2299 = vmul.f32 %v2294, %v2298
        %2300 = vrot.lane.b32.xlu0 %v2208, 64
        %v2301 = vpop.permute.xlu0 %2300
        %v2304 = vsel %vm1109, %v2299, 0
        %2306 = vmatprep.subr.mxu0 0.0
        %2307 = vmatpush1.msra.mxu0 %v2301
        %2308 = vmatprep.subr.mxu0 0.0
        %2309 = vmatpush1.msra.mxu0 0.0
        %2310 = vmatprep.subr.mxu0 0.0
        %2311 = vmatpush1.msra.mxu0 0.0
        %2312 = vmatprep.subr.mxu0 0.0
        %2313 = vmatpush1.msra.mxu0 0.0
        %2314 = vmatprep.subr.mxu0 0.0
        %2315 = vmatpush1.msra.mxu0 0.0
        %2316 = vmatprep.subr.mxu0 0.0
        %2317 = vmatpush1.msra.mxu0 0.0
        %2318 = vmatprep.subr.mxu0 0.0
        %2319 = vmatpush1.msra.mxu0 0.0
        %2320 = vmatprep.subr.mxu0 0.0
        %2321 = vmatpush1.msra.mxu0 0.0
        %2322 = vmatprep.subr.mxu0 0.0
        %2323 = vmatpush1.msra.mxu0 0.0
        %2324 = vmatprep.subr.mxu0 0.0
        %2325 = vmatpush1.msra.mxu0 0.0
        %2326 = vmatprep.subr.mxu0 0.0
        %2327 = vmatpush1.msra.mxu0 0.0
        %2328 = vmatprep.subr.mxu0 0.0
        %2329 = vmatpush1.msra.mxu0 0.0
        %2330 = vmatprep.subr.mxu0 0.0
        %2331 = vmatpush1.msra.mxu0 0.0
        %2332 = vmatprep.subr.mxu0 0.0
        %2333 = vmatpush1.msra.mxu0 0.0
        %2334 = vmatprep.subr.mxu0 0.0
        %2335 = vmatpush1.msra.mxu0 0.0
        %2336 = vmatprep.subr.mxu0 0.0
        %2337 = vmatpush1.msra.mxu0 0.0
        %2338 = vmatprep.subr.mxu0 0.0
        %2339 = vmatpush1.msra.mxu0 0.0
        %2340 = vmatprep.subr.mxu0 0.0
        %2341 = vmatpush1.msra.mxu0 0.0
        %2342 = vmatprep.subr.mxu0 0.0
        %2343 = vmatpush1.msra.mxu0 0.0
        %2344 = vmatprep.subr.mxu0 0.0
        %2345 = vmatpush1.msra.mxu0 0.0
        %2346 = vmatprep.subr.mxu0 0.0
        %2347 = vmatpush1.msra.mxu0 0.0
        %2348 = vmatprep.subr.mxu0 0.0
        %2349 = vmatpush1.msra.mxu0 0.0
        %2350 = vmatprep.subr.mxu0 0.0
        %2351 = vmatpush1.msra.mxu0 0.0
        %2352 = vmatprep.subr.mxu0 0.0
        %2353 = vmatpush1.msra.mxu0 0.0
        %2354 = vmatprep.subr.mxu0 0.0
        %2355 = vmatpush1.msra.mxu0 0.0
        %2356 = vmatprep.subr.mxu0 0.0
        %2357 = vmatpush1.msra.mxu0 0.0
        %2358 = vmatprep.subr.mxu0 0.0
        %2359 = vmatpush1.msra.mxu0 0.0
        %2360 = vmatprep.subr.mxu0 0.0
        %2361 = vmatpush1.msra.mxu0 0.0
        %2362 = vmatprep.subr.mxu0 0.0
        %2363 = vmatpush1.msra.mxu0 0.0
        %2364 = vmatprep.subr.mxu0 0.0
        %2365 = vmatpush1.msra.mxu0 0.0
        %2366 = vmatprep.subr.mxu0 0.0
        %2367 = vmatpush1.msra.mxu0 0.0
        %2368 = vmatprep.subr.mxu0 0.0
        %2369 = vmatpush1.msra.mxu0 0.0
        %2370 = vmatprep.mubr.f32.mxu0 0.0
        %2371 = vmatmul.mubr.f32.gmra.mrb[0].mxu0 %v2304
        %v2372 = vpop.f32.mrb[0].mxu0
        %v2373 = vadd.f32 0.0, %v2372
        %v2374 = vpop.f32.mrb[0].mxu0
        %2375 = vdwg.mxu0
        %2376 = vrot.lane.b32.xlu0 %v2208, 120
        %v2377 = vpop.permute.xlu0 %2376
        %2378 = vrot.lane.b32.xlu0 %v2208, 88
        %v2379 = vpop.permute.xlu0 %2378
        %v2380 = vsel %vm1109, %v2377, 0
        %v2382 = vsel %vm1109, %v2379, 0
        %2384 = vmatprep.subr.mxu0 0.0
        %2385 = vmatpush1.xpose.msra.mxu0 %v2382
        %2386 = vmatprep.subr.mxu0 0.0
        %2387 = vmatpush1.xpose.msra.mxu0 0.0
        %2388 = vmatprep.subr.mxu0 0.0
        %2389 = vmatpush1.xpose.msra.mxu0 0.0
        %2390 = vmatprep.subr.mxu0 0.0
        %2391 = vmatpush1.xpose.msra.mxu0 0.0
        %2392 = vmatprep.subr.mxu0 0.0
        %2393 = vmatpush1.xpose.msra.mxu0 0.0
        %2394 = vmatprep.subr.mxu0 0.0
        %2395 = vmatpush1.xpose.msra.mxu0 0.0
        %2396 = vmatprep.subr.mxu0 0.0
        %2397 = vmatpush1.xpose.msra.mxu0 0.0
        %2398 = vmatprep.subr.mxu0 0.0
        %2399 = vmatpush1.xpose.msra.mxu0 0.0
        %2400 = vmatprep.subr.mxu0 0.0
        %2401 = vmatpush1.xpose.msra.mxu0 0.0
        %2402 = vmatprep.subr.mxu0 0.0
        %2403 = vmatpush1.xpose.msra.mxu0 0.0
        %2404 = vmatprep.subr.mxu0 0.0
        %2405 = vmatpush1.xpose.msra.mxu0 0.0
        %2406 = vmatprep.subr.mxu0 0.0
        %2407 = vmatpush1.xpose.msra.mxu0 0.0
        %2408 = vmatprep.subr.mxu0 0.0
        %2409 = vmatpush1.xpose.msra.mxu0 0.0
        %2410 = vmatprep.subr.mxu0 0.0
        %2411 = vmatpush1.xpose.msra.mxu0 0.0
        %2412 = vmatprep.subr.mxu0 0.0
        %2413 = vmatpush1.xpose.msra.mxu0 0.0
        %2414 = vmatprep.subr.mxu0 0.0
        %2415 = vmatpush1.xpose.msra.mxu0 0.0
        %2416 = vmatprep.subr.mxu0 0.0
        %2417 = vmatpush1.xpose.msra.mxu0 0.0
        %2418 = vmatprep.subr.mxu0 0.0
        %2419 = vmatpush1.xpose.msra.mxu0 0.0
        %2420 = vmatprep.subr.mxu0 0.0
        %2421 = vmatpush1.xpose.msra.mxu0 0.0
        %2422 = vmatprep.subr.mxu0 0.0
        %2423 = vmatpush1.xpose.msra.mxu0 0.0
        %2424 = vmatprep.subr.mxu0 0.0
        %2425 = vmatpush1.xpose.msra.mxu0 0.0
        %2426 = vmatprep.subr.mxu0 0.0
        %2427 = vmatpush1.xpose.msra.mxu0 0.0
        %2428 = vmatprep.subr.mxu0 0.0
        %2429 = vmatpush1.xpose.msra.mxu0 0.0
        %2430 = vmatprep.subr.mxu0 0.0
        %2431 = vmatpush1.xpose.msra.mxu0 0.0
        %2432 = vmatprep.subr.mxu0 0.0
        %2433 = vmatpush1.xpose.msra.mxu0 0.0
        %2434 = vmatprep.subr.mxu0 0.0
        %2435 = vmatpush1.xpose.msra.mxu0 0.0
        %2436 = vmatprep.subr.mxu0 0.0
        %2437 = vmatpush1.xpose.msra.mxu0 0.0
        %2438 = vmatprep.subr.mxu0 0.0
        %2439 = vmatpush1.xpose.msra.mxu0 0.0
        %2440 = vmatprep.subr.mxu0 0.0
        %2441 = vmatpush1.xpose.msra.mxu0 0.0
        %2442 = vmatprep.subr.mxu0 0.0
        %2443 = vmatpush1.xpose.msra.mxu0 0.0
        %2444 = vmatprep.subr.mxu0 0.0
        %2445 = vmatpush1.xpose.msra.mxu0 0.0
        %2446 = vmatprep.subr.mxu0 0.0
        %2447 = vmatpush1.xpose.msra.mxu0 0.0
        %2448 = vmatprep.mubr.f32.mxu0 0.0
        %2449 = vmatmul.mubr.f32.gmra.mrb[0].mxu0 %v2380
        %v2450 = vpop.f32.mrb[0].mxu0
        %v2451 = vadd.f32 0.0, %v2450
        %v2452 = vpop.f32.mrb[0].mxu0
        %2453 = vdwg.mxu0
        %v2454 = vmul.f32 %v2451, 0.35355338
        %v2455 = vsel %vm1109, %v2454, -inf
        %2456 = vmax.xlane.f32.xlu0 %v2455
        %v2457 = vpop.xlane.xlu0 %2456
        %v2458 = vsub.f32 %v2454, %v2457
        %v2459 = vmul.f32 %v2458, 1.442695
        %v2460 = vpow.pop %v2459
        %v2461 = vsel %vm1109, %v2460, 0.0
        %2462 = vadd.xlane.f32.xlu0 %v2461
        %v2463 = vpop.xlane.xlu0 %2462
        %v2464 = vrcp.pop %v2463
        %v2465 = vmul.f32 %v2460, %v2464
        %2466 = vrot.lane.b32.xlu0 %v2208, 56
        %v2467 = vpop.permute.xlu0 %2466
        %v2470 = vsel %vm1109, %v2465, 0
        %2472 = vmatprep.subr.mxu0 0.0
        %2473 = vmatpush1.msra.mxu0 %v2467
        %2474 = vmatprep.subr.mxu0 0.0
        %2475 = vmatpush1.msra.mxu0 0.0
        %2476 = vmatprep.subr.mxu0 0.0
        %2477 = vmatpush1.msra.mxu0 0.0
        %2478 = vmatprep.subr.mxu0 0.0
        %2479 = vmatpush1.msra.mxu0 0.0
        %2480 = vmatprep.subr.mxu0 0.0
        %2481 = vmatpush1.msra.mxu0 0.0
        %2482 = vmatprep.subr.mxu0 0.0
        %2483 = vmatpush1.msra.mxu0 0.0
        %2484 = vmatprep.subr.mxu0 0.0
        %2485 = vmatpush1.msra.mxu0 0.0
        %2486 = vmatprep.subr.mxu0 0.0
        %2487 = vmatpush1.msra.mxu0 0.0
        %2488 = vmatprep.subr.mxu0 0.0
        %2489 = vmatpush1.msra.mxu0 0.0
        %2490 = vmatprep.subr.mxu0 0.0
        %2491 = vmatpush1.msra.mxu0 0.0
        %2492 = vmatprep.subr.mxu0 0.0
        %2493 = vmatpush1.msra.mxu0 0.0
        %2494 = vmatprep.subr.mxu0 0.0
        %2495 = vmatpush1.msra.mxu0 0.0
        %2496 = vmatprep.subr.mxu0 0.0
        %2497 = vmatpush1.msra.mxu0 0.0
        %2498 = vmatprep.subr.mxu0 0.0
        %2499 = vmatpush1.msra.mxu0 0.0
        %2500 = vmatprep.subr.mxu0 0.0
        %2501 = vmatpush1.msra.mxu0 0.0
        %2502 = vmatprep.subr.mxu0 0.0
        %2503 = vmatpush1.msra.mxu0 0.0
        %2504 = vmatprep.subr.mxu0 0.0
        %2505 = vmatpush1.msra.mxu0 0.0
        %2506 = vmatprep.subr.mxu0 0.0
        %2507 = vmatpush1.msra.mxu0 0.0
        %2508 = vmatprep.subr.mxu0 0.0
        %2509 = vmatpush1.msra.mxu0 0.0
        %2510 = vmatprep.subr.mxu0 0.0
        %2511 = vmatpush1.msra.mxu0 0.0
        %2512 = vmatprep.subr.mxu0 0.0
        %2513 = vmatpush1.msra.mxu0 0.0
        %2514 = vmatprep.subr.mxu0 0.0
        %2515 = vmatpush1.msra.mxu0 0.0
        %2516 = vmatprep.subr.mxu0 0.0
        %2517 = vmatpush1.msra.mxu0 0.0
        %2518 = vmatprep.subr.mxu0 0.0
        %2519 = vmatpush1.msra.mxu0 0.0
        %2520 = vmatprep.subr.mxu0 0.0
        %2521 = vmatpush1.msra.mxu0 0.0
        %2522 = vmatprep.subr.mxu0 0.0
        %2523 = vmatpush1.msra.mxu0 0.0
        %2524 = vmatprep.subr.mxu0 0.0
        %2525 = vmatpush1.msra.mxu0 0.0
        %2526 = vmatprep.subr.mxu0 0.0
        %2527 = vmatpush1.msra.mxu0 0.0
        %2528 = vmatprep.subr.mxu0 0.0
        %2529 = vmatpush1.msra.mxu0 0.0
        %2530 = vmatprep.subr.mxu0 0.0
        %2531 = vmatpush1.msra.mxu0 0.0
        %2532 = vmatprep.subr.mxu0 0.0
        %2533 = vmatpush1.msra.mxu0 0.0
        %2534 = vmatprep.subr.mxu0 0.0
        %2535 = vmatpush1.msra.mxu0 0.0
        %2536 = vmatprep.mubr.f32.mxu0 0.0
        %2537 = vmatmul.mubr.f32.gmra.mrb[0].mxu0 %v2470
        %v2538 = vpop.f32.mrb[0].mxu0
        %v2539 = vadd.f32 0.0, %v2538
        %v2540 = vpop.f32.mrb[0].mxu0
        %2541 = vdwg.mxu0
        %2542 = vrot.lane.b32.xlu0 %v2208, 112
        %v2543 = vpop.permute.xlu0 %2542
        %2544 = vrot.lane.b32.xlu0 %v2208, 80
        %v2545 = vpop.permute.xlu0 %2544
        %v2546 = vsel %vm1109, %v2543, 0
        %v2548 = vsel %vm1109, %v2545, 0
        %2550 = vmatprep.subr.mxu0 0.0
        %2551 = vmatpush1.xpose.msra.mxu0 %v2548
        %2552 = vmatprep.subr.mxu0 0.0
        %2553 = vmatpush1.xpose.msra.mxu0 0.0
        %2554 = vmatprep.subr.mxu0 0.0
        %2555 = vmatpush1.xpose.msra.mxu0 0.0
        %2556 = vmatprep.subr.mxu0 0.0
        %2557 = vmatpush1.xpose.msra.mxu0 0.0
        %2558 = vmatprep.subr.mxu0 0.0
        %2559 = vmatpush1.xpose.msra.mxu0 0.0
        %2560 = vmatprep.subr.mxu0 0.0
        %2561 = vmatpush1.xpose.msra.mxu0 0.0
        %2562 = vmatprep.subr.mxu0 0.0
        %2563 = vmatpush1.xpose.msra.mxu0 0.0
        %2564 = vmatprep.subr.mxu0 0.0
        %2565 = vmatpush1.xpose.msra.mxu0 0.0
        %2566 = vmatprep.subr.mxu0 0.0
        %2567 = vmatpush1.xpose.msra.mxu0 0.0
        %2568 = vmatprep.subr.mxu0 0.0
        %2569 = vmatpush1.xpose.msra.mxu0 0.0
        %2570 = vmatprep.subr.mxu0 0.0
        %2571 = vmatpush1.xpose.msra.mxu0 0.0
        %2572 = vmatprep.subr.mxu0 0.0
        %2573 = vmatpush1.xpose.msra.mxu0 0.0
        %2574 = vmatprep.subr.mxu0 0.0
        %2575 = vmatpush1.xpose.msra.mxu0 0.0
        %2576 = vmatprep.subr.mxu0 0.0
        %2577 = vmatpush1.xpose.msra.mxu0 0.0
        %2578 = vmatprep.subr.mxu0 0.0
        %2579 = vmatpush1.xpose.msra.mxu0 0.0
        %2580 = vmatprep.subr.mxu0 0.0
        %2581 = vmatpush1.xpose.msra.mxu0 0.0
        %2582 = vmatprep.subr.mxu0 0.0
        %2583 = vmatpush1.xpose.msra.mxu0 0.0
        %2584 = vmatprep.subr.mxu0 0.0
        %2585 = vmatpush1.xpose.msra.mxu0 0.0
        %2586 = vmatprep.subr.mxu0 0.0
        %2587 = vmatpush1.xpose.msra.mxu0 0.0
        %2588 = vmatprep.subr.mxu0 0.0
        %2589 = vmatpush1.xpose.msra.mxu0 0.0
        %2590 = vmatprep.subr.mxu0 0.0
        %2591 = vmatpush1.xpose.msra.mxu0 0.0
        %2592 = vmatprep.subr.mxu0 0.0
        %2593 = vmatpush1.xpose.msra.mxu0 0.0
        %2594 = vmatprep.subr.mxu0 0.0
        %2595 = vmatpush1.xpose.msra.mxu0 0.0
        %2596 = vmatprep.subr.mxu0 0.0
        %2597 = vmatpush1.xpose.msra.mxu0 0.0
        %2598 = vmatprep.subr.mxu0 0.0
        %2599 = vmatpush1.xpose.msra.mxu0 0.0
        %2600 = vmatprep.subr.mxu0 0.0
        %2601 = vmatpush1.xpose.msra.mxu0 0.0
        %2602 = vmatprep.subr.mxu0 0.0
        %2603 = vmatpush1.xpose.msra.mxu0 0.0
        %2604 = vmatprep.subr.mxu0 0.0
        %2605 = vmatpush1.xpose.msra.mxu0 0.0
        %2606 = vmatprep.subr.mxu0 0.0
        %2607 = vmatpush1.xpose.msra.mxu0 0.0
        %2608 = vmatprep.subr.mxu0 0.0
        %2609 = vmatpush1.xpose.msra.mxu0 0.0
        %2610 = vmatprep.subr.mxu0 0.0
        %2611 = vmatpush1.xpose.msra.mxu0 0.0
        %2612 = vmatprep.subr.mxu0 0.0
        %2613 = vmatpush1.xpose.msra.mxu0 0.0
        %2614 = vmatprep.mubr.f32.mxu0 0.0
        %2615 = vmatmul.mubr.f32.gmra.mrb[0].mxu0 %v2546
        %v2616 = vpop.f32.mrb[0].mxu0
        %v2617 = vadd.f32 0.0, %v2616
        %v2618 = vpop.f32.mrb[0].mxu0
        %2619 = vdwg.mxu0
        %v2620 = vmul.f32 %v2617, 0.35355338
        %v2621 = vsel %vm1109, %v2620, -inf
        %2622 = vmax.xlane.f32.xlu0 %v2621
        %v2623 = vpop.xlane.xlu0 %2622
        %v2624 = vsub.f32 %v2620, %v2623
        %v2625 = vmul.f32 %v2624, 1.442695
        %v2626 = vpow.pop %v2625
        %v2627 = vsel %vm1109, %v2626, 0.0
        %2628 = vadd.xlane.f32.xlu0 %v2627
        %v2629 = vpop.xlane.xlu0 %2628
        %v2630 = vrcp.pop %v2629
        %v2631 = vmul.f32 %v2626, %v2630
        %2632 = vrot.lane.b32.xlu0 %v2208, 48
        %v2633 = vpop.permute.xlu0 %2632
        %v2636 = vsel %vm1109, %v2631, 0
        %2638 = vmatprep.subr.mxu0 0.0
        %2639 = vmatpush1.msra.mxu0 %v2633
        %2640 = vmatprep.subr.mxu0 0.0
        %2641 = vmatpush1.msra.mxu0 0.0
        %2642 = vmatprep.subr.mxu0 0.0
        %2643 = vmatpush1.msra.mxu0 0.0
        %2644 = vmatprep.subr.mxu0 0.0
        %2645 = vmatpush1.msra.mxu0 0.0
        %2646 = vmatprep.subr.mxu0 0.0
        %2647 = vmatpush1.msra.mxu0 0.0
        %2648 = vmatprep.subr.mxu0 0.0
        %2649 = vmatpush1.msra.mxu0 0.0
        %2650 = vmatprep.subr.mxu0 0.0
        %2651 = vmatpush1.msra.mxu0 0.0
        %2652 = vmatprep.subr.mxu0 0.0
        %2653 = vmatpush1.msra.mxu0 0.0
        %2654 = vmatprep.subr.mxu0 0.0
        %2655 = vmatpush1.msra.mxu0 0.0
        %2656 = vmatprep.subr.mxu0 0.0
        %2657 = vmatpush1.msra.mxu0 0.0
        %2658 = vmatprep.subr.mxu0 0.0
        %2659 = vmatpush1.msra.mxu0 0.0
        %2660 = vmatprep.subr.mxu0 0.0
        %2661 = vmatpush1.msra.mxu0 0.0
        %2662 = vmatprep.subr.mxu0 0.0
        %2663 = vmatpush1.msra.mxu0 0.0
        %2664 = vmatprep.subr.mxu0 0.0
        %2665 = vmatpush1.msra.mxu0 0.0
        %2666 = vmatprep.subr.mxu0 0.0
        %2667 = vmatpush1.msra.mxu0 0.0
        %2668 = vmatprep.subr.mxu0 0.0
        %2669 = vmatpush1.msra.mxu0 0.0
        %2670 = vmatprep.subr.mxu0 0.0
        %2671 = vmatpush1.msra.mxu0 0.0
        %2672 = vmatprep.subr.mxu0 0.0
        %2673 = vmatpush1.msra.mxu0 0.0
        %2674 = vmatprep.subr.mxu0 0.0
        %2675 = vmatpush1.msra.mxu0 0.0
        %2676 = vmatprep.subr.mxu0 0.0
        %2677 = vmatpush1.msra.mxu0 0.0
        %2678 = vmatprep.subr.mxu0 0.0
        %2679 = vmatpush1.msra.mxu0 0.0
        %2680 = vmatprep.subr.mxu0 0.0
        %2681 = vmatpush1.msra.mxu0 0.0
        %2682 = vmatprep.subr.mxu0 0.0
        %2683 = vmatpush1.msra.mxu0 0.0
        %2684 = vmatprep.subr.mxu0 0.0
        %2685 = vmatpush1.msra.mxu0 0.0
        %2686 = vmatprep.subr.mxu0 0.0
        %2687 = vmatpush1.msra.mxu0 0.0
        %2688 = vmatprep.subr.mxu0 0.0
        %2689 = vmatpush1.msra.mxu0 0.0
        %2690 = vmatprep.subr.mxu0 0.0
        %2691 = vmatpush1.msra.mxu0 0.0
        %2692 = vmatprep.subr.mxu0 0.0
        %2693 = vmatpush1.msra.mxu0 0.0
        %2694 = vmatprep.subr.mxu0 0.0
        %2695 = vmatpush1.msra.mxu0 0.0
        %2696 = vmatprep.subr.mxu0 0.0
        %2697 = vmatpush1.msra.mxu0 0.0
        %2698 = vmatprep.subr.mxu0 0.0
        %2699 = vmatpush1.msra.mxu0 0.0
        %2700 = vmatprep.subr.mxu0 0.0
        %2701 = vmatpush1.msra.mxu0 0.0
        %2702 = vmatprep.mubr.f32.mxu0 0.0
        %2703 = vmatmul.mubr.f32.gmra.mrb[0].mxu0 %v2636
        %v2704 = vpop.f32.mrb[0].mxu0
        %v2705 = vadd.f32 0.0, %v2704
        %v2706 = vpop.f32.mrb[0].mxu0
        %2707 = vdwg.mxu0
        %2708 = vrot.lane.b32.xlu0 %v2208, 104
        %v2709 = vpop.permute.xlu0 %2708
        %2710 = vrot.lane.b32.xlu0 %v2208, 72
        %v2711 = vpop.permute.xlu0 %2710
        %v2712 = vsel %vm1109, %v2709, 0
        %v2714 = vsel %vm1109, %v2711, 0
        %2716 = vmatprep.subr.mxu0 0.0
        %2717 = vmatpush1.xpose.msra.mxu0 %v2714
        %2718 = vmatprep.subr.mxu0 0.0
        %2719 = vmatpush1.xpose.msra.mxu0 0.0
        %2720 = vmatprep.subr.mxu0 0.0
        %2721 = vmatpush1.xpose.msra.mxu0 0.0
        %2722 = vmatprep.subr.mxu0 0.0
        %2723 = vmatpush1.xpose.msra.mxu0 0.0
        %2724 = vmatprep.subr.mxu0 0.0
        %2725 = vmatpush1.xpose.msra.mxu0 0.0
        %2726 = vmatprep.subr.mxu0 0.0
        %2727 = vmatpush1.xpose.msra.mxu0 0.0
        %2728 = vmatprep.subr.mxu0 0.0
        %2729 = vmatpush1.xpose.msra.mxu0 0.0
        %2730 = vmatprep.subr.mxu0 0.0
        %2731 = vmatpush1.xpose.msra.mxu0 0.0
        %2732 = vmatprep.subr.mxu0 0.0
        %2733 = vmatpush1.xpose.msra.mxu0 0.0
        %2734 = vmatprep.subr.mxu0 0.0
        %2735 = vmatpush1.xpose.msra.mxu0 0.0
        %2736 = vmatprep.subr.mxu0 0.0
        %2737 = vmatpush1.xpose.msra.mxu0 0.0
        %2738 = vmatprep.subr.mxu0 0.0
        %2739 = vmatpush1.xpose.msra.mxu0 0.0
        %2740 = vmatprep.subr.mxu0 0.0
        %2741 = vmatpush1.xpose.msra.mxu0 0.0
        %2742 = vmatprep.subr.mxu0 0.0
        %2743 = vmatpush1.xpose.msra.mxu0 0.0
        %2744 = vmatprep.subr.mxu0 0.0
        %2745 = vmatpush1.xpose.msra.mxu0 0.0
        %2746 = vmatprep.subr.mxu0 0.0
        %2747 = vmatpush1.xpose.msra.mxu0 0.0
        %2748 = vmatprep.subr.mxu0 0.0
        %2749 = vmatpush1.xpose.msra.mxu0 0.0
        %2750 = vmatprep.subr.mxu0 0.0
        %2751 = vmatpush1.xpose.msra.mxu0 0.0
        %2752 = vmatprep.subr.mxu0 0.0
        %2753 = vmatpush1.xpose.msra.mxu0 0.0
        %2754 = vmatprep.subr.mxu0 0.0
        %2755 = vmatpush1.xpose.msra.mxu0 0.0
        %2756 = vmatprep.subr.mxu0 0.0
        %2757 = vmatpush1.xpose.msra.mxu0 0.0
        %2758 = vmatprep.subr.mxu0 0.0
        %2759 = vmatpush1.xpose.msra.mxu0 0.0
        %2760 = vmatprep.subr.mxu0 0.0
        %2761 = vmatpush1.xpose.msra.mxu0 0.0
        %2762 = vmatprep.subr.mxu0 0.0
        %2763 = vmatpush1.xpose.msra.mxu0 0.0
        %2764 = vmatprep.subr.mxu0 0.0
        %2765 = vmatpush1.xpose.msra.mxu0 0.0
        %2766 = vmatprep.subr.mxu0 0.0
        %2767 = vmatpush1.xpose.msra.mxu0 0.0
        %2768 = vmatprep.subr.mxu0 0.0
        %2769 = vmatpush1.xpose.msra.mxu0 0.0
        %2770 = vmatprep.subr.mxu0 0.0
        %2771 = vmatpush1.xpose.msra.mxu0 0.0
        %2772 = vmatprep.subr.mxu0 0.0
        %2773 = vmatpush1.xpose.msra.mxu0 0.0
        %2774 = vmatprep.subr.mxu0 0.0
        %2775 = vmatpush1.xpose.msra.mxu0 0.0
        %2776 = vmatprep.subr.mxu0 0.0
        %2777 = vmatpush1.xpose.msra.mxu0 0.0
        %2778 = vmatprep.subr.mxu0 0.0
        %2779 = vmatpush1.xpose.msra.mxu0 0.0
        %2780 = vmatprep.mubr.f32.mxu0 0.0
        %2781 = vmatmul.mubr.f32.gmra.mrb[0].mxu0 %v2712
        %v2782 = vpop.f32.mrb[0].mxu0
        %v2783 = vadd.f32 0.0, %v2782
        %v2784 = vpop.f32.mrb[0].mxu0
        %2785 = vdwg.mxu0
        %v2786 = vmul.f32 %v2783, 0.35355338
        %v2787 = vsel %vm1109, %v2786, -inf
        %2788 = vmax.xlane.f32.xlu0 %v2787
        %v2789 = vpop.xlane.xlu0 %2788
        %v2790 = vsub.f32 %v2786, %v2789
        %v2791 = vmul.f32 %v2790, 1.442695
        %v2792 = vpow.pop %v2791
        %v2793 = vsel %vm1109, %v2792, 0.0
        %2794 = vadd.xlane.f32.xlu0 %v2793
        %v2795 = vpop.xlane.xlu0 %2794
        %v2796 = vrcp.pop %v2795
        %v2797 = vmul.f32 %v2792, %v2796
        %2798 = vrot.lane.b32.xlu0 %v2208, 40
        %v2799 = vpop.permute.xlu0 %2798
        %v2802 = vsel %vm1109, %v2797, 0
        %2804 = vmatprep.subr.mxu0 0.0
        %2805 = vmatpush1.msra.mxu0 %v2799
        %2806 = vmatprep.subr.mxu0 0.0
        %2807 = vmatpush1.msra.mxu0 0.0
        %2808 = vmatprep.subr.mxu0 0.0
        %2809 = vmatpush1.msra.mxu0 0.0
        %2810 = vmatprep.subr.mxu0 0.0
        %2811 = vmatpush1.msra.mxu0 0.0
        %2812 = vmatprep.subr.mxu0 0.0
        %2813 = vmatpush1.msra.mxu0 0.0
        %2814 = vmatprep.subr.mxu0 0.0
        %2815 = vmatpush1.msra.mxu0 0.0
        %2816 = vmatprep.subr.mxu0 0.0
        %2817 = vmatpush1.msra.mxu0 0.0
        %2818 = vmatprep.subr.mxu0 0.0
        %2819 = vmatpush1.msra.mxu0 0.0
        %2820 = vmatprep.subr.mxu0 0.0
        %2821 = vmatpush1.msra.mxu0 0.0
        %2822 = vmatprep.subr.mxu0 0.0
        %2823 = vmatpush1.msra.mxu0 0.0
        %2824 = vmatprep.subr.mxu0 0.0
        %2825 = vmatpush1.msra.mxu0 0.0
        %2826 = vmatprep.subr.mxu0 0.0
        %2827 = vmatpush1.msra.mxu0 0.0
        %2828 = vmatprep.subr.mxu0 0.0
        %2829 = vmatpush1.msra.mxu0 0.0
        %2830 = vmatprep.subr.mxu0 0.0
        %2831 = vmatpush1.msra.mxu0 0.0
        %2832 = vmatprep.subr.mxu0 0.0
        %2833 = vmatpush1.msra.mxu0 0.0
        %2834 = vmatprep.subr.mxu0 0.0
        %2835 = vmatpush1.msra.mxu0 0.0
        %2836 = vmatprep.subr.mxu0 0.0
        %2837 = vmatpush1.msra.mxu0 0.0
        %2838 = vmatprep.subr.mxu0 0.0
        %2839 = vmatpush1.msra.mxu0 0.0
        %2840 = vmatprep.subr.mxu0 0.0
        %2841 = vmatpush1.msra.mxu0 0.0
        %2842 = vmatprep.subr.mxu0 0.0
        %2843 = vmatpush1.msra.mxu0 0.0
        %2844 = vmatprep.subr.mxu0 0.0
        %2845 = vmatpush1.msra.mxu0 0.0
        %2846 = vmatprep.subr.mxu0 0.0
        %2847 = vmatpush1.msra.mxu0 0.0
        %2848 = vmatprep.subr.mxu0 0.0
        %2849 = vmatpush1.msra.mxu0 0.0
        %2850 = vmatprep.subr.mxu0 0.0
        %2851 = vmatpush1.msra.mxu0 0.0
        %2852 = vmatprep.subr.mxu0 0.0
        %2853 = vmatpush1.msra.mxu0 0.0
        %2854 = vmatprep.subr.mxu0 0.0
        %2855 = vmatpush1.msra.mxu0 0.0
        %2856 = vmatprep.subr.mxu0 0.0
        %2857 = vmatpush1.msra.mxu0 0.0
        %2858 = vmatprep.subr.mxu0 0.0
        %2859 = vmatpush1.msra.mxu0 0.0
        %2860 = vmatprep.subr.mxu0 0.0
        %2861 = vmatpush1.msra.mxu0 0.0
        %2862 = vmatprep.subr.mxu0 0.0
        %2863 = vmatpush1.msra.mxu0 0.0
        %2864 = vmatprep.subr.mxu0 0.0
        %2865 = vmatpush1.msra.mxu0 0.0
        %2866 = vmatprep.subr.mxu0 0.0
        %2867 = vmatpush1.msra.mxu0 0.0
        %2868 = vmatprep.mubr.f32.mxu0 0.0
        %2869 = vmatmul.mubr.f32.gmra.mrb[0].mxu0 %v2802
        %v2870 = vpop.f32.mrb[0].mxu0
        %v2871 = vadd.f32 0.0, %v2870
        %v2872 = vpop.f32.mrb[0].mxu0
        %2873 = vdwg.mxu0
        %2875 = vrot.lane.b32.xlu0 %v2539, 8
        %v2876 = vpop.permute.xlu0 %2875
        %2879 = vrot.lane.b32.xlu0 %v2705, 16
        %v2880 = vpop.permute.xlu0 %2879
        %2883 = vrot.lane.b32.xlu0 %v2871, 24
        %v2884 = vpop.permute.xlu0 %2883
        %v2886 = vsel %vm1109, %v2373, %v2876
        %v2887 = vsel %vm1783, %v2886, %v2880
        %v2888 = vsel %vm1785, %v2887, %v2884
        %s2889 = scalar_lea.vmem [#allocation11], 32
        %v2890 = vld [vmem:[%s2889] sm:$0xff]
        %v2891 = vld [vmem:[%s2889 + $0x8] sm:$0xff]
        %v2892 = vld [vmem:[%s2889 + $0x10] sm:$0xff]
        %v2893 = vld [vmem:[%s2889 + $0x18] sm:$0xff]
        %v2895 = vsel %vm993, %v2888, 0
        %2897 = vmatprep.subr.mxu0 0.0
        %2898 = vmatpush1.msra.mxu0 %v2890
        %2899 = vmatprep.subr.mxu0 0.0
        %2900 = vmatpush1.msra.mxu0 %v2891
        %2901 = vmatprep.subr.mxu0 0.0
        %2902 = vmatpush1.msra.mxu0 %v2892
        %2903 = vmatprep.subr.mxu0 0.0
        %2904 = vmatpush1.msra.mxu0 %v2893
        %2905 = vmatprep.subr.mxu0 0.0
        %2906 = vmatpush1.msra.mxu0 0.0
        %2907 = vmatprep.subr.mxu0 0.0
        %2908 = vmatpush1.msra.mxu0 0.0
        %2909 = vmatprep.subr.mxu0 0.0
        %2910 = vmatpush1.msra.mxu0 0.0
        %2911 = vmatprep.subr.mxu0 0.0
        %2912 = vmatpush1.msra.mxu0 0.0
        %2913 = vmatprep.subr.mxu0 0.0
        %2914 = vmatpush1.msra.mxu0 0.0
        %2915 = vmatprep.subr.mxu0 0.0
        %2916 = vmatpush1.msra.mxu0 0.0
        %2917 = vmatprep.subr.mxu0 0.0
        %2918 = vmatpush1.msra.mxu0 0.0
        %2919 = vmatprep.subr.mxu0 0.0
        %2920 = vmatpush1.msra.mxu0 0.0
        %2921 = vmatprep.subr.mxu0 0.0
        %2922 = vmatpush1.msra.mxu0 0.0
        %2923 = vmatprep.subr.mxu0 0.0
        %2924 = vmatpush1.msra.mxu0 0.0
        %2925 = vmatprep.subr.mxu0 0.0
        %2926 = vmatpush1.msra.mxu0 0.0
        %2927 = vmatprep.subr.mxu0 0.0
        %2928 = vmatpush1.msra.mxu0 0.0
        %2929 = vmatprep.subr.mxu0 0.0
        %2930 = vmatpush1.msra.mxu0 0.0
        %2931 = vmatprep.subr.mxu0 0.0
        %2932 = vmatpush1.msra.mxu0 0.0
        %2933 = vmatprep.subr.mxu0 0.0
        %2934 = vmatpush1.msra.mxu0 0.0
        %2935 = vmatprep.subr.mxu0 0.0
        %2936 = vmatpush1.msra.mxu0 0.0
        %2937 = vmatprep.subr.mxu0 0.0
        %2938 = vmatpush1.msra.mxu0 0.0
        %2939 = vmatprep.subr.mxu0 0.0
        %2940 = vmatpush1.msra.mxu0 0.0
        %2941 = vmatprep.subr.mxu0 0.0
        %2942 = vmatpush1.msra.mxu0 0.0
        %2943 = vmatprep.subr.mxu0 0.0
        %2944 = vmatpush1.msra.mxu0 0.0
        %2945 = vmatprep.subr.mxu0 0.0
        %2946 = vmatpush1.msra.mxu0 0.0
        %2947 = vmatprep.subr.mxu0 0.0
        %2948 = vmatpush1.msra.mxu0 0.0
        %2949 = vmatprep.subr.mxu0 0.0
        %2950 = vmatpush1.msra.mxu0 0.0
        %2951 = vmatprep.subr.mxu0 0.0
        %2952 = vmatpush1.msra.mxu0 0.0
        %2953 = vmatprep.subr.mxu0 0.0
        %2954 = vmatpush1.msra.mxu0 0.0
        %2955 = vmatprep.subr.mxu0 0.0
        %2956 = vmatpush1.msra.mxu0 0.0
        %2957 = vmatprep.subr.mxu0 0.0
        %2958 = vmatpush1.msra.mxu0 0.0
        %2959 = vmatprep.subr.mxu0 0.0
        %2960 = vmatpush1.msra.mxu0 0.0
        %2961 = vmatprep.mubr.f32.mxu0 0.0
        %2962 = vmatmul.mubr.f32.gmra.mrb[0].mxu0 %v2895
        %v2963 = vpop.f32.mrb[0].mxu0
        %v2964 = vadd.f32 0.0, %v2963
        %v2965 = vpop.f32.mrb[0].mxu0
        %2966 = vdwg.mxu0
        %v2967 = vadd.f32 %v990, %v2964
        %s2968 = scalar_lea.vmem [#allocation13], 1
        %v2969 = vld [vmem:[%s2968] sm:$0x1]
        %v2971 = vlaneseq
        %v2972 = vshrl.u32 %v2971, 7
        %v2973 = vsub.s32 0, %v2972
        %v2974 = vrot.slane %v2969, %v2973
        %v2976 = vadd.f32 %v2967, %v2974
        %s2977 = scalar_lea.vmem [#allocation14], 1
        %v2978 = vld [vmem:[%s2977] sm:$0x1]
        %s2979 = scalar_lea.vmem [#allocation16], 1
        %v2980 = vld [vmem:[%s2979] sm:$0x1]
        %v2981 = vsel %vm993, %v2976, 0.0
        %2982 = vadd.xlane.f32.xlu0 %v2981
        %v2983 = vpop.xlane.xlu0 %2982
        %v2984 = vmul.f32 %v2983, %v997
        %v2985 = vsub.f32 %v2976, %v2984
        %v2986 = vmul.f32 %v2985, %v2985
        %v2987 = vsel %vm993, %v2986, 0.0
        %2988 = vadd.xlane.f32.xlu0 %v2987
        %v2989 = vpop.xlane.xlu0 %2988
        %v2990 = vmul.f32 %v2989, %v997
        %v2991 = vadd.f32 %v2990, 1e-05
        %v2992 = vrsqrt.pop %v2991
        %v2993 = vmul.f32 %v2985, %v2992
        %v2995 = vlaneseq
        %v2996 = vshrl.u32 %v2995, 7
        %v2997 = vsub.s32 0, %v2996
        %v2998 = vrot.slane %v2978, %v2997
        %v3000 = vmul.f32 %v2993, %v2998
        %v3002 = vlaneseq
        %v3003 = vshrl.u32 %v3002, 7
        %v3004 = vsub.s32 0, %v3003
        %v3005 = vrot.slane %v2980, %v3004
        %v3007 = vadd.f32 %v3000, %v3005
        %s3008 = scalar_lea.vmem [#allocation17], 32
        %v3009 = vld [vmem:[%s3008] sm:$0xff]
        %v3010 = vld [vmem:[%s3008 + $0x8] sm:$0xff]
        %v3011 = vld [vmem:[%s3008 + $0x10] sm:$0xff]
        %v3012 = vld [vmem:[%s3008 + $0x18] sm:$0xff]
        %s3013 = scalar_lea.vmem [#allocation19], 1
        %v3014 = vld [vmem:[%s3013] sm:$0x1]
        %v3016 = vlaneseq
        %v3017 = vshrl.u32 %v3016, 7
        %v3018 = vsub.s32 0, %v3017
        %v3019 = vrot.slane %v3014, %v3018
        %v3022 = vsel %vm993, %v3007, 0
        %3024 = vmatprep.subr.mxu0 0.0
        %3025 = vmatpush1.msra.mxu0 %v3009
        %3026 = vmatprep.subr.mxu0 0.0
        %3027 = vmatpush1.msra.mxu0 %v3010
        %3028 = vmatprep.subr.mxu0 0.0
        %3029 = vmatpush1.msra.mxu0 %v3011
        %3030 = vmatprep.subr.mxu0 0.0
        %3031 = vmatpush1.msra.mxu0 %v3012
        %3032 = vmatprep.subr.mxu0 0.0
        %3033 = vmatpush1.msra.mxu0 0.0
        %3034 = vmatprep.subr.mxu0 0.0
        %3035 = vmatpush1.msra.mxu0 0.0
        %3036 = vmatprep.subr.mxu0 0.0
        %3037 = vmatpush1.msra.mxu0 0.0
        %3038 = vmatprep.subr.mxu0 0.0
        %3039 = vmatpush1.msra.mxu0 0.0
        %3040 = vmatprep.subr.mxu0 0.0
        %3041 = vmatpush1.msra.mxu0 0.0
        %3042 = vmatprep.subr.mxu0 0.0
        %3043 = vmatpush1.msra.mxu0 0.0
        %3044 = vmatprep.subr.mxu0 0.0
        %3045 = vmatpush1.msra.mxu0 0.0
        %3046 = vmatprep.subr.mxu0 0.0
        %3047 = vmatpush1.msra.mxu0 0.0
        %3048 = vmatprep.subr.mxu0 0.0
        %3049 = vmatpush1.msra.mxu0 0.0
        %3050 = vmatprep.subr.mxu0 0.0
        %3051 = vmatpush1.msra.mxu0 0.0
        %3052 = vmatprep.subr.mxu0 0.0
        %3053 = vmatpush1.msra.mxu0 0.0
        %3054 = vmatprep.subr.mxu0 0.0
        %3055 = vmatpush1.msra.mxu0 0.0
        %3056 = vmatprep.subr.mxu0 0.0
        %3057 = vmatpush1.msra.mxu0 0.0
        %3058 = vmatprep.subr.mxu0 0.0
        %3059 = vmatpush1.msra.mxu0 0.0
        %3060 = vmatprep.subr.mxu0 0.0
        %3061 = vmatpush1.msra.mxu0 0.0
        %3062 = vmatprep.subr.mxu0 0.0
        %3063 = vmatpush1.msra.mxu0 0.0
        %3064 = vmatprep.subr.mxu0 0.0
        %3065 = vmatpush1.msra.mxu0 0.0
        %3066 = vmatprep.subr.mxu0 0.0
        %3067 = vmatpush1.msra.mxu0 0.0
        %3068 = vmatprep.subr.mxu0 0.0
        %3069 = vmatpush1.msra.mxu0 0.0
        %3070 = vmatprep.subr.mxu0 0.0
        %3071 = vmatpush1.msra.mxu0 0.0
        %3072 = vmatprep.subr.mxu0 0.0
        %3073 = vmatpush1.msra.mxu0 0.0
        %3074 = vmatprep.subr.mxu0 0.0
        %3075 = vmatpush1.msra.mxu0 0.0
        %3076 = vmatprep.subr.mxu0 0.0
        %3077 = vmatpush1.msra.mxu0 0.0
        %3078 = vmatprep.subr.mxu0 0.0
        %3079 = vmatpush1.msra.mxu0 0.0
        %3080 = vmatprep.subr.mxu0 0.0
        %3081 = vmatpush1.msra.mxu0 0.0
        %3082 = vmatprep.subr.mxu0 0.0
        %3083 = vmatpush1.msra.mxu0 0.0
        %3084 = vmatprep.subr.mxu0 0.0
        %3085 = vmatpush1.msra.mxu0 0.0
        %3086 = vmatprep.subr.mxu0 0.0
        %3087 = vmatpush1.msra.mxu0 0.0
        %3088 = vmatprep.mubr.f32.mxu0 0.0
        %3089 = vmatmul.mubr.f32.gmra.mrb[0].mxu0 %v3022
        %v3090 = vpop.f32.mrb[0].mxu0
        %v3091 = vadd.f32 %v3019, %v3090
        %v3092 = vpop.f32.mrb[0].mxu0
        %3093 = vdwg.mxu0
        %v3094 = vmul.f32 %v3091, 0.5
        %v3095 = vmul.f32 %v3091, 0.70710677
        %v3096 = vand.u32 2147483647, %v3095
        %v3097 = vmul.f32 %v3096, 0.3275911
        %v3098 = vadd.f32 %v3097, 1.0
        %v3099 = vrcp.pop %v3098
        %v3100 = vmul.f32 1.0, %v3099
        %v3101 = vmul.f32 %v3100, 1.0614054
        %v3102 = vadd.f32 %v3101, -1.4531521
        %v3103 = vmul.f32 %v3102, %v3100
        %v3104 = vadd.f32 %v3103, 1.4214138
        %v3105 = vmul.f32 %v3104, %v3100
        %v3106 = vadd.f32 %v3105, -0.28449672
        %v3107 = vmul.f32 %v3106, %v3100
        %v3108 = vadd.f32 %v3107, 0.2548296
        %v3109 = vmul.f32 %v3108, %v3100
        %v3110 = vsub.f32 0.0, %v3096
        %v3111 = vmul.f32 %v3110, %v3096
        %v3112 = vmul.f32 %v3111, 1.442695
        %v3113 = vpow.pop %v3112
        %v3114 = vmul.f32 %v3109, %v3113
        %v3115 = vsub.f32 1.0, %v3114
        %vm3116 = vcmp.ge.f32.partialorder %v3095, 0.0
        %v3117 = vsub.f32 0.0, %v3115
        %v3118 = vsel %vm3116, %v3115, %v3117
        %v3119 = vadd.f32 %v3118, 1.0
        %v3120 = vmul.f32 %v3094, %v3119
        %s3121 = scalar_lea.vmem %s11, 128
        %v3122 = vld [vmem:[%s3121] sm:$0xff]
        %v3123 = vld [vmem:[%s3121 + $0x8] sm:$0xff]
        %v3124 = vld [vmem:[%s3121 + $0x10] sm:$0xff]
        %v3125 = vld [vmem:[%s3121 + $0x18] sm:$0xff]
        %v3126 = vld [vmem:[%s3121 + $0x20] sm:$0xff]
        %v3127 = vld [vmem:[%s3121 + $0x28] sm:$0xff]
        %v3128 = vld [vmem:[%s3121 + $0x30] sm:$0xff]
        %v3129 = vld [vmem:[%s3121 + $0x38] sm:$0xff]
        %v3130 = vld [vmem:[%s3121 + $0x40] sm:$0xff]
        %v3131 = vld [vmem:[%s3121 + $0x48] sm:$0xff]
        %v3132 = vld [vmem:[%s3121 + $0x50] sm:$0xff]
        %v3133 = vld [vmem:[%s3121 + $0x58] sm:$0xff]
        %v3134 = vld [vmem:[%s3121 + $0x60] sm:$0xff]
        %v3135 = vld [vmem:[%s3121 + $0x68] sm:$0xff]
        %v3136 = vld [vmem:[%s3121 + $0x70] sm:$0xff]
        %v3137 = vld [vmem:[%s3121 + $0x78] sm:$0xff]
        %s3138 = scalar_lea.vmem [#allocation20], 1
        %v3139 = vld [vmem:[%s3138] sm:$0x1]
        %v3141 = vlaneseq
        %v3142 = vshrl.u32 %v3141, 7
        %v3143 = vsub.s32 0, %v3142
        %v3144 = vrot.slane %v3139, %v3143
        %3146 = vmatprep.subr.mxu0 0.0
        %3147 = vmatpush1.msra.mxu0 %v3122
        %3148 = vmatprep.subr.mxu0 0.0
        %3149 = vmatpush1.msra.mxu0 %v3123
        %3150 = vmatprep.subr.mxu0 0.0
        %3151 = vmatpush1.msra.mxu0 %v3124
        %3152 = vmatprep.subr.mxu0 0.0
        %3153 = vmatpush1.msra.mxu0 %v3125
        %3154 = vmatprep.subr.mxu0 0.0
        %3155 = vmatpush1.msra.mxu0 %v3126
        %3156 = vmatprep.subr.mxu0 0.0
        %3157 = vmatpush1.msra.mxu0 %v3127
        %3158 = vmatprep.subr.mxu0 0.0
        %3159 = vmatpush1.msra.mxu0 %v3128
        %3160 = vmatprep.subr.mxu0 0.0
        %3161 = vmatpush1.msra.mxu0 %v3129
        %3162 = vmatprep.subr.mxu0 0.0
        %3163 = vmatpush1.msra.mxu0 %v3130
        %3164 = vmatprep.subr.mxu0 0.0
        %3165 = vmatpush1.msra.mxu0 %v3131
        %3166 = vmatprep.subr.mxu0 0.0
        %3167 = vmatpush1.msra.mxu0 %v3132
        %3168 = vmatprep.subr.mxu0 0.0
        %3169 = vmatpush1.msra.mxu0 %v3133
        %3170 = vmatprep.subr.mxu0 0.0
        %3171 = vmatpush1.msra.mxu0 %v3134
        %3172 = vmatprep.subr.mxu0 0.0
        %3173 = vmatpush1.msra.mxu0 %v3135
        %3174 = vmatprep.subr.mxu0 0.0
        %3175 = vmatpush1.msra.mxu0 %v3136
        %3176 = vmatprep.subr.mxu0 0.0
        %3177 = vmatpush1.msra.mxu0 %v3137
        %3178 = vmatprep.subr.mxu0 0.0
        %3179 = vmatpush1.msra.mxu0 0.0
        %3180 = vmatprep.subr.mxu0 0.0
        %3181 = vmatpush1.msra.mxu0 0.0
        %3182 = vmatprep.subr.mxu0 0.0
        %3183 = vmatpush1.msra.mxu0 0.0
        %3184 = vmatprep.subr.mxu0 0.0
        %3185 = vmatpush1.msra.mxu0 0.0
        %3186 = vmatprep.subr.mxu0 0.0
        %3187 = vmatpush1.msra.mxu0 0.0
        %3188 = vmatprep.subr.mxu0 0.0
        %3189 = vmatpush1.msra.mxu0 0.0
        %3190 = vmatprep.subr.mxu0 0.0
        %3191 = vmatpush1.msra.mxu0 0.0
        %3192 = vmatprep.subr.mxu0 0.0
        %3193 = vmatpush1.msra.mxu0 0.0
        %3194 = vmatprep.subr.mxu0 0.0
        %3195 = vmatpush1.msra.mxu0 0.0
        %3196 = vmatprep.subr.mxu0 0.0
        %3197 = vmatpush1.msra.mxu0 0.0
        %3198 = vmatprep.subr.mxu0 0.0
        %3199 = vmatpush1.msra.mxu0 0.0
        %3200 = vmatprep.subr.mxu0 0.0
        %3201 = vmatpush1.msra.mxu0 0.0
        %3202 = vmatprep.subr.mxu0 0.0
        %3203 = vmatpush1.msra.mxu0 0.0
        %3204 = vmatprep.subr.mxu0 0.0
        %3205 = vmatpush1.msra.mxu0 0.0
        %3206 = vmatprep.subr.mxu0 0.0
        %3207 = vmatpush1.msra.mxu0 0.0
        %3208 = vmatprep.subr.mxu0 0.0
        %3209 = vmatpush1.msra.mxu0 0.0
        %3210 = vmatprep.mubr.f32.mxu0 0.0
        %3211 = vmatmul.mubr.f32.gmra.mrb[0].mxu0 %v3120
        %v3212 = vpop.f32.mrb[0].mxu0
        %v3213 = vadd.f32 %v3144, %v3212
        %v3214 = vpop.f32.mrb[0].mxu0
        %3215 = vdwg.mxu0
        %v3216 = vadd.f32 %v2976, %v3213
        %v3217 = vld [vmem:[%s13] sm:$0xff]
        %v3218 = vld [vmem:[%s13 + $0x8] sm:$0xff]
        %v3219 = vld [vmem:[%s13 + $0x10] sm:$0xff]
        %v3220 = vld [vmem:[%s13 + $0x18] sm:$0xff]
        %v3221 = vld [vmem:[#allocation22] sm:$0x1]
        %v3223 = vlaneseq
        %v3224 = vshrl.u32 %v3223, 7
        %v3225 = vsub.s32 0, %v3224
        %v3226 = vrot.slane %v3221, %v3225
        %v3229 = vsel %vm993, %v990, 0
        %3231 = vmatprep.subr.mxu0 0.0
        %3232 = vmatpush1.msra.mxu0 %v3217
        %3233 = vmatprep.subr.mxu0 0.0
        %3234 = vmatpush1.msra.mxu0 %v3218
        %3235 = vmatprep.subr.mxu0 0.0
        %3236 = vmatpush1.msra.mxu0 %v3219
        %3237 = vmatprep.subr.mxu0 0.0
        %3238 = vmatpush1.msra.mxu0 %v3220
        %3239 = vmatprep.subr.mxu0 0.0
        %3240 = vmatpush1.msra.mxu0 0.0
        %3241 = vmatprep.subr.mxu0 0.0
        %3242 = vmatpush1.msra.mxu0 0.0
        %3243 = vmatprep.subr.mxu0 0.0
        %3244 = vmatpush1.msra.mxu0 0.0
        %3245 = vmatprep.subr.mxu0 0.0
        %3246 = vmatpush1.msra.mxu0 0.0
        %3247 = vmatprep.subr.mxu0 0.0
        %3248 = vmatpush1.msra.mxu0 0.0
        %3249 = vmatprep.subr.mxu0 0.0
        %3250 = vmatpush1.msra.mxu0 0.0
        %3251 = vmatprep.subr.mxu0 0.0
        %3252 = vmatpush1.msra.mxu0 0.0
        %3253 = vmatprep.subr.mxu0 0.0
        %3254 = vmatpush1.msra.mxu0 0.0
        %3255 = vmatprep.subr.mxu0 0.0
        %3256 = vmatpush1.msra.mxu0 0.0
        %3257 = vmatprep.subr.mxu0 0.0
        %3258 = vmatpush1.msra.mxu0 0.0
        %3259 = vmatprep.subr.mxu0 0.0
        %3260 = vmatpush1.msra.mxu0 0.0
        %3261 = vmatprep.subr.mxu0 0.0
        %3262 = vmatpush1.msra.mxu0 0.0
        %3263 = vmatprep.subr.mxu0 0.0
        %3264 = vmatpush1.msra.mxu0 0.0
        %3265 = vmatprep.subr.mxu0 0.0
        %3266 = vmatpush1.msra.mxu0 0.0
        %3267 = vmatprep.subr.mxu0 0.0
        %3268 = vmatpush1.msra.mxu0 0.0
        %3269 = vmatprep.subr.mxu0 0.0
        %3270 = vmatpush1.msra.mxu0 0.0
        %3271 = vmatprep.subr.mxu0 0.0
        %3272 = vmatpush1.msra.mxu0 0.0
        %3273 = vmatprep.subr.mxu0 0.0
        %3274 = vmatpush1.msra.mxu0 0.0
        %3275 = vmatprep.subr.mxu0 0.0
        %3276 = vmatpush1.msra.mxu0 0.0
        %3277 = vmatprep.subr.mxu0 0.0
        %3278 = vmatpush1.msra.mxu0 0.0
        %3279 = vmatprep.subr.mxu0 0.0
        %3280 = vmatpush1.msra.mxu0 0.0
        %3281 = vmatprep.subr.mxu0 0.0
        %3282 = vmatpush1.msra.mxu0 0.0
        %3283 = vmatprep.subr.mxu0 0.0
        %3284 = vmatpush1.msra.mxu0 0.0
        %3285 = vmatprep.subr.mxu0 0.0
        %3286 = vmatpush1.msra.mxu0 0.0
        %3287 = vmatprep.subr.mxu0 0.0
        %3288 = vmatpush1.msra.mxu0 0.0
        %3289 = vmatprep.subr.mxu0 0.0
        %3290 = vmatpush1.msra.mxu0 0.0
        %3291 = vmatprep.subr.mxu0 0.0
        %3292 = vmatpush1.msra.mxu0 0.0
        %3293 = vmatprep.subr.mxu0 0.0
        %3294 = vmatpush1.msra.mxu0 0.0
        %3295 = vmatprep.mubr.f32.mxu0 0.0
        %3296 = vmatmul.mubr.f32.gmra.mrb[0].mxu0 %v3229
        %v3297 = vpop.f32.mrb[0].mxu0
        %v3298 = vadd.f32 %v3226, %v3297
        %v3299 = vpop.f32.mrb[0].mxu0
        %3300 = vdwg.mxu0
        %vm3301 = vcmask 31744
        %v3302 = vsel %vm3301, %v3298, -inf
        %3303 = vmax.xlane.f32.xlu0 %v3302
        %v3304 = vpop.xlane.xlu0 %3303
        %v3305 = vsub.f32 %v3298, %v3304
        %v3306 = vmul.f32 %v3305, 1.442695
        %v3307 = vpow.pop %v3306
        %v3308 = vsel %vm3301, %v3307, 0.0
        %3309 = vadd.xlane.f32.xlu0 %v3308
        %v3310 = vpop.xlane.xlu0 %3309
        %v3311 = vrcp.pop %v3310
        %v3312 = vmul.f32 %v3307, %v3311
        %v3313 = vld [vmem:[%s15] sm:$0xff]
        %v3314 = vld [vmem:[%s15 + $0x8] sm:$0xff]
        %v3315 = vld [vmem:[%s15 + $0x10] sm:$0xff]
        %v3316 = vld [vmem:[%s15 + $0x18] sm:$0xff]
        %v3317 = vld [vmem:[%s16] sm:$0x1]
        %v3319 = vlaneseq
        %v3320 = vshrl.u32 %v3319, 7
        %v3321 = vsub.s32 0, %v3320
        %v3322 = vrot.slane %v3317, %v3321
        %3324 = vmatprep.subr.mxu0 0.0
        %3325 = vmatpush1.msra.mxu0 %v3313
        %3326 = vmatprep.subr.mxu0 0.0
        %3327 = vmatpush1.msra.mxu0 %v3314
        %3328 = vmatprep.subr.mxu0 0.0
        %3329 = vmatpush1.msra.mxu0 %v3315
        %3330 = vmatprep.subr.mxu0 0.0
        %3331 = vmatpush1.msra.mxu0 %v3316
        %3332 = vmatprep.subr.mxu0 0.0
        %3333 = vmatpush1.msra.mxu0 0.0
        %3334 = vmatprep.subr.mxu0 0.0
        %3335 = vmatpush1.msra.mxu0 0.0
        %3336 = vmatprep.subr.mxu0 0.0
        %3337 = vmatpush1.msra.mxu0 0.0
        %3338 = vmatprep.subr.mxu0 0.0
        %3339 = vmatpush1.msra.mxu0 0.0
        %3340 = vmatprep.subr.mxu0 0.0
        %3341 = vmatpush1.msra.mxu0 0.0
        %3342 = vmatprep.subr.mxu0 0.0
        %3343 = vmatpush1.msra.mxu0 0.0
        %3344 = vmatprep.subr.mxu0 0.0
        %3345 = vmatpush1.msra.mxu0 0.0
        %3346 = vmatprep.subr.mxu0 0.0
        %3347 = vmatpush1.msra.mxu0 0.0
        %3348 = vmatprep.subr.mxu0 0.0
        %3349 = vmatpush1.msra.mxu0 0.0
        %3350 = vmatprep.subr.mxu0 0.0
        %3351 = vmatpush1.msra.mxu0 0.0
        %3352 = vmatprep.subr.mxu0 0.0
        %3353 = vmatpush1.msra.mxu0 0.0
        %3354 = vmatprep.subr.mxu0 0.0
        %3355 = vmatpush1.msra.mxu0 0.0
        %3356 = vmatprep.subr.mxu0 0.0
        %3357 = vmatpush1.msra.mxu0 0.0
        %3358 = vmatprep.subr.mxu0 0.0
        %3359 = vmatpush1.msra.mxu0 0.0
        %3360 = vmatprep.subr.mxu0 0.0
        %3361 = vmatpush1.msra.mxu0 0.0
        %3362 = vmatprep.subr.mxu0 0.0
        %3363 = vmatpush1.msra.mxu0 0.0
        %3364 = vmatprep.subr.mxu0 0.0
        %3365 = vmatpush1.msra.mxu0 0.0
        %3366 = vmatprep.subr.mxu0 0.0
        %3367 = vmatpush1.msra.mxu0 0.0
        %3368 = vmatprep.subr.mxu0 0.0
        %3369 = vmatpush1.msra.mxu0 0.0
        %3370 = vmatprep.subr.mxu0 0.0
        %3371 = vmatpush1.msra.mxu0 0.0
        %3372 = vmatprep.subr.mxu0 0.0
        %3373 = vmatpush1.msra.mxu0 0.0
        %3374 = vmatprep.subr.mxu0 0.0
        %3375 = vmatpush1.msra.mxu0 0.0
        %3376 = vmatprep.subr.mxu0 0.0
        %3377 = vmatpush1.msra.mxu0 0.0
        %3378 = vmatprep.subr.mxu0 0.0
        %3379 = vmatpush1.msra.mxu0 0.0
        %3380 = vmatprep.subr.mxu0 0.0
        %3381 = vmatpush1.msra.mxu0 0.0
        %3382 = vmatprep.subr.mxu0 0.0
        %3383 = vmatpush1.msra.mxu0 0.0
        %3384 = vmatprep.subr.mxu0 0.0
        %3385 = vmatpush1.msra.mxu0 0.0
        %3386 = vmatprep.subr.mxu0 0.0
        %3387 = vmatpush1.msra.mxu0 0.0
        %3388 = vmatprep.mubr.f32.mxu0 0.0
        %3389 = vmatmul.mubr.f32.gmra.mrb[0].mxu0 %v3229
        %v3390 = vpop.f32.mrb[0].mxu0
        %v3391 = vadd.f32 %v3322, %v3390
        %v3392 = vpop.f32.mrb[0].mxu0
        %3393 = vdwg.mxu0
        %v3394 = vmul.f32 %v3391, 0.5
        %v3395 = vmul.f32 %v3391, 0.70710677
        %v3396 = vand.u32 2147483647, %v3395
        %v3397 = vmul.f32 %v3396, 0.3275911
        %v3398 = vadd.f32 %v3397, 1.0
        %v3399 = vrcp.pop %v3398
        %v3400 = vmul.f32 1.0, %v3399
        %v3401 = vmul.f32 %v3400, 1.0614054
        %v3402 = vadd.f32 %v3401, -1.4531521
        %v3403 = vmul.f32 %v3402, %v3400
        %v3404 = vadd.f32 %v3403, 1.4214138
        %v3405 = vmul.f32 %v3404, %v3400
        %v3406 = vadd.f32 %v3405, -0.28449672
        %v3407 = vmul.f32 %v3406, %v3400
        %v3408 = vadd.f32 %v3407, 0.2548296
        %v3409 = vmul.f32 %v3408, %v3400
        %v3410 = vsub.f32 0.0, %v3396
        %v3411 = vmul.f32 %v3410, %v3396
        %v3412 = vmul.f32 %v3411, 1.442695
        %v3413 = vpow.pop %v3412
        %v3414 = vmul.f32 %v3409, %v3413
        %v3415 = vsub.f32 1.0, %v3414
        %vm3416 = vcmp.ge.f32.partialorder %v3395, 0.0
        %v3417 = vsub.f32 0.0, %v3415
        %v3418 = vsel %vm3416, %v3415, %v3417
        %v3419 = vadd.f32 %v3418, 1.0
        %v3420 = vmul.f32 %v3394, %v3419
        %v3421 = vld [vmem:[%s17] sm:$0xff]
        %v3422 = vld [vmem:[%s17 + $0x8] sm:$0xff]
        %v3423 = vld [vmem:[%s17 + $0x10] sm:$0xff]
        %v3424 = vld [vmem:[%s17 + $0x18] sm:$0xff]
        %v3425 = vld [vmem:[%s18] sm:$0x1]
        %v3427 = vlaneseq
        %v3428 = vshrl.u32 %v3427, 7
        %v3429 = vsub.s32 0, %v3428
        %v3430 = vrot.slane %v3425, %v3429
        %v3433 = vsel %vm993, %v3420, 0
        %3435 = vmatprep.subr.mxu0 0.0
        %3436 = vmatpush1.msra.mxu0 %v3421
        %3437 = vmatprep.subr.mxu0 0.0
        %3438 = vmatpush1.msra.mxu0 %v3422
        %3439 = vmatprep.subr.mxu0 0.0
        %3440 = vmatpush1.msra.mxu0 %v3423
        %3441 = vmatprep.subr.mxu0 0.0
        %3442 = vmatpush1.msra.mxu0 %v3424
        %3443 = vmatprep.subr.mxu0 0.0
        %3444 = vmatpush1.msra.mxu0 0.0
        %3445 = vmatprep.subr.mxu0 0.0
        %3446 = vmatpush1.msra.mxu0 0.0
        %3447 = vmatprep.subr.mxu0 0.0
        %3448 = vmatpush1.msra.mxu0 0.0
        %3449 = vmatprep.subr.mxu0 0.0
        %3450 = vmatpush1.msra.mxu0 0.0
        %3451 = vmatprep.subr.mxu0 0.0
        %3452 = vmatpush1.msra.mxu0 0.0
        %3453 = vmatprep.subr.mxu0 0.0
        %3454 = vmatpush1.msra.mxu0 0.0
        %3455 = vmatprep.subr.mxu0 0.0
        %3456 = vmatpush1.msra.mxu0 0.0
        %3457 = vmatprep.subr.mxu0 0.0
        %3458 = vmatpush1.msra.mxu0 0.0
        %3459 = vmatprep.subr.mxu0 0.0
        %3460 = vmatpush1.msra.mxu0 0.0
        %3461 = vmatprep.subr.mxu0 0.0
        %3462 = vmatpush1.msra.mxu0 0.0
        %3463 = vmatprep.subr.mxu0 0.0
        %3464 = vmatpush1.msra.mxu0 0.0
        %3465 = vmatprep.subr.mxu0 0.0
        %3466 = vmatpush1.msra.mxu0 0.0
        %3467 = vmatprep.subr.mxu0 0.0
        %3468 = vmatpush1.msra.mxu0 0.0
        %3469 = vmatprep.subr.mxu0 0.0
        %3470 = vmatpush1.msra.mxu0 0.0
        %3471 = vmatprep.subr.mxu0 0.0
        %3472 = vmatpush1.msra.mxu0 0.0
        %3473 = vmatprep.subr.mxu0 0.0
        %3474 = vmatpush1.msra.mxu0 0.0
        %3475 = vmatprep.subr.mxu0 0.0
        %3476 = vmatpush1.msra.mxu0 0.0
        %3477 = vmatprep.subr.mxu0 0.0
        %3478 = vmatpush1.msra.mxu0 0.0
        %3479 = vmatprep.subr.mxu0 0.0
        %3480 = vmatpush1.msra.mxu0 0.0
        %3481 = vmatprep.subr.mxu0 0.0
        %3482 = vmatpush1.msra.mxu0 0.0
        %3483 = vmatprep.subr.mxu0 0.0
        %3484 = vmatpush1.msra.mxu0 0.0
        %3485 = vmatprep.subr.mxu0 0.0
        %3486 = vmatpush1.msra.mxu0 0.0
        %3487 = vmatprep.subr.mxu0 0.0
        %3488 = vmatpush1.msra.mxu0 0.0
        %3489 = vmatprep.subr.mxu0 0.0
        %3490 = vmatpush1.msra.mxu0 0.0
        %3491 = vmatprep.subr.mxu0 0.0
        %3492 = vmatpush1.msra.mxu0 0.0
        %3493 = vmatprep.subr.mxu0 0.0
        %3494 = vmatpush1.msra.mxu0 0.0
        %3495 = vmatprep.subr.mxu0 0.0
        %3496 = vmatpush1.msra.mxu0 0.0
        %3497 = vmatprep.subr.mxu0 0.0
        %3498 = vmatpush1.msra.mxu0 0.0
        %3499 = vmatprep.mubr.f32.mxu0 0.0
        %3500 = vmatmul.mubr.f32.gmra.mrb[0].mxu0 %v3433
        %v3501 = vpop.f32.mrb[0].mxu0
        %v3502 = vadd.f32 %v3430, %v3501
        %v3503 = vpop.f32.mrb[0].mxu0
        %3504 = vdwg.mxu0
        %3506 = vset.pattern.permute.xlu0 0
        %3507 = vperm.xlu0 %3506, %v3312
        %v3508 = vpop.permute.xlu0 %3507
        %v3510 = vmul.f32 %v3502, %v3508
        %v3511 = vadd.f32 %v3510, 0.0
        %s3512 = scalar_lea.vmem %s15, 32
        %v3513 = vld [vmem:[%s3512] sm:$0xff]
        %v3514 = vld [vmem:[%s3512 + $0x8] sm:$0xff]
        %v3515 = vld [vmem:[%s3512 + $0x10] sm:$0xff]
        %v3516 = vld [vmem:[%s3512 + $0x18] sm:$0xff]
        %s3517 = scalar_lea.vmem %s16, 1
        %v3518 = vld [vmem:[%s3517] sm:$0x1]
        %v3520 = vlaneseq
        %v3521 = vshrl.u32 %v3520, 7
        %v3522 = vsub.s32 0, %v3521
        %v3523 = vrot.slane %v3518, %v3522
        %3525 = vmatprep.subr.mxu0 0.0
        %3526 = vmatpush1.msra.mxu0 %v3513
        %3527 = vmatprep.subr.mxu0 0.0
        %3528 = vmatpush1.msra.mxu0 %v3514
        %3529 = vmatprep.subr.mxu0 0.0
        %3530 = vmatpush1.msra.mxu0 %v3515
        %3531 = vmatprep.subr.mxu0 0.0
        %3532 = vmatpush1.msra.mxu0 %v3516
        %3533 = vmatprep.subr.mxu0 0.0
        %3534 = vmatpush1.msra.mxu0 0.0
        %3535 = vmatprep.subr.mxu0 0.0
        %3536 = vmatpush1.msra.mxu0 0.0
        %3537 = vmatprep.subr.mxu0 0.0
        %3538 = vmatpush1.msra.mxu0 0.0
        %3539 = vmatprep.subr.mxu0 0.0
        %3540 = vmatpush1.msra.mxu0 0.0
        %3541 = vmatprep.subr.mxu0 0.0
        %3542 = vmatpush1.msra.mxu0 0.0
        %3543 = vmatprep.subr.mxu0 0.0
        %3544 = vmatpush1.msra.mxu0 0.0
        %3545 = vmatprep.subr.mxu0 0.0
        %3546 = vmatpush1.msra.mxu0 0.0
        %3547 = vmatprep.subr.mxu0 0.0
        %3548 = vmatpush1.msra.mxu0 0.0
        %3549 = vmatprep.subr.mxu0 0.0
        %3550 = vmatpush1.msra.mxu0 0.0
        %3551 = vmatprep.subr.mxu0 0.0
        %3552 = vmatpush1.msra.mxu0 0.0
        %3553 = vmatprep.subr.mxu0 0.0
        %3554 = vmatpush1.msra.mxu0 0.0
        %3555 = vmatprep.subr.mxu0 0.0
        %3556 = vmatpush1.msra.mxu0 0.0
        %3557 = vmatprep.subr.mxu0 0.0
        %3558 = vmatpush1.msra.mxu0 0.0
        %3559 = vmatprep.subr.mxu0 0.0
        %3560 = vmatpush1.msra.mxu0 0.0
        %3561 = vmatprep.subr.mxu0 0.0
        %3562 = vmatpush1.msra.mxu0 0.0
        %3563 = vmatprep.subr.mxu0 0.0
        %3564 = vmatpush1.msra.mxu0 0.0
        %3565 = vmatprep.subr.mxu0 0.0
        %3566 = vmatpush1.msra.mxu0 0.0
        %3567 = vmatprep.subr.mxu0 0.0
        %3568 = vmatpush1.msra.mxu0 0.0
        %3569 = vmatprep.subr.mxu0 0.0
        %3570 = vmatpush1.msra.mxu0 0.0
        %3571 = vmatprep.subr.mxu0 0.0
        %3572 = vmatpush1.msra.mxu0 0.0
        %3573 = vmatprep.subr.mxu0 0.0
        %3574 = vmatpush1.msra.mxu0 0.0
        %3575 = vmatprep.subr.mxu0 0.0
        %3576 = vmatpush1.msra.mxu0 0.0
        %3577 = vmatprep.subr.mxu0 0.0
        %3578 = vmatpush1.msra.mxu0 0.0
        %3579 = vmatprep.subr.mxu0 0.0
        %3580 = vmatpush1.msra.mxu0 0.0
        %3581 = vmatprep.subr.mxu0 0.0
        %3582 = vmatpush1.msra.mxu0 0.0
        %3583 = vmatprep.subr.mxu0 0.0
        %3584 = vmatpush1.msra.mxu0 0.0
        %3585 = vmatprep.subr.mxu0 0.0
        %3586 = vmatpush1.msra.mxu0 0.0
        %3587 = vmatprep.subr.mxu0 0.0
        %3588 = vmatpush1.msra.mxu0 0.0
        %3589 = vmatprep.mubr.f32.mxu0 0.0
        %3590 = vmatmul.mubr.f32.gmra.mrb[0].mxu0 %v3229
        %v3591 = vpop.f32.mrb[0].mxu0
        %v3592 = vadd.f32 %v3523, %v3591
        %v3593 = vpop.f32.mrb[0].mxu0
        %3594 = vdwg.mxu0
        %v3595 = vmul.f32 %v3592, 0.5
        %v3596 = vmul.f32 %v3592, 0.70710677
        %v3597 = vand.u32 2147483647, %v3596
        %v3598 = vmul.f32 %v3597, 0.3275911
        %v3599 = vadd.f32 %v3598, 1.0
        %v3600 = vrcp.pop %v3599
        %v3601 = vmul.f32 1.0, %v3600
        %v3602 = vmul.f32 %v3601, 1.0614054
        %v3603 = vadd.f32 %v3602, -1.4531521
        %v3604 = vmul.f32 %v3603, %v3601
        %v3605 = vadd.f32 %v3604, 1.4214138
        %v3606 = vmul.f32 %v3605, %v3601
        %v3607 = vadd.f32 %v3606, -0.28449672
        %v3608 = vmul.f32 %v3607, %v3601
        %v3609 = vadd.f32 %v3608, 0.2548296
        %v3610 = vmul.f32 %v3609, %v3601
        %v3611 = vsub.f32 0.0, %v3597
        %v3612 = vmul.f32 %v3611, %v3597
        %v3613 = vmul.f32 %v3612, 1.442695
        %v3614 = vpow.pop %v3613
        %v3615 = vmul.f32 %v3610, %v3614
        %v3616 = vsub.f32 1.0, %v3615
        %vm3617 = vcmp.ge.f32.partialorder %v3596, 0.0
        %v3618 = vsub.f32 0.0, %v3616
        %v3619 = vsel %vm3617, %v3616, %v3618
        %v3620 = vadd.f32 %v3619, 1.0
        %v3621 = vmul.f32 %v3595, %v3620
        %s3622 = scalar_lea.vmem %s17, 32
        %v3623 = vld [vmem:[%s3622] sm:$0xff]
        %v3624 = vld [vmem:[%s3622 + $0x8] sm:$0xff]
        %v3625 = vld [vmem:[%s3622 + $0x10] sm:$0xff]
        %v3626 = vld [vmem:[%s3622 + $0x18] sm:$0xff]
        %s3627 = scalar_lea.vmem %s18, 1
        %v3628 = vld [vmem:[%s3627] sm:$0x1]
        %v3630 = vlaneseq
        %v3631 = vshrl.u32 %v3630, 7
        %v3632 = vsub.s32 0, %v3631
        %v3633 = vrot.slane %v3628, %v3632
        %v3636 = vsel %vm993, %v3621, 0
        %3638 = vmatprep.subr.mxu0 0.0
        %3639 = vmatpush1.msra.mxu0 %v3623
        %3640 = vmatprep.subr.mxu0 0.0
        %3641 = vmatpush1.msra.mxu0 %v3624
        %3642 = vmatprep.subr.mxu0 0.0
        %3643 = vmatpush1.msra.mxu0 %v3625
        %3644 = vmatprep.subr.mxu0 0.0
        %3645 = vmatpush1.msra.mxu0 %v3626
        %3646 = vmatprep.subr.mxu0 0.0
        %3647 = vmatpush1.msra.mxu0 0.0
        %3648 = vmatprep.subr.mxu0 0.0
        %3649 = vmatpush1.msra.mxu0 0.0
        %3650 = vmatprep.subr.mxu0 0.0
        %3651 = vmatpush1.msra.mxu0 0.0
        %3652 = vmatprep.subr.mxu0 0.0
        %3653 = vmatpush1.msra.mxu0 0.0
        %3654 = vmatprep.subr.mxu0 0.0
        %3655 = vmatpush1.msra.mxu0 0.0
        %3656 = vmatprep.subr.mxu0 0.0
        %3657 = vmatpush1.msra.mxu0 0.0
        %3658 = vmatprep.subr.mxu0 0.0
        %3659 = vmatpush1.msra.mxu0 0.0
        %3660 = vmatprep.subr.mxu0 0.0
        %3661 = vmatpush1.msra.mxu0 0.0
        %3662 = vmatprep.subr.mxu0 0.0
        %3663 = vmatpush1.msra.mxu0 0.0
        %3664 = vmatprep.subr.mxu0 0.0
        %3665 = vmatpush1.msra.mxu0 0.0
        %3666 = vmatprep.subr.mxu0 0.0
        %3667 = vmatpush1.msra.mxu0 0.0
        %3668 = vmatprep.subr.mxu0 0.0
        %3669 = vmatpush1.msra.mxu0 0.0
        %3670 = vmatprep.subr.mxu0 0.0
        %3671 = vmatpush1.msra.mxu0 0.0
        %3672 = vmatprep.subr.mxu0 0.0
        %3673 = vmatpush1.msra.mxu0 0.0
        %3674 = vmatprep.subr.mxu0 0.0
        %3675 = vmatpush1.msra.mxu0 0.0
        %3676 = vmatprep.subr.mxu0 0.0
        %3677 = vmatpush1.msra.mxu0 0.0
        %3678 = vmatprep.subr.mxu0 0.0
        %3679 = vmatpush1.msra.mxu0 0.0
        %3680 = vmatprep.subr.mxu0 0.0
        %3681 = vmatpush1.msra.mxu0 0.0
        %3682 = vmatprep.subr.mxu0 0.0
        %3683 = vmatpush1.msra.mxu0 0.0
        %3684 = vmatprep.subr.mxu0 0.0
        %3685 = vmatpush1.msra.mxu0 0.0
        %3686 = vmatprep.subr.mxu0 0.0
        %3687 = vmatpush1.msra.mxu0 0.0
        %3688 = vmatprep.subr.mxu0 0.0
        %3689 = vmatpush1.msra.mxu0 0.0
        %3690 = vmatprep.subr.mxu0 0.0
        %3691 = vmatpush1.msra.mxu0 0.0
        %3692 = vmatprep.subr.mxu0 0.0
        %3693 = vmatpush1.msra.mxu0 0.0
        %3694 = vmatprep.subr.mxu0 0.0
        %3695 = vmatpush1.msra.mxu0 0.0
        %3696 = vmatprep.subr.mxu0 0.0
        %3697 = vmatpush1.msra.mxu0 0.0
        %3698 = vmatprep.subr.mxu0 0.0
        %3699 = vmatpush1.msra.mxu0 0.0
        %3700 = vmatprep.subr.mxu0 0.0
        %3701 = vmatpush1.msra.mxu0 0.0
        %3702 = vmatprep.mubr.f32.mxu0 0.0
        %3703 = vmatmul.mubr.f32.gmra.mrb[0].mxu0 %v3636
        %v3704 = vpop.f32.mrb[0].mxu0
        %v3705 = vadd.f32 %v3633, %v3704
        %v3706 = vpop.f32.mrb[0].mxu0
        %3707 = vdwg.mxu0
        %3708 = vset.pattern.permute.xlu0 1
        %3709 = vperm.xlu0 %3708, %v3312
        %v3710 = vpop.permute.xlu0 %3709
        %v3712 = vmul.f32 %v3705, %v3710
        %v3713 = vadd.f32 %v3511, %v3712
        %s3714 = scalar_lea.vmem %s15, 64
        %v3715 = vld [vmem:[%s3714] sm:$0xff]
        %v3716 = vld [vmem:[%s3714 + $0x8] sm:$0xff]
        %v3717 = vld [vmem:[%s3714 + $0x10] sm:$0xff]
        %v3718 = vld [vmem:[%s3714 + $0x18] sm:$0xff]
        %s3719 = scalar_lea.vmem %s16, 2
        %v3720 = vld [vmem:[%s3719] sm:$0x1]
        %v3722 = vlaneseq
        %v3723 = vshrl.u32 %v3722, 7
        %v3724 = vsub.s32 0, %v3723
        %v3725 = vrot.slane %v3720, %v3724
        %3727 = vmatprep.subr.mxu0 0.0
        %3728 = vmatpush1.msra.mxu0 %v3715
        %3729 = vmatprep.subr.mxu0 0.0
        %3730 = vmatpush1.msra.mxu0 %v3716
        %3731 = vmatprep.subr.mxu0 0.0
        %3732 = vmatpush1.msra.mxu0 %v3717
        %3733 = vmatprep.subr.mxu0 0.0
        %3734 = vmatpush1.msra.mxu0 %v3718
        %3735 = vmatprep.subr.mxu0 0.0
        %3736 = vmatpush1.msra.mxu0 0.0
        %3737 = vmatprep.subr.mxu0 0.0
        %3738 = vmatpush1.msra.mxu0 0.0
        %3739 = vmatprep.subr.mxu0 0.0
        %3740 = vmatpush1.msra.mxu0 0.0
        %3741 = vmatprep.subr.mxu0 0.0
        %3742 = vmatpush1.msra.mxu0 0.0
        %3743 = vmatprep.subr.mxu0 0.0
        %3744 = vmatpush1.msra.mxu0 0.0
        %3745 = vmatprep.subr.mxu0 0.0
        %3746 = vmatpush1.msra.mxu0 0.0
        %3747 = vmatprep.subr.mxu0 0.0
        %3748 = vmatpush1.msra.mxu0 0.0
        %3749 = vmatprep.subr.mxu0 0.0
        %3750 = vmatpush1.msra.mxu0 0.0
        %3751 = vmatprep.subr.mxu0 0.0
        %3752 = vmatpush1.msra.mxu0 0.0
        %3753 = vmatprep.subr.mxu0 0.0
        %3754 = vmatpush1.msra.mxu0 0.0
        %3755 = vmatprep.subr.mxu0 0.0
        %3756 = vmatpush1.msra.mxu0 0.0
        %3757 = vmatprep.subr.mxu0 0.0
        %3758 = vmatpush1.msra.mxu0 0.0
        %3759 = vmatprep.subr.mxu0 0.0
        %3760 = vmatpush1.msra.mxu0 0.0
        %3761 = vmatprep.subr.mxu0 0.0
        %3762 = vmatpush1.msra.mxu0 0.0
        %3763 = vmatprep.subr.mxu0 0.0
        %3764 = vmatpush1.msra.mxu0 0.0
        %3765 = vmatprep.subr.mxu0 0.0
        %3766 = vmatpush1.msra.mxu0 0.0
        %3767 = vmatprep.subr.mxu0 0.0
        %3768 = vmatpush1.msra.mxu0 0.0
        %3769 = vmatprep.subr.mxu0 0.0
        %3770 = vmatpush1.msra.mxu0 0.0
        %3771 = vmatprep.subr.mxu0 0.0
        %3772 = vmatpush1.msra.mxu0 0.0
        %3773 = vmatprep.subr.mxu0 0.0
        %3774 = vmatpush1.msra.mxu0 0.0
        %3775 = vmatprep.subr.mxu0 0.0
        %3776 = vmatpush1.msra.mxu0 0.0
        %3777 = vmatprep.subr.mxu0 0.0
        %3778 = vmatpush1.msra.mxu0 0.0
        %3779 = vmatprep.subr.mxu0 0.0
        %3780 = vmatpush1.msra.mxu0 0.0
        %3781 = vmatprep.subr.mxu0 0.0
        %3782 = vmatpush1.msra.mxu0 0.0
        %3783 = vmatprep.subr.mxu0 0.0
        %3784 = vmatpush1.msra.mxu0 0.0
        %3785 = vmatprep.subr.mxu0 0.0
        %3786 = vmatpush1.msra.mxu0 0.0
        %3787 = vmatprep.subr.mxu0 0.0
        %3788 = vmatpush1.msra.mxu0 0.0
        %3789 = vmatprep.subr.mxu0 0.0
        %3790 = vmatpush1.msra.mxu0 0.0
        %3791 = vmatprep.mubr.f32.mxu0 0.0
        %3792 = vmatmul.mubr.f32.gmra.mrb[0].mxu0 %v3229
        %v3793 = vpop.f32.mrb[0].mxu0
        %v3794 = vadd.f32 %v3725, %v3793
        %v3795 = vpop.f32.mrb[0].mxu0
        %3796 = vdwg.mxu0
        %v3797 = vmul.f32 %v3794, 0.5
        %v3798 = vmul.f32 %v3794, 0.70710677
        %v3799 = vand.u32 2147483647, %v3798
        %v3800 = vmul.f32 %v3799, 0.3275911
        %v3801 = vadd.f32 %v3800, 1.0
        %v3802 = vrcp.pop %v3801
        %v3803 = vmul.f32 1.0, %v3802
        %v3804 = vmul.f32 %v3803, 1.0614054
        %v3805 = vadd.f32 %v3804, -1.4531521
        %v3806 = vmul.f32 %v3805, %v3803
        %v3807 = vadd.f32 %v3806, 1.4214138
        %v3808 = vmul.f32 %v3807, %v3803
        %v3809 = vadd.f32 %v3808, -0.28449672
        %v3810 = vmul.f32 %v3809, %v3803
        %v3811 = vadd.f32 %v3810, 0.2548296
        %v3812 = vmul.f32 %v3811, %v3803
        %v3813 = vsub.f32 0.0, %v3799
        %v3814 = vmul.f32 %v3813, %v3799
        %v3815 = vmul.f32 %v3814, 1.442695
        %v3816 = vpow.pop %v3815
        %v3817 = vmul.f32 %v3812, %v3816
        %v3818 = vsub.f32 1.0, %v3817
        %vm3819 = vcmp.ge.f32.partialorder %v3798, 0.0
        %v3820 = vsub.f32 0.0, %v3818
        %v3821 = vsel %vm3819, %v3818, %v3820
        %v3822 = vadd.f32 %v3821, 1.0
        %v3823 = vmul.f32 %v3797, %v3822
        %s3824 = scalar_lea.vmem %s17, 64
        %v3825 = vld [vmem:[%s3824] sm:$0xff]
        %v3826 = vld [vmem:[%s3824 + $0x8] sm:$0xff]
        %v3827 = vld [vmem:[%s3824 + $0x10] sm:$0xff]
        %v3828 = vld [vmem:[%s3824 + $0x18] sm:$0xff]
        %s3829 = scalar_lea.vmem %s18, 2
        %v3830 = vld [vmem:[%s3829] sm:$0x1]
        %v3832 = vlaneseq
        %v3833 = vshrl.u32 %v3832, 7
        %v3834 = vsub.s32 0, %v3833
        %v3835 = vrot.slane %v3830, %v3834
        %v3838 = vsel %vm993, %v3823, 0
        %3840 = vmatprep.subr.mxu0 0.0
        %3841 = vmatpush1.msra.mxu0 %v3825
        %3842 = vmatprep.subr.mxu0 0.0
        %3843 = vmatpush1.msra.mxu0 %v3826
        %3844 = vmatprep.subr.mxu0 0.0
        %3845 = vmatpush1.msra.mxu0 %v3827
        %3846 = vmatprep.subr.mxu0 0.0
        %3847 = vmatpush1.msra.mxu0 %v3828
        %3848 = vmatprep.subr.mxu0 0.0
        %3849 = vmatpush1.msra.mxu0 0.0
        %3850 = vmatprep.subr.mxu0 0.0
        %3851 = vmatpush1.msra.mxu0 0.0
        %3852 = vmatprep.subr.mxu0 0.0
        %3853 = vmatpush1.msra.mxu0 0.0
        %3854 = vmatprep.subr.mxu0 0.0
        %3855 = vmatpush1.msra.mxu0 0.0
        %3856 = vmatprep.subr.mxu0 0.0
        %3857 = vmatpush1.msra.mxu0 0.0
        %3858 = vmatprep.subr.mxu0 0.0
        %3859 = vmatpush1.msra.mxu0 0.0
        %3860 = vmatprep.subr.mxu0 0.0
        %3861 = vmatpush1.msra.mxu0 0.0
        %3862 = vmatprep.subr.mxu0 0.0
        %3863 = vmatpush1.msra.mxu0 0.0
        %3864 = vmatprep.subr.mxu0 0.0
        %3865 = vmatpush1.msra.mxu0 0.0
        %3866 = vmatprep.subr.mxu0 0.0
        %3867 = vmatpush1.msra.mxu0 0.0
        %3868 = vmatprep.subr.mxu0 0.0
        %3869 = vmatpush1.msra.mxu0 0.0
        %3870 = vmatprep.subr.mxu0 0.0
        %3871 = vmatpush1.msra.mxu0 0.0
        %3872 = vmatprep.subr.mxu0 0.0
        %3873 = vmatpush1.msra.mxu0 0.0
        %3874 = vmatprep.subr.mxu0 0.0
        %3875 = vmatpush1.msra.mxu0 0.0
        %3876 = vmatprep.subr.mxu0 0.0
        %3877 = vmatpush1.msra.mxu0 0.0
        %3878 = vmatprep.subr.mxu0 0.0
        %3879 = vmatpush1.msra.mxu0 0.0
        %3880 = vmatprep.subr.mxu0 0.0
        %3881 = vmatpush1.msra.mxu0 0.0
        %3882 = vmatprep.subr.mxu0 0.0
        %3883 = vmatpush1.msra.mxu0 0.0
        %3884 = vmatprep.subr.mxu0 0.0
        %3885 = vmatpush1.msra.mxu0 0.0
        %3886 = vmatprep.subr.mxu0 0.0
        %3887 = vmatpush1.msra.mxu0 0.0
        %3888 = vmatprep.subr.mxu0 0.0
        %3889 = vmatpush1.msra.mxu0 0.0
        %3890 = vmatprep.subr.mxu0 0.0
        %3891 = vmatpush1.msra.mxu0 0.0
        %3892 = vmatprep.subr.mxu0 0.0
        %3893 = vmatpush1.msra.mxu0 0.0
        %3894 = vmatprep.subr.mxu0 0.0
        %3895 = vmatpush1.msra.mxu0 0.0
        %3896 = vmatprep.subr.mxu0 0.0
        %3897 = vmatpush1.msra.mxu0 0.0
        %3898 = vmatprep.subr.mxu0 0.0
        %3899 = vmatpush1.msra.mxu0 0.0
        %3900 = vmatprep.subr.mxu0 0.0
        %3901 = vmatpush1.msra.mxu0 0.0
        %3902 = vmatprep.subr.mxu0 0.0
        %3903 = vmatpush1.msra.mxu0 0.0
        %3904 = vmatprep.mubr.f32.mxu0 0.0
        %3905 = vmatmul.mubr.f32.gmra.mrb[0].mxu0 %v3838
        %v3906 = vpop.f32.mrb[0].mxu0
        %v3907 = vadd.f32 %v3835, %v3906
        %v3908 = vpop.f32.mrb[0].mxu0
        %3909 = vdwg.mxu0
        %3910 = vset.pattern.permute.xlu0 2
        %3911 = vperm.xlu0 %3910, %v3312
        %v3912 = vpop.permute.xlu0 %3911
        %v3914 = vmul.f32 %v3907, %v3912
        %v3915 = vadd.f32 %v3713, %v3914
        %s3916 = scalar_lea.vmem %s15, 96
        %v3917 = vld [vmem:[%s3916] sm:$0xff]
        %v3918 = vld [vmem:[%s3916 + $0x8] sm:$0xff]
        %v3919 = vld [vmem:[%s3916 + $0x10] sm:$0xff]
        %v3920 = vld [vmem:[%s3916 + $0x18] sm:$0xff]
        %s3921 = scalar_lea.vmem %s16, 3
        %v3922 = vld [vmem:[%s3921] sm:$0x1]
        %v3924 = vlaneseq
        %v3925 = vshrl.u32 %v3924, 7
        %v3926 = vsub.s32 0, %v3925
        %v3927 = vrot.slane %v3922, %v3926
        %3929 = vmatprep.subr.mxu0 0.0
        %3930 = vmatpush1.msra.mxu0 %v3917
        %3931 = vmatprep.subr.mxu0 0.0
        %3932 = vmatpush1.msra.mxu0 %v3918
        %3933 = vmatprep.subr.mxu0 0.0
        %3934 = vmatpush1.msra.mxu0 %v3919
        %3935 = vmatprep.subr.mxu0 0.0
        %3936 = vmatpush1.msra.mxu0 %v3920
        %3937 = vmatprep.subr.mxu0 0.0
        %3938 = vmatpush1.msra.mxu0 0.0
        %3939 = vmatprep.subr.mxu0 0.0
        %3940 = vmatpush1.msra.mxu0 0.0
        %3941 = vmatprep.subr.mxu0 0.0
        %3942 = vmatpush1.msra.mxu0 0.0
        %3943 = vmatprep.subr.mxu0 0.0
        %3944 = vmatpush1.msra.mxu0 0.0
        %3945 = vmatprep.subr.mxu0 0.0
        %3946 = vmatpush1.msra.mxu0 0.0
        %3947 = vmatprep.subr.mxu0 0.0
        %3948 = vmatpush1.msra.mxu0 0.0
        %3949 = vmatprep.subr.mxu0 0.0
        %3950 = vmatpush1.msra.mxu0 0.0
        %3951 = vmatprep.subr.mxu0 0.0
        %3952 = vmatpush1.msra.mxu0 0.0
        %3953 = vmatprep.subr.mxu0 0.0
        %3954 = vmatpush1.msra.mxu0 0.0
        %3955 = vmatprep.subr.mxu0 0.0
        %3956 = vmatpush1.msra.mxu0 0.0
        %3957 = vmatprep.subr.mxu0 0.0
        %3958 = vmatpush1.msra.mxu0 0.0
        %3959 = vmatprep.subr.mxu0 0.0
        %3960 = vmatpush1.msra.mxu0 0.0
        %3961 = vmatprep.subr.mxu0 0.0
        %3962 = vmatpush1.msra.mxu0 0.0
        %3963 = vmatprep.subr.mxu0 0.0
        %3964 = vmatpush1.msra.mxu0 0.0
        %3965 = vmatprep.subr.mxu0 0.0
        %3966 = vmatpush1.msra.mxu0 0.0
        %3967 = vmatprep.subr.mxu0 0.0
        %3968 = vmatpush1.msra.mxu0 0.0
        %3969 = vmatprep.subr.mxu0 0.0
        %3970 = vmatpush1.msra.mxu0 0.0
        %3971 = vmatprep.subr.mxu0 0.0
        %3972 = vmatpush1.msra.mxu0 0.0
        %3973 = vmatprep.subr.mxu0 0.0
        %3974 = vmatpush1.msra.mxu0 0.0
        %3975 = vmatprep.subr.mxu0 0.0
        %3976 = vmatpush1.msra.mxu0 0.0
        %3977 = vmatprep.subr.mxu0 0.0
        %3978 = vmatpush1.msra.mxu0 0.0
        %3979 = vmatprep.subr.mxu0 0.0
        %3980 = vmatpush1.msra.mxu0 0.0
        %3981 = vmatprep.subr.mxu0 0.0
        %3982 = vmatpush1.msra.mxu0 0.0
        %3983 = vmatprep.subr.mxu0 0.0
        %3984 = vmatpush1.msra.mxu0 0.0
        %3985 = vmatprep.subr.mxu0 0.0
        %3986 = vmatpush1.msra.mxu0 0.0
        %3987 = vmatprep.subr.mxu0 0.0
        %3988 = vmatpush1.msra.mxu0 0.0
        %3989 = vmatprep.subr.mxu0 0.0
        %3990 = vmatpush1.msra.mxu0 0.0
        %3991 = vmatprep.subr.mxu0 0.0
        %3992 = vmatpush1.msra.mxu0 0.0
        %3993 = vmatprep.mubr.f32.mxu0 0.0
        %3994 = vmatmul.mubr.f32.gmra.mrb[0].mxu0 %v3229
        %v3995 = vpop.f32.mrb[0].mxu0
        %v3996 = vadd.f32 %v3927, %v3995
        %v3997 = vpop.f32.mrb[0].mxu0
        %3998 = vdwg.mxu0
        %v3999 = vmul.f32 %v3996, 0.5
        %v4000 = vmul.f32 %v3996, 0.70710677
        %v4001 = vand.u32 2147483647, %v4000
        %v4002 = vmul.f32 %v4001, 0.3275911
        %v4003 = vadd.f32 %v4002, 1.0
        %v4004 = vrcp.pop %v4003
        %v4005 = vmul.f32 1.0, %v4004
        %v4006 = vmul.f32 %v4005, 1.0614054
        %v4007 = vadd.f32 %v4006, -1.4531521
        %v4008 = vmul.f32 %v4007, %v4005
        %v4009 = vadd.f32 %v4008, 1.4214138
        %v4010 = vmul.f32 %v4009, %v4005
        %v4011 = vadd.f32 %v4010, -0.28449672
        %v4012 = vmul.f32 %v4011, %v4005
        %v4013 = vadd.f32 %v4012, 0.2548296
        %v4014 = vmul.f32 %v4013, %v4005
        %v4015 = vsub.f32 0.0, %v4001
        %v4016 = vmul.f32 %v4015, %v4001
        %v4017 = vmul.f32 %v4016, 1.442695
        %v4018 = vpow.pop %v4017
        %v4019 = vmul.f32 %v4014, %v4018
        %v4020 = vsub.f32 1.0, %v4019
        %vm4021 = vcmp.ge.f32.partialorder %v4000, 0.0
        %v4022 = vsub.f32 0.0, %v4020
        %v4023 = vsel %vm4021, %v4020, %v4022
        %v4024 = vadd.f32 %v4023, 1.0
        %v4025 = vmul.f32 %v3999, %v4024
        %s4026 = scalar_lea.vmem %s17, 96
        %v4027 = vld [vmem:[%s4026] sm:$0xff]
        %v4028 = vld [vmem:[%s4026 + $0x8] sm:$0xff]
        %v4029 = vld [vmem:[%s4026 + $0x10] sm:$0xff]
        %v4030 = vld [vmem:[%s4026 + $0x18] sm:$0xff]
        %s4031 = scalar_lea.vmem %s18, 3
        %v4032 = vld [vmem:[%s4031] sm:$0x1]
        %v4034 = vlaneseq
        %v4035 = vshrl.u32 %v4034, 7
        %v4036 = vsub.s32 0, %v4035
        %v4037 = vrot.slane %v4032, %v4036
        %v4040 = vsel %vm993, %v4025, 0
        %4042 = vmatprep.subr.mxu0 0.0
        %4043 = vmatpush1.msra.mxu0 %v4027
        %4044 = vmatprep.subr.mxu0 0.0
        %4045 = vmatpush1.msra.mxu0 %v4028
        %4046 = vmatprep.subr.mxu0 0.0
        %4047 = vmatpush1.msra.mxu0 %v4029
        %4048 = vmatprep.subr.mxu0 0.0
        %4049 = vmatpush1.msra.mxu0 %v4030
        %4050 = vmatprep.subr.mxu0 0.0
        %4051 = vmatpush1.msra.mxu0 0.0
        %4052 = vmatprep.subr.mxu0 0.0
        %4053 = vmatpush1.msra.mxu0 0.0
        %4054 = vmatprep.subr.mxu0 0.0
        %4055 = vmatpush1.msra.mxu0 0.0
        %4056 = vmatprep.subr.mxu0 0.0
        %4057 = vmatpush1.msra.mxu0 0.0
        %4058 = vmatprep.subr.mxu0 0.0
        %4059 = vmatpush1.msra.mxu0 0.0
        %4060 = vmatprep.subr.mxu0 0.0
        %4061 = vmatpush1.msra.mxu0 0.0
        %4062 = vmatprep.subr.mxu0 0.0
        %4063 = vmatpush1.msra.mxu0 0.0
        %4064 = vmatprep.subr.mxu0 0.0
        %4065 = vmatpush1.msra.mxu0 0.0
        %4066 = vmatprep.subr.mxu0 0.0
        %4067 = vmatpush1.msra.mxu0 0.0
        %4068 = vmatprep.subr.mxu0 0.0
        %4069 = vmatpush1.msra.mxu0 0.0
        %4070 = vmatprep.subr.mxu0 0.0
        %4071 = vmatpush1.msra.mxu0 0.0
        %4072 = vmatprep.subr.mxu0 0.0
        %4073 = vmatpush1.msra.mxu0 0.0
        %4074 = vmatprep.subr.mxu0 0.0
        %4075 = vmatpush1.msra.mxu0 0.0
        %4076 = vmatprep.subr.mxu0 0.0
        %4077 = vmatpush1.msra.mxu0 0.0
        %4078 = vmatprep.subr.mxu0 0.0
        %4079 = vmatpush1.msra.mxu0 0.0
        %4080 = vmatprep.subr.mxu0 0.0
        %4081 = vmatpush1.msra.mxu0 0.0
        %4082 = vmatprep.subr.mxu0 0.0
        %4083 = vmatpush1.msra.mxu0 0.0
        %4084 = vmatprep.subr.mxu0 0.0
        %4085 = vmatpush1.msra.mxu0 0.0
        %4086 = vmatprep.subr.mxu0 0.0
        %4087 = vmatpush1.msra.mxu0 0.0
        %4088 = vmatprep.subr.mxu0 0.0
        %4089 = vmatpush1.msra.mxu0 0.0
        %4090 = vmatprep.subr.mxu0 0.0
        %4091 = vmatpush1.msra.mxu0 0.0
        %4092 = vmatprep.subr.mxu0 0.0
        %4093 = vmatpush1.msra.mxu0 0.0
        %4094 = vmatprep.subr.mxu0 0.0
        %4095 = vmatpush1.msra.mxu0 0.0
        %4096 = vmatprep.subr.mxu0 0.0
        %4097 = vmatpush1.msra.mxu0 0.0
        %4098 = vmatprep.subr.mxu0 0.0
        %4099 = vmatpush1.msra.mxu0 0.0
        %4100 = vmatprep.subr.mxu0 0.0
        %4101 = vmatpush1.msra.mxu0 0.0
        %4102 = vmatprep.subr.mxu0 0.0
        %4103 = vmatpush1.msra.mxu0 0.0
        %4104 = vmatprep.subr.mxu0 0.0
        %4105 = vmatpush1.msra.mxu0 0.0
        %4106 = vmatprep.mubr.f32.mxu0 0.0
        %4107 = vmatmul.mubr.f32.gmra.mrb[0].mxu0 %v4040
        %v4108 = vpop.f32.mrb[0].mxu0
        %v4109 = vadd.f32 %v4037, %v4108
        %v4110 = vpop.f32.mrb[0].mxu0
        %4111 = vdwg.mxu0
        %4112 = vset.pattern.permute.xlu0 3
        %4113 = vperm.xlu0 %4112, %v3312
        %v4114 = vpop.permute.xlu0 %4113
        %v4116 = vmul.f32 %v4109, %v4114
        %v4117 = vadd.f32 %v3915, %v4116
        %v4118 = vld [vmem:[%s19] sm:$0xff]
        %v4119 = vld [vmem:[%s19 + $0x8] sm:$0xff]
        %v4120 = vld [vmem:[%s19 + $0x10] sm:$0xff]
        %v4121 = vld [vmem:[%s19 + $0x18] sm:$0xff]
        %v4122 = vld [vmem:[%s20] sm:$0x1]
        %v4124 = vlaneseq
        %v4125 = vshrl.u32 %v4124, 7
        %v4126 = vsub.s32 0, %v4125
        %v4127 = vrot.slane %v4122, %v4126
        %4129 = vmatprep.subr.mxu0 0.0
        %4130 = vmatpush1.msra.mxu0 %v4118
        %4131 = vmatprep.subr.mxu0 0.0
        %4132 = vmatpush1.msra.mxu0 %v4119
        %4133 = vmatprep.subr.mxu0 0.0
        %4134 = vmatpush1.msra.mxu0 %v4120
        %4135 = vmatprep.subr.mxu0 0.0
        %4136 = vmatpush1.msra.mxu0 %v4121
        %4137 = vmatprep.subr.mxu0 0.0
        %4138 = vmatpush1.msra.mxu0 0.0
        %4139 = vmatprep.subr.mxu0 0.0
        %4140 = vmatpush1.msra.mxu0 0.0
        %4141 = vmatprep.subr.mxu0 0.0
        %4142 = vmatpush1.msra.mxu0 0.0
        %4143 = vmatprep.subr.mxu0 0.0
        %4144 = vmatpush1.msra.mxu0 0.0
        %4145 = vmatprep.subr.mxu0 0.0
        %4146 = vmatpush1.msra.mxu0 0.0
        %4147 = vmatprep.subr.mxu0 0.0
        %4148 = vmatpush1.msra.mxu0 0.0
        %4149 = vmatprep.subr.mxu0 0.0
        %4150 = vmatpush1.msra.mxu0 0.0
        %4151 = vmatprep.subr.mxu0 0.0
        %4152 = vmatpush1.msra.mxu0 0.0
        %4153 = vmatprep.subr.mxu0 0.0
        %4154 = vmatpush1.msra.mxu0 0.0
        %4155 = vmatprep.subr.mxu0 0.0
        %4156 = vmatpush1.msra.mxu0 0.0
        %4157 = vmatprep.subr.mxu0 0.0
        %4158 = vmatpush1.msra.mxu0 0.0
        %4159 = vmatprep.subr.mxu0 0.0
        %4160 = vmatpush1.msra.mxu0 0.0
        %4161 = vmatprep.subr.mxu0 0.0
        %4162 = vmatpush1.msra.mxu0 0.0
        %4163 = vmatprep.subr.mxu0 0.0
        %4164 = vmatpush1.msra.mxu0 0.0
        %4165 = vmatprep.subr.mxu0 0.0
        %4166 = vmatpush1.msra.mxu0 0.0
        %4167 = vmatprep.subr.mxu0 0.0
        %4168 = vmatpush1.msra.mxu0 0.0
        %4169 = vmatprep.subr.mxu0 0.0
        %4170 = vmatpush1.msra.mxu0 0.0
        %4171 = vmatprep.subr.mxu0 0.0
        %4172 = vmatpush1.msra.mxu0 0.0
        %4173 = vmatprep.subr.mxu0 0.0
        %4174 = vmatpush1.msra.mxu0 0.0
        %4175 = vmatprep.subr.mxu0 0.0
        %4176 = vmatpush1.msra.mxu0 0.0
        %4177 = vmatprep.subr.mxu0 0.0
        %4178 = vmatpush1.msra.mxu0 0.0
        %4179 = vmatprep.subr.mxu0 0.0
        %4180 = vmatpush1.msra.mxu0 0.0
        %4181 = vmatprep.subr.mxu0 0.0
        %4182 = vmatpush1.msra.mxu0 0.0
        %4183 = vmatprep.subr.mxu0 0.0
        %4184 = vmatpush1.msra.mxu0 0.0
        %4185 = vmatprep.subr.mxu0 0.0
        %4186 = vmatpush1.msra.mxu0 0.0
        %4187 = vmatprep.subr.mxu0 0.0
        %4188 = vmatpush1.msra.mxu0 0.0
        %4189 = vmatprep.subr.mxu0 0.0
        %4190 = vmatpush1.msra.mxu0 0.0
        %4191 = vmatprep.subr.mxu0 0.0
        %4192 = vmatpush1.msra.mxu0 0.0
        %4193 = vmatprep.mubr.f32.mxu0 0.0
        %4194 = vmatmul.mubr.f32.gmra.mrb[0].mxu0 %v3229
        %v4195 = vpop.f32.mrb[0].mxu0
        %v4196 = vadd.f32 %v4127, %v4195
        %v4197 = vpop.f32.mrb[0].mxu0
        %4198 = vdwg.mxu0
        %vm4199 = vcmask 23552
        %v4200 = vsel %vm4199, %v4196, -inf
        %4201 = vmax.xlane.f32.xlu0 %v4200
        %v4202 = vpop.xlane.xlu0 %4201
        %v4203 = vsub.f32 %v4196, %v4202
        %v4204 = vmul.f32 %v4203, 1.442695
        %v4205 = vpow.pop %v4204
        %v4206 = vsel %vm4199, %v4205, 0.0
        %4207 = vadd.xlane.f32.xlu0 %v4206
        %v4208 = vpop.xlane.xlu0 %4207
        %v4209 = vrcp.pop %v4208
        %v4210 = vmul.f32 %v4205, %v4209
        %v4211 = vld [vmem:[%s21] sm:$0xff]
        %v4212 = vld [vmem:[%s21 + $0x8] sm:$0xff]
        %v4213 = vld [vmem:[%s21 + $0x10] sm:$0xff]
        %v4214 = vld [vmem:[%s21 + $0x18] sm:$0xff]
        %v4215 = vld [vmem:[%s22] sm:$0x1]
        %v4217 = vlaneseq
        %v4218 = vshrl.u32 %v4217, 7
        %v4219 = vsub.s32 0, %v4218
        %v4220 = vrot.slane %v4215, %v4219
        %4222 = vmatprep.subr.mxu0 0.0
        %4223 = vmatpush1.msra.mxu0 %v4211
        %4224 = vmatprep.subr.mxu0 0.0
        %4225 = vmatpush1.msra.mxu0 %v4212
        %4226 = vmatprep.subr.mxu0 0.0
        %4227 = vmatpush1.msra.mxu0 %v4213
        %4228 = vmatprep.subr.mxu0 0.0
        %4229 = vmatpush1.msra.mxu0 %v4214
        %4230 = vmatprep.subr.mxu0 0.0
        %4231 = vmatpush1.msra.mxu0 0.0
        %4232 = vmatprep.subr.mxu0 0.0
        %4233 = vmatpush1.msra.mxu0 0.0
        %4234 = vmatprep.subr.mxu0 0.0
        %4235 = vmatpush1.msra.mxu0 0.0
        %4236 = vmatprep.subr.mxu0 0.0
        %4237 = vmatpush1.msra.mxu0 0.0
        %4238 = vmatprep.subr.mxu0 0.0
        %4239 = vmatpush1.msra.mxu0 0.0
        %4240 = vmatprep.subr.mxu0 0.0
        %4241 = vmatpush1.msra.mxu0 0.0
        %4242 = vmatprep.subr.mxu0 0.0
        %4243 = vmatpush1.msra.mxu0 0.0
        %4244 = vmatprep.subr.mxu0 0.0
        %4245 = vmatpush1.msra.mxu0 0.0
        %4246 = vmatprep.subr.mxu0 0.0
        %4247 = vmatpush1.msra.mxu0 0.0
        %4248 = vmatprep.subr.mxu0 0.0
        %4249 = vmatpush1.msra.mxu0 0.0
        %4250 = vmatprep.subr.mxu0 0.0
        %4251 = vmatpush1.msra.mxu0 0.0
        %4252 = vmatprep.subr.mxu0 0.0
        %4253 = vmatpush1.msra.mxu0 0.0
        %4254 = vmatprep.subr.mxu0 0.0
        %4255 = vmatpush1.msra.mxu0 0.0
        %4256 = vmatprep.subr.mxu0 0.0
        %4257 = vmatpush1.msra.mxu0 0.0
        %4258 = vmatprep.subr.mxu0 0.0
        %4259 = vmatpush1.msra.mxu0 0.0
        %4260 = vmatprep.subr.mxu0 0.0
        %4261 = vmatpush1.msra.mxu0 0.0
        %4262 = vmatprep.subr.mxu0 0.0
        %4263 = vmatpush1.msra.mxu0 0.0
        %4264 = vmatprep.subr.mxu0 0.0
        %4265 = vmatpush1.msra.mxu0 0.0
        %4266 = vmatprep.subr.mxu0 0.0
        %4267 = vmatpush1.msra.mxu0 0.0
        %4268 = vmatprep.subr.mxu0 0.0
        %4269 = vmatpush1.msra.mxu0 0.0
        %4270 = vmatprep.subr.mxu0 0.0
        %4271 = vmatpush1.msra.mxu0 0.0
        %4272 = vmatprep.subr.mxu0 0.0
        %4273 = vmatpush1.msra.mxu0 0.0
        %4274 = vmatprep.subr.mxu0 0.0
        %4275 = vmatpush1.msra.mxu0 0.0
        %4276 = vmatprep.subr.mxu0 0.0
        %4277 = vmatpush1.msra.mxu0 0.0
        %4278 = vmatprep.subr.mxu0 0.0
        %4279 = vmatpush1.msra.mxu0 0.0
        %4280 = vmatprep.subr.mxu0 0.0
        %4281 = vmatpush1.msra.mxu0 0.0
        %4282 = vmatprep.subr.mxu0 0.0
        %4283 = vmatpush1.msra.mxu0 0.0
        %4284 = vmatprep.subr.mxu0 0.0
        %4285 = vmatpush1.msra.mxu0 0.0
        %4286 = vmatprep.mubr.f32.mxu0 0.0
        %4287 = vmatmul.mubr.f32.gmra.mrb[0].mxu0 %v3229
        %v4288 = vpop.f32.mrb[0].mxu0
        %v4289 = vadd.f32 %v4220, %v4288
        %v4290 = vpop.f32.mrb[0].mxu0
        %4291 = vdwg.mxu0
        %v4292 = vmul.f32 %v4289, 0.5
        %v4293 = vmul.f32 %v4289, 0.70710677
        %v4294 = vand.u32 2147483647, %v4293
        %v4295 = vmul.f32 %v4294, 0.3275911
        %v4296 = vadd.f32 %v4295, 1.0
        %v4297 = vrcp.pop %v4296
        %v4298 = vmul.f32 1.0, %v4297
        %v4299 = vmul.f32 %v4298, 1.0614054
        %v4300 = vadd.f32 %v4299, -1.4531521
        %v4301 = vmul.f32 %v4300, %v4298
        %v4302 = vadd.f32 %v4301, 1.4214138
        %v4303 = vmul.f32 %v4302, %v4298
        %v4304 = vadd.f32 %v4303, -0.28449672
        %v4305 = vmul.f32 %v4304, %v4298
        %v4306 = vadd.f32 %v4305, 0.2548296
        %v4307 = vmul.f32 %v4306, %v4298
        %v4308 = vsub.f32 0.0, %v4294
        %v4309 = vmul.f32 %v4308, %v4294
        %v4310 = vmul.f32 %v4309, 1.442695
        %v4311 = vpow.pop %v4310
        %v4312 = vmul.f32 %v4307, %v4311
        %v4313 = vsub.f32 1.0, %v4312
        %vm4314 = vcmp.ge.f32.partialorder %v4293, 0.0
        %v4315 = vsub.f32 0.0, %v4313
        %v4316 = vsel %vm4314, %v4313, %v4315
        %v4317 = vadd.f32 %v4316, 1.0
        %v4318 = vmul.f32 %v4292, %v4317
        %4320 = vset.pattern.permute.xlu0 0
        %4321 = vperm.xlu0 %4320, %v4210
        %v4322 = vpop.permute.xlu0 %4321
        %v4324 = vmul.f32 %v4318, %v4322
        %v4325 = vadd.f32 %v4324, 0.0
        %s4326 = scalar_lea.vmem %s21, 32
        %v4327 = vld [vmem:[%s4326] sm:$0xff]
        %v4328 = vld [vmem:[%s4326 + $0x8] sm:$0xff]
        %v4329 = vld [vmem:[%s4326 + $0x10] sm:$0xff]
        %v4330 = vld [vmem:[%s4326 + $0x18] sm:$0xff]
        %s4331 = scalar_lea.vmem %s22, 1
        %v4332 = vld [vmem:[%s4331] sm:$0x1]
        %v4334 = vlaneseq
        %v4335 = vshrl.u32 %v4334, 7
        %v4336 = vsub.s32 0, %v4335
        %v4337 = vrot.slane %v4332, %v4336
        %4339 = vmatprep.subr.mxu0 0.0
        %4340 = vmatpush1.msra.mxu0 %v4327
        %4341 = vmatprep.subr.mxu0 0.0
        %4342 = vmatpush1.msra.mxu0 %v4328
        %4343 = vmatprep.subr.mxu0 0.0
        %4344 = vmatpush1.msra.mxu0 %v4329
        %4345 = vmatprep.subr.mxu0 0.0
        %4346 = vmatpush1.msra.mxu0 %v4330
        %4347 = vmatprep.subr.mxu0 0.0
        %4348 = vmatpush1.msra.mxu0 0.0
        %4349 = vmatprep.subr.mxu0 0.0
        %4350 = vmatpush1.msra.mxu0 0.0
        %4351 = vmatprep.subr.mxu0 0.0
        %4352 = vmatpush1.msra.mxu0 0.0
        %4353 = vmatprep.subr.mxu0 0.0
        %4354 = vmatpush1.msra.mxu0 0.0
        %4355 = vmatprep.subr.mxu0 0.0
        %4356 = vmatpush1.msra.mxu0 0.0
        %4357 = vmatprep.subr.mxu0 0.0
        %4358 = vmatpush1.msra.mxu0 0.0
        %4359 = vmatprep.subr.mxu0 0.0
        %4360 = vmatpush1.msra.mxu0 0.0
        %4361 = vmatprep.subr.mxu0 0.0
        %4362 = vmatpush1.msra.mxu0 0.0
        %4363 = vmatprep.subr.mxu0 0.0
        %4364 = vmatpush1.msra.mxu0 0.0
        %4365 = vmatprep.subr.mxu0 0.0
        %4366 = vmatpush1.msra.mxu0 0.0
        %4367 = vmatprep.subr.mxu0 0.0
        %4368 = vmatpush1.msra.mxu0 0.0
        %4369 = vmatprep.subr.mxu0 0.0
        %4370 = vmatpush1.msra.mxu0 0.0
        %4371 = vmatprep.subr.mxu0 0.0
        %4372 = vmatpush1.msra.mxu0 0.0
        %4373 = vmatprep.subr.mxu0 0.0
        %4374 = vmatpush1.msra.mxu0 0.0
        %4375 = vmatprep.subr.mxu0 0.0
        %4376 = vmatpush1.msra.mxu0 0.0
        %4377 = vmatprep.subr.mxu0 0.0
        %4378 = vmatpush1.msra.mxu0 0.0
        %4379 = vmatprep.subr.mxu0 0.0
        %4380 = vmatpush1.msra.mxu0 0.0
        %4381 = vmatprep.subr.mxu0 0.0
        %4382 = vmatpush1.msra.mxu0 0.0
        %4383 = vmatprep.subr.mxu0 0.0
        %4384 = vmatpush1.msra.mxu0 0.0
        %4385 = vmatprep.subr.mxu0 0.0
        %4386 = vmatpush1.msra.mxu0 0.0
        %4387 = vmatprep.subr.mxu0 0.0
        %4388 = vmatpush1.msra.mxu0 0.0
        %4389 = vmatprep.subr.mxu0 0.0
        %4390 = vmatpush1.msra.mxu0 0.0
        %4391 = vmatprep.subr.mxu0 0.0
        %4392 = vmatpush1.msra.mxu0 0.0
        %4393 = vmatprep.subr.mxu0 0.0
        %4394 = vmatpush1.msra.mxu0 0.0
        %4395 = vmatprep.subr.mxu0 0.0
        %4396 = vmatpush1.msra.mxu0 0.0
        %4397 = vmatprep.subr.mxu0 0.0
        %4398 = vmatpush1.msra.mxu0 0.0
        %4399 = vmatprep.subr.mxu0 0.0
        %4400 = vmatpush1.msra.mxu0 0.0
        %4401 = vmatprep.subr.mxu0 0.0
        %4402 = vmatpush1.msra.mxu0 0.0
        %4403 = vmatprep.mubr.f32.mxu0 0.0
        %4404 = vmatmul.mubr.f32.gmra.mrb[0].mxu0 %v3229
        %v4405 = vpop.f32.mrb[0].mxu0
        %v4406 = vadd.f32 %v4337, %v4405
        %v4407 = vpop.f32.mrb[0].mxu0
        %4408 = vdwg.mxu0
        %v4409 = vmul.f32 %v4406, 0.5
        %v4410 = vmul.f32 %v4406, 0.70710677
        %v4411 = vand.u32 2147483647, %v4410
        %v4412 = vmul.f32 %v4411, 0.3275911
        %v4413 = vadd.f32 %v4412, 1.0
        %v4414 = vrcp.pop %v4413
        %v4415 = vmul.f32 1.0, %v4414
        %v4416 = vmul.f32 %v4415, 1.0614054
        %v4417 = vadd.f32 %v4416, -1.4531521
        %v4418 = vmul.f32 %v4417, %v4415
        %v4419 = vadd.f32 %v4418, 1.4214138
        %v4420 = vmul.f32 %v4419, %v4415
        %v4421 = vadd.f32 %v4420, -0.28449672
        %v4422 = vmul.f32 %v4421, %v4415
        %v4423 = vadd.f32 %v4422, 0.2548296
        %v4424 = vmul.f32 %v4423, %v4415
        %v4425 = vsub.f32 0.0, %v4411
        %v4426 = vmul.f32 %v4425, %v4411
        %v4427 = vmul.f32 %v4426, 1.442695
        %v4428 = vpow.pop %v4427
        %v4429 = vmul.f32 %v4424, %v4428
        %v4430 = vsub.f32 1.0, %v4429
        %vm4431 = vcmp.ge.f32.partialorder %v4410, 0.0
        %v4432 = vsub.f32 0.0, %v4430
        %v4433 = vsel %vm4431, %v4430, %v4432
        %v4434 = vadd.f32 %v4433, 1.0
        %v4435 = vmul.f32 %v4409, %v4434
        %4436 = vset.pattern.permute.xlu0 1
        %4437 = vperm.xlu0 %4436, %v4210
        %v4438 = vpop.permute.xlu0 %4437
        %v4440 = vmul.f32 %v4435, %v4438
        %v4441 = vadd.f32 %v4325, %v4440
        %s4442 = scalar_lea.vmem %s21, 64
        %v4443 = vld [vmem:[%s4442] sm:$0xff]
        %v4444 = vld [vmem:[%s4442 + $0x8] sm:$0xff]
        %v4445 = vld [vmem:[%s4442 + $0x10] sm:$0xff]
        %v4446 = vld [vmem:[%s4442 + $0x18] sm:$0xff]
        %s4447 = scalar_lea.vmem %s22, 2
        %v4448 = vld [vmem:[%s4447] sm:$0x1]
        %v4450 = vlaneseq
        %v4451 = vshrl.u32 %v4450, 7
        %v4452 = vsub.s32 0, %v4451
        %v4453 = vrot.slane %v4448, %v4452
        %4455 = vmatprep.subr.mxu0 0.0
        %4456 = vmatpush1.msra.mxu0 %v4443
        %4457 = vmatprep.subr.mxu0 0.0
        %4458 = vmatpush1.msra.mxu0 %v4444
        %4459 = vmatprep.subr.mxu0 0.0
        %4460 = vmatpush1.msra.mxu0 %v4445
        %4461 = vmatprep.subr.mxu0 0.0
        %4462 = vmatpush1.msra.mxu0 %v4446
        %4463 = vmatprep.subr.mxu0 0.0
        %4464 = vmatpush1.msra.mxu0 0.0
        %4465 = vmatprep.subr.mxu0 0.0
        %4466 = vmatpush1.msra.mxu0 0.0
        %4467 = vmatprep.subr.mxu0 0.0
        %4468 = vmatpush1.msra.mxu0 0.0
        %4469 = vmatprep.subr.mxu0 0.0
        %4470 = vmatpush1.msra.mxu0 0.0
        %4471 = vmatprep.subr.mxu0 0.0
        %4472 = vmatpush1.msra.mxu0 0.0
        %4473 = vmatprep.subr.mxu0 0.0
        %4474 = vmatpush1.msra.mxu0 0.0
        %4475 = vmatprep.subr.mxu0 0.0
        %4476 = vmatpush1.msra.mxu0 0.0
        %4477 = vmatprep.subr.mxu0 0.0
        %4478 = vmatpush1.msra.mxu0 0.0
        %4479 = vmatprep.subr.mxu0 0.0
        %4480 = vmatpush1.msra.mxu0 0.0
        %4481 = vmatprep.subr.mxu0 0.0
        %4482 = vmatpush1.msra.mxu0 0.0
        %4483 = vmatprep.subr.mxu0 0.0
        %4484 = vmatpush1.msra.mxu0 0.0
        %4485 = vmatprep.subr.mxu0 0.0
        %4486 = vmatpush1.msra.mxu0 0.0
        %4487 = vmatprep.subr.mxu0 0.0
        %4488 = vmatpush1.msra.mxu0 0.0
        %4489 = vmatprep.subr.mxu0 0.0
        %4490 = vmatpush1.msra.mxu0 0.0
        %4491 = vmatprep.subr.mxu0 0.0
        %4492 = vmatpush1.msra.mxu0 0.0
        %4493 = vmatprep.subr.mxu0 0.0
        %4494 = vmatpush1.msra.mxu0 0.0
        %4495 = vmatprep.subr.mxu0 0.0
        %4496 = vmatpush1.msra.mxu0 0.0
        %4497 = vmatprep.subr.mxu0 0.0
        %4498 = vmatpush1.msra.mxu0 0.0
        %4499 = vmatprep.subr.mxu0 0.0
        %4500 = vmatpush1.msra.mxu0 0.0
        %4501 = vmatprep.subr.mxu0 0.0
        %4502 = vmatpush1.msra.mxu0 0.0
        %4503 = vmatprep.subr.mxu0 0.0
        %4504 = vmatpush1.msra.mxu0 0.0
        %4505 = vmatprep.subr.mxu0 0.0
        %4506 = vmatpush1.msra.mxu0 0.0
        %4507 = vmatprep.subr.mxu0 0.0
        %4508 = vmatpush1.msra.mxu0 0.0
        %4509 = vmatprep.subr.mxu0 0.0
        %4510 = vmatpush1.msra.mxu0 0.0
        %4511 = vmatprep.subr.mxu0 0.0
        %4512 = vmatpush1.msra.mxu0 0.0
        %4513 = vmatprep.subr.mxu0 0.0
        %4514 = vmatpush1.msra.mxu0 0.0
        %4515 = vmatprep.subr.mxu0 0.0
        %4516 = vmatpush1.msra.mxu0 0.0
        %4517 = vmatprep.subr.mxu0 0.0
        %4518 = vmatpush1.msra.mxu0 0.0
        %4519 = vmatprep.mubr.f32.mxu0 0.0
        %4520 = vmatmul.mubr.f32.gmra.mrb[0].mxu0 %v3229
        %v4521 = vpop.f32.mrb[0].mxu0
        %v4522 = vadd.f32 %v4453, %v4521
        %v4523 = vpop.f32.mrb[0].mxu0
        %4524 = vdwg.mxu0
        %v4525 = vmul.f32 %v4522, 0.5
        %v4526 = vmul.f32 %v4522, 0.70710677
        %v4527 = vand.u32 2147483647, %v4526
        %v4528 = vmul.f32 %v4527, 0.3275911
        %v4529 = vadd.f32 %v4528, 1.0
        %v4530 = vrcp.pop %v4529
        %v4531 = vmul.f32 1.0, %v4530
        %v4532 = vmul.f32 %v4531, 1.0614054
        %v4533 = vadd.f32 %v4532, -1.4531521
        %v4534 = vmul.f32 %v4533, %v4531
        %v4535 = vadd.f32 %v4534, 1.4214138
        %v4536 = vmul.f32 %v4535, %v4531
        %v4537 = vadd.f32 %v4536, -0.28449672
        %v4538 = vmul.f32 %v4537, %v4531
        %v4539 = vadd.f32 %v4538, 0.2548296
        %v4540 = vmul.f32 %v4539, %v4531
        %v4541 = vsub.f32 0.0, %v4527
        %v4542 = vmul.f32 %v4541, %v4527
        %v4543 = vmul.f32 %v4542, 1.442695
        %v4544 = vpow.pop %v4543
        %v4545 = vmul.f32 %v4540, %v4544
        %v4546 = vsub.f32 1.0, %v4545
        %vm4547 = vcmp.ge.f32.partialorder %v4526, 0.0
        %v4548 = vsub.f32 0.0, %v4546
        %v4549 = vsel %vm4547, %v4546, %v4548
        %v4550 = vadd.f32 %v4549, 1.0
        %v4551 = vmul.f32 %v4525, %v4550
        %4552 = vset.pattern.permute.xlu0 2
        %4553 = vperm.xlu0 %4552, %v4210
        %v4554 = vpop.permute.xlu0 %4553
        %v4556 = vmul.f32 %v4551, %v4554
        %v4557 = vadd.f32 %v4441, %v4556
        %v4558 = vmul.f32 %v2106, 0.2
        %v4559 = vmul.f32 %v4117, 0.2
        %v4560 = vadd.f32 %v4558, %v4559
        %v4561 = vmul.f32 %v4557, 0.2
        %v4562 = vadd.f32 %v4560, %v4561
        %v4563 = vmul.f32 %v3216, 0.4
        %v4564 = vadd.f32 %v4562, %v4563
        %v4565 = vld [vmem:[%s23] sm:$0xff]
        %v4566 = vld [vmem:[%s23 + $0x8] sm:$0xff]
        %v4567 = vld [vmem:[%s23 + $0x10] sm:$0xff]
        %v4568 = vld [vmem:[%s23 + $0x18] sm:$0xff]
        %v4569 = vld [vmem:[%s24] sm:$0x1]
        %v4571 = vlaneseq
        %v4572 = vshrl.u32 %v4571, 7
        %v4573 = vsub.s32 0, %v4572
        %v4574 = vrot.slane %v4569, %v4573
        %v4577 = vsel %vm993, %v4564, 0
        %4579 = vmatprep.subr.mxu0 0.0
        %4580 = vmatpush1.msra.mxu0 %v4565
        %4581 = vmatprep.subr.mxu0 0.0
        %4582 = vmatpush1.msra.mxu0 %v4566
        %4583 = vmatprep.subr.mxu0 0.0
        %4584 = vmatpush1.msra.mxu0 %v4567
        %4585 = vmatprep.subr.mxu0 0.0
        %4586 = vmatpush1.msra.mxu0 %v4568
        %4587 = vmatprep.subr.mxu0 0.0
        %4588 = vmatpush1.msra.mxu0 0.0
        %4589 = vmatprep.subr.mxu0 0.0
        %4590 = vmatpush1.msra.mxu0 0.0
        %4591 = vmatprep.subr.mxu0 0.0
        %4592 = vmatpush1.msra.mxu0 0.0
        %4593 = vmatprep.subr.mxu0 0.0
        %4594 = vmatpush1.msra.mxu0 0.0
        %4595 = vmatprep.subr.mxu0 0.0
        %4596 = vmatpush1.msra.mxu0 0.0
        %4597 = vmatprep.subr.mxu0 0.0
        %4598 = vmatpush1.msra.mxu0 0.0
        %4599 = vmatprep.subr.mxu0 0.0
        %4600 = vmatpush1.msra.mxu0 0.0
        %4601 = vmatprep.subr.mxu0 0.0
        %4602 = vmatpush1.msra.mxu0 0.0
        %4603 = vmatprep.subr.mxu0 0.0
        %4604 = vmatpush1.msra.mxu0 0.0
        %4605 = vmatprep.subr.mxu0 0.0
        %4606 = vmatpush1.msra.mxu0 0.0
        %4607 = vmatprep.subr.mxu0 0.0
        %4608 = vmatpush1.msra.mxu0 0.0
        %4609 = vmatprep.subr.mxu0 0.0
        %4610 = vmatpush1.msra.mxu0 0.0
        %4611 = vmatprep.subr.mxu0 0.0
        %4612 = vmatpush1.msra.mxu0 0.0
        %4613 = vmatprep.subr.mxu0 0.0
        %4614 = vmatpush1.msra.mxu0 0.0
        %4615 = vmatprep.subr.mxu0 0.0
        %4616 = vmatpush1.msra.mxu0 0.0
        %4617 = vmatprep.subr.mxu0 0.0
        %4618 = vmatpush1.msra.mxu0 0.0
        %4619 = vmatprep.subr.mxu0 0.0
        %4620 = vmatpush1.msra.mxu0 0.0
        %4621 = vmatprep.subr.mxu0 0.0
        %4622 = vmatpush1.msra.mxu0 0.0
        %4623 = vmatprep.subr.mxu0 0.0
        %4624 = vmatpush1.msra.mxu0 0.0
        %4625 = vmatprep.subr.mxu0 0.0
        %4626 = vmatpush1.msra.mxu0 0.0
        %4627 = vmatprep.subr.mxu0 0.0
        %4628 = vmatpush1.msra.mxu0 0.0
        %4629 = vmatprep.subr.mxu0 0.0
        %4630 = vmatpush1.msra.mxu0 0.0
        %4631 = vmatprep.subr.mxu0 0.0
        %4632 = vmatpush1.msra.mxu0 0.0
        %4633 = vmatprep.subr.mxu0 0.0
        %4634 = vmatpush1.msra.mxu0 0.0
        %4635 = vmatprep.subr.mxu0 0.0
        %4636 = vmatpush1.msra.mxu0 0.0
        %4637 = vmatprep.subr.mxu0 0.0
        %4638 = vmatpush1.msra.mxu0 0.0
        %4639 = vmatprep.subr.mxu0 0.0
        %4640 = vmatpush1.msra.mxu0 0.0
        %4641 = vmatprep.subr.mxu0 0.0
        %4642 = vmatpush1.msra.mxu0 0.0
        %4643 = vmatprep.mubr.f32.mxu0 0.0
        %4644 = vmatmul.mubr.f32.gmra.mrb[0].mxu0 %v4577
        %v4645 = vpop.f32.mrb[0].mxu0
        %v4646 = vadd.f32 %v4574, %v4645
        %v4647 = vpop.f32.mrb[0].mxu0
        %4648 = vdwg.mxu0
        %4649 = vst.msk [vmem:[%s979] sm:$0xff] %vm993, %v4646
        %4650 = vst.msk [vmem:[%s989] sm:$0xff] %vm4199, %v4210
        %s4651 = sand.u32 %s588, 1
        %s4652 = scalar_lea.sflag [#allocation4], %s4651
        %s4653 = sand.u32 %s588, 1
        %s4654 = smul.addr %s4653, 8
        %s4655 = scalar_lea.vmem [#allocation23], %s4654
        %p4656 = scmp.lt.s32.totalorder %s50, 1
        %s4657 = scalar_select %p4656, %s50, 1
        %s4658 = smul.addr %s4657, 8
        %s4659 = scalar_lea.vmem %s26, %s4658
        // Predicated region
        $region173: #{tpu_custom_call.1} parent=119 // pred_check
          %p4660 = pneg %p598
        $region174: #{tpu_custom_call.1} parent=119 // pred_check_branch
          %4662 = sbr.rel (%p4660) target = $region176
        $region175: #{tpu_custom_call.1} parent=119 // pred_region
          %s4664 = ssub.s32 128, 128
          %4665 = vsyncadd %s4652, %s4664
          %s4666 = smul.addr %s50, 128
          %s4667 = scalar_lea.hbm %s25, %s4666
          %s4669 = sshll.u32 %s4655, 4
          %s4670 = int_to_ptr.vmem [resolvable:$true] %s4669
          %4672 = dma.vmem_to_hbm [thread:$0]  %s4670, 128, %s4667, %s4652
        $region176: #{tpu_custom_call.1} parent=119 // pred_fallthru
          _
        // Predicated region
        $region177: #{tpu_custom_call.1} parent=119 // pred_check
          %p4673 = pneg %p624
        $region178: #{tpu_custom_call.1} parent=119 // pred_check_branch
          %4675 = sbr.rel (%p4673) target = $region180
        $region179: #{tpu_custom_call.1} parent=119 // pred_region
          _
        $region180: #{tpu_custom_call.1} parent=119 // pred_fallthru
          _
      $region120: #{tpu_custom_call.1} parent=5 // pred_fallthru
        _
      %p4676 = scmp.le.s32.totalorder 2, %s45
      // Predicated region
      $region181: #{tpu_custom_call.1} parent=5 // pred_check
        %p4677 = pneg %p4676
      $region182: #{tpu_custom_call.1} parent=5 // pred_check_branch
        %4679 = sbr.rel (%p4677) target = $region184
      $region183: #{tpu_custom_call.1} parent=5 // pred_region
        %s4680 = ssub.s32 %s45, 2
        // Predicated region
        $region185: #{tpu_custom_call.1} parent=183 // pred_check
          %p4681 = pneg %p604
        $region186: #{tpu_custom_call.1} parent=183 // pred_check_branch
          %4683 = sbr.rel (%p4681) target = $region188
        $region187: #{tpu_custom_call.1} parent=183 // pred_region
          %s4684 = sand.u32 %s589, 1
          %s4685 = scalar_lea.sflag [#allocation4], %s4684
          %s4686 = sand.u32 %s589, 1
          %s4687 = smul.addr %s4686, 8
          %s4688 = scalar_lea.vmem [#allocation23], %s4687
          %4689 = dma.done %s4685, 128
        $region188: #{tpu_custom_call.1} parent=183 // pred_fallthru
          _
        // Predicated region
        $region189: #{tpu_custom_call.1} parent=183 // pred_check
          %p4690 = pneg %p630
        $region190: #{tpu_custom_call.1} parent=183 // pred_check_branch
          %4692 = sbr.rel (%p4690) target = $region192
        $region191: #{tpu_custom_call.1} parent=183 // pred_region
          %p4693 = scmp.lt.s32.totalorder %s51, 1
          %s4694 = scalar_select %p4693, %s51, 1
          %s4695 = smul.addr %s4694, 8
          %s4696 = scalar_lea.vmem %s26, %s4695
        $region192: #{tpu_custom_call.1} parent=183 // pred_fallthru
          _
      $region184: #{tpu_custom_call.1} parent=5 // pred_fallthru
        _
    $region6: #{tpu_custom_call.1} parent=1 // loop_footer
      %s49 = sadd.s32 1, %s45
    $region7: #{tpu_custom_call.1} parent=1 // loop_footer_branch
      %44 = sbr.rel target = $region3
    $region8: #{tpu_custom_call.1} parent=1 // loop_exit
      _
    %4697 = vsyncpa [#allocation3], 1
    %s4698 = scalar_lea.sflag [#allocation3], 1
    %4699 = vsyncpa %s4698, 1
    %4700 = vsyncpa [#allocation6], 1
    %4701 = vsyncpa [#allocation9], 1
    %4702 = vsyncpa [#allocation12], 1
    %4703 = vsyncpa [#allocation15], 1
    %4704 = vsyncpa [#allocation18], 1
    %4705 = vsyncpa [#allocation21], 1
    %4706 = vsyncpa [#allocation4], 1
    %s4707 = scalar_lea.sflag [#allocation4], 1
    %4708 = vsyncpa %s4707, 1

</llo_original>
